<compile_context>
chip_gen: v7x
topology: tpu7x:2x2x1
jax: 0.10.0
libtpu: 0.0.40
codegen_flags: <defaults>
</compile_context>

<pallas_src>
import numpy as np

import jax
import jax.numpy as jnp
from jax.experimental import pallas as pl
from jax.experimental.pallas import tpu as pltpu

# ---- static geometry (CIFAR-sized input, required by fc1 = 36*32) ---------
H_IN, W_IN, C_IN = 32, 32, 3
K1, S1, C1 = 10, 2, 32
OH1 = (H_IN - K1) // S1 + 1            # 12
OW1 = (W_IN - K1) // S1 + 1            # 12
K2, C2 = 7, 32
OH2, OW2 = OH1 - K2 + 1, OW1 - K2 + 1  # 6, 6
N_OUT = 10
HALF_H = H_IN // 2                     # 16 (even/odd row split for stride 2)

LANES_X = W_IN * C_IN                  # 96   input rows:  lane = w*3  + c
LANES_H1 = OW1 * C1                    # 384  conv1 out:   lane = ow*32 + oc
LANES_H2 = OW2 * C2                    # 192  conv2 out:   lane = ow*32 + oc

N1_CHUNK = 128                         # conv1 output-lane chunk (vreg-resident acc)
N1_CHUNKS = LANES_H1 // N1_CHUNK       # 3

# B_TILE target: conv1 M = 12*16 = 192 MXU rows (good fill on 128/256-row MXUs)
# while the per-chunk f32 accumulator ([192,128] = 24 vregs) stays in registers.
B_TILE_TARGET = 16


def _pick_b_tile(B):
    """Sublane-aligned (multiple of 8) batch tile; keep >=2 grid steps when the
    batch allows so dimension_semantics=('parallel',) feeds both v7x cores."""
    if B >= 2 * B_TILE_TARGET:
        return B_TILE_TARGET
    half = -(-B // 2)
    return max(8, min(-(-half // 8) * 8, B_TILE_TARGET))


# ------------------------------ Pallas kernel ------------------------------
def _fused_cnn_kernel(x_ref, w1_ref, b1_ref, w2_ref, b2_ref, w3_ref, b3_ref,
                      o_ref, h1_ref, h2_ref):
    """B_TILE images per grid step; conv1+conv2+fc1 fully fused in VMEM.

    Activation layout everywhere: rows = oh*B_TILE + b (row-major, batch-minor),
    lanes = w*channels.  All sublane slice offsets are multiples of B_TILE
    (a multiple of 8), so slices never cross (8,128) tiles unaligned.
    """
    bt = o_ref.shape[0]                                   # B_TILE (static)

    # ---- conv1 + ReLU: 10 kernel-row matmuls, N chunked so acc stays in vregs
    for c in range(N1_CHUNKS):
        lo, hi = c * N1_CHUNK, (c + 1) * N1_CHUNK
        acc = None
        for di in range(K1):
            par, a = di % 2, di // 2                      # even/odd rows, offset
            lhs = x_ref[par, a * bt:(a + OH1) * bt, :]    # bf16 [12*bt, 96]
            p = jnp.dot(lhs, w1_ref[di, :, lo:hi],
                        preferred_element_type=jnp.float32)
            acc = p if acc is None else acc + p
        h1_ref[:, lo:hi] = jnp.maximum(acc + b1_ref[:, lo:hi],
                                       0.0).astype(jnp.bfloat16)

    # ---- conv2 + ReLU: 7 kernel-row matmuls off the bf16 h1 scratch ----
    acc2 = None
    for di in range(K2):
        lhs = h1_ref[di * bt:(di + OH2) * bt, :]          # bf16 [6*bt, 384]
        p = jnp.dot(lhs, w2_ref[di], preferred_element_type=jnp.float32)
        acc2 = p if acc2 is None else acc2 + p
    h2_ref[...] = jnp.maximum(acc2 + b2_ref[...], 0.0).astype(jnp.bfloat16)

    # ---- fc1: 6 row-matmuls (one per conv2 output row), accumulated in vregs
    acc3 = None
    for oh in range(OH2):
        lhs = h2_ref[oh * bt:(oh + 1) * bt, :]            # bf16 [bt, 192]
        p = jnp.dot(lhs, w3_ref[oh], preferred_element_type=jnp.float32)
        acc3 = p if acc3 is None else acc3 + p
    o_ref[...] = (acc3 + b3_ref[...]).astype(o_ref.dtype)


# --------------------------- one-time weight prep ---------------------------
def prepare_params(params):
    """Pre-lay-out all weights for the fused kernel (done once, host-side)."""
    w1 = np.asarray(params["w1"], np.float32)   # [32, 3, 10, 10]  OIHW
    w2 = np.asarray(params["w2"], np.float32)   # [32, 32, 7, 7]
    w3 = np.asarray(params["w3"], np.float32)   # [10, 1152]
    b1 = np.asarray(params["b1"], np.float32)
    b2 = np.asarray(params["b2"], np.float32)
    b3 = np.asarray(params["b3"], np.float32)

    # conv1: one [96, 384] slab per kernel row di; covers all (dj, c) taps.
    w1big = np.zeros((K1, LANES_X, LANES_H1), np.float32)
    for di in range(K1):
        for dj in range(K1):
            blk = w1[:, :, di, dj].T                       # [c=3, oc=32]
            for ow in range(OW1):
                w_in = S1 * ow + dj                        # 0..31
                w1big[di, w_in * C_IN:(w_in + 1) * C_IN,
                      ow * C1:(ow + 1) * C1] = blk
    b1big = np.tile(b1, OW1)[None, :]                      # [1, 384]

    # conv2: one [384, 192] slab per kernel row di.
    w2big = np.zeros((K2, LANES_H1, LANES_H2), np.float32)
    for di in range(K2):
        for dj in range(K2):
            blk = w2[:, :, di, dj].T                       # [c=32, oc=32]
            for ow in range(OW2):
                w_in = ow + dj                             # 0..11
                w2big[di, w_in * C1:(w_in + 1) * C1,
                      ow * C2:(ow + 1) * C2] = blk
    b2big = np.tile(b2, OW2)[None, :]                      # [1, 192]

    # fc1: permute columns from torch C-major flatten (c*36 + oh*6 + ow)
    # into the kernel's (oh, ow*32 + c) activation layout; one [192,10] per oh.
    w3big = np.zeros((OH2, LANES_H2, N_OUT), np.float32)
    for oh in range(OH2):
        for ow in range(OW2):
            for c in range(C2):
                w3big[oh, ow * C2 + c, :] = w3[:, c * (OH2 * OW2) + oh * OW2 + ow]
    b3r = b3[None, :]                                      # [1, 10]

    return {
        "w1": jnp.asarray(w1big, jnp.bfloat16),
        "b1": jnp.asarray(b1big, jnp.float32),
        "w2": jnp.asarray(w2big, jnp.bfloat16),
        "b2": jnp.asarray(b2big, jnp.float32),
        "w3": jnp.asarray(w3big, jnp.bfloat16),
        "b3": jnp.asarray(b3r, jnp.float32),
    }


# -------------------------------- forward -----------------------------------
def fused_forward(prep, x):
    """x: [B, 3, 32, 32] (NCHW, PyTorch convention) -> [B, 10]."""
    B = x.shape[0]
    bt = _pick_b_tile(B)
    n_blk = pl.cdiv(B, bt)
    Bp = n_blk * bt

    # One-time relayout: NCHW -> NHWC rows flattened to w*C lanes, cast to bf16
    # (halves the per-step DMA), split into even/odd rows so the stride-2 conv1
    # only needs contiguous row slices, then regroup halfrow-major/batch-minor
    # so the batch stacks contiguously into the MXU M dimension in-kernel.
    x_rows = jnp.transpose(x, (0, 2, 3, 1)).astype(jnp.bfloat16)
    x_rows = x_rows.reshape(B, H_IN, LANES_X)                    # [B, 32, 96]
    if Bp != B:
        x_rows = jnp.pad(x_rows, ((0, Bp - B), (0, 0), (0, 0)))
    xp = jnp.stack([x_rows[:, 0::2], x_rows[:, 1::2]], axis=1)   # [Bp,2,16,96]
    xp = xp.reshape(n_blk, bt, 2, HALF_H, LANES_X)
    xp = jnp.transpose(xp, (0, 2, 3, 1, 4))                      # [nb,2,16,bt,96]
    xp = xp.reshape(n_blk, 2, HALF_H * bt, LANES_X)              # one DMA/step

    out = pl.pallas_call(
        _fused_cnn_kernel,
        out_shape=jax.ShapeDtypeStruct((Bp, N_OUT), jnp.float32),
        grid=(n_blk,),
        in_specs=[
            # packed even/odd input rows, B_TILE images per block
            pl.BlockSpec((None, 2, HALF_H * bt, LANES_X), lambda g: (g, 0, 0, 0)),
            # weights/biases: constant block index -> DMA'd once, stay resident
            pl.BlockSpec((K1, LANES_X, LANES_H1), lambda g: (0, 0, 0)),
            pl.BlockSpec((1, LANES_H1), lambda g: (0, 0)),
            pl.BlockSpec((K2, LANES_H1, LANES_H2), lambda g: (0, 0, 0)),
            pl.BlockSpec((1, LANES_H2), lambda g: (0, 0)),
            pl.BlockSpec((OH2, LANES_H2, N_OUT), lambda g: (0, 0, 0)),
            pl.BlockSpec((1, N_OUT), lambda g: (0, 0)),
        ],
        out_specs=pl.BlockSpec((bt, N_OUT), lambda g: (g, 0)),
        scratch_shapes=[
            pltpu.VMEM((OH1 * bt, LANES_H1), jnp.bfloat16),   # h1 (conv2 LHS)
            pltpu.VMEM((OH2 * bt, LANES_H2), jnp.bfloat16),   # h2 (fc1 LHS)
        ],
        compiler_params=pltpu.CompilerParams(
            dimension_semantics=("parallel",)),   # batch tiles shard across TCs
    )(xp, prep["w1"], prep["b1"], prep["w2"], prep["b2"],
      prep["w3"], prep["b3"])
    return out[:B]


forward = jax.jit(fused_forward)


# ------------------------------ init & reference ----------------------------
def init_params(key):
    k1, k2, k3, k4, k5, k6 = jax.random.split(key, 6)
    p = {}
    p["w1"] = jax.random.normal(k1, (32, 3, 10, 10), jnp.float32) / jnp.sqrt(3.0 * 100)
    p["b1"] = jax.random.normal(k2, (32,), jnp.float32) * 0.01
    p["w2"] = jax.random.normal(k3, (32, 32, 7, 7), jnp.float32) / jnp.sqrt(32.0 * 49)
    p["b2"] = jax.random.normal(k4, (32,), jnp.float32) * 0.01
    p["w3"] = jax.random.normal(k5, (10, 36 * 32), jnp.float32) / jnp.sqrt(36.0 * 32)
    p["b3"] = jax.random.normal(k6, (10,), jnp.float32) * 0.01
    return p


def forward_ref(params, x):
    """Pure-JAX f32 reference matching the PyTorch module."""
    dn = ("NCHW", "OIHW", "NCHW")
    h = jax.lax.conv_general_dilated(x, params["w1"], (2, 2), "VALID",
                                     dimension_numbers=dn)
    h = jax.nn.relu(h + params["b1"][None, :, None, None])
    h = jax.lax.conv_general_dilated(h, params["w2"], (1, 1), "VALID",
                                     dimension_numbers=dn)
    h = jax.nn.relu(h + params["b2"][None, :, None, None])
    h = h.reshape(h.shape[0], -1)
    return h @ params["w3"].T + params["b3"]


if __name__ == "__main__":
    key = jax.random.PRNGKey(0)
    pkey, xkey = jax.random.split(key)
    params = init_params(pkey)
    prep = prepare_params(params)          # one-time weight layout, not per-call

    # fc1 (36*32 = 32ch * 6*6 spatial) requires 32x32 inputs; batch kept small.
    x = jax.random.normal(xkey, (2, 3, 32, 32), jnp.float32)

    out = jax.block_until_ready(forward(prep, x))
    ref = forward_ref(params, x)

    assert out.shape == (2, 10), out.shape
    # bf16 MXU operands (f32 accumulation) vs pure-f32 reference -> loose tol.
    max_err = float(jnp.max(jnp.abs(out - ref)))
    assert jnp.allclose(out, ref, atol=5e-2, rtol=5e-2), max_err
    print("KERNEL_OK")
</pallas_src>

<mosaic_0001>
module attributes {stable_mosaic.version = 11 : i64} {
  func.func @_fused_cnn_kernel(%arg0: i32, %arg1: memref<1x2x128x96xbf16, #tpu.memory_space<vmem>>, %arg2: memref<10x96x384xbf16, #tpu.memory_space<vmem>>, %arg3: memref<1x384xf32, #tpu.memory_space<vmem>>, %arg4: memref<7x384x192xbf16, #tpu.memory_space<vmem>>, %arg5: memref<1x192xf32, #tpu.memory_space<vmem>>, %arg6: memref<6x192x10xbf16, #tpu.memory_space<vmem>>, %arg7: memref<1x10xf32, #tpu.memory_space<vmem>>, %arg8: memref<8x10xf32, #tpu.memory_space<vmem>>, %arg9: memref<96x384xbf16, #tpu.memory_space<vmem>>, %arg10: memref<48x192xbf16, #tpu.memory_space<vmem>>) attributes {dimension_semantics = [#tpu.dimension_semantics<parallel>], iteration_bounds = array<i64: 1>, scalar_prefetch = 0 : i64, scratch_operands = 2 : i64, tpu.core_type = #tpu.core_type<tc>, window_params = [{transform_indices = @transform_0, window_bounds = array<i64: 1, 2, 128, 96>}, {pipeline_mode = #tpu.pipeline_mode<synchronous>, transform_indices = @transform_1, window_bounds = array<i64: 10, 96, 384>}, {pipeline_mode = #tpu.pipeline_mode<synchronous>, transform_indices = @transform_2, window_bounds = array<i64: 1, 384>}, {pipeline_mode = #tpu.pipeline_mode<synchronous>, transform_indices = @transform_3, window_bounds = array<i64: 7, 384, 192>}, {pipeline_mode = #tpu.pipeline_mode<synchronous>, transform_indices = @transform_4, window_bounds = array<i64: 1, 192>}, {pipeline_mode = #tpu.pipeline_mode<synchronous>, transform_indices = @transform_5, window_bounds = array<i64: 6, 192, 10>}, {pipeline_mode = #tpu.pipeline_mode<synchronous>, transform_indices = @transform_6, window_bounds = array<i64: 1, 10>}, {transform_indices = @transform_7, window_bounds = array<i64: 8, 10>}]} {
    %c0 = arith.constant 0 : index
    %c0_0 = arith.constant 0 : index
    %c0_1 = arith.constant 0 : index
    %c0_2 = arith.constant 0 : index
    %0 = vector.load %arg1[%c0, %c0_0, %c0_1, %c0_2] : memref<1x2x128x96xbf16, #tpu.memory_space<vmem>>, vector<1x1x96x96xbf16>
    %1 = vector.shape_cast %0 : vector<1x1x96x96xbf16> to vector<96x96xbf16>
    %c0_3 = arith.constant 0 : index
    %c0_4 = arith.constant 0 : index
    %c0_5 = arith.constant 0 : index
    %2 = vector.load %arg2[%c0_3, %c0_4, %c0_5] : memref<10x96x384xbf16, #tpu.memory_space<vmem>>, vector<1x96x128xbf16>
    %3 = vector.shape_cast %2 : vector<1x96x128xbf16> to vector<96x128xbf16>
    %cst = arith.constant dense<0.000000e+00> : vector<96x128xf32>
    %4 = tpu.matmul %1, %3, %cst {dimension_numbers = #tpu.dot_dimension_numbers<[1], [0], [0], [1], [0, 0, 1, 1], [], []>} : vector<96x96xbf16>, vector<96x128xbf16>, vector<96x128xf32> -> vector<96x128xf32>
    %c0_6 = arith.constant 0 : index
    %c1 = arith.constant 1 : index
    %c0_7 = arith.constant 0 : index
    %c0_8 = arith.constant 0 : index
    %5 = vector.load %arg1[%c0_6, %c1, %c0_7, %c0_8] : memref<1x2x128x96xbf16, #tpu.memory_space<vmem>>, vector<1x1x96x96xbf16>
    %6 = vector.shape_cast %5 : vector<1x1x96x96xbf16> to vector<96x96xbf16>
    %c1_9 = arith.constant 1 : index
    %c0_10 = arith.constant 0 : index
    %c0_11 = arith.constant 0 : index
    %7 = vector.load %arg2[%c1_9, %c0_10, %c0_11] : memref<10x96x384xbf16, #tpu.memory_space<vmem>>, vector<1x96x128xbf16>
    %8 = vector.shape_cast %7 : vector<1x96x128xbf16> to vector<96x128xbf16>
    %cst_12 = arith.constant dense<0.000000e+00> : vector<96x128xf32>
    %9 = tpu.matmul %6, %8, %cst_12 {dimension_numbers = #tpu.dot_dimension_numbers<[1], [0], [0], [1], [0, 0, 1, 1], [], []>} : vector<96x96xbf16>, vector<96x128xbf16>, vector<96x128xf32> -> vector<96x128xf32>
    %10 = arith.addf %4, %9 : vector<96x128xf32>
    %c0_13 = arith.constant 0 : index
    %c0_14 = arith.constant 0 : index
    %c8 = arith.constant 8 : index
    %c0_15 = arith.constant 0 : index
    %11 = vector.load %arg1[%c0_13, %c0_14, %c8, %c0_15] : memref<1x2x128x96xbf16, #tpu.memory_space<vmem>>, vector<1x1x96x96xbf16>
    %12 = vector.shape_cast %11 : vector<1x1x96x96xbf16> to vector<96x96xbf16>
    %c2 = arith.constant 2 : index
    %c0_16 = arith.constant 0 : index
    %c0_17 = arith.constant 0 : index
    %13 = vector.load %arg2[%c2, %c0_16, %c0_17] : memref<10x96x384xbf16, #tpu.memory_space<vmem>>, vector<1x96x128xbf16>
    %14 = vector.shape_cast %13 : vector<1x96x128xbf16> to vector<96x128xbf16>
    %cst_18 = arith.constant dense<0.000000e+00> : vector<96x128xf32>
    %15 = tpu.matmul %12, %14, %cst_18 {dimension_numbers = #tpu.dot_dimension_numbers<[1], [0], [0], [1], [0, 0, 1, 1], [], []>} : vector<96x96xbf16>, vector<96x128xbf16>, vector<96x128xf32> -> vector<96x128xf32>
    %16 = arith.addf %10, %15 : vector<96x128xf32>
    %c0_19 = arith.constant 0 : index
    %c1_20 = arith.constant 1 : index
    %c8_21 = arith.constant 8 : index
    %c0_22 = arith.constant 0 : index
    %17 = vector.load %arg1[%c0_19, %c1_20, %c8_21, %c0_22] : memref<1x2x128x96xbf16, #tpu.memory_space<vmem>>, vector<1x1x96x96xbf16>
    %18 = vector.shape_cast %17 : vector<1x1x96x96xbf16> to vector<96x96xbf16>
    %c3 = arith.constant 3 : index
    %c0_23 = arith.constant 0 : index
    %c0_24 = arith.constant 0 : index
    %19 = vector.load %arg2[%c3, %c0_23, %c0_24] : memref<10x96x384xbf16, #tpu.memory_space<vmem>>, vector<1x96x128xbf16>
    %20 = vector.shape_cast %19 : vector<1x96x128xbf16> to vector<96x128xbf16>
    %cst_25 = arith.constant dense<0.000000e+00> : vector<96x128xf32>
    %21 = tpu.matmul %18, %20, %cst_25 {dimension_numbers = #tpu.dot_dimension_numbers<[1], [0], [0], [1], [0, 0, 1, 1], [], []>} : vector<96x96xbf16>, vector<96x128xbf16>, vector<96x128xf32> -> vector<96x128xf32>
    %22 = arith.addf %16, %21 : vector<96x128xf32>
    %c0_26 = arith.constant 0 : index
    %c0_27 = arith.constant 0 : index
    %c16 = arith.constant 16 : index
    %c0_28 = arith.constant 0 : index
    %23 = vector.load %arg1[%c0_26, %c0_27, %c16, %c0_28] : memref<1x2x128x96xbf16, #tpu.memory_space<vmem>>, vector<1x1x96x96xbf16>
    %24 = vector.shape_cast %23 : vector<1x1x96x96xbf16> to vector<96x96xbf16>
    %c4 = arith.constant 4 : index
    %c0_29 = arith.constant 0 : index
    %c0_30 = arith.constant 0 : index
    %25 = vector.load %arg2[%c4, %c0_29, %c0_30] : memref<10x96x384xbf16, #tpu.memory_space<vmem>>, vector<1x96x128xbf16>
    %26 = vector.shape_cast %25 : vector<1x96x128xbf16> to vector<96x128xbf16>
    %cst_31 = arith.constant dense<0.000000e+00> : vector<96x128xf32>
    %27 = tpu.matmul %24, %26, %cst_31 {dimension_numbers = #tpu.dot_dimension_numbers<[1], [0], [0], [1], [0, 0, 1, 1], [], []>} : vector<96x96xbf16>, vector<96x128xbf16>, vector<96x128xf32> -> vector<96x128xf32>
    %28 = arith.addf %22, %27 : vector<96x128xf32>
    %c0_32 = arith.constant 0 : index
    %c1_33 = arith.constant 1 : index
    %c16_34 = arith.constant 16 : index
    %c0_35 = arith.constant 0 : index
    %29 = vector.load %arg1[%c0_32, %c1_33, %c16_34, %c0_35] : memref<1x2x128x96xbf16, #tpu.memory_space<vmem>>, vector<1x1x96x96xbf16>
    %30 = vector.shape_cast %29 : vector<1x1x96x96xbf16> to vector<96x96xbf16>
    %c5 = arith.constant 5 : index
    %c0_36 = arith.constant 0 : index
    %c0_37 = arith.constant 0 : index
    %31 = vector.load %arg2[%c5, %c0_36, %c0_37] : memref<10x96x384xbf16, #tpu.memory_space<vmem>>, vector<1x96x128xbf16>
    %32 = vector.shape_cast %31 : vector<1x96x128xbf16> to vector<96x128xbf16>
    %cst_38 = arith.constant dense<0.000000e+00> : vector<96x128xf32>
    %33 = tpu.matmul %30, %32, %cst_38 {dimension_numbers = #tpu.dot_dimension_numbers<[1], [0], [0], [1], [0, 0, 1, 1], [], []>} : vector<96x96xbf16>, vector<96x128xbf16>, vector<96x128xf32> -> vector<96x128xf32>
    %34 = arith.addf %28, %33 : vector<96x128xf32>
    %c0_39 = arith.constant 0 : index
    %c0_40 = arith.constant 0 : index
    %c24 = arith.constant 24 : index
    %c0_41 = arith.constant 0 : index
    %35 = vector.load %arg1[%c0_39, %c0_40, %c24, %c0_41] : memref<1x2x128x96xbf16, #tpu.memory_space<vmem>>, vector<1x1x96x96xbf16>
    %36 = vector.shape_cast %35 : vector<1x1x96x96xbf16> to vector<96x96xbf16>
    %c6 = arith.constant 6 : index
    %c0_42 = arith.constant 0 : index
    %c0_43 = arith.constant 0 : index
    %37 = vector.load %arg2[%c6, %c0_42, %c0_43] : memref<10x96x384xbf16, #tpu.memory_space<vmem>>, vector<1x96x128xbf16>
    %38 = vector.shape_cast %37 : vector<1x96x128xbf16> to vector<96x128xbf16>
    %cst_44 = arith.constant dense<0.000000e+00> : vector<96x128xf32>
    %39 = tpu.matmul %36, %38, %cst_44 {dimension_numbers = #tpu.dot_dimension_numbers<[1], [0], [0], [1], [0, 0, 1, 1], [], []>} : vector<96x96xbf16>, vector<96x128xbf16>, vector<96x128xf32> -> vector<96x128xf32>
    %40 = arith.addf %34, %39 : vector<96x128xf32>
    %c0_45 = arith.constant 0 : index
    %c1_46 = arith.constant 1 : index
    %c24_47 = arith.constant 24 : index
    %c0_48 = arith.constant 0 : index
    %41 = vector.load %arg1[%c0_45, %c1_46, %c24_47, %c0_48] : memref<1x2x128x96xbf16, #tpu.memory_space<vmem>>, vector<1x1x96x96xbf16>
    %42 = vector.shape_cast %41 : vector<1x1x96x96xbf16> to vector<96x96xbf16>
    %c7 = arith.constant 7 : index
    %c0_49 = arith.constant 0 : index
    %c0_50 = arith.constant 0 : index
    %43 = vector.load %arg2[%c7, %c0_49, %c0_50] : memref<10x96x384xbf16, #tpu.memory_space<vmem>>, vector<1x96x128xbf16>
    %44 = vector.shape_cast %43 : vector<1x96x128xbf16> to vector<96x128xbf16>
    %cst_51 = arith.constant dense<0.000000e+00> : vector<96x128xf32>
    %45 = tpu.matmul %42, %44, %cst_51 {dimension_numbers = #tpu.dot_dimension_numbers<[1], [0], [0], [1], [0, 0, 1, 1], [], []>} : vector<96x96xbf16>, vector<96x128xbf16>, vector<96x128xf32> -> vector<96x128xf32>
    %46 = arith.addf %40, %45 : vector<96x128xf32>
    %c0_52 = arith.constant 0 : index
    %c0_53 = arith.constant 0 : index
    %c32 = arith.constant 32 : index
    %c0_54 = arith.constant 0 : index
    %47 = vector.load %arg1[%c0_52, %c0_53, %c32, %c0_54] : memref<1x2x128x96xbf16, #tpu.memory_space<vmem>>, vector<1x1x96x96xbf16>
    %48 = vector.shape_cast %47 : vector<1x1x96x96xbf16> to vector<96x96xbf16>
    %c8_55 = arith.constant 8 : index
    %c0_56 = arith.constant 0 : index
    %c0_57 = arith.constant 0 : index
    %49 = vector.load %arg2[%c8_55, %c0_56, %c0_57] : memref<10x96x384xbf16, #tpu.memory_space<vmem>>, vector<1x96x128xbf16>
    %50 = vector.shape_cast %49 : vector<1x96x128xbf16> to vector<96x128xbf16>
    %cst_58 = arith.constant dense<0.000000e+00> : vector<96x128xf32>
    %51 = tpu.matmul %48, %50, %cst_58 {dimension_numbers = #tpu.dot_dimension_numbers<[1], [0], [0], [1], [0, 0, 1, 1], [], []>} : vector<96x96xbf16>, vector<96x128xbf16>, vector<96x128xf32> -> vector<96x128xf32>
    %52 = arith.addf %46, %51 : vector<96x128xf32>
    %c0_59 = arith.constant 0 : index
    %c1_60 = arith.constant 1 : index
    %c32_61 = arith.constant 32 : index
    %c0_62 = arith.constant 0 : index
    %53 = vector.load %arg1[%c0_59, %c1_60, %c32_61, %c0_62] : memref<1x2x128x96xbf16, #tpu.memory_space<vmem>>, vector<1x1x96x96xbf16>
    %54 = vector.shape_cast %53 : vector<1x1x96x96xbf16> to vector<96x96xbf16>
    %c9 = arith.constant 9 : index
    %c0_63 = arith.constant 0 : index
    %c0_64 = arith.constant 0 : index
    %55 = vector.load %arg2[%c9, %c0_63, %c0_64] : memref<10x96x384xbf16, #tpu.memory_space<vmem>>, vector<1x96x128xbf16>
    %56 = vector.shape_cast %55 : vector<1x96x128xbf16> to vector<96x128xbf16>
    %cst_65 = arith.constant dense<0.000000e+00> : vector<96x128xf32>
    %57 = tpu.matmul %54, %56, %cst_65 {dimension_numbers = #tpu.dot_dimension_numbers<[1], [0], [0], [1], [0, 0, 1, 1], [], []>} : vector<96x96xbf16>, vector<96x128xbf16>, vector<96x128xf32> -> vector<96x128xf32>
    %58 = arith.addf %52, %57 : vector<96x128xf32>
    %c0_66 = arith.constant 0 : index
    %c0_67 = arith.constant 0 : index
    %59 = vector.load %arg3[%c0_66, %c0_67] : memref<1x384xf32, #tpu.memory_space<vmem>>, vector<1x128xf32>
    %60 = vector.broadcast %59 : vector<1x128xf32> to vector<96x128xf32>
    %61 = arith.addf %58, %60 : vector<96x128xf32>
    %cst_68 = arith.constant 0.000000e+00 : f32
    %62 = vector.broadcast %cst_68 : f32 to vector<96x128xf32>
    %63 = arith.maximumf %61, %62 : vector<96x128xf32>
    %64 = arith.truncf %63 : vector<96x128xf32> to vector<96x128xbf16>
    %c0_69 = arith.constant 0 : index
    %c0_70 = arith.constant 0 : index
    %65 = vector.load %arg9[%c0_69, %c0_70] : memref<96x384xbf16, #tpu.memory_space<vmem>>, vector<96x128xbf16>
    tpu.vector_store %arg9[%c0_69, %c0_70], %64 {strides = array<i32>} : memref<96x384xbf16, #tpu.memory_space<vmem>>, vector<96x128xbf16>,
    %c0_71 = arith.constant 0 : index
    %c0_72 = arith.constant 0 : index
    %c0_73 = arith.constant 0 : index
    %c0_74 = arith.constant 0 : index
    %66 = vector.load %arg1[%c0_71, %c0_72, %c0_73, %c0_74] : memref<1x2x128x96xbf16, #tpu.memory_space<vmem>>, vector<1x1x96x96xbf16>
    %67 = vector.shape_cast %66 : vector<1x1x96x96xbf16> to vector<96x96xbf16>
    %c0_75 = arith.constant 0 : index
    %c0_76 = arith.constant 0 : index
    %c128 = arith.constant 128 : index
    %68 = vector.load %arg2[%c0_75, %c0_76, %c128] : memref<10x96x384xbf16, #tpu.memory_space<vmem>>, vector<1x96x128xbf16>
    %69 = vector.shape_cast %68 : vector<1x96x128xbf16> to vector<96x128xbf16>
    %cst_77 = arith.constant dense<0.000000e+00> : vector<96x128xf32>
    %70 = tpu.matmul %67, %69, %cst_77 {dimension_numbers = #tpu.dot_dimension_numbers<[1], [0], [0], [1], [0, 0, 1, 1], [], []>} : vector<96x96xbf16>, vector<96x128xbf16>, vector<96x128xf32> -> vector<96x128xf32>
    %c0_78 = arith.constant 0 : index
    %c1_79 = arith.constant 1 : index
    %c0_80 = arith.constant 0 : index
    %c0_81 = arith.constant 0 : index
    %71 = vector.load %arg1[%c0_78, %c1_79, %c0_80, %c0_81] : memref<1x2x128x96xbf16, #tpu.memory_space<vmem>>, vector<1x1x96x96xbf16>
    %72 = vector.shape_cast %71 : vector<1x1x96x96xbf16> to vector<96x96xbf16>
    %c1_82 = arith.constant 1 : index
    %c0_83 = arith.constant 0 : index
    %c128_84 = arith.constant 128 : index
    %73 = vector.load %arg2[%c1_82, %c0_83, %c128_84] : memref<10x96x384xbf16, #tpu.memory_space<vmem>>, vector<1x96x128xbf16>
    %74 = vector.shape_cast %73 : vector<1x96x128xbf16> to vector<96x128xbf16>
    %cst_85 = arith.constant dense<0.000000e+00> : vector<96x128xf32>
    %75 = tpu.matmul %72, %74, %cst_85 {dimension_numbers = #tpu.dot_dimension_numbers<[1], [0], [0], [1], [0, 0, 1, 1], [], []>} : vector<96x96xbf16>, vector<96x128xbf16>, vector<96x128xf32> -> vector<96x128xf32>
    %76 = arith.addf %70, %75 : vector<96x128xf32>
    %c0_86 = arith.constant 0 : index
    %c0_87 = arith.constant 0 : index
    %c8_88 = arith.constant 8 : index
    %c0_89 = arith.constant 0 : index
    %77 = vector.load %arg1[%c0_86, %c0_87, %c8_88, %c0_89] : memref<1x2x128x96xbf16, #tpu.memory_space<vmem>>, vector<1x1x96x96xbf16>
    %78 = vector.shape_cast %77 : vector<1x1x96x96xbf16> to vector<96x96xbf16>
    %c2_90 = arith.constant 2 : index
    %c0_91 = arith.constant 0 : index
    %c128_92 = arith.constant 128 : index
    %79 = vector.load %arg2[%c2_90, %c0_91, %c128_92] : memref<10x96x384xbf16, #tpu.memory_space<vmem>>, vector<1x96x128xbf16>
    %80 = vector.shape_cast %79 : vector<1x96x128xbf16> to vector<96x128xbf16>
    %cst_93 = arith.constant dense<0.000000e+00> : vector<96x128xf32>
    %81 = tpu.matmul %78, %80, %cst_93 {dimension_numbers = #tpu.dot_dimension_numbers<[1], [0], [0], [1], [0, 0, 1, 1], [], []>} : vector<96x96xbf16>, vector<96x128xbf16>, vector<96x128xf32> -> vector<96x128xf32>
    %82 = arith.addf %76, %81 : vector<96x128xf32>
    %c0_94 = arith.constant 0 : index
    %c1_95 = arith.constant 1 : index
    %c8_96 = arith.constant 8 : index
    %c0_97 = arith.constant 0 : index
    %83 = vector.load %arg1[%c0_94, %c1_95, %c8_96, %c0_97] : memref<1x2x128x96xbf16, #tpu.memory_space<vmem>>, vector<1x1x96x96xbf16>
    %84 = vector.shape_cast %83 : vector<1x1x96x96xbf16> to vector<96x96xbf16>
    %c3_98 = arith.constant 3 : index
    %c0_99 = arith.constant 0 : index
    %c128_100 = arith.constant 128 : index
    %85 = vector.load %arg2[%c3_98, %c0_99, %c128_100] : memref<10x96x384xbf16, #tpu.memory_space<vmem>>, vector<1x96x128xbf16>
    %86 = vector.shape_cast %85 : vector<1x96x128xbf16> to vector<96x128xbf16>
    %cst_101 = arith.constant dense<0.000000e+00> : vector<96x128xf32>
    %87 = tpu.matmul %84, %86, %cst_101 {dimension_numbers = #tpu.dot_dimension_numbers<[1], [0], [0], [1], [0, 0, 1, 1], [], []>} : vector<96x96xbf16>, vector<96x128xbf16>, vector<96x128xf32> -> vector<96x128xf32>
    %88 = arith.addf %82, %87 : vector<96x128xf32>
    %c0_102 = arith.constant 0 : index
    %c0_103 = arith.constant 0 : index
    %c16_104 = arith.constant 16 : index
    %c0_105 = arith.constant 0 : index
    %89 = vector.load %arg1[%c0_102, %c0_103, %c16_104, %c0_105] : memref<1x2x128x96xbf16, #tpu.memory_space<vmem>>, vector<1x1x96x96xbf16>
    %90 = vector.shape_cast %89 : vector<1x1x96x96xbf16> to vector<96x96xbf16>
    %c4_106 = arith.constant 4 : index
    %c0_107 = arith.constant 0 : index
    %c128_108 = arith.constant 128 : index
    %91 = vector.load %arg2[%c4_106, %c0_107, %c128_108] : memref<10x96x384xbf16, #tpu.memory_space<vmem>>, vector<1x96x128xbf16>
    %92 = vector.shape_cast %91 : vector<1x96x128xbf16> to vector<96x128xbf16>
    %cst_109 = arith.constant dense<0.000000e+00> : vector<96x128xf32>
    %93 = tpu.matmul %90, %92, %cst_109 {dimension_numbers = #tpu.dot_dimension_numbers<[1], [0], [0], [1], [0, 0, 1, 1], [], []>} : vector<96x96xbf16>, vector<96x128xbf16>, vector<96x128xf32> -> vector<96x128xf32>
    %94 = arith.addf %88, %93 : vector<96x128xf32>
    %c0_110 = arith.constant 0 : index
    %c1_111 = arith.constant 1 : index
    %c16_112 = arith.constant 16 : index
    %c0_113 = arith.constant 0 : index
    %95 = vector.load %arg1[%c0_110, %c1_111, %c16_112, %c0_113] : memref<1x2x128x96xbf16, #tpu.memory_space<vmem>>, vector<1x1x96x96xbf16>
    %96 = vector.shape_cast %95 : vector<1x1x96x96xbf16> to vector<96x96xbf16>
    %c5_114 = arith.constant 5 : index
    %c0_115 = arith.constant 0 : index
    %c128_116 = arith.constant 128 : index
    %97 = vector.load %arg2[%c5_114, %c0_115, %c128_116] : memref<10x96x384xbf16, #tpu.memory_space<vmem>>, vector<1x96x128xbf16>
    %98 = vector.shape_cast %97 : vector<1x96x128xbf16> to vector<96x128xbf16>
    %cst_117 = arith.constant dense<0.000000e+00> : vector<96x128xf32>
    %99 = tpu.matmul %96, %98, %cst_117 {dimension_numbers = #tpu.dot_dimension_numbers<[1], [0], [0], [1], [0, 0, 1, 1], [], []>} : vector<96x96xbf16>, vector<96x128xbf16>, vector<96x128xf32> -> vector<96x128xf32>
    %100 = arith.addf %94, %99 : vector<96x128xf32>
    %c0_118 = arith.constant 0 : index
    %c0_119 = arith.constant 0 : index
    %c24_120 = arith.constant 24 : index
    %c0_121 = arith.constant 0 : index
    %101 = vector.load %arg1[%c0_118, %c0_119, %c24_120, %c0_121] : memref<1x2x128x96xbf16, #tpu.memory_space<vmem>>, vector<1x1x96x96xbf16>
    %102 = vector.shape_cast %101 : vector<1x1x96x96xbf16> to vector<96x96xbf16>
    %c6_122 = arith.constant 6 : index
    %c0_123 = arith.constant 0 : index
    %c128_124 = arith.constant 128 : index
    %103 = vector.load %arg2[%c6_122, %c0_123, %c128_124] : memref<10x96x384xbf16, #tpu.memory_space<vmem>>, vector<1x96x128xbf16>
    %104 = vector.shape_cast %103 : vector<1x96x128xbf16> to vector<96x128xbf16>
    %cst_125 = arith.constant dense<0.000000e+00> : vector<96x128xf32>
    %105 = tpu.matmul %102, %104, %cst_125 {dimension_numbers = #tpu.dot_dimension_numbers<[1], [0], [0], [1], [0, 0, 1, 1], [], []>} : vector<96x96xbf16>, vector<96x128xbf16>, vector<96x128xf32> -> vector<96x128xf32>
    %106 = arith.addf %100, %105 : vector<96x128xf32>
    %c0_126 = arith.constant 0 : index
    %c1_127 = arith.constant 1 : index
    %c24_128 = arith.constant 24 : index
    %c0_129 = arith.constant 0 : index
    %107 = vector.load %arg1[%c0_126, %c1_127, %c24_128, %c0_129] : memref<1x2x128x96xbf16, #tpu.memory_space<vmem>>, vector<1x1x96x96xbf16>
    %108 = vector.shape_cast %107 : vector<1x1x96x96xbf16> to vector<96x96xbf16>
    %c7_130 = arith.constant 7 : index
    %c0_131 = arith.constant 0 : index
    %c128_132 = arith.constant 128 : index
    %109 = vector.load %arg2[%c7_130, %c0_131, %c128_132] : memref<10x96x384xbf16, #tpu.memory_space<vmem>>, vector<1x96x128xbf16>
    %110 = vector.shape_cast %109 : vector<1x96x128xbf16> to vector<96x128xbf16>
    %cst_133 = arith.constant dense<0.000000e+00> : vector<96x128xf32>
    %111 = tpu.matmul %108, %110, %cst_133 {dimension_numbers = #tpu.dot_dimension_numbers<[1], [0], [0], [1], [0, 0, 1, 1], [], []>} : vector<96x96xbf16>, vector<96x128xbf16>, vector<96x128xf32> -> vector<96x128xf32>
    %112 = arith.addf %106, %111 : vector<96x128xf32>
    %c0_134 = arith.constant 0 : index
    %c0_135 = arith.constant 0 : index
    %c32_136 = arith.constant 32 : index
    %c0_137 = arith.constant 0 : index
    %113 = vector.load %arg1[%c0_134, %c0_135, %c32_136, %c0_137] : memref<1x2x128x96xbf16, #tpu.memory_space<vmem>>, vector<1x1x96x96xbf16>
    %114 = vector.shape_cast %113 : vector<1x1x96x96xbf16> to vector<96x96xbf16>
    %c8_138 = arith.constant 8 : index
    %c0_139 = arith.constant 0 : index
    %c128_140 = arith.constant 128 : index
    %115 = vector.load %arg2[%c8_138, %c0_139, %c128_140] : memref<10x96x384xbf16, #tpu.memory_space<vmem>>, vector<1x96x128xbf16>
    %116 = vector.shape_cast %115 : vector<1x96x128xbf16> to vector<96x128xbf16>
    %cst_141 = arith.constant dense<0.000000e+00> : vector<96x128xf32>
    %117 = tpu.matmul %114, %116, %cst_141 {dimension_numbers = #tpu.dot_dimension_numbers<[1], [0], [0], [1], [0, 0, 1, 1], [], []>} : vector<96x96xbf16>, vector<96x128xbf16>, vector<96x128xf32> -> vector<96x128xf32>
    %118 = arith.addf %112, %117 : vector<96x128xf32>
    %c0_142 = arith.constant 0 : index
    %c1_143 = arith.constant 1 : index
    %c32_144 = arith.constant 32 : index
    %c0_145 = arith.constant 0 : index
    %119 = vector.load %arg1[%c0_142, %c1_143, %c32_144, %c0_145] : memref<1x2x128x96xbf16, #tpu.memory_space<vmem>>, vector<1x1x96x96xbf16>
    %120 = vector.shape_cast %119 : vector<1x1x96x96xbf16> to vector<96x96xbf16>
    %c9_146 = arith.constant 9 : index
    %c0_147 = arith.constant 0 : index
    %c128_148 = arith.constant 128 : index
    %121 = vector.load %arg2[%c9_146, %c0_147, %c128_148] : memref<10x96x384xbf16, #tpu.memory_space<vmem>>, vector<1x96x128xbf16>
    %122 = vector.shape_cast %121 : vector<1x96x128xbf16> to vector<96x128xbf16>
    %cst_149 = arith.constant dense<0.000000e+00> : vector<96x128xf32>
    %123 = tpu.matmul %120, %122, %cst_149 {dimension_numbers = #tpu.dot_dimension_numbers<[1], [0], [0], [1], [0, 0, 1, 1], [], []>} : vector<96x96xbf16>, vector<96x128xbf16>, vector<96x128xf32> -> vector<96x128xf32>
    %124 = arith.addf %118, %123 : vector<96x128xf32>
    %c0_150 = arith.constant 0 : index
    %c128_151 = arith.constant 128 : index
    %125 = vector.load %arg3[%c0_150, %c128_151] : memref<1x384xf32, #tpu.memory_space<vmem>>, vector<1x128xf32>
    %126 = vector.broadcast %125 : vector<1x128xf32> to vector<96x128xf32>
    %127 = arith.addf %124, %126 : vector<96x128xf32>
    %cst_152 = arith.constant 0.000000e+00 : f32
    %128 = vector.broadcast %cst_152 : f32 to vector<96x128xf32>
    %129 = arith.maximumf %127, %128 : vector<96x128xf32>
    %130 = arith.truncf %129 : vector<96x128xf32> to vector<96x128xbf16>
    %c0_153 = arith.constant 0 : index
    %c128_154 = arith.constant 128 : index
    %131 = vector.load %arg9[%c0_153, %c128_154] : memref<96x384xbf16, #tpu.memory_space<vmem>>, vector<96x128xbf16>
    tpu.vector_store %arg9[%c0_153, %c128_154], %130 {strides = array<i32>} : memref<96x384xbf16, #tpu.memory_space<vmem>>, vector<96x128xbf16>,
    %c0_155 = arith.constant 0 : index
    %c0_156 = arith.constant 0 : index
    %c0_157 = arith.constant 0 : index
    %c0_158 = arith.constant 0 : index
    %132 = vector.load %arg1[%c0_155, %c0_156, %c0_157, %c0_158] : memref<1x2x128x96xbf16, #tpu.memory_space<vmem>>, vector<1x1x96x96xbf16>
    %133 = vector.shape_cast %132 : vector<1x1x96x96xbf16> to vector<96x96xbf16>
    %c0_159 = arith.constant 0 : index
    %c0_160 = arith.constant 0 : index
    %c256 = arith.constant 256 : index
    %134 = vector.load %arg2[%c0_159, %c0_160, %c256] : memref<10x96x384xbf16, #tpu.memory_space<vmem>>, vector<1x96x128xbf16>
    %135 = vector.shape_cast %134 : vector<1x96x128xbf16> to vector<96x128xbf16>
    %cst_161 = arith.constant dense<0.000000e+00> : vector<96x128xf32>
    %136 = tpu.matmul %133, %135, %cst_161 {dimension_numbers = #tpu.dot_dimension_numbers<[1], [0], [0], [1], [0, 0, 1, 1], [], []>} : vector<96x96xbf16>, vector<96x128xbf16>, vector<96x128xf32> -> vector<96x128xf32>
    %c0_162 = arith.constant 0 : index
    %c1_163 = arith.constant 1 : index
    %c0_164 = arith.constant 0 : index
    %c0_165 = arith.constant 0 : index
    %137 = vector.load %arg1[%c0_162, %c1_163, %c0_164, %c0_165] : memref<1x2x128x96xbf16, #tpu.memory_space<vmem>>, vector<1x1x96x96xbf16>
    %138 = vector.shape_cast %137 : vector<1x1x96x96xbf16> to vector<96x96xbf16>
    %c1_166 = arith.constant 1 : index
    %c0_167 = arith.constant 0 : index
    %c256_168 = arith.constant 256 : index
    %139 = vector.load %arg2[%c1_166, %c0_167, %c256_168] : memref<10x96x384xbf16, #tpu.memory_space<vmem>>, vector<1x96x128xbf16>
    %140 = vector.shape_cast %139 : vector<1x96x128xbf16> to vector<96x128xbf16>
    %cst_169 = arith.constant dense<0.000000e+00> : vector<96x128xf32>
    %141 = tpu.matmul %138, %140, %cst_169 {dimension_numbers = #tpu.dot_dimension_numbers<[1], [0], [0], [1], [0, 0, 1, 1], [], []>} : vector<96x96xbf16>, vector<96x128xbf16>, vector<96x128xf32> -> vector<96x128xf32>
    %142 = arith.addf %136, %141 : vector<96x128xf32>
    %c0_170 = arith.constant 0 : index
    %c0_171 = arith.constant 0 : index
    %c8_172 = arith.constant 8 : index
    %c0_173 = arith.constant 0 : index
    %143 = vector.load %arg1[%c0_170, %c0_171, %c8_172, %c0_173] : memref<1x2x128x96xbf16, #tpu.memory_space<vmem>>, vector<1x1x96x96xbf16>
    %144 = vector.shape_cast %143 : vector<1x1x96x96xbf16> to vector<96x96xbf16>
    %c2_174 = arith.constant 2 : index
    %c0_175 = arith.constant 0 : index
    %c256_176 = arith.constant 256 : index
    %145 = vector.load %arg2[%c2_174, %c0_175, %c256_176] : memref<10x96x384xbf16, #tpu.memory_space<vmem>>, vector<1x96x128xbf16>
    %146 = vector.shape_cast %145 : vector<1x96x128xbf16> to vector<96x128xbf16>
    %cst_177 = arith.constant dense<0.000000e+00> : vector<96x128xf32>
    %147 = tpu.matmul %144, %146, %cst_177 {dimension_numbers = #tpu.dot_dimension_numbers<[1], [0], [0], [1], [0, 0, 1, 1], [], []>} : vector<96x96xbf16>, vector<96x128xbf16>, vector<96x128xf32> -> vector<96x128xf32>
    %148 = arith.addf %142, %147 : vector<96x128xf32>
    %c0_178 = arith.constant 0 : index
    %c1_179 = arith.constant 1 : index
    %c8_180 = arith.constant 8 : index
    %c0_181 = arith.constant 0 : index
    %149 = vector.load %arg1[%c0_178, %c1_179, %c8_180, %c0_181] : memref<1x2x128x96xbf16, #tpu.memory_space<vmem>>, vector<1x1x96x96xbf16>
    %150 = vector.shape_cast %149 : vector<1x1x96x96xbf16> to vector<96x96xbf16>
    %c3_182 = arith.constant 3 : index
    %c0_183 = arith.constant 0 : index
    %c256_184 = arith.constant 256 : index
    %151 = vector.load %arg2[%c3_182, %c0_183, %c256_184] : memref<10x96x384xbf16, #tpu.memory_space<vmem>>, vector<1x96x128xbf16>
    %152 = vector.shape_cast %151 : vector<1x96x128xbf16> to vector<96x128xbf16>
    %cst_185 = arith.constant dense<0.000000e+00> : vector<96x128xf32>
    %153 = tpu.matmul %150, %152, %cst_185 {dimension_numbers = #tpu.dot_dimension_numbers<[1], [0], [0], [1], [0, 0, 1, 1], [], []>} : vector<96x96xbf16>, vector<96x128xbf16>, vector<96x128xf32> -> vector<96x128xf32>
    %154 = arith.addf %148, %153 : vector<96x128xf32>
    %c0_186 = arith.constant 0 : index
    %c0_187 = arith.constant 0 : index
    %c16_188 = arith.constant 16 : index
    %c0_189 = arith.constant 0 : index
    %155 = vector.load %arg1[%c0_186, %c0_187, %c16_188, %c0_189] : memref<1x2x128x96xbf16, #tpu.memory_space<vmem>>, vector<1x1x96x96xbf16>
    %156 = vector.shape_cast %155 : vector<1x1x96x96xbf16> to vector<96x96xbf16>
    %c4_190 = arith.constant 4 : index
    %c0_191 = arith.constant 0 : index
    %c256_192 = arith.constant 256 : index
    %157 = vector.load %arg2[%c4_190, %c0_191, %c256_192] : memref<10x96x384xbf16, #tpu.memory_space<vmem>>, vector<1x96x128xbf16>
    %158 = vector.shape_cast %157 : vector<1x96x128xbf16> to vector<96x128xbf16>
    %cst_193 = arith.constant dense<0.000000e+00> : vector<96x128xf32>
    %159 = tpu.matmul %156, %158, %cst_193 {dimension_numbers = #tpu.dot_dimension_numbers<[1], [0], [0], [1], [0, 0, 1, 1], [], []>} : vector<96x96xbf16>, vector<96x128xbf16>, vector<96x128xf32> -> vector<96x128xf32>
    %160 = arith.addf %154, %159 : vector<96x128xf32>
    %c0_194 = arith.constant 0 : index
    %c1_195 = arith.constant 1 : index
    %c16_196 = arith.constant 16 : index
    %c0_197 = arith.constant 0 : index
    %161 = vector.load %arg1[%c0_194, %c1_195, %c16_196, %c0_197] : memref<1x2x128x96xbf16, #tpu.memory_space<vmem>>, vector<1x1x96x96xbf16>
    %162 = vector.shape_cast %161 : vector<1x1x96x96xbf16> to vector<96x96xbf16>
    %c5_198 = arith.constant 5 : index
    %c0_199 = arith.constant 0 : index
    %c256_200 = arith.constant 256 : index
    %163 = vector.load %arg2[%c5_198, %c0_199, %c256_200] : memref<10x96x384xbf16, #tpu.memory_space<vmem>>, vector<1x96x128xbf16>
    %164 = vector.shape_cast %163 : vector<1x96x128xbf16> to vector<96x128xbf16>
    %cst_201 = arith.constant dense<0.000000e+00> : vector<96x128xf32>
    %165 = tpu.matmul %162, %164, %cst_201 {dimension_numbers = #tpu.dot_dimension_numbers<[1], [0], [0], [1], [0, 0, 1, 1], [], []>} : vector<96x96xbf16>, vector<96x128xbf16>, vector<96x128xf32> -> vector<96x128xf32>
    %166 = arith.addf %160, %165 : vector<96x128xf32>
    %c0_202 = arith.constant 0 : index
    %c0_203 = arith.constant 0 : index
    %c24_204 = arith.constant 24 : index
    %c0_205 = arith.constant 0 : index
    %167 = vector.load %arg1[%c0_202, %c0_203, %c24_204, %c0_205] : memref<1x2x128x96xbf16, #tpu.memory_space<vmem>>, vector<1x1x96x96xbf16>
    %168 = vector.shape_cast %167 : vector<1x1x96x96xbf16> to vector<96x96xbf16>
    %c6_206 = arith.constant 6 : index
    %c0_207 = arith.constant 0 : index
    %c256_208 = arith.constant 256 : index
    %169 = vector.load %arg2[%c6_206, %c0_207, %c256_208] : memref<10x96x384xbf16, #tpu.memory_space<vmem>>, vector<1x96x128xbf16>
    %170 = vector.shape_cast %169 : vector<1x96x128xbf16> to vector<96x128xbf16>
    %cst_209 = arith.constant dense<0.000000e+00> : vector<96x128xf32>
    %171 = tpu.matmul %168, %170, %cst_209 {dimension_numbers = #tpu.dot_dimension_numbers<[1], [0], [0], [1], [0, 0, 1, 1], [], []>} : vector<96x96xbf16>, vector<96x128xbf16>, vector<96x128xf32> -> vector<96x128xf32>
    %172 = arith.addf %166, %171 : vector<96x128xf32>
    %c0_210 = arith.constant 0 : index
    %c1_211 = arith.constant 1 : index
    %c24_212 = arith.constant 24 : index
    %c0_213 = arith.constant 0 : index
    %173 = vector.load %arg1[%c0_210, %c1_211, %c24_212, %c0_213] : memref<1x2x128x96xbf16, #tpu.memory_space<vmem>>, vector<1x1x96x96xbf16>
    %174 = vector.shape_cast %173 : vector<1x1x96x96xbf16> to vector<96x96xbf16>
    %c7_214 = arith.constant 7 : index
    %c0_215 = arith.constant 0 : index
    %c256_216 = arith.constant 256 : index
    %175 = vector.load %arg2[%c7_214, %c0_215, %c256_216] : memref<10x96x384xbf16, #tpu.memory_space<vmem>>, vector<1x96x128xbf16>
    %176 = vector.shape_cast %175 : vector<1x96x128xbf16> to vector<96x128xbf16>
    %cst_217 = arith.constant dense<0.000000e+00> : vector<96x128xf32>
    %177 = tpu.matmul %174, %176, %cst_217 {dimension_numbers = #tpu.dot_dimension_numbers<[1], [0], [0], [1], [0, 0, 1, 1], [], []>} : vector<96x96xbf16>, vector<96x128xbf16>, vector<96x128xf32> -> vector<96x128xf32>
    %178 = arith.addf %172, %177 : vector<96x128xf32>
    %c0_218 = arith.constant 0 : index
    %c0_219 = arith.constant 0 : index
    %c32_220 = arith.constant 32 : index
    %c0_221 = arith.constant 0 : index
    %179 = vector.load %arg1[%c0_218, %c0_219, %c32_220, %c0_221] : memref<1x2x128x96xbf16, #tpu.memory_space<vmem>>, vector<1x1x96x96xbf16>
    %180 = vector.shape_cast %179 : vector<1x1x96x96xbf16> to vector<96x96xbf16>
    %c8_222 = arith.constant 8 : index
    %c0_223 = arith.constant 0 : index
    %c256_224 = arith.constant 256 : index
    %181 = vector.load %arg2[%c8_222, %c0_223, %c256_224] : memref<10x96x384xbf16, #tpu.memory_space<vmem>>, vector<1x96x128xbf16>
    %182 = vector.shape_cast %181 : vector<1x96x128xbf16> to vector<96x128xbf16>
    %cst_225 = arith.constant dense<0.000000e+00> : vector<96x128xf32>
    %183 = tpu.matmul %180, %182, %cst_225 {dimension_numbers = #tpu.dot_dimension_numbers<[1], [0], [0], [1], [0, 0, 1, 1], [], []>} : vector<96x96xbf16>, vector<96x128xbf16>, vector<96x128xf32> -> vector<96x128xf32>
    %184 = arith.addf %178, %183 : vector<96x128xf32>
    %c0_226 = arith.constant 0 : index
    %c1_227 = arith.constant 1 : index
    %c32_228 = arith.constant 32 : index
    %c0_229 = arith.constant 0 : index
    %185 = vector.load %arg1[%c0_226, %c1_227, %c32_228, %c0_229] : memref<1x2x128x96xbf16, #tpu.memory_space<vmem>>, vector<1x1x96x96xbf16>
    %186 = vector.shape_cast %185 : vector<1x1x96x96xbf16> to vector<96x96xbf16>
    %c9_230 = arith.constant 9 : index
    %c0_231 = arith.constant 0 : index
    %c256_232 = arith.constant 256 : index
    %187 = vector.load %arg2[%c9_230, %c0_231, %c256_232] : memref<10x96x384xbf16, #tpu.memory_space<vmem>>, vector<1x96x128xbf16>
    %188 = vector.shape_cast %187 : vector<1x96x128xbf16> to vector<96x128xbf16>
    %cst_233 = arith.constant dense<0.000000e+00> : vector<96x128xf32>
    %189 = tpu.matmul %186, %188, %cst_233 {dimension_numbers = #tpu.dot_dimension_numbers<[1], [0], [0], [1], [0, 0, 1, 1], [], []>} : vector<96x96xbf16>, vector<96x128xbf16>, vector<96x128xf32> -> vector<96x128xf32>
    %190 = arith.addf %184, %189 : vector<96x128xf32>
    %c0_234 = arith.constant 0 : index
    %c256_235 = arith.constant 256 : index
    %191 = vector.load %arg3[%c0_234, %c256_235] : memref<1x384xf32, #tpu.memory_space<vmem>>, vector<1x128xf32>
    %192 = vector.broadcast %191 : vector<1x128xf32> to vector<96x128xf32>
    %193 = arith.addf %190, %192 : vector<96x128xf32>
    %cst_236 = arith.constant 0.000000e+00 : f32
    %194 = vector.broadcast %cst_236 : f32 to vector<96x128xf32>
    %195 = arith.maximumf %193, %194 : vector<96x128xf32>
    %196 = arith.truncf %195 : vector<96x128xf32> to vector<96x128xbf16>
    %c0_237 = arith.constant 0 : index
    %c256_238 = arith.constant 256 : index
    %197 = vector.load %arg9[%c0_237, %c256_238] : memref<96x384xbf16, #tpu.memory_space<vmem>>, vector<96x128xbf16>
    tpu.vector_store %arg9[%c0_237, %c256_238], %196 {strides = array<i32>} : memref<96x384xbf16, #tpu.memory_space<vmem>>, vector<96x128xbf16>,
    %c0_239 = arith.constant 0 : index
    %c0_240 = arith.constant 0 : index
    %198 = vector.load %arg9[%c0_239, %c0_240] : memref<96x384xbf16, #tpu.memory_space<vmem>>, vector<48x384xbf16>
    %c0_241 = arith.constant 0 : index
    %c0_242 = arith.constant 0 : index
    %c0_243 = arith.constant 0 : index
    %199 = vector.load %arg4[%c0_241, %c0_242, %c0_243] : memref<7x384x192xbf16, #tpu.memory_space<vmem>>, vector<1x384x192xbf16>
    %200 = vector.shape_cast %199 : vector<1x384x192xbf16> to vector<384x192xbf16>
    %cst_244 = arith.constant dense<0.000000e+00> : vector<48x192xf32>
    %201 = tpu.matmul %198, %200, %cst_244 {dimension_numbers = #tpu.dot_dimension_numbers<[1], [0], [0], [1], [0, 0, 1, 1], [], []>} : vector<48x384xbf16>, vector<384x192xbf16>, vector<48x192xf32> -> vector<48x192xf32>
    %c8_245 = arith.constant 8 : index
    %c0_246 = arith.constant 0 : index
    %202 = vector.load %arg9[%c8_245, %c0_246] : memref<96x384xbf16, #tpu.memory_space<vmem>>, vector<48x384xbf16>
    %c1_247 = arith.constant 1 : index
    %c0_248 = arith.constant 0 : index
    %c0_249 = arith.constant 0 : index
    %203 = vector.load %arg4[%c1_247, %c0_248, %c0_249] : memref<7x384x192xbf16, #tpu.memory_space<vmem>>, vector<1x384x192xbf16>
    %204 = vector.shape_cast %203 : vector<1x384x192xbf16> to vector<384x192xbf16>
    %cst_250 = arith.constant dense<0.000000e+00> : vector<48x192xf32>
    %205 = tpu.matmul %202, %204, %cst_250 {dimension_numbers = #tpu.dot_dimension_numbers<[1], [0], [0], [1], [0, 0, 1, 1], [], []>} : vector<48x384xbf16>, vector<384x192xbf16>, vector<48x192xf32> -> vector<48x192xf32>
    %206 = arith.addf %201, %205 : vector<48x192xf32>
    %c16_251 = arith.constant 16 : index
    %c0_252 = arith.constant 0 : index
    %207 = vector.load %arg9[%c16_251, %c0_252] : memref<96x384xbf16, #tpu.memory_space<vmem>>, vector<48x384xbf16>
    %c2_253 = arith.constant 2 : index
    %c0_254 = arith.constant 0 : index
    %c0_255 = arith.constant 0 : index
    %208 = vector.load %arg4[%c2_253, %c0_254, %c0_255] : memref<7x384x192xbf16, #tpu.memory_space<vmem>>, vector<1x384x192xbf16>
    %209 = vector.shape_cast %208 : vector<1x384x192xbf16> to vector<384x192xbf16>
    %cst_256 = arith.constant dense<0.000000e+00> : vector<48x192xf32>
    %210 = tpu.matmul %207, %209, %cst_256 {dimension_numbers = #tpu.dot_dimension_numbers<[1], [0], [0], [1], [0, 0, 1, 1], [], []>} : vector<48x384xbf16>, vector<384x192xbf16>, vector<48x192xf32> -> vector<48x192xf32>
    %211 = arith.addf %206, %210 : vector<48x192xf32>
    %c24_257 = arith.constant 24 : index
    %c0_258 = arith.constant 0 : index
    %212 = vector.load %arg9[%c24_257, %c0_258] : memref<96x384xbf16, #tpu.memory_space<vmem>>, vector<48x384xbf16>
    %c3_259 = arith.constant 3 : index
    %c0_260 = arith.constant 0 : index
    %c0_261 = arith.constant 0 : index
    %213 = vector.load %arg4[%c3_259, %c0_260, %c0_261] : memref<7x384x192xbf16, #tpu.memory_space<vmem>>, vector<1x384x192xbf16>
    %214 = vector.shape_cast %213 : vector<1x384x192xbf16> to vector<384x192xbf16>
    %cst_262 = arith.constant dense<0.000000e+00> : vector<48x192xf32>
    %215 = tpu.matmul %212, %214, %cst_262 {dimension_numbers = #tpu.dot_dimension_numbers<[1], [0], [0], [1], [0, 0, 1, 1], [], []>} : vector<48x384xbf16>, vector<384x192xbf16>, vector<48x192xf32> -> vector<48x192xf32>
    %216 = arith.addf %211, %215 : vector<48x192xf32>
    %c32_263 = arith.constant 32 : index
    %c0_264 = arith.constant 0 : index
    %217 = vector.load %arg9[%c32_263, %c0_264] : memref<96x384xbf16, #tpu.memory_space<vmem>>, vector<48x384xbf16>
    %c4_265 = arith.constant 4 : index
    %c0_266 = arith.constant 0 : index
    %c0_267 = arith.constant 0 : index
    %218 = vector.load %arg4[%c4_265, %c0_266, %c0_267] : memref<7x384x192xbf16, #tpu.memory_space<vmem>>, vector<1x384x192xbf16>
    %219 = vector.shape_cast %218 : vector<1x384x192xbf16> to vector<384x192xbf16>
    %cst_268 = arith.constant dense<0.000000e+00> : vector<48x192xf32>
    %220 = tpu.matmul %217, %219, %cst_268 {dimension_numbers = #tpu.dot_dimension_numbers<[1], [0], [0], [1], [0, 0, 1, 1], [], []>} : vector<48x384xbf16>, vector<384x192xbf16>, vector<48x192xf32> -> vector<48x192xf32>
    %221 = arith.addf %216, %220 : vector<48x192xf32>
    %c40 = arith.constant 40 : index
    %c0_269 = arith.constant 0 : index
    %222 = vector.load %arg9[%c40, %c0_269] : memref<96x384xbf16, #tpu.memory_space<vmem>>, vector<48x384xbf16>
    %c5_270 = arith.constant 5 : index
    %c0_271 = arith.constant 0 : index
    %c0_272 = arith.constant 0 : index
    %223 = vector.load %arg4[%c5_270, %c0_271, %c0_272] : memref<7x384x192xbf16, #tpu.memory_space<vmem>>, vector<1x384x192xbf16>
    %224 = vector.shape_cast %223 : vector<1x384x192xbf16> to vector<384x192xbf16>
    %cst_273 = arith.constant dense<0.000000e+00> : vector<48x192xf32>
    %225 = tpu.matmul %222, %224, %cst_273 {dimension_numbers = #tpu.dot_dimension_numbers<[1], [0], [0], [1], [0, 0, 1, 1], [], []>} : vector<48x384xbf16>, vector<384x192xbf16>, vector<48x192xf32> -> vector<48x192xf32>
    %226 = arith.addf %221, %225 : vector<48x192xf32>
    %c48 = arith.constant 48 : index
    %c0_274 = arith.constant 0 : index
    %227 = vector.load %arg9[%c48, %c0_274] : memref<96x384xbf16, #tpu.memory_space<vmem>>, vector<48x384xbf16>
    %c6_275 = arith.constant 6 : index
    %c0_276 = arith.constant 0 : index
    %c0_277 = arith.constant 0 : index
    %228 = vector.load %arg4[%c6_275, %c0_276, %c0_277] : memref<7x384x192xbf16, #tpu.memory_space<vmem>>, vector<1x384x192xbf16>
    %229 = vector.shape_cast %228 : vector<1x384x192xbf16> to vector<384x192xbf16>
    %cst_278 = arith.constant dense<0.000000e+00> : vector<48x192xf32>
    %230 = tpu.matmul %227, %229, %cst_278 {dimension_numbers = #tpu.dot_dimension_numbers<[1], [0], [0], [1], [0, 0, 1, 1], [], []>} : vector<48x384xbf16>, vector<384x192xbf16>, vector<48x192xf32> -> vector<48x192xf32>
    %231 = arith.addf %226, %230 : vector<48x192xf32>
    %c0_279 = arith.constant 0 : index
    %c0_280 = arith.constant 0 : index
    %232 = vector.load %arg5[%c0_279, %c0_280] : memref<1x192xf32, #tpu.memory_space<vmem>>, vector<1x192xf32>
    %233 = vector.broadcast %232 : vector<1x192xf32> to vector<48x192xf32>
    %234 = arith.addf %231, %233 : vector<48x192xf32>
    %cst_281 = arith.constant 0.000000e+00 : f32
    %235 = vector.broadcast %cst_281 : f32 to vector<48x192xf32>
    %236 = arith.maximumf %234, %235 : vector<48x192xf32>
    %237 = arith.truncf %236 : vector<48x192xf32> to vector<48x192xbf16>
    %c0_282 = arith.constant 0 : index
    %c0_283 = arith.constant 0 : index
    %238 = vector.load %arg10[%c0_282, %c0_283] : memref<48x192xbf16, #tpu.memory_space<vmem>>, vector<48x192xbf16>
    tpu.vector_store %arg10[%c0_282, %c0_283], %237 {strides = array<i32>} : memref<48x192xbf16, #tpu.memory_space<vmem>>, vector<48x192xbf16>,
    %c0_284 = arith.constant 0 : index
    %c0_285 = arith.constant 0 : index
    %239 = vector.load %arg10[%c0_284, %c0_285] : memref<48x192xbf16, #tpu.memory_space<vmem>>, vector<8x192xbf16>
    %c0_286 = arith.constant 0 : index
    %c0_287 = arith.constant 0 : index
    %c0_288 = arith.constant 0 : index
    %240 = vector.load %arg6[%c0_286, %c0_287, %c0_288] : memref<6x192x10xbf16, #tpu.memory_space<vmem>>, vector<1x192x10xbf16>
    %241 = vector.shape_cast %240 : vector<1x192x10xbf16> to vector<192x10xbf16>
    %cst_289 = arith.constant dense<0.000000e+00> : vector<8x10xf32>
    %242 = tpu.matmul %239, %241, %cst_289 {dimension_numbers = #tpu.dot_dimension_numbers<[1], [0], [0], [1], [0, 0, 1, 1], [], []>} : vector<8x192xbf16>, vector<192x10xbf16>, vector<8x10xf32> -> vector<8x10xf32>
    %c8_290 = arith.constant 8 : index
    %c0_291 = arith.constant 0 : index
    %243 = vector.load %arg10[%c8_290, %c0_291] : memref<48x192xbf16, #tpu.memory_space<vmem>>, vector<8x192xbf16>
    %c1_292 = arith.constant 1 : index
    %c0_293 = arith.constant 0 : index
    %c0_294 = arith.constant 0 : index
    %244 = vector.load %arg6[%c1_292, %c0_293, %c0_294] : memref<6x192x10xbf16, #tpu.memory_space<vmem>>, vector<1x192x10xbf16>
    %245 = vector.shape_cast %244 : vector<1x192x10xbf16> to vector<192x10xbf16>
    %cst_295 = arith.constant dense<0.000000e+00> : vector<8x10xf32>
    %246 = tpu.matmul %243, %245, %cst_295 {dimension_numbers = #tpu.dot_dimension_numbers<[1], [0], [0], [1], [0, 0, 1, 1], [], []>} : vector<8x192xbf16>, vector<192x10xbf16>, vector<8x10xf32> -> vector<8x10xf32>
    %247 = arith.addf %242, %246 : vector<8x10xf32>
    %c16_296 = arith.constant 16 : index
    %c0_297 = arith.constant 0 : index
    %248 = vector.load %arg10[%c16_296, %c0_297] : memref<48x192xbf16, #tpu.memory_space<vmem>>, vector<8x192xbf16>
    %c2_298 = arith.constant 2 : index
    %c0_299 = arith.constant 0 : index
    %c0_300 = arith.constant 0 : index
    %249 = vector.load %arg6[%c2_298, %c0_299, %c0_300] : memref<6x192x10xbf16, #tpu.memory_space<vmem>>, vector<1x192x10xbf16>
    %250 = vector.shape_cast %249 : vector<1x192x10xbf16> to vector<192x10xbf16>
    %cst_301 = arith.constant dense<0.000000e+00> : vector<8x10xf32>
    %251 = tpu.matmul %248, %250, %cst_301 {dimension_numbers = #tpu.dot_dimension_numbers<[1], [0], [0], [1], [0, 0, 1, 1], [], []>} : vector<8x192xbf16>, vector<192x10xbf16>, vector<8x10xf32> -> vector<8x10xf32>
    %252 = arith.addf %247, %251 : vector<8x10xf32>
    %c24_302 = arith.constant 24 : index
    %c0_303 = arith.constant 0 : index
    %253 = vector.load %arg10[%c24_302, %c0_303] : memref<48x192xbf16, #tpu.memory_space<vmem>>, vector<8x192xbf16>
    %c3_304 = arith.constant 3 : index
    %c0_305 = arith.constant 0 : index
    %c0_306 = arith.constant 0 : index
    %254 = vector.load %arg6[%c3_304, %c0_305, %c0_306] : memref<6x192x10xbf16, #tpu.memory_space<vmem>>, vector<1x192x10xbf16>
    %255 = vector.shape_cast %254 : vector<1x192x10xbf16> to vector<192x10xbf16>
    %cst_307 = arith.constant dense<0.000000e+00> : vector<8x10xf32>
    %256 = tpu.matmul %253, %255, %cst_307 {dimension_numbers = #tpu.dot_dimension_numbers<[1], [0], [0], [1], [0, 0, 1, 1], [], []>} : vector<8x192xbf16>, vector<192x10xbf16>, vector<8x10xf32> -> vector<8x10xf32>
    %257 = arith.addf %252, %256 : vector<8x10xf32>
    %c32_308 = arith.constant 32 : index
    %c0_309 = arith.constant 0 : index
    %258 = vector.load %arg10[%c32_308, %c0_309] : memref<48x192xbf16, #tpu.memory_space<vmem>>, vector<8x192xbf16>
    %c4_310 = arith.constant 4 : index
    %c0_311 = arith.constant 0 : index
    %c0_312 = arith.constant 0 : index
    %259 = vector.load %arg6[%c4_310, %c0_311, %c0_312] : memref<6x192x10xbf16, #tpu.memory_space<vmem>>, vector<1x192x10xbf16>
    %260 = vector.shape_cast %259 : vector<1x192x10xbf16> to vector<192x10xbf16>
    %cst_313 = arith.constant dense<0.000000e+00> : vector<8x10xf32>
    %261 = tpu.matmul %258, %260, %cst_313 {dimension_numbers = #tpu.dot_dimension_numbers<[1], [0], [0], [1], [0, 0, 1, 1], [], []>} : vector<8x192xbf16>, vector<192x10xbf16>, vector<8x10xf32> -> vector<8x10xf32>
    %262 = arith.addf %257, %261 : vector<8x10xf32>
    %c40_314 = arith.constant 40 : index
    %c0_315 = arith.constant 0 : index
    %263 = vector.load %arg10[%c40_314, %c0_315] : memref<48x192xbf16, #tpu.memory_space<vmem>>, vector<8x192xbf16>
    %c5_316 = arith.constant 5 : index
    %c0_317 = arith.constant 0 : index
    %c0_318 = arith.constant 0 : index
    %264 = vector.load %arg6[%c5_316, %c0_317, %c0_318] : memref<6x192x10xbf16, #tpu.memory_space<vmem>>, vector<1x192x10xbf16>
    %265 = vector.shape_cast %264 : vector<1x192x10xbf16> to vector<192x10xbf16>
    %cst_319 = arith.constant dense<0.000000e+00> : vector<8x10xf32>
    %266 = tpu.matmul %263, %265, %cst_319 {dimension_numbers = #tpu.dot_dimension_numbers<[1], [0], [0], [1], [0, 0, 1, 1], [], []>} : vector<8x192xbf16>, vector<192x10xbf16>, vector<8x10xf32> -> vector<8x10xf32>
    %267 = arith.addf %262, %266 : vector<8x10xf32>
    %c0_320 = arith.constant 0 : index
    %c0_321 = arith.constant 0 : index
    %268 = vector.load %arg7[%c0_320, %c0_321] : memref<1x10xf32, #tpu.memory_space<vmem>>, vector<1x10xf32>
    %269 = vector.broadcast %268 : vector<1x10xf32> to vector<8x10xf32>
    %270 = arith.addf %267, %269 : vector<8x10xf32>
    %c0_322 = arith.constant 0 : index
    %c0_323 = arith.constant 0 : index
    %271 = vector.load %arg8[%c0_322, %c0_323] : memref<8x10xf32, #tpu.memory_space<vmem>>, vector<8x10xf32>
    tpu.vector_store %arg8[%c0_322, %c0_323], %270 {strides = array<i32>} : memref<8x10xf32, #tpu.memory_space<vmem>>, vector<8x10xf32>,
    return
  }
  func.func @transform_0(%arg0: i32) -> (i32, i32, i32, i32) {
    %c0_i32 = arith.constant 0 : i32
    %c0_i32_0 = arith.constant 0 : i32
    %c0_i32_1 = arith.constant 0 : i32
    %c0_i32_2 = arith.constant 0 : i32
    return %arg0, %c0_i32, %c0_i32_0, %c0_i32_1 : i32, i32, i32, i32
  }
  func.func @transform_1(%arg0: i32) -> (i32, i32, i32) {
    %c0_i32 = arith.constant 0 : i32
    %c0_i32_0 = arith.constant 0 : i32
    %c0_i32_1 = arith.constant 0 : i32
    %c0_i32_2 = arith.constant 0 : i32
    return %c0_i32, %c0_i32_0, %c0_i32_1 : i32, i32, i32
  }
  func.func @transform_2(%arg0: i32) -> (i32, i32) {
    %c0_i32 = arith.constant 0 : i32
    %c0_i32_0 = arith.constant 0 : i32
    %c0_i32_1 = arith.constant 0 : i32
    return %c0_i32, %c0_i32_0 : i32, i32
  }
  func.func @transform_3(%arg0: i32) -> (i32, i32, i32) {
    %c0_i32 = arith.constant 0 : i32
    %c0_i32_0 = arith.constant 0 : i32
    %c0_i32_1 = arith.constant 0 : i32
    %c0_i32_2 = arith.constant 0 : i32
    return %c0_i32, %c0_i32_0, %c0_i32_1 : i32, i32, i32
  }
  func.func @transform_4(%arg0: i32) -> (i32, i32) {
    %c0_i32 = arith.constant 0 : i32
    %c0_i32_0 = arith.constant 0 : i32
    %c0_i32_1 = arith.constant 0 : i32
    return %c0_i32, %c0_i32_0 : i32, i32
  }
  func.func @transform_5(%arg0: i32) -> (i32, i32, i32) {
    %c0_i32 = arith.constant 0 : i32
    %c0_i32_0 = arith.constant 0 : i32
    %c0_i32_1 = arith.constant 0 : i32
    %c0_i32_2 = arith.constant 0 : i32
    return %c0_i32, %c0_i32_0, %c0_i32_1 : i32, i32, i32
  }
  func.func @transform_6(%arg0: i32) -> (i32, i32) {
    %c0_i32 = arith.constant 0 : i32
    %c0_i32_0 = arith.constant 0 : i32
    %c0_i32_1 = arith.constant 0 : i32
    return %c0_i32, %c0_i32_0 : i32, i32
  }
  func.func @transform_7(%arg0: i32) -> (i32, i32) {
    %c0_i32 = arith.constant 0 : i32
    %c0_i32_0 = arith.constant 0 : i32
    return %arg0, %c0_i32 : i32, i32
  }
}

</mosaic_0001>

<llo_original>
// kernel: fused_forward.1
$region0: #{fused_forward.1}
  #allocation0 [shape = 'u32[]', space=smem, size = 0x4, offset = 0x4, fixed_abs, tag = 'smem constant byte address 0x4 - core index']
  #allocation1 [shape = 'u32[144,128]{1,0:T(1,128)}', space=vmem, size = 0x12000, scoped, tag = 'internal scratch']
  #allocation2 [shape = 'bf16[96,384]{1,0:T(16,128)(2,1)}', space=vmem, size = 0x12000, scoped, tag = 'scratch operand']
  #allocation3 [shape = 'bf16[48,192]{1,0:T(16,128)(2,1)}', space=vmem, size = 0x6000, scoped, tag = 'scratch operand']
  %s0 = inlined_call_operand.vmem [shape: bf16[1,2,128,96], index: 0, kind: input, shape index: {}]
  %s1 = inlined_call_operand.vmem [shape: bf16[10,96,384], index: 1, kind: input, shape index: {}]
  %s2 = inlined_call_operand.vmem [shape: f32[1,384], index: 2, kind: input, shape index: {}]
  %s3 = inlined_call_operand.vmem [shape: bf16[7,384,192], index: 3, kind: input, shape index: {}]
  %s4 = inlined_call_operand.vmem [shape: f32[1,192], index: 4, kind: input, shape index: {}]
  %s5 = inlined_call_operand.vmem [shape: bf16[6,192,10], index: 5, kind: input, shape index: {}]
  %s6 = inlined_call_operand.vmem [shape: f32[1,10], index: 6, kind: input, shape index: {}]
  %s7 = inlined_call_operand.vmem [shape: f32[8,10], index: 7, kind: output, shape index: {}]
  %s8 = sld [smem:[#allocation0]]
  $region38: #{fused_forward.1} parent=0
    _
  %s10 = ssub.s32 1, %s8
  %s11 = scalar_select 0, %s10, %s8
  // Predicated region
  $region2: #{fused_forward.1} parent=0 // pred_check
    _
  $region3: #{fused_forward.1} parent=0 // pred_check_branch
    %13 = sbr.rel (0) target = $region5
  $region4: #{fused_forward.1} parent=0 // pred_region
    _
  $region5: #{fused_forward.1} parent=0 // pred_fallthru
    _
  // Predicated region
  $region6: #{fused_forward.1} parent=0 // pred_check
    _
  $region7: #{fused_forward.1} parent=0 // pred_check_branch
    %15 = sbr.rel (0) target = $region9
  $region8: #{fused_forward.1} parent=0 // pred_region
    _
  $region9: #{fused_forward.1} parent=0 // pred_fallthru
    _
  // Predicated region
  $region10: #{fused_forward.1} parent=0 // pred_check
    _
  $region11: #{fused_forward.1} parent=0 // pred_check_branch
    %17 = sbr.rel (0) target = $region13
  $region12: #{fused_forward.1} parent=0 // pred_region
    _
  $region13: #{fused_forward.1} parent=0 // pred_fallthru
    _
  // Predicated region
  $region14: #{fused_forward.1} parent=0 // pred_check
    _
  $region15: #{fused_forward.1} parent=0 // pred_check_branch
    %19 = sbr.rel (0) target = $region17
  $region16: #{fused_forward.1} parent=0 // pred_region
    _
  $region17: #{fused_forward.1} parent=0 // pred_fallthru
    _
  // Predicated region
  $region18: #{fused_forward.1} parent=0 // pred_check
    _
  $region19: #{fused_forward.1} parent=0 // pred_check_branch
    %21 = sbr.rel (0) target = $region21
  $region20: #{fused_forward.1} parent=0 // pred_region
    _
  $region21: #{fused_forward.1} parent=0 // pred_fallthru
    _
  // Predicated region
  $region22: #{fused_forward.1} parent=0 // pred_check
    _
  $region23: #{fused_forward.1} parent=0 // pred_check_branch
    %23 = sbr.rel (0) target = $region25
  $region24: #{fused_forward.1} parent=0 // pred_region
    _
  $region25: #{fused_forward.1} parent=0 // pred_fallthru
    _
  // Predicated region
  $region26: #{fused_forward.1} parent=0 // pred_check
    _
  $region27: #{fused_forward.1} parent=0 // pred_check_branch
    %25 = sbr.rel (0) target = $region29
  $region28: #{fused_forward.1} parent=0 // pred_region
    _
  $region29: #{fused_forward.1} parent=0 // pred_fallthru
    _
  %v27 = vld [vmem:[%s0] sm:$0xf]
  %v28 = vld [vmem:[%s0 + $0x4] sm:$0xf]
  %v29 = vld [vmem:[%s0 + $0x8] sm:$0xf]
  %v30 = vld [vmem:[%s0 + $0xc] sm:$0xf]
  %v31 = vld [vmem:[%s0 + $0x10] sm:$0xf]
  %v32 = vld [vmem:[%s0 + $0x14] sm:$0xf]
  %v33 = vld [vmem:[%s0 + $0x18] sm:$0xf]
  %v34 = vld [vmem:[%s0 + $0x1c] sm:$0xf]
  %v35 = vld [vmem:[%s0 + $0x20] sm:$0xf]
  %v36 = vld [vmem:[%s0 + $0x24] sm:$0xf]
  %v37 = vld [vmem:[%s0 + $0x28] sm:$0xf]
  %v38 = vld [vmem:[%s0 + $0x2c] sm:$0xf]
  %v39 = vld [vmem:[%s1] sm:$0xf]
  %v40 = vld [vmem:[%s1 + $0xc] sm:$0xf]
  %v41 = vld [vmem:[%s1 + $0x18] sm:$0xf]
  %v42 = vld [vmem:[%s1 + $0x24] sm:$0xf]
  %v43 = vld [vmem:[%s1 + $0x30] sm:$0xf]
  %v44 = vld [vmem:[%s1 + $0x3c] sm:$0xf]
  %v45 = vld [vmem:[%s1 + $0x48] sm:$0xf]
  %v46 = vld [vmem:[%s1 + $0x54] sm:$0xf]
  %v47 = vld [vmem:[%s1 + $0x60] sm:$0xf]
  %v48 = vld [vmem:[%s1 + $0x6c] sm:$0xf]
  %v49 = vld [vmem:[%s1 + $0x78] sm:$0xf]
  %v50 = vld [vmem:[%s1 + $0x84] sm:$0xf]
  %s51 = scalar_lea.vmem %s0, 64
  %v52 = vld [vmem:[%s51] sm:$0xf]
  %v53 = vld [vmem:[%s51 + $0x4] sm:$0xf]
  %v54 = vld [vmem:[%s51 + $0x8] sm:$0xf]
  %v55 = vld [vmem:[%s51 + $0xc] sm:$0xf]
  %v56 = vld [vmem:[%s51 + $0x10] sm:$0xf]
  %v57 = vld [vmem:[%s51 + $0x14] sm:$0xf]
  %v58 = vld [vmem:[%s51 + $0x18] sm:$0xf]
  %v59 = vld [vmem:[%s51 + $0x1c] sm:$0xf]
  %v60 = vld [vmem:[%s51 + $0x20] sm:$0xf]
  %v61 = vld [vmem:[%s51 + $0x24] sm:$0xf]
  %v62 = vld [vmem:[%s51 + $0x28] sm:$0xf]
  %v63 = vld [vmem:[%s51 + $0x2c] sm:$0xf]
  %s64 = scalar_lea.vmem %s1, 144
  %v65 = vld [vmem:[%s64] sm:$0xf]
  %v66 = vld [vmem:[%s64 + $0xc] sm:$0xf]
  %v67 = vld [vmem:[%s64 + $0x18] sm:$0xf]
  %v68 = vld [vmem:[%s64 + $0x24] sm:$0xf]
  %v69 = vld [vmem:[%s64 + $0x30] sm:$0xf]
  %v70 = vld [vmem:[%s64 + $0x3c] sm:$0xf]
  %v71 = vld [vmem:[%s64 + $0x48] sm:$0xf]
  %v72 = vld [vmem:[%s64 + $0x54] sm:$0xf]
  %v73 = vld [vmem:[%s64 + $0x60] sm:$0xf]
  %v74 = vld [vmem:[%s64 + $0x6c] sm:$0xf]
  %v75 = vld [vmem:[%s64 + $0x78] sm:$0xf]
  %v76 = vld [vmem:[%s64 + $0x84] sm:$0xf]
  %v89 = vunpack.c.l.b16 %v52
  %v90 = vunpack.c.l.b16 %v53
  %v91 = vunpack.c.l.b16 %v54
  %v92 = vunpack.c.l.b16 %v55
  %v93 = vunpack.c.l.b16 %v56
  %v94 = vunpack.c.l.b16 %v57
  %v95 = vunpack.c.l.b16 %v58
  %v96 = vunpack.c.l.b16 %v59
  %v97 = vunpack.c.l.b16 %v60
  %v98 = vunpack.c.l.b16 %v61
  %v99 = vunpack.c.l.b16 %v62
  %v100 = vunpack.c.l.b16 %v63
  %v101 = vpack.c.b16 %v90, %v89
  %v102 = vpack.c.b16 %v92, %v91
  %v103 = vpack.c.b16 %v94, %v93
  %v104 = vpack.c.b16 %v96, %v95
  %v105 = vpack.c.b16 %v98, %v97
  %v106 = vpack.c.b16 %v100, %v99
  %v119 = vunpack.c.l.b16 %v65
  %v120 = vunpack.c.l.b16 %v66
  %v121 = vunpack.c.l.b16 %v67
  %v122 = vunpack.c.l.b16 %v68
  %v123 = vunpack.c.l.b16 %v69
  %v124 = vunpack.c.l.b16 %v70
  %v125 = vunpack.c.l.b16 %v71
  %v126 = vunpack.c.l.b16 %v72
  %v127 = vunpack.c.l.b16 %v73
  %v128 = vunpack.c.l.b16 %v74
  %v129 = vunpack.c.l.b16 %v75
  %v130 = vunpack.c.l.b16 %v76
  %v131 = vpack.c.b16 %v120, %v119
  %v132 = vpack.c.b16 %v122, %v121
  %v133 = vpack.c.b16 %v124, %v123
  %v134 = vpack.c.b16 %v126, %v125
  %v135 = vpack.c.b16 %v128, %v127
  %v136 = vpack.c.b16 %v130, %v129
  %vm143 = vcmask 785408
  %v145 = vsel %vm143, %v101, 0
  %v148 = vsel %vm143, %v102, 0
  %v151 = vsel %vm143, %v103, 0
  %v154 = vsel %vm143, %v104, 0
  %v157 = vsel %vm143, %v105, 0
  %v160 = vsel %vm143, %v106, 0
  %162 = vmatprep.subr.bf16.mxu0 0
  %163 = vmatpush1.bf16.msra.mxu0 %v131
  %164 = vmatprep.subr.bf16.mxu0 0
  %165 = vmatpush1.bf16.msra.mxu0 %v132
  %166 = vmatprep.subr.bf16.mxu0 0
  %167 = vmatpush1.bf16.msra.mxu0 %v133
  %168 = vmatprep.subr.bf16.mxu0 0
  %169 = vmatpush1.bf16.msra.mxu0 %v134
  %170 = vmatprep.subr.bf16.mxu0 0
  %171 = vmatpush1.bf16.msra.mxu0 %v135
  %172 = vmatprep.subr.bf16.mxu0 0
  %173 = vmatpush1.bf16.msra.mxu0 %v136
  %174 = vmatprep.subr.bf16.mxu0 0
  %175 = vmatpush1.bf16.msra.mxu0 0
  %176 = vmatprep.subr.bf16.mxu0 0
  %177 = vmatpush1.bf16.msra.mxu0 0
  %178 = vmatprep.subr.bf16.mxu0 0
  %179 = vmatpush1.bf16.msra.mxu0 0
  %180 = vmatprep.subr.bf16.mxu0 0
  %181 = vmatpush1.bf16.msra.mxu0 0
  %182 = vmatprep.subr.bf16.mxu0 0
  %183 = vmatpush1.bf16.msra.mxu0 0
  %184 = vmatprep.subr.bf16.mxu0 0
  %185 = vmatpush1.bf16.msra.mxu0 0
  %186 = vmatprep.subr.bf16.mxu0 0
  %187 = vmatpush1.bf16.msra.mxu0 0
  %188 = vmatprep.subr.bf16.mxu0 0
  %189 = vmatpush1.bf16.msra.mxu0 0
  %190 = vmatprep.subr.bf16.mxu0 0
  %191 = vmatpush1.bf16.msra.mxu0 0
  %192 = vmatprep.subr.bf16.mxu0 0
  %193 = vmatpush1.bf16.msra.mxu0 0
  %194 = vmatprep.mubr.bf16.mxu0 0
  %195 = vmatmul.mubr.bf16.gmra.mrb[0].mxu0 %v145
  %v196 = vpop.f32.mrb[0].mxu0
  %v197 = vadd.f32 0.0, %v196
  %v198 = vpop.f32.mrb[0].mxu0
  %v199 = vpop.f32.mrb[0].mxu0
  %v200 = vadd.f32 0.0, %v199
  %v201 = vpop.f32.mrb[0].mxu0
  %202 = vmatprep.mubr.bf16.mxu0 0
  %203 = vmatmul.mubr.bf16.gmra.mrb[0].mxu0 %v148
  %v204 = vpop.f32.mrb[0].mxu0
  %v205 = vadd.f32 0.0, %v204
  %v206 = vpop.f32.mrb[0].mxu0
  %v207 = vpop.f32.mrb[0].mxu0
  %v208 = vadd.f32 0.0, %v207
  %v209 = vpop.f32.mrb[0].mxu0
  %210 = vmatprep.mubr.bf16.mxu0 0
  %211 = vmatmul.mubr.bf16.gmra.mrb[0].mxu0 %v151
  %v212 = vpop.f32.mrb[0].mxu0
  %v213 = vadd.f32 0.0, %v212
  %v214 = vpop.f32.mrb[0].mxu0
  %v215 = vpop.f32.mrb[0].mxu0
  %v216 = vadd.f32 0.0, %v215
  %v217 = vpop.f32.mrb[0].mxu0
  %218 = vmatprep.mubr.bf16.mxu0 0
  %219 = vmatmul.mubr.bf16.gmra.mrb[0].mxu0 %v154
  %v220 = vpop.f32.mrb[0].mxu0
  %v221 = vadd.f32 0.0, %v220
  %v222 = vpop.f32.mrb[0].mxu0
  %v223 = vpop.f32.mrb[0].mxu0
  %v224 = vadd.f32 0.0, %v223
  %v225 = vpop.f32.mrb[0].mxu0
  %226 = vmatprep.mubr.bf16.mxu0 0
  %227 = vmatmul.mubr.bf16.gmra.mrb[0].mxu0 %v157
  %v228 = vpop.f32.mrb[0].mxu0
  %v229 = vadd.f32 0.0, %v228
  %v230 = vpop.f32.mrb[0].mxu0
  %v231 = vpop.f32.mrb[0].mxu0
  %v232 = vadd.f32 0.0, %v231
  %v233 = vpop.f32.mrb[0].mxu0
  %234 = vmatprep.mubr.bf16.mxu0 0
  %235 = vmatmul.mubr.bf16.gmra.mrb[0].mxu0 %v160
  %v236 = vpop.f32.mrb[0].mxu0
  %v237 = vadd.f32 0.0, %v236
  %v238 = vpop.f32.mrb[0].mxu0
  %v239 = vpop.f32.mrb[0].mxu0
  %v240 = vadd.f32 0.0, %v239
  %v241 = vpop.f32.mrb[0].mxu0
  %242 = vdwg.mxu0
  %v255 = vunpack.c.l.b16 %v27
  %v256 = vunpack.c.l.b16 %v28
  %v257 = vunpack.c.l.b16 %v29
  %v258 = vunpack.c.l.b16 %v30
  %v259 = vunpack.c.l.b16 %v31
  %v260 = vunpack.c.l.b16 %v32
  %v261 = vunpack.c.l.b16 %v33
  %v262 = vunpack.c.l.b16 %v34
  %v263 = vunpack.c.l.b16 %v35
  %v264 = vunpack.c.l.b16 %v36
  %v265 = vunpack.c.l.b16 %v37
  %v266 = vunpack.c.l.b16 %v38
  %v267 = vpack.c.b16 %v256, %v255
  %v268 = vpack.c.b16 %v258, %v257
  %v269 = vpack.c.b16 %v260, %v259
  %v270 = vpack.c.b16 %v262, %v261
  %v271 = vpack.c.b16 %v264, %v263
  %v272 = vpack.c.b16 %v266, %v265
  %v285 = vunpack.c.l.b16 %v39
  %v286 = vunpack.c.l.b16 %v40
  %v287 = vunpack.c.l.b16 %v41
  %v288 = vunpack.c.l.b16 %v42
  %v289 = vunpack.c.l.b16 %v43
  %v290 = vunpack.c.l.b16 %v44
  %v291 = vunpack.c.l.b16 %v45
  %v292 = vunpack.c.l.b16 %v46
  %v293 = vunpack.c.l.b16 %v47
  %v294 = vunpack.c.l.b16 %v48
  %v295 = vunpack.c.l.b16 %v49
  %v296 = vunpack.c.l.b16 %v50
  %v297 = vpack.c.b16 %v286, %v285
  %v298 = vpack.c.b16 %v288, %v287
  %v299 = vpack.c.b16 %v290, %v289
  %v300 = vpack.c.b16 %v292, %v291
  %v301 = vpack.c.b16 %v294, %v293
  %v302 = vpack.c.b16 %v296, %v295
  %v310 = vsel %vm143, %v267, 0
  %v313 = vsel %vm143, %v268, 0
  %v316 = vsel %vm143, %v269, 0
  %v319 = vsel %vm143, %v270, 0
  %v322 = vsel %vm143, %v271, 0
  %v325 = vsel %vm143, %v272, 0
  %327 = vmatprep.subr.bf16.mxu0 0
  %328 = vmatpush1.bf16.msra.mxu0 %v297
  %329 = vmatprep.subr.bf16.mxu0 0
  %330 = vmatpush1.bf16.msra.mxu0 %v298
  %331 = vmatprep.subr.bf16.mxu0 0
  %332 = vmatpush1.bf16.msra.mxu0 %v299
  %333 = vmatprep.subr.bf16.mxu0 0
  %334 = vmatpush1.bf16.msra.mxu0 %v300
  %335 = vmatprep.subr.bf16.mxu0 0
  %336 = vmatpush1.bf16.msra.mxu0 %v301
  %337 = vmatprep.subr.bf16.mxu0 0
  %338 = vmatpush1.bf16.msra.mxu0 %v302
  %339 = vmatprep.subr.bf16.mxu0 0
  %340 = vmatpush1.bf16.msra.mxu0 0
  %341 = vmatprep.subr.bf16.mxu0 0
  %342 = vmatpush1.bf16.msra.mxu0 0
  %343 = vmatprep.subr.bf16.mxu0 0
  %344 = vmatpush1.bf16.msra.mxu0 0
  %345 = vmatprep.subr.bf16.mxu0 0
  %346 = vmatpush1.bf16.msra.mxu0 0
  %347 = vmatprep.subr.bf16.mxu0 0
  %348 = vmatpush1.bf16.msra.mxu0 0
  %349 = vmatprep.subr.bf16.mxu0 0
  %350 = vmatpush1.bf16.msra.mxu0 0
  %351 = vmatprep.subr.bf16.mxu0 0
  %352 = vmatpush1.bf16.msra.mxu0 0
  %353 = vmatprep.subr.bf16.mxu0 0
  %354 = vmatpush1.bf16.msra.mxu0 0
  %355 = vmatprep.subr.bf16.mxu0 0
  %356 = vmatpush1.bf16.msra.mxu0 0
  %357 = vmatprep.subr.bf16.mxu0 0
  %358 = vmatpush1.bf16.msra.mxu0 0
  %359 = vmatprep.mubr.bf16.mxu0 0
  %360 = vmatmul.mubr.bf16.gmra.mrb[0].mxu0 %v310
  %v361 = vpop.f32.mrb[0].mxu0
  %v362 = vadd.f32 %v197, %v361
  %v363 = vpop.f32.mrb[0].mxu0
  %v364 = vpop.f32.mrb[0].mxu0
  %v365 = vadd.f32 %v200, %v364
  %v366 = vpop.f32.mrb[0].mxu0
  %367 = vmatprep.mubr.bf16.mxu0 0
  %368 = vmatmul.mubr.bf16.gmra.mrb[0].mxu0 %v313
  %v369 = vpop.f32.mrb[0].mxu0
  %v370 = vadd.f32 %v205, %v369
  %v371 = vpop.f32.mrb[0].mxu0
  %v372 = vpop.f32.mrb[0].mxu0
  %v373 = vadd.f32 %v208, %v372
  %v374 = vpop.f32.mrb[0].mxu0
  %375 = vmatprep.mubr.bf16.mxu0 0
  %376 = vmatmul.mubr.bf16.gmra.mrb[0].mxu0 %v316
  %v377 = vpop.f32.mrb[0].mxu0
  %v378 = vadd.f32 %v213, %v377
  %v379 = vpop.f32.mrb[0].mxu0
  %v380 = vpop.f32.mrb[0].mxu0
  %v381 = vadd.f32 %v216, %v380
  %v382 = vpop.f32.mrb[0].mxu0
  %383 = vmatprep.mubr.bf16.mxu0 0
  %384 = vmatmul.mubr.bf16.gmra.mrb[0].mxu0 %v319
  %v385 = vpop.f32.mrb[0].mxu0
  %v386 = vadd.f32 %v221, %v385
  %v387 = vpop.f32.mrb[0].mxu0
  %v388 = vpop.f32.mrb[0].mxu0
  %v389 = vadd.f32 %v224, %v388
  %v390 = vpop.f32.mrb[0].mxu0
  %391 = vmatprep.mubr.bf16.mxu0 0
  %392 = vmatmul.mubr.bf16.gmra.mrb[0].mxu0 %v322
  %v393 = vpop.f32.mrb[0].mxu0
  %v394 = vadd.f32 %v229, %v393
  %v395 = vpop.f32.mrb[0].mxu0
  %v396 = vpop.f32.mrb[0].mxu0
  %v397 = vadd.f32 %v232, %v396
  %v398 = vpop.f32.mrb[0].mxu0
  %399 = vmatprep.mubr.bf16.mxu0 0
  %400 = vmatmul.mubr.bf16.gmra.mrb[0].mxu0 %v325
  %v401 = vpop.f32.mrb[0].mxu0
  %v402 = vadd.f32 %v237, %v401
  %v403 = vpop.f32.mrb[0].mxu0
  %v404 = vpop.f32.mrb[0].mxu0
  %v405 = vadd.f32 %v240, %v404
  %v406 = vpop.f32.mrb[0].mxu0
  %407 = vdwg.mxu0
  %v408 = vld [vmem:[%s0 + $0x4] sm:$0xf]
  %v409 = vld [vmem:[%s0 + $0x8] sm:$0xf]
  %v410 = vld [vmem:[%s0 + $0xc] sm:$0xf]
  %v411 = vld [vmem:[%s0 + $0x10] sm:$0xf]
  %v412 = vld [vmem:[%s0 + $0x14] sm:$0xf]
  %v413 = vld [vmem:[%s0 + $0x18] sm:$0xf]
  %v414 = vld [vmem:[%s0 + $0x1c] sm:$0xf]
  %v415 = vld [vmem:[%s0 + $0x20] sm:$0xf]
  %v416 = vld [vmem:[%s0 + $0x24] sm:$0xf]
  %v417 = vld [vmem:[%s0 + $0x28] sm:$0xf]
  %v418 = vld [vmem:[%s0 + $0x2c] sm:$0xf]
  %v419 = vld [vmem:[%s0 + $0x30] sm:$0xf]
  %s420 = scalar_lea.vmem %s1, 288
  %v421 = vld [vmem:[%s420] sm:$0xf]
  %v422 = vld [vmem:[%s420 + $0xc] sm:$0xf]
  %v423 = vld [vmem:[%s420 + $0x18] sm:$0xf]
  %v424 = vld [vmem:[%s420 + $0x24] sm:$0xf]
  %v425 = vld [vmem:[%s420 + $0x30] sm:$0xf]
  %v426 = vld [vmem:[%s420 + $0x3c] sm:$0xf]
  %v427 = vld [vmem:[%s420 + $0x48] sm:$0xf]
  %v428 = vld [vmem:[%s420 + $0x54] sm:$0xf]
  %v429 = vld [vmem:[%s420 + $0x60] sm:$0xf]
  %v430 = vld [vmem:[%s420 + $0x6c] sm:$0xf]
  %v431 = vld [vmem:[%s420 + $0x78] sm:$0xf]
  %v432 = vld [vmem:[%s420 + $0x84] sm:$0xf]
  %v445 = vunpack.c.l.b16 %v408
  %v446 = vunpack.c.l.b16 %v409
  %v447 = vunpack.c.l.b16 %v410
  %v448 = vunpack.c.l.b16 %v411
  %v449 = vunpack.c.l.b16 %v412
  %v450 = vunpack.c.l.b16 %v413
  %v451 = vunpack.c.l.b16 %v414
  %v452 = vunpack.c.l.b16 %v415
  %v453 = vunpack.c.l.b16 %v416
  %v454 = vunpack.c.l.b16 %v417
  %v455 = vunpack.c.l.b16 %v418
  %v456 = vunpack.c.l.b16 %v419
  %v457 = vpack.c.b16 %v446, %v445
  %v458 = vpack.c.b16 %v448, %v447
  %v459 = vpack.c.b16 %v450, %v449
  %v460 = vpack.c.b16 %v452, %v451
  %v461 = vpack.c.b16 %v454, %v453
  %v462 = vpack.c.b16 %v456, %v455
  %v475 = vunpack.c.l.b16 %v421
  %v476 = vunpack.c.l.b16 %v422
  %v477 = vunpack.c.l.b16 %v423
  %v478 = vunpack.c.l.b16 %v424
  %v479 = vunpack.c.l.b16 %v425
  %v480 = vunpack.c.l.b16 %v426
  %v481 = vunpack.c.l.b16 %v427
  %v482 = vunpack.c.l.b16 %v428
  %v483 = vunpack.c.l.b16 %v429
  %v484 = vunpack.c.l.b16 %v430
  %v485 = vunpack.c.l.b16 %v431
  %v486 = vunpack.c.l.b16 %v432
  %v487 = vpack.c.b16 %v476, %v475
  %v488 = vpack.c.b16 %v478, %v477
  %v489 = vpack.c.b16 %v480, %v479
  %v490 = vpack.c.b16 %v482, %v481
  %v491 = vpack.c.b16 %v484, %v483
  %v492 = vpack.c.b16 %v486, %v485
  %v500 = vsel %vm143, %v457, 0
  %v503 = vsel %vm143, %v458, 0
  %v506 = vsel %vm143, %v459, 0
  %v509 = vsel %vm143, %v460, 0
  %v512 = vsel %vm143, %v461, 0
  %v515 = vsel %vm143, %v462, 0
  %517 = vmatprep.subr.bf16.mxu0 0
  %518 = vmatpush1.bf16.msra.mxu0 %v487
  %519 = vmatprep.subr.bf16.mxu0 0
  %520 = vmatpush1.bf16.msra.mxu0 %v488
  %521 = vmatprep.subr.bf16.mxu0 0
  %522 = vmatpush1.bf16.msra.mxu0 %v489
  %523 = vmatprep.subr.bf16.mxu0 0
  %524 = vmatpush1.bf16.msra.mxu0 %v490
  %525 = vmatprep.subr.bf16.mxu0 0
  %526 = vmatpush1.bf16.msra.mxu0 %v491
  %527 = vmatprep.subr.bf16.mxu0 0
  %528 = vmatpush1.bf16.msra.mxu0 %v492
  %529 = vmatprep.subr.bf16.mxu0 0
  %530 = vmatpush1.bf16.msra.mxu0 0
  %531 = vmatprep.subr.bf16.mxu0 0
  %532 = vmatpush1.bf16.msra.mxu0 0
  %533 = vmatprep.subr.bf16.mxu0 0
  %534 = vmatpush1.bf16.msra.mxu0 0
  %535 = vmatprep.subr.bf16.mxu0 0
  %536 = vmatpush1.bf16.msra.mxu0 0
  %537 = vmatprep.subr.bf16.mxu0 0
  %538 = vmatpush1.bf16.msra.mxu0 0
  %539 = vmatprep.subr.bf16.mxu0 0
  %540 = vmatpush1.bf16.msra.mxu0 0
  %541 = vmatprep.subr.bf16.mxu0 0
  %542 = vmatpush1.bf16.msra.mxu0 0
  %543 = vmatprep.subr.bf16.mxu0 0
  %544 = vmatpush1.bf16.msra.mxu0 0
  %545 = vmatprep.subr.bf16.mxu0 0
  %546 = vmatpush1.bf16.msra.mxu0 0
  %547 = vmatprep.subr.bf16.mxu0 0
  %548 = vmatpush1.bf16.msra.mxu0 0
  %549 = vmatprep.mubr.bf16.mxu0 0
  %550 = vmatmul.mubr.bf16.gmra.mrb[0].mxu0 %v500
  %v551 = vpop.f32.mrb[0].mxu0
  %v552 = vadd.f32 0.0, %v551
  %v553 = vpop.f32.mrb[0].mxu0
  %v554 = vpop.f32.mrb[0].mxu0
  %v555 = vadd.f32 0.0, %v554
  %v556 = vpop.f32.mrb[0].mxu0
  %557 = vmatprep.mubr.bf16.mxu0 0
  %558 = vmatmul.mubr.bf16.gmra.mrb[0].mxu0 %v503
  %v559 = vpop.f32.mrb[0].mxu0
  %v560 = vadd.f32 0.0, %v559
  %v561 = vpop.f32.mrb[0].mxu0
  %v562 = vpop.f32.mrb[0].mxu0
  %v563 = vadd.f32 0.0, %v562
  %v564 = vpop.f32.mrb[0].mxu0
  %565 = vmatprep.mubr.bf16.mxu0 0
  %566 = vmatmul.mubr.bf16.gmra.mrb[0].mxu0 %v506
  %v567 = vpop.f32.mrb[0].mxu0
  %v568 = vadd.f32 0.0, %v567
  %v569 = vpop.f32.mrb[0].mxu0
  %v570 = vpop.f32.mrb[0].mxu0
  %v571 = vadd.f32 0.0, %v570
  %v572 = vpop.f32.mrb[0].mxu0
  %573 = vmatprep.mubr.bf16.mxu0 0
  %574 = vmatmul.mubr.bf16.gmra.mrb[0].mxu0 %v509
  %v575 = vpop.f32.mrb[0].mxu0
  %v576 = vadd.f32 0.0, %v575
  %v577 = vpop.f32.mrb[0].mxu0
  %v578 = vpop.f32.mrb[0].mxu0
  %v579 = vadd.f32 0.0, %v578
  %v580 = vpop.f32.mrb[0].mxu0
  %581 = vmatprep.mubr.bf16.mxu0 0
  %582 = vmatmul.mubr.bf16.gmra.mrb[0].mxu0 %v512
  %v583 = vpop.f32.mrb[0].mxu0
  %v584 = vadd.f32 0.0, %v583
  %v585 = vpop.f32.mrb[0].mxu0
  %v586 = vpop.f32.mrb[0].mxu0
  %v587 = vadd.f32 0.0, %v586
  %v588 = vpop.f32.mrb[0].mxu0
  %589 = vmatprep.mubr.bf16.mxu0 0
  %590 = vmatmul.mubr.bf16.gmra.mrb[0].mxu0 %v515
  %v591 = vpop.f32.mrb[0].mxu0
  %v592 = vadd.f32 0.0, %v591
  %v593 = vpop.f32.mrb[0].mxu0
  %v594 = vpop.f32.mrb[0].mxu0
  %v595 = vadd.f32 0.0, %v594
  %v596 = vpop.f32.mrb[0].mxu0
  %597 = vdwg.mxu0
  %v598 = vadd.f32 %v362, %v552
  %v599 = vadd.f32 %v365, %v555
  %v600 = vadd.f32 %v370, %v560
  %v601 = vadd.f32 %v373, %v563
  %v602 = vadd.f32 %v378, %v568
  %v603 = vadd.f32 %v381, %v571
  %v604 = vadd.f32 %v386, %v576
  %v605 = vadd.f32 %v389, %v579
  %v606 = vadd.f32 %v394, %v584
  %v607 = vadd.f32 %v397, %v587
  %v608 = vadd.f32 %v402, %v592
  %v609 = vadd.f32 %v405, %v595
  %v610 = vld [vmem:[%s51 + $0x4] sm:$0xf]
  %v611 = vld [vmem:[%s51 + $0x8] sm:$0xf]
  %v612 = vld [vmem:[%s51 + $0xc] sm:$0xf]
  %v613 = vld [vmem:[%s51 + $0x10] sm:$0xf]
  %v614 = vld [vmem:[%s51 + $0x14] sm:$0xf]
  %v615 = vld [vmem:[%s51 + $0x18] sm:$0xf]
  %v616 = vld [vmem:[%s51 + $0x1c] sm:$0xf]
  %v617 = vld [vmem:[%s51 + $0x20] sm:$0xf]
  %v618 = vld [vmem:[%s51 + $0x24] sm:$0xf]
  %v619 = vld [vmem:[%s51 + $0x28] sm:$0xf]
  %v620 = vld [vmem:[%s51 + $0x2c] sm:$0xf]
  %v621 = vld [vmem:[%s51 + $0x30] sm:$0xf]
  %s622 = scalar_lea.vmem %s1, 432
  %v623 = vld [vmem:[%s622] sm:$0xf]
  %v624 = vld [vmem:[%s622 + $0xc] sm:$0xf]
  %v625 = vld [vmem:[%s622 + $0x18] sm:$0xf]
  %v626 = vld [vmem:[%s622 + $0x24] sm:$0xf]
  %v627 = vld [vmem:[%s622 + $0x30] sm:$0xf]
  %v628 = vld [vmem:[%s622 + $0x3c] sm:$0xf]
  %v629 = vld [vmem:[%s622 + $0x48] sm:$0xf]
  %v630 = vld [vmem:[%s622 + $0x54] sm:$0xf]
  %v631 = vld [vmem:[%s622 + $0x60] sm:$0xf]
  %v632 = vld [vmem:[%s622 + $0x6c] sm:$0xf]
  %v633 = vld [vmem:[%s622 + $0x78] sm:$0xf]
  %v634 = vld [vmem:[%s622 + $0x84] sm:$0xf]
  %v647 = vunpack.c.l.b16 %v610
  %v648 = vunpack.c.l.b16 %v611
  %v649 = vunpack.c.l.b16 %v612
  %v650 = vunpack.c.l.b16 %v613
  %v651 = vunpack.c.l.b16 %v614
  %v652 = vunpack.c.l.b16 %v615
  %v653 = vunpack.c.l.b16 %v616
  %v654 = vunpack.c.l.b16 %v617
  %v655 = vunpack.c.l.b16 %v618
  %v656 = vunpack.c.l.b16 %v619
  %v657 = vunpack.c.l.b16 %v620
  %v658 = vunpack.c.l.b16 %v621
  %v659 = vpack.c.b16 %v648, %v647
  %v660 = vpack.c.b16 %v650, %v649
  %v661 = vpack.c.b16 %v652, %v651
  %v662 = vpack.c.b16 %v654, %v653
  %v663 = vpack.c.b16 %v656, %v655
  %v664 = vpack.c.b16 %v658, %v657
  %v677 = vunpack.c.l.b16 %v623
  %v678 = vunpack.c.l.b16 %v624
  %v679 = vunpack.c.l.b16 %v625
  %v680 = vunpack.c.l.b16 %v626
  %v681 = vunpack.c.l.b16 %v627
  %v682 = vunpack.c.l.b16 %v628
  %v683 = vunpack.c.l.b16 %v629
  %v684 = vunpack.c.l.b16 %v630
  %v685 = vunpack.c.l.b16 %v631
  %v686 = vunpack.c.l.b16 %v632
  %v687 = vunpack.c.l.b16 %v633
  %v688 = vunpack.c.l.b16 %v634
  %v689 = vpack.c.b16 %v678, %v677
  %v690 = vpack.c.b16 %v680, %v679
  %v691 = vpack.c.b16 %v682, %v681
  %v692 = vpack.c.b16 %v684, %v683
  %v693 = vpack.c.b16 %v686, %v685
  %v694 = vpack.c.b16 %v688, %v687
  %v702 = vsel %vm143, %v659, 0
  %v705 = vsel %vm143, %v660, 0
  %v708 = vsel %vm143, %v661, 0
  %v711 = vsel %vm143, %v662, 0
  %v714 = vsel %vm143, %v663, 0
  %v717 = vsel %vm143, %v664, 0
  %719 = vmatprep.subr.bf16.mxu0 0
  %720 = vmatpush1.bf16.msra.mxu0 %v689
  %721 = vmatprep.subr.bf16.mxu0 0
  %722 = vmatpush1.bf16.msra.mxu0 %v690
  %723 = vmatprep.subr.bf16.mxu0 0
  %724 = vmatpush1.bf16.msra.mxu0 %v691
  %725 = vmatprep.subr.bf16.mxu0 0
  %726 = vmatpush1.bf16.msra.mxu0 %v692
  %727 = vmatprep.subr.bf16.mxu0 0
  %728 = vmatpush1.bf16.msra.mxu0 %v693
  %729 = vmatprep.subr.bf16.mxu0 0
  %730 = vmatpush1.bf16.msra.mxu0 %v694
  %731 = vmatprep.subr.bf16.mxu0 0
  %732 = vmatpush1.bf16.msra.mxu0 0
  %733 = vmatprep.subr.bf16.mxu0 0
  %734 = vmatpush1.bf16.msra.mxu0 0
  %735 = vmatprep.subr.bf16.mxu0 0
  %736 = vmatpush1.bf16.msra.mxu0 0
  %737 = vmatprep.subr.bf16.mxu0 0
  %738 = vmatpush1.bf16.msra.mxu0 0
  %739 = vmatprep.subr.bf16.mxu0 0
  %740 = vmatpush1.bf16.msra.mxu0 0
  %741 = vmatprep.subr.bf16.mxu0 0
  %742 = vmatpush1.bf16.msra.mxu0 0
  %743 = vmatprep.subr.bf16.mxu0 0
  %744 = vmatpush1.bf16.msra.mxu0 0
  %745 = vmatprep.subr.bf16.mxu0 0
  %746 = vmatpush1.bf16.msra.mxu0 0
  %747 = vmatprep.subr.bf16.mxu0 0
  %748 = vmatpush1.bf16.msra.mxu0 0
  %749 = vmatprep.subr.bf16.mxu0 0
  %750 = vmatpush1.bf16.msra.mxu0 0
  %751 = vmatprep.mubr.bf16.mxu0 0
  %752 = vmatmul.mubr.bf16.gmra.mrb[0].mxu0 %v702
  %v753 = vpop.f32.mrb[0].mxu0
  %v754 = vadd.f32 0.0, %v753
  %v755 = vpop.f32.mrb[0].mxu0
  %v756 = vpop.f32.mrb[0].mxu0
  %v757 = vadd.f32 0.0, %v756
  %v758 = vpop.f32.mrb[0].mxu0
  %759 = vmatprep.mubr.bf16.mxu0 0
  %760 = vmatmul.mubr.bf16.gmra.mrb[0].mxu0 %v705
  %v761 = vpop.f32.mrb[0].mxu0
  %v762 = vadd.f32 0.0, %v761
  %v763 = vpop.f32.mrb[0].mxu0
  %v764 = vpop.f32.mrb[0].mxu0
  %v765 = vadd.f32 0.0, %v764
  %v766 = vpop.f32.mrb[0].mxu0
  %767 = vmatprep.mubr.bf16.mxu0 0
  %768 = vmatmul.mubr.bf16.gmra.mrb[0].mxu0 %v708
  %v769 = vpop.f32.mrb[0].mxu0
  %v770 = vadd.f32 0.0, %v769
  %v771 = vpop.f32.mrb[0].mxu0
  %v772 = vpop.f32.mrb[0].mxu0
  %v773 = vadd.f32 0.0, %v772
  %v774 = vpop.f32.mrb[0].mxu0
  %775 = vmatprep.mubr.bf16.mxu0 0
  %776 = vmatmul.mubr.bf16.gmra.mrb[0].mxu0 %v711
  %v777 = vpop.f32.mrb[0].mxu0
  %v778 = vadd.f32 0.0, %v777
  %v779 = vpop.f32.mrb[0].mxu0
  %v780 = vpop.f32.mrb[0].mxu0
  %v781 = vadd.f32 0.0, %v780
  %v782 = vpop.f32.mrb[0].mxu0
  %783 = vmatprep.mubr.bf16.mxu0 0
  %784 = vmatmul.mubr.bf16.gmra.mrb[0].mxu0 %v714
  %v785 = vpop.f32.mrb[0].mxu0
  %v786 = vadd.f32 0.0, %v785
  %v787 = vpop.f32.mrb[0].mxu0
  %v788 = vpop.f32.mrb[0].mxu0
  %v789 = vadd.f32 0.0, %v788
  %v790 = vpop.f32.mrb[0].mxu0
  %791 = vmatprep.mubr.bf16.mxu0 0
  %792 = vmatmul.mubr.bf16.gmra.mrb[0].mxu0 %v717
  %v793 = vpop.f32.mrb[0].mxu0
  %v794 = vadd.f32 0.0, %v793
  %v795 = vpop.f32.mrb[0].mxu0
  %v796 = vpop.f32.mrb[0].mxu0
  %v797 = vadd.f32 0.0, %v796
  %v798 = vpop.f32.mrb[0].mxu0
  %799 = vdwg.mxu0
  %v800 = vadd.f32 %v598, %v754
  %v801 = vadd.f32 %v599, %v757
  %v802 = vadd.f32 %v600, %v762
  %v803 = vadd.f32 %v601, %v765
  %v804 = vadd.f32 %v602, %v770
  %v805 = vadd.f32 %v603, %v773
  %v806 = vadd.f32 %v604, %v778
  %v807 = vadd.f32 %v605, %v781
  %v808 = vadd.f32 %v606, %v786
  %v809 = vadd.f32 %v607, %v789
  %v810 = vadd.f32 %v608, %v794
  %v811 = vadd.f32 %v609, %v797
  %v812 = vld [vmem:[%s0 + $0x8] sm:$0xf]
  %v813 = vld [vmem:[%s0 + $0xc] sm:$0xf]
  %v814 = vld [vmem:[%s0 + $0x10] sm:$0xf]
  %v815 = vld [vmem:[%s0 + $0x14] sm:$0xf]
  %v816 = vld [vmem:[%s0 + $0x18] sm:$0xf]
  %v817 = vld [vmem:[%s0 + $0x1c] sm:$0xf]
  %v818 = vld [vmem:[%s0 + $0x20] sm:$0xf]
  %v819 = vld [vmem:[%s0 + $0x24] sm:$0xf]
  %v820 = vld [vmem:[%s0 + $0x28] sm:$0xf]
  %v821 = vld [vmem:[%s0 + $0x2c] sm:$0xf]
  %v822 = vld [vmem:[%s0 + $0x30] sm:$0xf]
  %v823 = vld [vmem:[%s0 + $0x34] sm:$0xf]
  %s824 = scalar_lea.vmem %s1, 576
  %v825 = vld [vmem:[%s824] sm:$0xf]
  %v826 = vld [vmem:[%s824 + $0xc] sm:$0xf]
  %v827 = vld [vmem:[%s824 + $0x18] sm:$0xf]
  %v828 = vld [vmem:[%s824 + $0x24] sm:$0xf]
  %v829 = vld [vmem:[%s824 + $0x30] sm:$0xf]
  %v830 = vld [vmem:[%s824 + $0x3c] sm:$0xf]
  %v831 = vld [vmem:[%s824 + $0x48] sm:$0xf]
  %v832 = vld [vmem:[%s824 + $0x54] sm:$0xf]
  %v833 = vld [vmem:[%s824 + $0x60] sm:$0xf]
  %v834 = vld [vmem:[%s824 + $0x6c] sm:$0xf]
  %v835 = vld [vmem:[%s824 + $0x78] sm:$0xf]
  %v836 = vld [vmem:[%s824 + $0x84] sm:$0xf]
  %v849 = vunpack.c.l.b16 %v812
  %v850 = vunpack.c.l.b16 %v813
  %v851 = vunpack.c.l.b16 %v814
  %v852 = vunpack.c.l.b16 %v815
  %v853 = vunpack.c.l.b16 %v816
  %v854 = vunpack.c.l.b16 %v817
  %v855 = vunpack.c.l.b16 %v818
  %v856 = vunpack.c.l.b16 %v819
  %v857 = vunpack.c.l.b16 %v820
  %v858 = vunpack.c.l.b16 %v821
  %v859 = vunpack.c.l.b16 %v822
  %v860 = vunpack.c.l.b16 %v823
  %v861 = vpack.c.b16 %v850, %v849
  %v862 = vpack.c.b16 %v852, %v851
  %v863 = vpack.c.b16 %v854, %v853
  %v864 = vpack.c.b16 %v856, %v855
  %v865 = vpack.c.b16 %v858, %v857
  %v866 = vpack.c.b16 %v860, %v859
  %v879 = vunpack.c.l.b16 %v825
  %v880 = vunpack.c.l.b16 %v826
  %v881 = vunpack.c.l.b16 %v827
  %v882 = vunpack.c.l.b16 %v828
  %v883 = vunpack.c.l.b16 %v829
  %v884 = vunpack.c.l.b16 %v830
  %v885 = vunpack.c.l.b16 %v831
  %v886 = vunpack.c.l.b16 %v832
  %v887 = vunpack.c.l.b16 %v833
  %v888 = vunpack.c.l.b16 %v834
  %v889 = vunpack.c.l.b16 %v835
  %v890 = vunpack.c.l.b16 %v836
  %v891 = vpack.c.b16 %v880, %v879
  %v892 = vpack.c.b16 %v882, %v881
  %v893 = vpack.c.b16 %v884, %v883
  %v894 = vpack.c.b16 %v886, %v885
  %v895 = vpack.c.b16 %v888, %v887
  %v896 = vpack.c.b16 %v890, %v889
  %v904 = vsel %vm143, %v861, 0
  %v907 = vsel %vm143, %v862, 0
  %v910 = vsel %vm143, %v863, 0
  %v913 = vsel %vm143, %v864, 0
  %v916 = vsel %vm143, %v865, 0
  %v919 = vsel %vm143, %v866, 0
  %921 = vmatprep.subr.bf16.mxu0 0
  %922 = vmatpush1.bf16.msra.mxu0 %v891
  %923 = vmatprep.subr.bf16.mxu0 0
  %924 = vmatpush1.bf16.msra.mxu0 %v892
  %925 = vmatprep.subr.bf16.mxu0 0
  %926 = vmatpush1.bf16.msra.mxu0 %v893
  %927 = vmatprep.subr.bf16.mxu0 0
  %928 = vmatpush1.bf16.msra.mxu0 %v894
  %929 = vmatprep.subr.bf16.mxu0 0
  %930 = vmatpush1.bf16.msra.mxu0 %v895
  %931 = vmatprep.subr.bf16.mxu0 0
  %932 = vmatpush1.bf16.msra.mxu0 %v896
  %933 = vmatprep.subr.bf16.mxu0 0
  %934 = vmatpush1.bf16.msra.mxu0 0
  %935 = vmatprep.subr.bf16.mxu0 0
  %936 = vmatpush1.bf16.msra.mxu0 0
  %937 = vmatprep.subr.bf16.mxu0 0
  %938 = vmatpush1.bf16.msra.mxu0 0
  %939 = vmatprep.subr.bf16.mxu0 0
  %940 = vmatpush1.bf16.msra.mxu0 0
  %941 = vmatprep.subr.bf16.mxu0 0
  %942 = vmatpush1.bf16.msra.mxu0 0
  %943 = vmatprep.subr.bf16.mxu0 0
  %944 = vmatpush1.bf16.msra.mxu0 0
  %945 = vmatprep.subr.bf16.mxu0 0
  %946 = vmatpush1.bf16.msra.mxu0 0
  %947 = vmatprep.subr.bf16.mxu0 0
  %948 = vmatpush1.bf16.msra.mxu0 0
  %949 = vmatprep.subr.bf16.mxu0 0
  %950 = vmatpush1.bf16.msra.mxu0 0
  %951 = vmatprep.subr.bf16.mxu0 0
  %952 = vmatpush1.bf16.msra.mxu0 0
  %953 = vmatprep.mubr.bf16.mxu0 0
  %954 = vmatmul.mubr.bf16.gmra.mrb[0].mxu0 %v904
  %v955 = vpop.f32.mrb[0].mxu0
  %v956 = vadd.f32 0.0, %v955
  %v957 = vpop.f32.mrb[0].mxu0
  %v958 = vpop.f32.mrb[0].mxu0
  %v959 = vadd.f32 0.0, %v958
  %v960 = vpop.f32.mrb[0].mxu0
  %961 = vmatprep.mubr.bf16.mxu0 0
  %962 = vmatmul.mubr.bf16.gmra.mrb[0].mxu0 %v907
  %v963 = vpop.f32.mrb[0].mxu0
  %v964 = vadd.f32 0.0, %v963
  %v965 = vpop.f32.mrb[0].mxu0
  %v966 = vpop.f32.mrb[0].mxu0
  %v967 = vadd.f32 0.0, %v966
  %v968 = vpop.f32.mrb[0].mxu0
  %969 = vmatprep.mubr.bf16.mxu0 0
  %970 = vmatmul.mubr.bf16.gmra.mrb[0].mxu0 %v910
  %v971 = vpop.f32.mrb[0].mxu0
  %v972 = vadd.f32 0.0, %v971
  %v973 = vpop.f32.mrb[0].mxu0
  %v974 = vpop.f32.mrb[0].mxu0
  %v975 = vadd.f32 0.0, %v974
  %v976 = vpop.f32.mrb[0].mxu0
  %977 = vmatprep.mubr.bf16.mxu0 0
  %978 = vmatmul.mubr.bf16.gmra.mrb[0].mxu0 %v913
  %v979 = vpop.f32.mrb[0].mxu0
  %v980 = vadd.f32 0.0, %v979
  %v981 = vpop.f32.mrb[0].mxu0
  %v982 = vpop.f32.mrb[0].mxu0
  %v983 = vadd.f32 0.0, %v982
  %v984 = vpop.f32.mrb[0].mxu0
  %985 = vmatprep.mubr.bf16.mxu0 0
  %986 = vmatmul.mubr.bf16.gmra.mrb[0].mxu0 %v916
  %v987 = vpop.f32.mrb[0].mxu0
  %v988 = vadd.f32 0.0, %v987
  %v989 = vpop.f32.mrb[0].mxu0
  %v990 = vpop.f32.mrb[0].mxu0
  %v991 = vadd.f32 0.0, %v990
  %v992 = vpop.f32.mrb[0].mxu0
  %993 = vmatprep.mubr.bf16.mxu0 0
  %994 = vmatmul.mubr.bf16.gmra.mrb[0].mxu0 %v919
  %v995 = vpop.f32.mrb[0].mxu0
  %v996 = vadd.f32 0.0, %v995
  %v997 = vpop.f32.mrb[0].mxu0
  %v998 = vpop.f32.mrb[0].mxu0
  %v999 = vadd.f32 0.0, %v998
  %v1000 = vpop.f32.mrb[0].mxu0
  %1001 = vdwg.mxu0
  %v1002 = vadd.f32 %v800, %v956
  %v1003 = vadd.f32 %v801, %v959
  %v1004 = vadd.f32 %v802, %v964
  %v1005 = vadd.f32 %v803, %v967
  %v1006 = vadd.f32 %v804, %v972
  %v1007 = vadd.f32 %v805, %v975
  %v1008 = vadd.f32 %v806, %v980
  %v1009 = vadd.f32 %v807, %v983
  %v1010 = vadd.f32 %v808, %v988
  %v1011 = vadd.f32 %v809, %v991
  %v1012 = vadd.f32 %v810, %v996
  %v1013 = vadd.f32 %v811, %v999
  %v1014 = vld [vmem:[%s51 + $0x8] sm:$0xf]
  %v1015 = vld [vmem:[%s51 + $0xc] sm:$0xf]
  %v1016 = vld [vmem:[%s51 + $0x10] sm:$0xf]
  %v1017 = vld [vmem:[%s51 + $0x14] sm:$0xf]
  %v1018 = vld [vmem:[%s51 + $0x18] sm:$0xf]
  %v1019 = vld [vmem:[%s51 + $0x1c] sm:$0xf]
  %v1020 = vld [vmem:[%s51 + $0x20] sm:$0xf]
  %v1021 = vld [vmem:[%s51 + $0x24] sm:$0xf]
  %v1022 = vld [vmem:[%s51 + $0x28] sm:$0xf]
  %v1023 = vld [vmem:[%s51 + $0x2c] sm:$0xf]
  %v1024 = vld [vmem:[%s51 + $0x30] sm:$0xf]
  %v1025 = vld [vmem:[%s51 + $0x34] sm:$0xf]
  %s1026 = scalar_lea.vmem %s1, 720
  %v1027 = vld [vmem:[%s1026] sm:$0xf]
  %v1028 = vld [vmem:[%s1026 + $0xc] sm:$0xf]
  %v1029 = vld [vmem:[%s1026 + $0x18] sm:$0xf]
  %v1030 = vld [vmem:[%s1026 + $0x24] sm:$0xf]
  %v1031 = vld [vmem:[%s1026 + $0x30] sm:$0xf]
  %v1032 = vld [vmem:[%s1026 + $0x3c] sm:$0xf]
  %v1033 = vld [vmem:[%s1026 + $0x48] sm:$0xf]
  %v1034 = vld [vmem:[%s1026 + $0x54] sm:$0xf]
  %v1035 = vld [vmem:[%s1026 + $0x60] sm:$0xf]
  %v1036 = vld [vmem:[%s1026 + $0x6c] sm:$0xf]
  %v1037 = vld [vmem:[%s1026 + $0x78] sm:$0xf]
  %v1038 = vld [vmem:[%s1026 + $0x84] sm:$0xf]
  %v1051 = vunpack.c.l.b16 %v1014
  %v1052 = vunpack.c.l.b16 %v1015
  %v1053 = vunpack.c.l.b16 %v1016
  %v1054 = vunpack.c.l.b16 %v1017
  %v1055 = vunpack.c.l.b16 %v1018
  %v1056 = vunpack.c.l.b16 %v1019
  %v1057 = vunpack.c.l.b16 %v1020
  %v1058 = vunpack.c.l.b16 %v1021
  %v1059 = vunpack.c.l.b16 %v1022
  %v1060 = vunpack.c.l.b16 %v1023
  %v1061 = vunpack.c.l.b16 %v1024
  %v1062 = vunpack.c.l.b16 %v1025
  %v1063 = vpack.c.b16 %v1052, %v1051
  %v1064 = vpack.c.b16 %v1054, %v1053
  %v1065 = vpack.c.b16 %v1056, %v1055
  %v1066 = vpack.c.b16 %v1058, %v1057
  %v1067 = vpack.c.b16 %v1060, %v1059
  %v1068 = vpack.c.b16 %v1062, %v1061
  %v1081 = vunpack.c.l.b16 %v1027
  %v1082 = vunpack.c.l.b16 %v1028
  %v1083 = vunpack.c.l.b16 %v1029
  %v1084 = vunpack.c.l.b16 %v1030
  %v1085 = vunpack.c.l.b16 %v1031
  %v1086 = vunpack.c.l.b16 %v1032
  %v1087 = vunpack.c.l.b16 %v1033
  %v1088 = vunpack.c.l.b16 %v1034
  %v1089 = vunpack.c.l.b16 %v1035
  %v1090 = vunpack.c.l.b16 %v1036
  %v1091 = vunpack.c.l.b16 %v1037
  %v1092 = vunpack.c.l.b16 %v1038
  %v1093 = vpack.c.b16 %v1082, %v1081
  %v1094 = vpack.c.b16 %v1084, %v1083
  %v1095 = vpack.c.b16 %v1086, %v1085
  %v1096 = vpack.c.b16 %v1088, %v1087
  %v1097 = vpack.c.b16 %v1090, %v1089
  %v1098 = vpack.c.b16 %v1092, %v1091
  %v1106 = vsel %vm143, %v1063, 0
  %v1109 = vsel %vm143, %v1064, 0
  %v1112 = vsel %vm143, %v1065, 0
  %v1115 = vsel %vm143, %v1066, 0
  %v1118 = vsel %vm143, %v1067, 0
  %v1121 = vsel %vm143, %v1068, 0
  %1123 = vmatprep.subr.bf16.mxu0 0
  %1124 = vmatpush1.bf16.msra.mxu0 %v1093
  %1125 = vmatprep.subr.bf16.mxu0 0
  %1126 = vmatpush1.bf16.msra.mxu0 %v1094
  %1127 = vmatprep.subr.bf16.mxu0 0
  %1128 = vmatpush1.bf16.msra.mxu0 %v1095
  %1129 = vmatprep.subr.bf16.mxu0 0
  %1130 = vmatpush1.bf16.msra.mxu0 %v1096
  %1131 = vmatprep.subr.bf16.mxu0 0
  %1132 = vmatpush1.bf16.msra.mxu0 %v1097
  %1133 = vmatprep.subr.bf16.mxu0 0
  %1134 = vmatpush1.bf16.msra.mxu0 %v1098
  %1135 = vmatprep.subr.bf16.mxu0 0
  %1136 = vmatpush1.bf16.msra.mxu0 0
  %1137 = vmatprep.subr.bf16.mxu0 0
  %1138 = vmatpush1.bf16.msra.mxu0 0
  %1139 = vmatprep.subr.bf16.mxu0 0
  %1140 = vmatpush1.bf16.msra.mxu0 0
  %1141 = vmatprep.subr.bf16.mxu0 0
  %1142 = vmatpush1.bf16.msra.mxu0 0
  %1143 = vmatprep.subr.bf16.mxu0 0
  %1144 = vmatpush1.bf16.msra.mxu0 0
  %1145 = vmatprep.subr.bf16.mxu0 0
  %1146 = vmatpush1.bf16.msra.mxu0 0
  %1147 = vmatprep.subr.bf16.mxu0 0
  %1148 = vmatpush1.bf16.msra.mxu0 0
  %1149 = vmatprep.subr.bf16.mxu0 0
  %1150 = vmatpush1.bf16.msra.mxu0 0
  %1151 = vmatprep.subr.bf16.mxu0 0
  %1152 = vmatpush1.bf16.msra.mxu0 0
  %1153 = vmatprep.subr.bf16.mxu0 0
  %1154 = vmatpush1.bf16.msra.mxu0 0
  %1155 = vmatprep.mubr.bf16.mxu0 0
  %1156 = vmatmul.mubr.bf16.gmra.mrb[0].mxu0 %v1106
  %v1157 = vpop.f32.mrb[0].mxu0
  %v1158 = vadd.f32 0.0, %v1157
  %v1159 = vpop.f32.mrb[0].mxu0
  %v1160 = vpop.f32.mrb[0].mxu0
  %v1161 = vadd.f32 0.0, %v1160
  %v1162 = vpop.f32.mrb[0].mxu0
  %1163 = vmatprep.mubr.bf16.mxu0 0
  %1164 = vmatmul.mubr.bf16.gmra.mrb[0].mxu0 %v1109
  %v1165 = vpop.f32.mrb[0].mxu0
  %v1166 = vadd.f32 0.0, %v1165
  %v1167 = vpop.f32.mrb[0].mxu0
  %v1168 = vpop.f32.mrb[0].mxu0
  %v1169 = vadd.f32 0.0, %v1168
  %v1170 = vpop.f32.mrb[0].mxu0
  %1171 = vmatprep.mubr.bf16.mxu0 0
  %1172 = vmatmul.mubr.bf16.gmra.mrb[0].mxu0 %v1112
  %v1173 = vpop.f32.mrb[0].mxu0
  %v1174 = vadd.f32 0.0, %v1173
  %v1175 = vpop.f32.mrb[0].mxu0
  %v1176 = vpop.f32.mrb[0].mxu0
  %v1177 = vadd.f32 0.0, %v1176
  %v1178 = vpop.f32.mrb[0].mxu0
  %1179 = vmatprep.mubr.bf16.mxu0 0
  %1180 = vmatmul.mubr.bf16.gmra.mrb[0].mxu0 %v1115
  %v1181 = vpop.f32.mrb[0].mxu0
  %v1182 = vadd.f32 0.0, %v1181
  %v1183 = vpop.f32.mrb[0].mxu0
  %v1184 = vpop.f32.mrb[0].mxu0
  %v1185 = vadd.f32 0.0, %v1184
  %v1186 = vpop.f32.mrb[0].mxu0
  %1187 = vmatprep.mubr.bf16.mxu0 0
  %1188 = vmatmul.mubr.bf16.gmra.mrb[0].mxu0 %v1118
  %v1189 = vpop.f32.mrb[0].mxu0
  %v1190 = vadd.f32 0.0, %v1189
  %v1191 = vpop.f32.mrb[0].mxu0
  %v1192 = vpop.f32.mrb[0].mxu0
  %v1193 = vadd.f32 0.0, %v1192
  %v1194 = vpop.f32.mrb[0].mxu0
  %1195 = vmatprep.mubr.bf16.mxu0 0
  %1196 = vmatmul.mubr.bf16.gmra.mrb[0].mxu0 %v1121
  %v1197 = vpop.f32.mrb[0].mxu0
  %v1198 = vadd.f32 0.0, %v1197
  %v1199 = vpop.f32.mrb[0].mxu0
  %v1200 = vpop.f32.mrb[0].mxu0
  %v1201 = vadd.f32 0.0, %v1200
  %v1202 = vpop.f32.mrb[0].mxu0
  %1203 = vdwg.mxu0
  %v1204 = vadd.f32 %v1002, %v1158
  %v1205 = vadd.f32 %v1003, %v1161
  %v1206 = vadd.f32 %v1004, %v1166
  %v1207 = vadd.f32 %v1005, %v1169
  %v1208 = vadd.f32 %v1006, %v1174
  %v1209 = vadd.f32 %v1007, %v1177
  %v1210 = vadd.f32 %v1008, %v1182
  %v1211 = vadd.f32 %v1009, %v1185
  %v1212 = vadd.f32 %v1010, %v1190
  %v1213 = vadd.f32 %v1011, %v1193
  %v1214 = vadd.f32 %v1012, %v1198
  %v1215 = vadd.f32 %v1013, %v1201
  %v1216 = vld [vmem:[%s0 + $0xc] sm:$0xf]
  %v1217 = vld [vmem:[%s0 + $0x10] sm:$0xf]
  %v1218 = vld [vmem:[%s0 + $0x14] sm:$0xf]
  %v1219 = vld [vmem:[%s0 + $0x18] sm:$0xf]
  %v1220 = vld [vmem:[%s0 + $0x1c] sm:$0xf]
  %v1221 = vld [vmem:[%s0 + $0x20] sm:$0xf]
  %v1222 = vld [vmem:[%s0 + $0x24] sm:$0xf]
  %v1223 = vld [vmem:[%s0 + $0x28] sm:$0xf]
  %v1224 = vld [vmem:[%s0 + $0x2c] sm:$0xf]
  %v1225 = vld [vmem:[%s0 + $0x30] sm:$0xf]
  %v1226 = vld [vmem:[%s0 + $0x34] sm:$0xf]
  %v1227 = vld [vmem:[%s0 + $0x38] sm:$0xf]
  %s1228 = scalar_lea.vmem %s1, 864
  %v1229 = vld [vmem:[%s1228] sm:$0xf]
  %v1230 = vld [vmem:[%s1228 + $0xc] sm:$0xf]
  %v1231 = vld [vmem:[%s1228 + $0x18] sm:$0xf]
  %v1232 = vld [vmem:[%s1228 + $0x24] sm:$0xf]
  %v1233 = vld [vmem:[%s1228 + $0x30] sm:$0xf]
  %v1234 = vld [vmem:[%s1228 + $0x3c] sm:$0xf]
  %v1235 = vld [vmem:[%s1228 + $0x48] sm:$0xf]
  %v1236 = vld [vmem:[%s1228 + $0x54] sm:$0xf]
  %v1237 = vld [vmem:[%s1228 + $0x60] sm:$0xf]
  %v1238 = vld [vmem:[%s1228 + $0x6c] sm:$0xf]
  %v1239 = vld [vmem:[%s1228 + $0x78] sm:$0xf]
  %v1240 = vld [vmem:[%s1228 + $0x84] sm:$0xf]
  %v1253 = vunpack.c.l.b16 %v1216
  %v1254 = vunpack.c.l.b16 %v1217
  %v1255 = vunpack.c.l.b16 %v1218
  %v1256 = vunpack.c.l.b16 %v1219
  %v1257 = vunpack.c.l.b16 %v1220
  %v1258 = vunpack.c.l.b16 %v1221
  %v1259 = vunpack.c.l.b16 %v1222
  %v1260 = vunpack.c.l.b16 %v1223
  %v1261 = vunpack.c.l.b16 %v1224
  %v1262 = vunpack.c.l.b16 %v1225
  %v1263 = vunpack.c.l.b16 %v1226
  %v1264 = vunpack.c.l.b16 %v1227
  %v1265 = vpack.c.b16 %v1254, %v1253
  %v1266 = vpack.c.b16 %v1256, %v1255
  %v1267 = vpack.c.b16 %v1258, %v1257
  %v1268 = vpack.c.b16 %v1260, %v1259
  %v1269 = vpack.c.b16 %v1262, %v1261
  %v1270 = vpack.c.b16 %v1264, %v1263
  %v1283 = vunpack.c.l.b16 %v1229
  %v1284 = vunpack.c.l.b16 %v1230
  %v1285 = vunpack.c.l.b16 %v1231
  %v1286 = vunpack.c.l.b16 %v1232
  %v1287 = vunpack.c.l.b16 %v1233
  %v1288 = vunpack.c.l.b16 %v1234
  %v1289 = vunpack.c.l.b16 %v1235
  %v1290 = vunpack.c.l.b16 %v1236
  %v1291 = vunpack.c.l.b16 %v1237
  %v1292 = vunpack.c.l.b16 %v1238
  %v1293 = vunpack.c.l.b16 %v1239
  %v1294 = vunpack.c.l.b16 %v1240
  %v1295 = vpack.c.b16 %v1284, %v1283
  %v1296 = vpack.c.b16 %v1286, %v1285
  %v1297 = vpack.c.b16 %v1288, %v1287
  %v1298 = vpack.c.b16 %v1290, %v1289
  %v1299 = vpack.c.b16 %v1292, %v1291
  %v1300 = vpack.c.b16 %v1294, %v1293
  %v1308 = vsel %vm143, %v1265, 0
  %v1311 = vsel %vm143, %v1266, 0
  %v1314 = vsel %vm143, %v1267, 0
  %v1317 = vsel %vm143, %v1268, 0
  %v1320 = vsel %vm143, %v1269, 0
  %v1323 = vsel %vm143, %v1270, 0
  %1325 = vmatprep.subr.bf16.mxu0 0
  %1326 = vmatpush1.bf16.msra.mxu0 %v1295
  %1327 = vmatprep.subr.bf16.mxu0 0
  %1328 = vmatpush1.bf16.msra.mxu0 %v1296
  %1329 = vmatprep.subr.bf16.mxu0 0
  %1330 = vmatpush1.bf16.msra.mxu0 %v1297
  %1331 = vmatprep.subr.bf16.mxu0 0
  %1332 = vmatpush1.bf16.msra.mxu0 %v1298
  %1333 = vmatprep.subr.bf16.mxu0 0
  %1334 = vmatpush1.bf16.msra.mxu0 %v1299
  %1335 = vmatprep.subr.bf16.mxu0 0
  %1336 = vmatpush1.bf16.msra.mxu0 %v1300
  %1337 = vmatprep.subr.bf16.mxu0 0
  %1338 = vmatpush1.bf16.msra.mxu0 0
  %1339 = vmatprep.subr.bf16.mxu0 0
  %1340 = vmatpush1.bf16.msra.mxu0 0
  %1341 = vmatprep.subr.bf16.mxu0 0
  %1342 = vmatpush1.bf16.msra.mxu0 0
  %1343 = vmatprep.subr.bf16.mxu0 0
  %1344 = vmatpush1.bf16.msra.mxu0 0
  %1345 = vmatprep.subr.bf16.mxu0 0
  %1346 = vmatpush1.bf16.msra.mxu0 0
  %1347 = vmatprep.subr.bf16.mxu0 0
  %1348 = vmatpush1.bf16.msra.mxu0 0
  %1349 = vmatprep.subr.bf16.mxu0 0
  %1350 = vmatpush1.bf16.msra.mxu0 0
  %1351 = vmatprep.subr.bf16.mxu0 0
  %1352 = vmatpush1.bf16.msra.mxu0 0
  %1353 = vmatprep.subr.bf16.mxu0 0
  %1354 = vmatpush1.bf16.msra.mxu0 0
  %1355 = vmatprep.subr.bf16.mxu0 0
  %1356 = vmatpush1.bf16.msra.mxu0 0
  %1357 = vmatprep.mubr.bf16.mxu0 0
  %1358 = vmatmul.mubr.bf16.gmra.mrb[0].mxu0 %v1308
  %v1359 = vpop.f32.mrb[0].mxu0
  %v1360 = vadd.f32 0.0, %v1359
  %v1361 = vpop.f32.mrb[0].mxu0
  %v1362 = vpop.f32.mrb[0].mxu0
  %v1363 = vadd.f32 0.0, %v1362
  %v1364 = vpop.f32.mrb[0].mxu0
  %1365 = vmatprep.mubr.bf16.mxu0 0
  %1366 = vmatmul.mubr.bf16.gmra.mrb[0].mxu0 %v1311
  %v1367 = vpop.f32.mrb[0].mxu0
  %v1368 = vadd.f32 0.0, %v1367
  %v1369 = vpop.f32.mrb[0].mxu0
  %v1370 = vpop.f32.mrb[0].mxu0
  %v1371 = vadd.f32 0.0, %v1370
  %v1372 = vpop.f32.mrb[0].mxu0
  %1373 = vmatprep.mubr.bf16.mxu0 0
  %1374 = vmatmul.mubr.bf16.gmra.mrb[0].mxu0 %v1314
  %v1375 = vpop.f32.mrb[0].mxu0
  %v1376 = vadd.f32 0.0, %v1375
  %v1377 = vpop.f32.mrb[0].mxu0
  %v1378 = vpop.f32.mrb[0].mxu0
  %v1379 = vadd.f32 0.0, %v1378
  %v1380 = vpop.f32.mrb[0].mxu0
  %1381 = vmatprep.mubr.bf16.mxu0 0
  %1382 = vmatmul.mubr.bf16.gmra.mrb[0].mxu0 %v1317
  %v1383 = vpop.f32.mrb[0].mxu0
  %v1384 = vadd.f32 0.0, %v1383
  %v1385 = vpop.f32.mrb[0].mxu0
  %v1386 = vpop.f32.mrb[0].mxu0
  %v1387 = vadd.f32 0.0, %v1386
  %v1388 = vpop.f32.mrb[0].mxu0
  %1389 = vmatprep.mubr.bf16.mxu0 0
  %1390 = vmatmul.mubr.bf16.gmra.mrb[0].mxu0 %v1320
  %v1391 = vpop.f32.mrb[0].mxu0
  %v1392 = vadd.f32 0.0, %v1391
  %v1393 = vpop.f32.mrb[0].mxu0
  %v1394 = vpop.f32.mrb[0].mxu0
  %v1395 = vadd.f32 0.0, %v1394
  %v1396 = vpop.f32.mrb[0].mxu0
  %1397 = vmatprep.mubr.bf16.mxu0 0
  %1398 = vmatmul.mubr.bf16.gmra.mrb[0].mxu0 %v1323
  %v1399 = vpop.f32.mrb[0].mxu0
  %v1400 = vadd.f32 0.0, %v1399
  %v1401 = vpop.f32.mrb[0].mxu0
  %v1402 = vpop.f32.mrb[0].mxu0
  %v1403 = vadd.f32 0.0, %v1402
  %v1404 = vpop.f32.mrb[0].mxu0
  %1405 = vdwg.mxu0
  %v1406 = vadd.f32 %v1204, %v1360
  %v1407 = vadd.f32 %v1205, %v1363
  %v1408 = vadd.f32 %v1206, %v1368
  %v1409 = vadd.f32 %v1207, %v1371
  %v1410 = vadd.f32 %v1208, %v1376
  %v1411 = vadd.f32 %v1209, %v1379
  %v1412 = vadd.f32 %v1210, %v1384
  %v1413 = vadd.f32 %v1211, %v1387
  %v1414 = vadd.f32 %v1212, %v1392
  %v1415 = vadd.f32 %v1213, %v1395
  %v1416 = vadd.f32 %v1214, %v1400
  %v1417 = vadd.f32 %v1215, %v1403
  %v1418 = vld [vmem:[%s51 + $0xc] sm:$0xf]
  %v1419 = vld [vmem:[%s51 + $0x10] sm:$0xf]
  %v1420 = vld [vmem:[%s51 + $0x14] sm:$0xf]
  %v1421 = vld [vmem:[%s51 + $0x18] sm:$0xf]
  %v1422 = vld [vmem:[%s51 + $0x1c] sm:$0xf]
  %v1423 = vld [vmem:[%s51 + $0x20] sm:$0xf]
  %v1424 = vld [vmem:[%s51 + $0x24] sm:$0xf]
  %v1425 = vld [vmem:[%s51 + $0x28] sm:$0xf]
  %v1426 = vld [vmem:[%s51 + $0x2c] sm:$0xf]
  %v1427 = vld [vmem:[%s51 + $0x30] sm:$0xf]
  %v1428 = vld [vmem:[%s51 + $0x34] sm:$0xf]
  %v1429 = vld [vmem:[%s51 + $0x38] sm:$0xf]
  %s1430 = scalar_lea.vmem %s1, 1008
  %v1431 = vld [vmem:[%s1430] sm:$0xf]
  %v1432 = vld [vmem:[%s1430 + $0xc] sm:$0xf]
  %v1433 = vld [vmem:[%s1430 + $0x18] sm:$0xf]
  %v1434 = vld [vmem:[%s1430 + $0x24] sm:$0xf]
  %v1435 = vld [vmem:[%s1430 + $0x30] sm:$0xf]
  %v1436 = vld [vmem:[%s1430 + $0x3c] sm:$0xf]
  %v1437 = vld [vmem:[%s1430 + $0x48] sm:$0xf]
  %v1438 = vld [vmem:[%s1430 + $0x54] sm:$0xf]
  %v1439 = vld [vmem:[%s1430 + $0x60] sm:$0xf]
  %v1440 = vld [vmem:[%s1430 + $0x6c] sm:$0xf]
  %v1441 = vld [vmem:[%s1430 + $0x78] sm:$0xf]
  %v1442 = vld [vmem:[%s1430 + $0x84] sm:$0xf]
  %v1455 = vunpack.c.l.b16 %v1418
  %v1456 = vunpack.c.l.b16 %v1419
  %v1457 = vunpack.c.l.b16 %v1420
  %v1458 = vunpack.c.l.b16 %v1421
  %v1459 = vunpack.c.l.b16 %v1422
  %v1460 = vunpack.c.l.b16 %v1423
  %v1461 = vunpack.c.l.b16 %v1424
  %v1462 = vunpack.c.l.b16 %v1425
  %v1463 = vunpack.c.l.b16 %v1426
  %v1464 = vunpack.c.l.b16 %v1427
  %v1465 = vunpack.c.l.b16 %v1428
  %v1466 = vunpack.c.l.b16 %v1429
  %v1467 = vpack.c.b16 %v1456, %v1455
  %v1468 = vpack.c.b16 %v1458, %v1457
  %v1469 = vpack.c.b16 %v1460, %v1459
  %v1470 = vpack.c.b16 %v1462, %v1461
  %v1471 = vpack.c.b16 %v1464, %v1463
  %v1472 = vpack.c.b16 %v1466, %v1465
  %v1485 = vunpack.c.l.b16 %v1431
  %v1486 = vunpack.c.l.b16 %v1432
  %v1487 = vunpack.c.l.b16 %v1433
  %v1488 = vunpack.c.l.b16 %v1434
  %v1489 = vunpack.c.l.b16 %v1435
  %v1490 = vunpack.c.l.b16 %v1436
  %v1491 = vunpack.c.l.b16 %v1437
  %v1492 = vunpack.c.l.b16 %v1438
  %v1493 = vunpack.c.l.b16 %v1439
  %v1494 = vunpack.c.l.b16 %v1440
  %v1495 = vunpack.c.l.b16 %v1441
  %v1496 = vunpack.c.l.b16 %v1442
  %v1497 = vpack.c.b16 %v1486, %v1485
  %v1498 = vpack.c.b16 %v1488, %v1487
  %v1499 = vpack.c.b16 %v1490, %v1489
  %v1500 = vpack.c.b16 %v1492, %v1491
  %v1501 = vpack.c.b16 %v1494, %v1493
  %v1502 = vpack.c.b16 %v1496, %v1495
  %v1510 = vsel %vm143, %v1467, 0
  %v1513 = vsel %vm143, %v1468, 0
  %v1516 = vsel %vm143, %v1469, 0
  %v1519 = vsel %vm143, %v1470, 0
  %v1522 = vsel %vm143, %v1471, 0
  %v1525 = vsel %vm143, %v1472, 0
  %1527 = vmatprep.subr.bf16.mxu0 0
  %1528 = vmatpush1.bf16.msra.mxu0 %v1497
  %1529 = vmatprep.subr.bf16.mxu0 0
  %1530 = vmatpush1.bf16.msra.mxu0 %v1498
  %1531 = vmatprep.subr.bf16.mxu0 0
  %1532 = vmatpush1.bf16.msra.mxu0 %v1499
  %1533 = vmatprep.subr.bf16.mxu0 0
  %1534 = vmatpush1.bf16.msra.mxu0 %v1500
  %1535 = vmatprep.subr.bf16.mxu0 0
  %1536 = vmatpush1.bf16.msra.mxu0 %v1501
  %1537 = vmatprep.subr.bf16.mxu0 0
  %1538 = vmatpush1.bf16.msra.mxu0 %v1502
  %1539 = vmatprep.subr.bf16.mxu0 0
  %1540 = vmatpush1.bf16.msra.mxu0 0
  %1541 = vmatprep.subr.bf16.mxu0 0
  %1542 = vmatpush1.bf16.msra.mxu0 0
  %1543 = vmatprep.subr.bf16.mxu0 0
  %1544 = vmatpush1.bf16.msra.mxu0 0
  %1545 = vmatprep.subr.bf16.mxu0 0
  %1546 = vmatpush1.bf16.msra.mxu0 0
  %1547 = vmatprep.subr.bf16.mxu0 0
  %1548 = vmatpush1.bf16.msra.mxu0 0
  %1549 = vmatprep.subr.bf16.mxu0 0
  %1550 = vmatpush1.bf16.msra.mxu0 0
  %1551 = vmatprep.subr.bf16.mxu0 0
  %1552 = vmatpush1.bf16.msra.mxu0 0
  %1553 = vmatprep.subr.bf16.mxu0 0
  %1554 = vmatpush1.bf16.msra.mxu0 0
  %1555 = vmatprep.subr.bf16.mxu0 0
  %1556 = vmatpush1.bf16.msra.mxu0 0
  %1557 = vmatprep.subr.bf16.mxu0 0
  %1558 = vmatpush1.bf16.msra.mxu0 0
  %1559 = vmatprep.mubr.bf16.mxu0 0
  %1560 = vmatmul.mubr.bf16.gmra.mrb[0].mxu0 %v1510
  %v1561 = vpop.f32.mrb[0].mxu0
  %v1562 = vadd.f32 0.0, %v1561
  %v1563 = vpop.f32.mrb[0].mxu0
  %v1564 = vpop.f32.mrb[0].mxu0
  %v1565 = vadd.f32 0.0, %v1564
  %v1566 = vpop.f32.mrb[0].mxu0
  %1567 = vmatprep.mubr.bf16.mxu0 0
  %1568 = vmatmul.mubr.bf16.gmra.mrb[0].mxu0 %v1513
  %v1569 = vpop.f32.mrb[0].mxu0
  %v1570 = vadd.f32 0.0, %v1569
  %v1571 = vpop.f32.mrb[0].mxu0
  %v1572 = vpop.f32.mrb[0].mxu0
  %v1573 = vadd.f32 0.0, %v1572
  %v1574 = vpop.f32.mrb[0].mxu0
  %1575 = vmatprep.mubr.bf16.mxu0 0
  %1576 = vmatmul.mubr.bf16.gmra.mrb[0].mxu0 %v1516
  %v1577 = vpop.f32.mrb[0].mxu0
  %v1578 = vadd.f32 0.0, %v1577
  %v1579 = vpop.f32.mrb[0].mxu0
  %v1580 = vpop.f32.mrb[0].mxu0
  %v1581 = vadd.f32 0.0, %v1580
  %v1582 = vpop.f32.mrb[0].mxu0
  %1583 = vmatprep.mubr.bf16.mxu0 0
  %1584 = vmatmul.mubr.bf16.gmra.mrb[0].mxu0 %v1519
  %v1585 = vpop.f32.mrb[0].mxu0
  %v1586 = vadd.f32 0.0, %v1585
  %v1587 = vpop.f32.mrb[0].mxu0
  %v1588 = vpop.f32.mrb[0].mxu0
  %v1589 = vadd.f32 0.0, %v1588
  %v1590 = vpop.f32.mrb[0].mxu0
  %1591 = vmatprep.mubr.bf16.mxu0 0
  %1592 = vmatmul.mubr.bf16.gmra.mrb[0].mxu0 %v1522
  %v1593 = vpop.f32.mrb[0].mxu0
  %v1594 = vadd.f32 0.0, %v1593
  %v1595 = vpop.f32.mrb[0].mxu0
  %v1596 = vpop.f32.mrb[0].mxu0
  %v1597 = vadd.f32 0.0, %v1596
  %v1598 = vpop.f32.mrb[0].mxu0
  %1599 = vmatprep.mubr.bf16.mxu0 0
  %1600 = vmatmul.mubr.bf16.gmra.mrb[0].mxu0 %v1525
  %v1601 = vpop.f32.mrb[0].mxu0
  %v1602 = vadd.f32 0.0, %v1601
  %v1603 = vpop.f32.mrb[0].mxu0
  %v1604 = vpop.f32.mrb[0].mxu0
  %v1605 = vadd.f32 0.0, %v1604
  %v1606 = vpop.f32.mrb[0].mxu0
  %1607 = vdwg.mxu0
  %v1608 = vadd.f32 %v1406, %v1562
  %v1609 = vadd.f32 %v1407, %v1565
  %v1610 = vadd.f32 %v1408, %v1570
  %v1611 = vadd.f32 %v1409, %v1573
  %v1612 = vadd.f32 %v1410, %v1578
  %v1613 = vadd.f32 %v1411, %v1581
  %v1614 = vadd.f32 %v1412, %v1586
  %v1615 = vadd.f32 %v1413, %v1589
  %v1616 = vadd.f32 %v1414, %v1594
  %v1617 = vadd.f32 %v1415, %v1597
  %v1618 = vadd.f32 %v1416, %v1602
  %v1619 = vadd.f32 %v1417, %v1605
  %v1620 = vld [vmem:[%s0 + $0x10] sm:$0xf]
  %v1621 = vld [vmem:[%s0 + $0x14] sm:$0xf]
  %v1622 = vld [vmem:[%s0 + $0x18] sm:$0xf]
  %v1623 = vld [vmem:[%s0 + $0x1c] sm:$0xf]
  %v1624 = vld [vmem:[%s0 + $0x20] sm:$0xf]
  %v1625 = vld [vmem:[%s0 + $0x24] sm:$0xf]
  %v1626 = vld [vmem:[%s0 + $0x28] sm:$0xf]
  %v1627 = vld [vmem:[%s0 + $0x2c] sm:$0xf]
  %v1628 = vld [vmem:[%s0 + $0x30] sm:$0xf]
  %v1629 = vld [vmem:[%s0 + $0x34] sm:$0xf]
  %v1630 = vld [vmem:[%s0 + $0x38] sm:$0xf]
  %v1631 = vld [vmem:[%s0 + $0x3c] sm:$0xf]
  %s1632 = scalar_lea.vmem %s1, 1152
  %v1633 = vld [vmem:[%s1632] sm:$0xf]
  %v1634 = vld [vmem:[%s1632 + $0xc] sm:$0xf]
  %v1635 = vld [vmem:[%s1632 + $0x18] sm:$0xf]
  %v1636 = vld [vmem:[%s1632 + $0x24] sm:$0xf]
  %v1637 = vld [vmem:[%s1632 + $0x30] sm:$0xf]
  %v1638 = vld [vmem:[%s1632 + $0x3c] sm:$0xf]
  %v1639 = vld [vmem:[%s1632 + $0x48] sm:$0xf]
  %v1640 = vld [vmem:[%s1632 + $0x54] sm:$0xf]
  %v1641 = vld [vmem:[%s1632 + $0x60] sm:$0xf]
  %v1642 = vld [vmem:[%s1632 + $0x6c] sm:$0xf]
  %v1643 = vld [vmem:[%s1632 + $0x78] sm:$0xf]
  %v1644 = vld [vmem:[%s1632 + $0x84] sm:$0xf]
  %v1657 = vunpack.c.l.b16 %v1620
  %v1658 = vunpack.c.l.b16 %v1621
  %v1659 = vunpack.c.l.b16 %v1622
  %v1660 = vunpack.c.l.b16 %v1623
  %v1661 = vunpack.c.l.b16 %v1624
  %v1662 = vunpack.c.l.b16 %v1625
  %v1663 = vunpack.c.l.b16 %v1626
  %v1664 = vunpack.c.l.b16 %v1627
  %v1665 = vunpack.c.l.b16 %v1628
  %v1666 = vunpack.c.l.b16 %v1629
  %v1667 = vunpack.c.l.b16 %v1630
  %v1668 = vunpack.c.l.b16 %v1631
  %v1669 = vpack.c.b16 %v1658, %v1657
  %v1670 = vpack.c.b16 %v1660, %v1659
  %v1671 = vpack.c.b16 %v1662, %v1661
  %v1672 = vpack.c.b16 %v1664, %v1663
  %v1673 = vpack.c.b16 %v1666, %v1665
  %v1674 = vpack.c.b16 %v1668, %v1667
  %v1687 = vunpack.c.l.b16 %v1633
  %v1688 = vunpack.c.l.b16 %v1634
  %v1689 = vunpack.c.l.b16 %v1635
  %v1690 = vunpack.c.l.b16 %v1636
  %v1691 = vunpack.c.l.b16 %v1637
  %v1692 = vunpack.c.l.b16 %v1638
  %v1693 = vunpack.c.l.b16 %v1639
  %v1694 = vunpack.c.l.b16 %v1640
  %v1695 = vunpack.c.l.b16 %v1641
  %v1696 = vunpack.c.l.b16 %v1642
  %v1697 = vunpack.c.l.b16 %v1643
  %v1698 = vunpack.c.l.b16 %v1644
  %v1699 = vpack.c.b16 %v1688, %v1687
  %v1700 = vpack.c.b16 %v1690, %v1689
  %v1701 = vpack.c.b16 %v1692, %v1691
  %v1702 = vpack.c.b16 %v1694, %v1693
  %v1703 = vpack.c.b16 %v1696, %v1695
  %v1704 = vpack.c.b16 %v1698, %v1697
  %v1712 = vsel %vm143, %v1669, 0
  %v1715 = vsel %vm143, %v1670, 0
  %v1718 = vsel %vm143, %v1671, 0
  %v1721 = vsel %vm143, %v1672, 0
  %v1724 = vsel %vm143, %v1673, 0
  %v1727 = vsel %vm143, %v1674, 0
  %1729 = vmatprep.subr.bf16.mxu0 0
  %1730 = vmatpush1.bf16.msra.mxu0 %v1699
  %1731 = vmatprep.subr.bf16.mxu0 0
  %1732 = vmatpush1.bf16.msra.mxu0 %v1700
  %1733 = vmatprep.subr.bf16.mxu0 0
  %1734 = vmatpush1.bf16.msra.mxu0 %v1701
  %1735 = vmatprep.subr.bf16.mxu0 0
  %1736 = vmatpush1.bf16.msra.mxu0 %v1702
  %1737 = vmatprep.subr.bf16.mxu0 0
  %1738 = vmatpush1.bf16.msra.mxu0 %v1703
  %1739 = vmatprep.subr.bf16.mxu0 0
  %1740 = vmatpush1.bf16.msra.mxu0 %v1704
  %1741 = vmatprep.subr.bf16.mxu0 0
  %1742 = vmatpush1.bf16.msra.mxu0 0
  %1743 = vmatprep.subr.bf16.mxu0 0
  %1744 = vmatpush1.bf16.msra.mxu0 0
  %1745 = vmatprep.subr.bf16.mxu0 0
  %1746 = vmatpush1.bf16.msra.mxu0 0
  %1747 = vmatprep.subr.bf16.mxu0 0
  %1748 = vmatpush1.bf16.msra.mxu0 0
  %1749 = vmatprep.subr.bf16.mxu0 0
  %1750 = vmatpush1.bf16.msra.mxu0 0
  %1751 = vmatprep.subr.bf16.mxu0 0
  %1752 = vmatpush1.bf16.msra.mxu0 0
  %1753 = vmatprep.subr.bf16.mxu0 0
  %1754 = vmatpush1.bf16.msra.mxu0 0
  %1755 = vmatprep.subr.bf16.mxu0 0
  %1756 = vmatpush1.bf16.msra.mxu0 0
  %1757 = vmatprep.subr.bf16.mxu0 0
  %1758 = vmatpush1.bf16.msra.mxu0 0
  %1759 = vmatprep.subr.bf16.mxu0 0
  %1760 = vmatpush1.bf16.msra.mxu0 0
  %1761 = vmatprep.mubr.bf16.mxu0 0
  %1762 = vmatmul.mubr.bf16.gmra.mrb[0].mxu0 %v1712
  %v1763 = vpop.f32.mrb[0].mxu0
  %v1764 = vadd.f32 0.0, %v1763
  %v1765 = vpop.f32.mrb[0].mxu0
  %v1766 = vpop.f32.mrb[0].mxu0
  %v1767 = vadd.f32 0.0, %v1766
  %v1768 = vpop.f32.mrb[0].mxu0
  %1769 = vmatprep.mubr.bf16.mxu0 0
  %1770 = vmatmul.mubr.bf16.gmra.mrb[0].mxu0 %v1715
  %v1771 = vpop.f32.mrb[0].mxu0
  %v1772 = vadd.f32 0.0, %v1771
  %v1773 = vpop.f32.mrb[0].mxu0
  %v1774 = vpop.f32.mrb[0].mxu0
  %v1775 = vadd.f32 0.0, %v1774
  %v1776 = vpop.f32.mrb[0].mxu0
  %1777 = vmatprep.mubr.bf16.mxu0 0
  %1778 = vmatmul.mubr.bf16.gmra.mrb[0].mxu0 %v1718
  %v1779 = vpop.f32.mrb[0].mxu0
  %v1780 = vadd.f32 0.0, %v1779
  %v1781 = vpop.f32.mrb[0].mxu0
  %v1782 = vpop.f32.mrb[0].mxu0
  %v1783 = vadd.f32 0.0, %v1782
  %v1784 = vpop.f32.mrb[0].mxu0
  %1785 = vmatprep.mubr.bf16.mxu0 0
  %1786 = vmatmul.mubr.bf16.gmra.mrb[0].mxu0 %v1721
  %v1787 = vpop.f32.mrb[0].mxu0
  %v1788 = vadd.f32 0.0, %v1787
  %v1789 = vpop.f32.mrb[0].mxu0
  %v1790 = vpop.f32.mrb[0].mxu0
  %v1791 = vadd.f32 0.0, %v1790
  %v1792 = vpop.f32.mrb[0].mxu0
  %1793 = vmatprep.mubr.bf16.mxu0 0
  %1794 = vmatmul.mubr.bf16.gmra.mrb[0].mxu0 %v1724
  %v1795 = vpop.f32.mrb[0].mxu0
  %v1796 = vadd.f32 0.0, %v1795
  %v1797 = vpop.f32.mrb[0].mxu0
  %v1798 = vpop.f32.mrb[0].mxu0
  %v1799 = vadd.f32 0.0, %v1798
  %v1800 = vpop.f32.mrb[0].mxu0
  %1801 = vmatprep.mubr.bf16.mxu0 0
  %1802 = vmatmul.mubr.bf16.gmra.mrb[0].mxu0 %v1727
  %v1803 = vpop.f32.mrb[0].mxu0
  %v1804 = vadd.f32 0.0, %v1803
  %v1805 = vpop.f32.mrb[0].mxu0
  %v1806 = vpop.f32.mrb[0].mxu0
  %v1807 = vadd.f32 0.0, %v1806
  %v1808 = vpop.f32.mrb[0].mxu0
  %1809 = vdwg.mxu0
  %v1810 = vadd.f32 %v1608, %v1764
  %v1811 = vadd.f32 %v1609, %v1767
  %v1812 = vadd.f32 %v1610, %v1772
  %v1813 = vadd.f32 %v1611, %v1775
  %v1814 = vadd.f32 %v1612, %v1780
  %v1815 = vadd.f32 %v1613, %v1783
  %v1816 = vadd.f32 %v1614, %v1788
  %v1817 = vadd.f32 %v1615, %v1791
  %v1818 = vadd.f32 %v1616, %v1796
  %v1819 = vadd.f32 %v1617, %v1799
  %v1820 = vadd.f32 %v1618, %v1804
  %v1821 = vadd.f32 %v1619, %v1807
  %v1822 = vld [vmem:[%s51 + $0x10] sm:$0xf]
  %v1823 = vld [vmem:[%s51 + $0x14] sm:$0xf]
  %v1824 = vld [vmem:[%s51 + $0x18] sm:$0xf]
  %v1825 = vld [vmem:[%s51 + $0x1c] sm:$0xf]
  %v1826 = vld [vmem:[%s51 + $0x20] sm:$0xf]
  %v1827 = vld [vmem:[%s51 + $0x24] sm:$0xf]
  %v1828 = vld [vmem:[%s51 + $0x28] sm:$0xf]
  %v1829 = vld [vmem:[%s51 + $0x2c] sm:$0xf]
  %v1830 = vld [vmem:[%s51 + $0x30] sm:$0xf]
  %v1831 = vld [vmem:[%s51 + $0x34] sm:$0xf]
  %v1832 = vld [vmem:[%s51 + $0x38] sm:$0xf]
  %v1833 = vld [vmem:[%s51 + $0x3c] sm:$0xf]
  %s1834 = scalar_lea.vmem %s1, 1296
  %v1835 = vld [vmem:[%s1834] sm:$0xf]
  %v1836 = vld [vmem:[%s1834 + $0xc] sm:$0xf]
  %v1837 = vld [vmem:[%s1834 + $0x18] sm:$0xf]
  %v1838 = vld [vmem:[%s1834 + $0x24] sm:$0xf]
  %v1839 = vld [vmem:[%s1834 + $0x30] sm:$0xf]
  %v1840 = vld [vmem:[%s1834 + $0x3c] sm:$0xf]
  %v1841 = vld [vmem:[%s1834 + $0x48] sm:$0xf]
  %v1842 = vld [vmem:[%s1834 + $0x54] sm:$0xf]
  %v1843 = vld [vmem:[%s1834 + $0x60] sm:$0xf]
  %v1844 = vld [vmem:[%s1834 + $0x6c] sm:$0xf]
  %v1845 = vld [vmem:[%s1834 + $0x78] sm:$0xf]
  %v1846 = vld [vmem:[%s1834 + $0x84] sm:$0xf]
  %v1859 = vunpack.c.l.b16 %v1822
  %v1860 = vunpack.c.l.b16 %v1823
  %v1861 = vunpack.c.l.b16 %v1824
  %v1862 = vunpack.c.l.b16 %v1825
  %v1863 = vunpack.c.l.b16 %v1826
  %v1864 = vunpack.c.l.b16 %v1827
  %v1865 = vunpack.c.l.b16 %v1828
  %v1866 = vunpack.c.l.b16 %v1829
  %v1867 = vunpack.c.l.b16 %v1830
  %v1868 = vunpack.c.l.b16 %v1831
  %v1869 = vunpack.c.l.b16 %v1832
  %v1870 = vunpack.c.l.b16 %v1833
  %v1871 = vpack.c.b16 %v1860, %v1859
  %v1872 = vpack.c.b16 %v1862, %v1861
  %v1873 = vpack.c.b16 %v1864, %v1863
  %v1874 = vpack.c.b16 %v1866, %v1865
  %v1875 = vpack.c.b16 %v1868, %v1867
  %v1876 = vpack.c.b16 %v1870, %v1869
  %v1889 = vunpack.c.l.b16 %v1835
  %v1890 = vunpack.c.l.b16 %v1836
  %v1891 = vunpack.c.l.b16 %v1837
  %v1892 = vunpack.c.l.b16 %v1838
  %v1893 = vunpack.c.l.b16 %v1839
  %v1894 = vunpack.c.l.b16 %v1840
  %v1895 = vunpack.c.l.b16 %v1841
  %v1896 = vunpack.c.l.b16 %v1842
  %v1897 = vunpack.c.l.b16 %v1843
  %v1898 = vunpack.c.l.b16 %v1844
  %v1899 = vunpack.c.l.b16 %v1845
  %v1900 = vunpack.c.l.b16 %v1846
  %v1901 = vpack.c.b16 %v1890, %v1889
  %v1902 = vpack.c.b16 %v1892, %v1891
  %v1903 = vpack.c.b16 %v1894, %v1893
  %v1904 = vpack.c.b16 %v1896, %v1895
  %v1905 = vpack.c.b16 %v1898, %v1897
  %v1906 = vpack.c.b16 %v1900, %v1899
  %v1914 = vsel %vm143, %v1871, 0
  %v1917 = vsel %vm143, %v1872, 0
  %v1920 = vsel %vm143, %v1873, 0
  %v1923 = vsel %vm143, %v1874, 0
  %v1926 = vsel %vm143, %v1875, 0
  %v1929 = vsel %vm143, %v1876, 0
  %1931 = vmatprep.subr.bf16.mxu0 0
  %1932 = vmatpush1.bf16.msra.mxu0 %v1901
  %1933 = vmatprep.subr.bf16.mxu0 0
  %1934 = vmatpush1.bf16.msra.mxu0 %v1902
  %1935 = vmatprep.subr.bf16.mxu0 0
  %1936 = vmatpush1.bf16.msra.mxu0 %v1903
  %1937 = vmatprep.subr.bf16.mxu0 0
  %1938 = vmatpush1.bf16.msra.mxu0 %v1904
  %1939 = vmatprep.subr.bf16.mxu0 0
  %1940 = vmatpush1.bf16.msra.mxu0 %v1905
  %1941 = vmatprep.subr.bf16.mxu0 0
  %1942 = vmatpush1.bf16.msra.mxu0 %v1906
  %1943 = vmatprep.subr.bf16.mxu0 0
  %1944 = vmatpush1.bf16.msra.mxu0 0
  %1945 = vmatprep.subr.bf16.mxu0 0
  %1946 = vmatpush1.bf16.msra.mxu0 0
  %1947 = vmatprep.subr.bf16.mxu0 0
  %1948 = vmatpush1.bf16.msra.mxu0 0
  %1949 = vmatprep.subr.bf16.mxu0 0
  %1950 = vmatpush1.bf16.msra.mxu0 0
  %1951 = vmatprep.subr.bf16.mxu0 0
  %1952 = vmatpush1.bf16.msra.mxu0 0
  %1953 = vmatprep.subr.bf16.mxu0 0
  %1954 = vmatpush1.bf16.msra.mxu0 0
  %1955 = vmatprep.subr.bf16.mxu0 0
  %1956 = vmatpush1.bf16.msra.mxu0 0
  %1957 = vmatprep.subr.bf16.mxu0 0
  %1958 = vmatpush1.bf16.msra.mxu0 0
  %1959 = vmatprep.subr.bf16.mxu0 0
  %1960 = vmatpush1.bf16.msra.mxu0 0
  %1961 = vmatprep.subr.bf16.mxu0 0
  %1962 = vmatpush1.bf16.msra.mxu0 0
  %1963 = vmatprep.mubr.bf16.mxu0 0
  %1964 = vmatmul.mubr.bf16.gmra.mrb[0].mxu0 %v1914
  %v1965 = vpop.f32.mrb[0].mxu0
  %v1966 = vadd.f32 0.0, %v1965
  %v1967 = vpop.f32.mrb[0].mxu0
  %v1968 = vpop.f32.mrb[0].mxu0
  %v1969 = vadd.f32 0.0, %v1968
  %v1970 = vpop.f32.mrb[0].mxu0
  %1971 = vmatprep.mubr.bf16.mxu0 0
  %1972 = vmatmul.mubr.bf16.gmra.mrb[0].mxu0 %v1917
  %v1973 = vpop.f32.mrb[0].mxu0
  %v1974 = vadd.f32 0.0, %v1973
  %v1975 = vpop.f32.mrb[0].mxu0
  %v1976 = vpop.f32.mrb[0].mxu0
  %v1977 = vadd.f32 0.0, %v1976
  %v1978 = vpop.f32.mrb[0].mxu0
  %1979 = vmatprep.mubr.bf16.mxu0 0
  %1980 = vmatmul.mubr.bf16.gmra.mrb[0].mxu0 %v1920
  %v1981 = vpop.f32.mrb[0].mxu0
  %v1982 = vadd.f32 0.0, %v1981
  %v1983 = vpop.f32.mrb[0].mxu0
  %v1984 = vpop.f32.mrb[0].mxu0
  %v1985 = vadd.f32 0.0, %v1984
  %v1986 = vpop.f32.mrb[0].mxu0
  %1987 = vmatprep.mubr.bf16.mxu0 0
  %1988 = vmatmul.mubr.bf16.gmra.mrb[0].mxu0 %v1923
  %v1989 = vpop.f32.mrb[0].mxu0
  %v1990 = vadd.f32 0.0, %v1989
  %v1991 = vpop.f32.mrb[0].mxu0
  %v1992 = vpop.f32.mrb[0].mxu0
  %v1993 = vadd.f32 0.0, %v1992
  %v1994 = vpop.f32.mrb[0].mxu0
  %1995 = vmatprep.mubr.bf16.mxu0 0
  %1996 = vmatmul.mubr.bf16.gmra.mrb[0].mxu0 %v1926
  %v1997 = vpop.f32.mrb[0].mxu0
  %v1998 = vadd.f32 0.0, %v1997
  %v1999 = vpop.f32.mrb[0].mxu0
  %v2000 = vpop.f32.mrb[0].mxu0
  %v2001 = vadd.f32 0.0, %v2000
  %v2002 = vpop.f32.mrb[0].mxu0
  %2003 = vmatprep.mubr.bf16.mxu0 0
  %2004 = vmatmul.mubr.bf16.gmra.mrb[0].mxu0 %v1929
  %v2005 = vpop.f32.mrb[0].mxu0
  %v2006 = vadd.f32 0.0, %v2005
  %v2007 = vpop.f32.mrb[0].mxu0
  %v2008 = vpop.f32.mrb[0].mxu0
  %v2009 = vadd.f32 0.0, %v2008
  %v2010 = vpop.f32.mrb[0].mxu0
  %2011 = vdwg.mxu0
  %v2012 = vadd.f32 %v1810, %v1966
  %v2013 = vadd.f32 %v1811, %v1969
  %v2014 = vadd.f32 %v1812, %v1974
  %v2015 = vadd.f32 %v1813, %v1977
  %v2016 = vadd.f32 %v1814, %v1982
  %v2017 = vadd.f32 %v1815, %v1985
  %v2018 = vadd.f32 %v1816, %v1990
  %v2019 = vadd.f32 %v1817, %v1993
  %v2020 = vadd.f32 %v1818, %v1998
  %v2021 = vadd.f32 %v1819, %v2001
  %v2022 = vadd.f32 %v1820, %v2006
  %v2023 = vadd.f32 %v1821, %v2009
  %v2024 = vld [vmem:[%s2] sm:$0x1]
  %v2026 = vlaneseq
  %v2027 = vshrl.u32 %v2026, 7
  %v2028 = vsub.s32 0, %v2027
  %v2029 = vrot.slane %v2024, %v2028
  %v2031 = vadd.f32 %v2012, %v2029
  %v2032 = vadd.f32 %v2013, %v2029
  %v2033 = vadd.f32 %v2014, %v2029
  %v2034 = vadd.f32 %v2015, %v2029
  %v2035 = vadd.f32 %v2016, %v2029
  %v2036 = vadd.f32 %v2017, %v2029
  %v2037 = vadd.f32 %v2018, %v2029
  %v2038 = vadd.f32 %v2019, %v2029
  %v2039 = vadd.f32 %v2020, %v2029
  %v2040 = vadd.f32 %v2021, %v2029
  %v2041 = vadd.f32 %v2022, %v2029
  %v2042 = vadd.f32 %v2023, %v2029
  %v2043 = vmax.f32 %v2031, 0.0
  %v2044 = vmax.f32 %v2032, 0.0
  %v2045 = vmax.f32 %v2033, 0.0
  %v2046 = vmax.f32 %v2034, 0.0
  %v2047 = vmax.f32 %v2035, 0.0
  %v2048 = vmax.f32 %v2036, 0.0
  %v2049 = vmax.f32 %v2037, 0.0
  %v2050 = vmax.f32 %v2038, 0.0
  %v2051 = vmax.f32 %v2039, 0.0
  %v2052 = vmax.f32 %v2040, 0.0
  %v2053 = vmax.f32 %v2041, 0.0
  %v2054 = vmax.f32 %v2042, 0.0
  %v2055 = vpack.c.bf16 %v2044, %v2043
  %v2056 = vpack.c.bf16 %v2046, %v2045
  %v2057 = vpack.c.bf16 %v2048, %v2047
  %v2058 = vpack.c.bf16 %v2050, %v2049
  %v2059 = vpack.c.bf16 %v2052, %v2051
  %v2060 = vpack.c.bf16 %v2054, %v2053
  %2061 = vst [vmem:[#allocation2] sm:$0xff] %v2055
  %2062 = vst [vmem:[#allocation2 + $0x18] sm:$0xff] %v2056
  %2063 = vst [vmem:[#allocation2 + $0x30] sm:$0xff] %v2057
  %2064 = vst [vmem:[#allocation2 + $0x48] sm:$0xff] %v2058
  %2065 = vst [vmem:[#allocation2 + $0x60] sm:$0xff] %v2059
  %2066 = vst [vmem:[#allocation2 + $0x78] sm:$0xff] %v2060
  %v2067 = vld [vmem:[%s0] sm:$0xf]
  %v2068 = vld [vmem:[%s0 + $0x4] sm:$0xf]
  %v2069 = vld [vmem:[%s0 + $0x8] sm:$0xf]
  %v2070 = vld [vmem:[%s0 + $0xc] sm:$0xf]
  %v2071 = vld [vmem:[%s0 + $0x10] sm:$0xf]
  %v2072 = vld [vmem:[%s0 + $0x14] sm:$0xf]
  %v2073 = vld [vmem:[%s0 + $0x18] sm:$0xf]
  %v2074 = vld [vmem:[%s0 + $0x1c] sm:$0xf]
  %v2075 = vld [vmem:[%s0 + $0x20] sm:$0xf]
  %v2076 = vld [vmem:[%s0 + $0x24] sm:$0xf]
  %v2077 = vld [vmem:[%s0 + $0x28] sm:$0xf]
  %v2078 = vld [vmem:[%s0 + $0x2c] sm:$0xf]
  %v2079 = vld [vmem:[%s1 + $0x4] sm:$0xf]
  %v2080 = vld [vmem:[%s1 + $0x10] sm:$0xf]
  %v2081 = vld [vmem:[%s1 + $0x1c] sm:$0xf]
  %v2082 = vld [vmem:[%s1 + $0x28] sm:$0xf]
  %v2083 = vld [vmem:[%s1 + $0x34] sm:$0xf]
  %v2084 = vld [vmem:[%s1 + $0x40] sm:$0xf]
  %v2085 = vld [vmem:[%s1 + $0x4c] sm:$0xf]
  %v2086 = vld [vmem:[%s1 + $0x58] sm:$0xf]
  %v2087 = vld [vmem:[%s1 + $0x64] sm:$0xf]
  %v2088 = vld [vmem:[%s1 + $0x70] sm:$0xf]
  %v2089 = vld [vmem:[%s1 + $0x7c] sm:$0xf]
  %v2090 = vld [vmem:[%s1 + $0x88] sm:$0xf]
  %v2091 = vld [vmem:[%s51] sm:$0xf]
  %v2092 = vld [vmem:[%s51 + $0x4] sm:$0xf]
  %v2093 = vld [vmem:[%s51 + $0x8] sm:$0xf]
  %v2094 = vld [vmem:[%s51 + $0xc] sm:$0xf]
  %v2095 = vld [vmem:[%s51 + $0x10] sm:$0xf]
  %v2096 = vld [vmem:[%s51 + $0x14] sm:$0xf]
  %v2097 = vld [vmem:[%s51 + $0x18] sm:$0xf]
  %v2098 = vld [vmem:[%s51 + $0x1c] sm:$0xf]
  %v2099 = vld [vmem:[%s51 + $0x20] sm:$0xf]
  %v2100 = vld [vmem:[%s51 + $0x24] sm:$0xf]
  %v2101 = vld [vmem:[%s51 + $0x28] sm:$0xf]
  %v2102 = vld [vmem:[%s51 + $0x2c] sm:$0xf]
  %v2103 = vld [vmem:[%s64 + $0x4] sm:$0xf]
  %v2104 = vld [vmem:[%s64 + $0x10] sm:$0xf]
  %v2105 = vld [vmem:[%s64 + $0x1c] sm:$0xf]
  %v2106 = vld [vmem:[%s64 + $0x28] sm:$0xf]
  %v2107 = vld [vmem:[%s64 + $0x34] sm:$0xf]
  %v2108 = vld [vmem:[%s64 + $0x40] sm:$0xf]
  %v2109 = vld [vmem:[%s64 + $0x4c] sm:$0xf]
  %v2110 = vld [vmem:[%s64 + $0x58] sm:$0xf]
  %v2111 = vld [vmem:[%s64 + $0x64] sm:$0xf]
  %v2112 = vld [vmem:[%s64 + $0x70] sm:$0xf]
  %v2113 = vld [vmem:[%s64 + $0x7c] sm:$0xf]
  %v2114 = vld [vmem:[%s64 + $0x88] sm:$0xf]
  %v2127 = vunpack.c.l.b16 %v2091
  %v2128 = vunpack.c.l.b16 %v2092
  %v2129 = vunpack.c.l.b16 %v2093
  %v2130 = vunpack.c.l.b16 %v2094
  %v2131 = vunpack.c.l.b16 %v2095
  %v2132 = vunpack.c.l.b16 %v2096
  %v2133 = vunpack.c.l.b16 %v2097
  %v2134 = vunpack.c.l.b16 %v2098
  %v2135 = vunpack.c.l.b16 %v2099
  %v2136 = vunpack.c.l.b16 %v2100
  %v2137 = vunpack.c.l.b16 %v2101
  %v2138 = vunpack.c.l.b16 %v2102
  %v2139 = vpack.c.b16 %v2128, %v2127
  %v2140 = vpack.c.b16 %v2130, %v2129
  %v2141 = vpack.c.b16 %v2132, %v2131
  %v2142 = vpack.c.b16 %v2134, %v2133
  %v2143 = vpack.c.b16 %v2136, %v2135
  %v2144 = vpack.c.b16 %v2138, %v2137
  %v2157 = vunpack.c.l.b16 %v2103
  %v2158 = vunpack.c.l.b16 %v2104
  %v2159 = vunpack.c.l.b16 %v2105
  %v2160 = vunpack.c.l.b16 %v2106
  %v2161 = vunpack.c.l.b16 %v2107
  %v2162 = vunpack.c.l.b16 %v2108
  %v2163 = vunpack.c.l.b16 %v2109
  %v2164 = vunpack.c.l.b16 %v2110
  %v2165 = vunpack.c.l.b16 %v2111
  %v2166 = vunpack.c.l.b16 %v2112
  %v2167 = vunpack.c.l.b16 %v2113
  %v2168 = vunpack.c.l.b16 %v2114
  %v2169 = vpack.c.b16 %v2158, %v2157
  %v2170 = vpack.c.b16 %v2160, %v2159
  %v2171 = vpack.c.b16 %v2162, %v2161
  %v2172 = vpack.c.b16 %v2164, %v2163
  %v2173 = vpack.c.b16 %v2166, %v2165
  %v2174 = vpack.c.b16 %v2168, %v2167
  %v2182 = vsel %vm143, %v2139, 0
  %v2185 = vsel %vm143, %v2140, 0
  %v2188 = vsel %vm143, %v2141, 0
  %v2191 = vsel %vm143, %v2142, 0
  %v2194 = vsel %vm143, %v2143, 0
  %v2197 = vsel %vm143, %v2144, 0
  %2199 = vmatprep.subr.bf16.mxu0 0
  %2200 = vmatpush1.bf16.msra.mxu0 %v2169
  %2201 = vmatprep.subr.bf16.mxu0 0
  %2202 = vmatpush1.bf16.msra.mxu0 %v2170
  %2203 = vmatprep.subr.bf16.mxu0 0
  %2204 = vmatpush1.bf16.msra.mxu0 %v2171
  %2205 = vmatprep.subr.bf16.mxu0 0
  %2206 = vmatpush1.bf16.msra.mxu0 %v2172
  %2207 = vmatprep.subr.bf16.mxu0 0
  %2208 = vmatpush1.bf16.msra.mxu0 %v2173
  %2209 = vmatprep.subr.bf16.mxu0 0
  %2210 = vmatpush1.bf16.msra.mxu0 %v2174
  %2211 = vmatprep.subr.bf16.mxu0 0
  %2212 = vmatpush1.bf16.msra.mxu0 0
  %2213 = vmatprep.subr.bf16.mxu0 0
  %2214 = vmatpush1.bf16.msra.mxu0 0
  %2215 = vmatprep.subr.bf16.mxu0 0
  %2216 = vmatpush1.bf16.msra.mxu0 0
  %2217 = vmatprep.subr.bf16.mxu0 0
  %2218 = vmatpush1.bf16.msra.mxu0 0
  %2219 = vmatprep.subr.bf16.mxu0 0
  %2220 = vmatpush1.bf16.msra.mxu0 0
  %2221 = vmatprep.subr.bf16.mxu0 0
  %2222 = vmatpush1.bf16.msra.mxu0 0
  %2223 = vmatprep.subr.bf16.mxu0 0
  %2224 = vmatpush1.bf16.msra.mxu0 0
  %2225 = vmatprep.subr.bf16.mxu0 0
  %2226 = vmatpush1.bf16.msra.mxu0 0
  %2227 = vmatprep.subr.bf16.mxu0 0
  %2228 = vmatpush1.bf16.msra.mxu0 0
  %2229 = vmatprep.subr.bf16.mxu0 0
  %2230 = vmatpush1.bf16.msra.mxu0 0
  %2231 = vmatprep.mubr.bf16.mxu0 0
  %2232 = vmatmul.mubr.bf16.gmra.mrb[0].mxu0 %v2182
  %v2233 = vpop.f32.mrb[0].mxu0
  %v2234 = vadd.f32 0.0, %v2233
  %v2235 = vpop.f32.mrb[0].mxu0
  %v2236 = vpop.f32.mrb[0].mxu0
  %v2237 = vadd.f32 0.0, %v2236
  %v2238 = vpop.f32.mrb[0].mxu0
  %2239 = vmatprep.mubr.bf16.mxu0 0
  %2240 = vmatmul.mubr.bf16.gmra.mrb[0].mxu0 %v2185
  %v2241 = vpop.f32.mrb[0].mxu0
  %v2242 = vadd.f32 0.0, %v2241
  %v2243 = vpop.f32.mrb[0].mxu0
  %v2244 = vpop.f32.mrb[0].mxu0
  %v2245 = vadd.f32 0.0, %v2244
  %v2246 = vpop.f32.mrb[0].mxu0
  %2247 = vmatprep.mubr.bf16.mxu0 0
  %2248 = vmatmul.mubr.bf16.gmra.mrb[0].mxu0 %v2188
  %v2249 = vpop.f32.mrb[0].mxu0
  %v2250 = vadd.f32 0.0, %v2249
  %v2251 = vpop.f32.mrb[0].mxu0
  %v2252 = vpop.f32.mrb[0].mxu0
  %v2253 = vadd.f32 0.0, %v2252
  %v2254 = vpop.f32.mrb[0].mxu0
  %2255 = vmatprep.mubr.bf16.mxu0 0
  %2256 = vmatmul.mubr.bf16.gmra.mrb[0].mxu0 %v2191
  %v2257 = vpop.f32.mrb[0].mxu0
  %v2258 = vadd.f32 0.0, %v2257
  %v2259 = vpop.f32.mrb[0].mxu0
  %v2260 = vpop.f32.mrb[0].mxu0
  %v2261 = vadd.f32 0.0, %v2260
  %v2262 = vpop.f32.mrb[0].mxu0
  %2263 = vmatprep.mubr.bf16.mxu0 0
  %2264 = vmatmul.mubr.bf16.gmra.mrb[0].mxu0 %v2194
  %v2265 = vpop.f32.mrb[0].mxu0
  %v2266 = vadd.f32 0.0, %v2265
  %v2267 = vpop.f32.mrb[0].mxu0
  %v2268 = vpop.f32.mrb[0].mxu0
  %v2269 = vadd.f32 0.0, %v2268
  %v2270 = vpop.f32.mrb[0].mxu0
  %2271 = vmatprep.mubr.bf16.mxu0 0
  %2272 = vmatmul.mubr.bf16.gmra.mrb[0].mxu0 %v2197
  %v2273 = vpop.f32.mrb[0].mxu0
  %v2274 = vadd.f32 0.0, %v2273
  %v2275 = vpop.f32.mrb[0].mxu0
  %v2276 = vpop.f32.mrb[0].mxu0
  %v2277 = vadd.f32 0.0, %v2276
  %v2278 = vpop.f32.mrb[0].mxu0
  %2279 = vdwg.mxu0
  %v2292 = vunpack.c.l.b16 %v2067
  %v2293 = vunpack.c.l.b16 %v2068
  %v2294 = vunpack.c.l.b16 %v2069
  %v2295 = vunpack.c.l.b16 %v2070
  %v2296 = vunpack.c.l.b16 %v2071
  %v2297 = vunpack.c.l.b16 %v2072
  %v2298 = vunpack.c.l.b16 %v2073
  %v2299 = vunpack.c.l.b16 %v2074
  %v2300 = vunpack.c.l.b16 %v2075
  %v2301 = vunpack.c.l.b16 %v2076
  %v2302 = vunpack.c.l.b16 %v2077
  %v2303 = vunpack.c.l.b16 %v2078
  %v2304 = vpack.c.b16 %v2293, %v2292
  %v2305 = vpack.c.b16 %v2295, %v2294
  %v2306 = vpack.c.b16 %v2297, %v2296
  %v2307 = vpack.c.b16 %v2299, %v2298
  %v2308 = vpack.c.b16 %v2301, %v2300
  %v2309 = vpack.c.b16 %v2303, %v2302
  %v2322 = vunpack.c.l.b16 %v2079
  %v2323 = vunpack.c.l.b16 %v2080
  %v2324 = vunpack.c.l.b16 %v2081
  %v2325 = vunpack.c.l.b16 %v2082
  %v2326 = vunpack.c.l.b16 %v2083
  %v2327 = vunpack.c.l.b16 %v2084
  %v2328 = vunpack.c.l.b16 %v2085
  %v2329 = vunpack.c.l.b16 %v2086
  %v2330 = vunpack.c.l.b16 %v2087
  %v2331 = vunpack.c.l.b16 %v2088
  %v2332 = vunpack.c.l.b16 %v2089
  %v2333 = vunpack.c.l.b16 %v2090
  %v2334 = vpack.c.b16 %v2323, %v2322
  %v2335 = vpack.c.b16 %v2325, %v2324
  %v2336 = vpack.c.b16 %v2327, %v2326
  %v2337 = vpack.c.b16 %v2329, %v2328
  %v2338 = vpack.c.b16 %v2331, %v2330
  %v2339 = vpack.c.b16 %v2333, %v2332
  %v2347 = vsel %vm143, %v2304, 0
  %v2350 = vsel %vm143, %v2305, 0
  %v2353 = vsel %vm143, %v2306, 0
  %v2356 = vsel %vm143, %v2307, 0
  %v2359 = vsel %vm143, %v2308, 0
  %v2362 = vsel %vm143, %v2309, 0
  %2364 = vmatprep.subr.bf16.mxu0 0
  %2365 = vmatpush1.bf16.msra.mxu0 %v2334
  %2366 = vmatprep.subr.bf16.mxu0 0
  %2367 = vmatpush1.bf16.msra.mxu0 %v2335
  %2368 = vmatprep.subr.bf16.mxu0 0
  %2369 = vmatpush1.bf16.msra.mxu0 %v2336
  %2370 = vmatprep.subr.bf16.mxu0 0
  %2371 = vmatpush1.bf16.msra.mxu0 %v2337
  %2372 = vmatprep.subr.bf16.mxu0 0
  %2373 = vmatpush1.bf16.msra.mxu0 %v2338
  %2374 = vmatprep.subr.bf16.mxu0 0
  %2375 = vmatpush1.bf16.msra.mxu0 %v2339
  %2376 = vmatprep.subr.bf16.mxu0 0
  %2377 = vmatpush1.bf16.msra.mxu0 0
  %2378 = vmatprep.subr.bf16.mxu0 0
  %2379 = vmatpush1.bf16.msra.mxu0 0
  %2380 = vmatprep.subr.bf16.mxu0 0
  %2381 = vmatpush1.bf16.msra.mxu0 0
  %2382 = vmatprep.subr.bf16.mxu0 0
  %2383 = vmatpush1.bf16.msra.mxu0 0
  %2384 = vmatprep.subr.bf16.mxu0 0
  %2385 = vmatpush1.bf16.msra.mxu0 0
  %2386 = vmatprep.subr.bf16.mxu0 0
  %2387 = vmatpush1.bf16.msra.mxu0 0
  %2388 = vmatprep.subr.bf16.mxu0 0
  %2389 = vmatpush1.bf16.msra.mxu0 0
  %2390 = vmatprep.subr.bf16.mxu0 0
  %2391 = vmatpush1.bf16.msra.mxu0 0
  %2392 = vmatprep.subr.bf16.mxu0 0
  %2393 = vmatpush1.bf16.msra.mxu0 0
  %2394 = vmatprep.subr.bf16.mxu0 0
  %2395 = vmatpush1.bf16.msra.mxu0 0
  %2396 = vmatprep.mubr.bf16.mxu0 0
  %2397 = vmatmul.mubr.bf16.gmra.mrb[0].mxu0 %v2347
  %v2398 = vpop.f32.mrb[0].mxu0
  %v2399 = vadd.f32 %v2234, %v2398
  %v2400 = vpop.f32.mrb[0].mxu0
  %v2401 = vpop.f32.mrb[0].mxu0
  %v2402 = vadd.f32 %v2237, %v2401
  %v2403 = vpop.f32.mrb[0].mxu0
  %2404 = vmatprep.mubr.bf16.mxu0 0
  %2405 = vmatmul.mubr.bf16.gmra.mrb[0].mxu0 %v2350
  %v2406 = vpop.f32.mrb[0].mxu0
  %v2407 = vadd.f32 %v2242, %v2406
  %v2408 = vpop.f32.mrb[0].mxu0
  %v2409 = vpop.f32.mrb[0].mxu0
  %v2410 = vadd.f32 %v2245, %v2409
  %v2411 = vpop.f32.mrb[0].mxu0
  %2412 = vmatprep.mubr.bf16.mxu0 0
  %2413 = vmatmul.mubr.bf16.gmra.mrb[0].mxu0 %v2353
  %v2414 = vpop.f32.mrb[0].mxu0
  %v2415 = vadd.f32 %v2250, %v2414
  %v2416 = vpop.f32.mrb[0].mxu0
  %v2417 = vpop.f32.mrb[0].mxu0
  %v2418 = vadd.f32 %v2253, %v2417
  %v2419 = vpop.f32.mrb[0].mxu0
  %2420 = vmatprep.mubr.bf16.mxu0 0
  %2421 = vmatmul.mubr.bf16.gmra.mrb[0].mxu0 %v2356
  %v2422 = vpop.f32.mrb[0].mxu0
  %v2423 = vadd.f32 %v2258, %v2422
  %v2424 = vpop.f32.mrb[0].mxu0
  %v2425 = vpop.f32.mrb[0].mxu0
  %v2426 = vadd.f32 %v2261, %v2425
  %v2427 = vpop.f32.mrb[0].mxu0
  %2428 = vmatprep.mubr.bf16.mxu0 0
  %2429 = vmatmul.mubr.bf16.gmra.mrb[0].mxu0 %v2359
  %v2430 = vpop.f32.mrb[0].mxu0
  %v2431 = vadd.f32 %v2266, %v2430
  %v2432 = vpop.f32.mrb[0].mxu0
  %v2433 = vpop.f32.mrb[0].mxu0
  %v2434 = vadd.f32 %v2269, %v2433
  %v2435 = vpop.f32.mrb[0].mxu0
  %2436 = vmatprep.mubr.bf16.mxu0 0
  %2437 = vmatmul.mubr.bf16.gmra.mrb[0].mxu0 %v2362
  %v2438 = vpop.f32.mrb[0].mxu0
  %v2439 = vadd.f32 %v2274, %v2438
  %v2440 = vpop.f32.mrb[0].mxu0
  %v2441 = vpop.f32.mrb[0].mxu0
  %v2442 = vadd.f32 %v2277, %v2441
  %v2443 = vpop.f32.mrb[0].mxu0
  %2444 = vdwg.mxu0
  %v2445 = vld [vmem:[%s0 + $0x4] sm:$0xf]
  %v2446 = vld [vmem:[%s0 + $0x8] sm:$0xf]
  %v2447 = vld [vmem:[%s0 + $0xc] sm:$0xf]
  %v2448 = vld [vmem:[%s0 + $0x10] sm:$0xf]
  %v2449 = vld [vmem:[%s0 + $0x14] sm:$0xf]
  %v2450 = vld [vmem:[%s0 + $0x18] sm:$0xf]
  %v2451 = vld [vmem:[%s0 + $0x1c] sm:$0xf]
  %v2452 = vld [vmem:[%s0 + $0x20] sm:$0xf]
  %v2453 = vld [vmem:[%s0 + $0x24] sm:$0xf]
  %v2454 = vld [vmem:[%s0 + $0x28] sm:$0xf]
  %v2455 = vld [vmem:[%s0 + $0x2c] sm:$0xf]
  %v2456 = vld [vmem:[%s0 + $0x30] sm:$0xf]
  %v2457 = vld [vmem:[%s420 + $0x4] sm:$0xf]
  %v2458 = vld [vmem:[%s420 + $0x10] sm:$0xf]
  %v2459 = vld [vmem:[%s420 + $0x1c] sm:$0xf]
  %v2460 = vld [vmem:[%s420 + $0x28] sm:$0xf]
  %v2461 = vld [vmem:[%s420 + $0x34] sm:$0xf]
  %v2462 = vld [vmem:[%s420 + $0x40] sm:$0xf]
  %v2463 = vld [vmem:[%s420 + $0x4c] sm:$0xf]
  %v2464 = vld [vmem:[%s420 + $0x58] sm:$0xf]
  %v2465 = vld [vmem:[%s420 + $0x64] sm:$0xf]
  %v2466 = vld [vmem:[%s420 + $0x70] sm:$0xf]
  %v2467 = vld [vmem:[%s420 + $0x7c] sm:$0xf]
  %v2468 = vld [vmem:[%s420 + $0x88] sm:$0xf]
  %v2481 = vunpack.c.l.b16 %v2445
  %v2482 = vunpack.c.l.b16 %v2446
  %v2483 = vunpack.c.l.b16 %v2447
  %v2484 = vunpack.c.l.b16 %v2448
  %v2485 = vunpack.c.l.b16 %v2449
  %v2486 = vunpack.c.l.b16 %v2450
  %v2487 = vunpack.c.l.b16 %v2451
  %v2488 = vunpack.c.l.b16 %v2452
  %v2489 = vunpack.c.l.b16 %v2453
  %v2490 = vunpack.c.l.b16 %v2454
  %v2491 = vunpack.c.l.b16 %v2455
  %v2492 = vunpack.c.l.b16 %v2456
  %v2493 = vpack.c.b16 %v2482, %v2481
  %v2494 = vpack.c.b16 %v2484, %v2483
  %v2495 = vpack.c.b16 %v2486, %v2485
  %v2496 = vpack.c.b16 %v2488, %v2487
  %v2497 = vpack.c.b16 %v2490, %v2489
  %v2498 = vpack.c.b16 %v2492, %v2491
  %v2511 = vunpack.c.l.b16 %v2457
  %v2512 = vunpack.c.l.b16 %v2458
  %v2513 = vunpack.c.l.b16 %v2459
  %v2514 = vunpack.c.l.b16 %v2460
  %v2515 = vunpack.c.l.b16 %v2461
  %v2516 = vunpack.c.l.b16 %v2462
  %v2517 = vunpack.c.l.b16 %v2463
  %v2518 = vunpack.c.l.b16 %v2464
  %v2519 = vunpack.c.l.b16 %v2465
  %v2520 = vunpack.c.l.b16 %v2466
  %v2521 = vunpack.c.l.b16 %v2467
  %v2522 = vunpack.c.l.b16 %v2468
  %v2523 = vpack.c.b16 %v2512, %v2511
  %v2524 = vpack.c.b16 %v2514, %v2513
  %v2525 = vpack.c.b16 %v2516, %v2515
  %v2526 = vpack.c.b16 %v2518, %v2517
  %v2527 = vpack.c.b16 %v2520, %v2519
  %v2528 = vpack.c.b16 %v2522, %v2521
  %v2536 = vsel %vm143, %v2493, 0
  %v2539 = vsel %vm143, %v2494, 0
  %v2542 = vsel %vm143, %v2495, 0
  %v2545 = vsel %vm143, %v2496, 0
  %v2548 = vsel %vm143, %v2497, 0
  %v2551 = vsel %vm143, %v2498, 0
  %2553 = vmatprep.subr.bf16.mxu0 0
  %2554 = vmatpush1.bf16.msra.mxu0 %v2523
  %2555 = vmatprep.subr.bf16.mxu0 0
  %2556 = vmatpush1.bf16.msra.mxu0 %v2524
  %2557 = vmatprep.subr.bf16.mxu0 0
  %2558 = vmatpush1.bf16.msra.mxu0 %v2525
  %2559 = vmatprep.subr.bf16.mxu0 0
  %2560 = vmatpush1.bf16.msra.mxu0 %v2526
  %2561 = vmatprep.subr.bf16.mxu0 0
  %2562 = vmatpush1.bf16.msra.mxu0 %v2527
  %2563 = vmatprep.subr.bf16.mxu0 0
  %2564 = vmatpush1.bf16.msra.mxu0 %v2528
  %2565 = vmatprep.subr.bf16.mxu0 0
  %2566 = vmatpush1.bf16.msra.mxu0 0
  %2567 = vmatprep.subr.bf16.mxu0 0
  %2568 = vmatpush1.bf16.msra.mxu0 0
  %2569 = vmatprep.subr.bf16.mxu0 0
  %2570 = vmatpush1.bf16.msra.mxu0 0
  %2571 = vmatprep.subr.bf16.mxu0 0
  %2572 = vmatpush1.bf16.msra.mxu0 0
  %2573 = vmatprep.subr.bf16.mxu0 0
  %2574 = vmatpush1.bf16.msra.mxu0 0
  %2575 = vmatprep.subr.bf16.mxu0 0
  %2576 = vmatpush1.bf16.msra.mxu0 0
  %2577 = vmatprep.subr.bf16.mxu0 0
  %2578 = vmatpush1.bf16.msra.mxu0 0
  %2579 = vmatprep.subr.bf16.mxu0 0
  %2580 = vmatpush1.bf16.msra.mxu0 0
  %2581 = vmatprep.subr.bf16.mxu0 0
  %2582 = vmatpush1.bf16.msra.mxu0 0
  %2583 = vmatprep.subr.bf16.mxu0 0
  %2584 = vmatpush1.bf16.msra.mxu0 0
  %2585 = vmatprep.mubr.bf16.mxu0 0
  %2586 = vmatmul.mubr.bf16.gmra.mrb[0].mxu0 %v2536
  %v2587 = vpop.f32.mrb[0].mxu0
  %v2588 = vadd.f32 0.0, %v2587
  %v2589 = vpop.f32.mrb[0].mxu0
  %v2590 = vpop.f32.mrb[0].mxu0
  %v2591 = vadd.f32 0.0, %v2590
  %v2592 = vpop.f32.mrb[0].mxu0
  %2593 = vmatprep.mubr.bf16.mxu0 0
  %2594 = vmatmul.mubr.bf16.gmra.mrb[0].mxu0 %v2539
  %v2595 = vpop.f32.mrb[0].mxu0
  %v2596 = vadd.f32 0.0, %v2595
  %v2597 = vpop.f32.mrb[0].mxu0
  %v2598 = vpop.f32.mrb[0].mxu0
  %v2599 = vadd.f32 0.0, %v2598
  %v2600 = vpop.f32.mrb[0].mxu0
  %2601 = vmatprep.mubr.bf16.mxu0 0
  %2602 = vmatmul.mubr.bf16.gmra.mrb[0].mxu0 %v2542
  %v2603 = vpop.f32.mrb[0].mxu0
  %v2604 = vadd.f32 0.0, %v2603
  %v2605 = vpop.f32.mrb[0].mxu0
  %v2606 = vpop.f32.mrb[0].mxu0
  %v2607 = vadd.f32 0.0, %v2606
  %v2608 = vpop.f32.mrb[0].mxu0
  %2609 = vmatprep.mubr.bf16.mxu0 0
  %2610 = vmatmul.mubr.bf16.gmra.mrb[0].mxu0 %v2545
  %v2611 = vpop.f32.mrb[0].mxu0
  %v2612 = vadd.f32 0.0, %v2611
  %v2613 = vpop.f32.mrb[0].mxu0
  %v2614 = vpop.f32.mrb[0].mxu0
  %v2615 = vadd.f32 0.0, %v2614
  %v2616 = vpop.f32.mrb[0].mxu0
  %2617 = vmatprep.mubr.bf16.mxu0 0
  %2618 = vmatmul.mubr.bf16.gmra.mrb[0].mxu0 %v2548
  %v2619 = vpop.f32.mrb[0].mxu0
  %v2620 = vadd.f32 0.0, %v2619
  %v2621 = vpop.f32.mrb[0].mxu0
  %v2622 = vpop.f32.mrb[0].mxu0
  %v2623 = vadd.f32 0.0, %v2622
  %v2624 = vpop.f32.mrb[0].mxu0
  %2625 = vmatprep.mubr.bf16.mxu0 0
  %2626 = vmatmul.mubr.bf16.gmra.mrb[0].mxu0 %v2551
  %v2627 = vpop.f32.mrb[0].mxu0
  %v2628 = vadd.f32 0.0, %v2627
  %v2629 = vpop.f32.mrb[0].mxu0
  %v2630 = vpop.f32.mrb[0].mxu0
  %v2631 = vadd.f32 0.0, %v2630
  %v2632 = vpop.f32.mrb[0].mxu0
  %2633 = vdwg.mxu0
  %v2634 = vadd.f32 %v2399, %v2588
  %v2635 = vadd.f32 %v2402, %v2591
  %v2636 = vadd.f32 %v2407, %v2596
  %v2637 = vadd.f32 %v2410, %v2599
  %v2638 = vadd.f32 %v2415, %v2604
  %v2639 = vadd.f32 %v2418, %v2607
  %v2640 = vadd.f32 %v2423, %v2612
  %v2641 = vadd.f32 %v2426, %v2615
  %v2642 = vadd.f32 %v2431, %v2620
  %v2643 = vadd.f32 %v2434, %v2623
  %v2644 = vadd.f32 %v2439, %v2628
  %v2645 = vadd.f32 %v2442, %v2631
  %v2646 = vld [vmem:[%s51 + $0x4] sm:$0xf]
  %v2647 = vld [vmem:[%s51 + $0x8] sm:$0xf]
  %v2648 = vld [vmem:[%s51 + $0xc] sm:$0xf]
  %v2649 = vld [vmem:[%s51 + $0x10] sm:$0xf]
  %v2650 = vld [vmem:[%s51 + $0x14] sm:$0xf]
  %v2651 = vld [vmem:[%s51 + $0x18] sm:$0xf]
  %v2652 = vld [vmem:[%s51 + $0x1c] sm:$0xf]
  %v2653 = vld [vmem:[%s51 + $0x20] sm:$0xf]
  %v2654 = vld [vmem:[%s51 + $0x24] sm:$0xf]
  %v2655 = vld [vmem:[%s51 + $0x28] sm:$0xf]
  %v2656 = vld [vmem:[%s51 + $0x2c] sm:$0xf]
  %v2657 = vld [vmem:[%s51 + $0x30] sm:$0xf]
  %v2658 = vld [vmem:[%s622 + $0x4] sm:$0xf]
  %v2659 = vld [vmem:[%s622 + $0x10] sm:$0xf]
  %v2660 = vld [vmem:[%s622 + $0x1c] sm:$0xf]
  %v2661 = vld [vmem:[%s622 + $0x28] sm:$0xf]
  %v2662 = vld [vmem:[%s622 + $0x34] sm:$0xf]
  %v2663 = vld [vmem:[%s622 + $0x40] sm:$0xf]
  %v2664 = vld [vmem:[%s622 + $0x4c] sm:$0xf]
  %v2665 = vld [vmem:[%s622 + $0x58] sm:$0xf]
  %v2666 = vld [vmem:[%s622 + $0x64] sm:$0xf]
  %v2667 = vld [vmem:[%s622 + $0x70] sm:$0xf]
  %v2668 = vld [vmem:[%s622 + $0x7c] sm:$0xf]
  %v2669 = vld [vmem:[%s622 + $0x88] sm:$0xf]
  %v2682 = vunpack.c.l.b16 %v2646
  %v2683 = vunpack.c.l.b16 %v2647
  %v2684 = vunpack.c.l.b16 %v2648
  %v2685 = vunpack.c.l.b16 %v2649
  %v2686 = vunpack.c.l.b16 %v2650
  %v2687 = vunpack.c.l.b16 %v2651
  %v2688 = vunpack.c.l.b16 %v2652
  %v2689 = vunpack.c.l.b16 %v2653
  %v2690 = vunpack.c.l.b16 %v2654
  %v2691 = vunpack.c.l.b16 %v2655
  %v2692 = vunpack.c.l.b16 %v2656
  %v2693 = vunpack.c.l.b16 %v2657
  %v2694 = vpack.c.b16 %v2683, %v2682
  %v2695 = vpack.c.b16 %v2685, %v2684
  %v2696 = vpack.c.b16 %v2687, %v2686
  %v2697 = vpack.c.b16 %v2689, %v2688
  %v2698 = vpack.c.b16 %v2691, %v2690
  %v2699 = vpack.c.b16 %v2693, %v2692
  %v2712 = vunpack.c.l.b16 %v2658
  %v2713 = vunpack.c.l.b16 %v2659
  %v2714 = vunpack.c.l.b16 %v2660
  %v2715 = vunpack.c.l.b16 %v2661
  %v2716 = vunpack.c.l.b16 %v2662
  %v2717 = vunpack.c.l.b16 %v2663
  %v2718 = vunpack.c.l.b16 %v2664
  %v2719 = vunpack.c.l.b16 %v2665
  %v2720 = vunpack.c.l.b16 %v2666
  %v2721 = vunpack.c.l.b16 %v2667
  %v2722 = vunpack.c.l.b16 %v2668
  %v2723 = vunpack.c.l.b16 %v2669
  %v2724 = vpack.c.b16 %v2713, %v2712
  %v2725 = vpack.c.b16 %v2715, %v2714
  %v2726 = vpack.c.b16 %v2717, %v2716
  %v2727 = vpack.c.b16 %v2719, %v2718
  %v2728 = vpack.c.b16 %v2721, %v2720
  %v2729 = vpack.c.b16 %v2723, %v2722
  %v2737 = vsel %vm143, %v2694, 0
  %v2740 = vsel %vm143, %v2695, 0
  %v2743 = vsel %vm143, %v2696, 0
  %v2746 = vsel %vm143, %v2697, 0
  %v2749 = vsel %vm143, %v2698, 0
  %v2752 = vsel %vm143, %v2699, 0
  %2754 = vmatprep.subr.bf16.mxu0 0
  %2755 = vmatpush1.bf16.msra.mxu0 %v2724
  %2756 = vmatprep.subr.bf16.mxu0 0
  %2757 = vmatpush1.bf16.msra.mxu0 %v2725
  %2758 = vmatprep.subr.bf16.mxu0 0
  %2759 = vmatpush1.bf16.msra.mxu0 %v2726
  %2760 = vmatprep.subr.bf16.mxu0 0
  %2761 = vmatpush1.bf16.msra.mxu0 %v2727
  %2762 = vmatprep.subr.bf16.mxu0 0
  %2763 = vmatpush1.bf16.msra.mxu0 %v2728
  %2764 = vmatprep.subr.bf16.mxu0 0
  %2765 = vmatpush1.bf16.msra.mxu0 %v2729
  %2766 = vmatprep.subr.bf16.mxu0 0
  %2767 = vmatpush1.bf16.msra.mxu0 0
  %2768 = vmatprep.subr.bf16.mxu0 0
  %2769 = vmatpush1.bf16.msra.mxu0 0
  %2770 = vmatprep.subr.bf16.mxu0 0
  %2771 = vmatpush1.bf16.msra.mxu0 0
  %2772 = vmatprep.subr.bf16.mxu0 0
  %2773 = vmatpush1.bf16.msra.mxu0 0
  %2774 = vmatprep.subr.bf16.mxu0 0
  %2775 = vmatpush1.bf16.msra.mxu0 0
  %2776 = vmatprep.subr.bf16.mxu0 0
  %2777 = vmatpush1.bf16.msra.mxu0 0
  %2778 = vmatprep.subr.bf16.mxu0 0
  %2779 = vmatpush1.bf16.msra.mxu0 0
  %2780 = vmatprep.subr.bf16.mxu0 0
  %2781 = vmatpush1.bf16.msra.mxu0 0
  %2782 = vmatprep.subr.bf16.mxu0 0
  %2783 = vmatpush1.bf16.msra.mxu0 0
  %2784 = vmatprep.subr.bf16.mxu0 0
  %2785 = vmatpush1.bf16.msra.mxu0 0
  %2786 = vmatprep.mubr.bf16.mxu0 0
  %2787 = vmatmul.mubr.bf16.gmra.mrb[0].mxu0 %v2737
  %v2788 = vpop.f32.mrb[0].mxu0
  %v2789 = vadd.f32 0.0, %v2788
  %v2790 = vpop.f32.mrb[0].mxu0
  %v2791 = vpop.f32.mrb[0].mxu0
  %v2792 = vadd.f32 0.0, %v2791
  %v2793 = vpop.f32.mrb[0].mxu0
  %2794 = vmatprep.mubr.bf16.mxu0 0
  %2795 = vmatmul.mubr.bf16.gmra.mrb[0].mxu0 %v2740
  %v2796 = vpop.f32.mrb[0].mxu0
  %v2797 = vadd.f32 0.0, %v2796
  %v2798 = vpop.f32.mrb[0].mxu0
  %v2799 = vpop.f32.mrb[0].mxu0
  %v2800 = vadd.f32 0.0, %v2799
  %v2801 = vpop.f32.mrb[0].mxu0
  %2802 = vmatprep.mubr.bf16.mxu0 0
  %2803 = vmatmul.mubr.bf16.gmra.mrb[0].mxu0 %v2743
  %v2804 = vpop.f32.mrb[0].mxu0
  %v2805 = vadd.f32 0.0, %v2804
  %v2806 = vpop.f32.mrb[0].mxu0
  %v2807 = vpop.f32.mrb[0].mxu0
  %v2808 = vadd.f32 0.0, %v2807
  %v2809 = vpop.f32.mrb[0].mxu0
  %2810 = vmatprep.mubr.bf16.mxu0 0
  %2811 = vmatmul.mubr.bf16.gmra.mrb[0].mxu0 %v2746
  %v2812 = vpop.f32.mrb[0].mxu0
  %v2813 = vadd.f32 0.0, %v2812
  %v2814 = vpop.f32.mrb[0].mxu0
  %v2815 = vpop.f32.mrb[0].mxu0
  %v2816 = vadd.f32 0.0, %v2815
  %v2817 = vpop.f32.mrb[0].mxu0
  %2818 = vmatprep.mubr.bf16.mxu0 0
  %2819 = vmatmul.mubr.bf16.gmra.mrb[0].mxu0 %v2749
  %v2820 = vpop.f32.mrb[0].mxu0
  %v2821 = vadd.f32 0.0, %v2820
  %v2822 = vpop.f32.mrb[0].mxu0
  %v2823 = vpop.f32.mrb[0].mxu0
  %v2824 = vadd.f32 0.0, %v2823
  %v2825 = vpop.f32.mrb[0].mxu0
  %2826 = vmatprep.mubr.bf16.mxu0 0
  %2827 = vmatmul.mubr.bf16.gmra.mrb[0].mxu0 %v2752
  %v2828 = vpop.f32.mrb[0].mxu0
  %v2829 = vadd.f32 0.0, %v2828
  %v2830 = vpop.f32.mrb[0].mxu0
  %v2831 = vpop.f32.mrb[0].mxu0
  %v2832 = vadd.f32 0.0, %v2831
  %v2833 = vpop.f32.mrb[0].mxu0
  %2834 = vdwg.mxu0
  %v2835 = vadd.f32 %v2634, %v2789
  %v2836 = vadd.f32 %v2635, %v2792
  %v2837 = vadd.f32 %v2636, %v2797
  %v2838 = vadd.f32 %v2637, %v2800
  %v2839 = vadd.f32 %v2638, %v2805
  %v2840 = vadd.f32 %v2639, %v2808
  %v2841 = vadd.f32 %v2640, %v2813
  %v2842 = vadd.f32 %v2641, %v2816
  %v2843 = vadd.f32 %v2642, %v2821
  %v2844 = vadd.f32 %v2643, %v2824
  %v2845 = vadd.f32 %v2644, %v2829
  %v2846 = vadd.f32 %v2645, %v2832
  %v2847 = vld [vmem:[%s0 + $0x8] sm:$0xf]
  %v2848 = vld [vmem:[%s0 + $0xc] sm:$0xf]
  %v2849 = vld [vmem:[%s0 + $0x10] sm:$0xf]
  %v2850 = vld [vmem:[%s0 + $0x14] sm:$0xf]
  %v2851 = vld [vmem:[%s0 + $0x18] sm:$0xf]
  %v2852 = vld [vmem:[%s0 + $0x1c] sm:$0xf]
  %v2853 = vld [vmem:[%s0 + $0x20] sm:$0xf]
  %v2854 = vld [vmem:[%s0 + $0x24] sm:$0xf]
  %v2855 = vld [vmem:[%s0 + $0x28] sm:$0xf]
  %v2856 = vld [vmem:[%s0 + $0x2c] sm:$0xf]
  %v2857 = vld [vmem:[%s0 + $0x30] sm:$0xf]
  %v2858 = vld [vmem:[%s0 + $0x34] sm:$0xf]
  %v2859 = vld [vmem:[%s824 + $0x4] sm:$0xf]
  %v2860 = vld [vmem:[%s824 + $0x10] sm:$0xf]
  %v2861 = vld [vmem:[%s824 + $0x1c] sm:$0xf]
  %v2862 = vld [vmem:[%s824 + $0x28] sm:$0xf]
  %v2863 = vld [vmem:[%s824 + $0x34] sm:$0xf]
  %v2864 = vld [vmem:[%s824 + $0x40] sm:$0xf]
  %v2865 = vld [vmem:[%s824 + $0x4c] sm:$0xf]
  %v2866 = vld [vmem:[%s824 + $0x58] sm:$0xf]
  %v2867 = vld [vmem:[%s824 + $0x64] sm:$0xf]
  %v2868 = vld [vmem:[%s824 + $0x70] sm:$0xf]
  %v2869 = vld [vmem:[%s824 + $0x7c] sm:$0xf]
  %v2870 = vld [vmem:[%s824 + $0x88] sm:$0xf]
  %v2883 = vunpack.c.l.b16 %v2847
  %v2884 = vunpack.c.l.b16 %v2848
  %v2885 = vunpack.c.l.b16 %v2849
  %v2886 = vunpack.c.l.b16 %v2850
  %v2887 = vunpack.c.l.b16 %v2851
  %v2888 = vunpack.c.l.b16 %v2852
  %v2889 = vunpack.c.l.b16 %v2853
  %v2890 = vunpack.c.l.b16 %v2854
  %v2891 = vunpack.c.l.b16 %v2855
  %v2892 = vunpack.c.l.b16 %v2856
  %v2893 = vunpack.c.l.b16 %v2857
  %v2894 = vunpack.c.l.b16 %v2858
  %v2895 = vpack.c.b16 %v2884, %v2883
  %v2896 = vpack.c.b16 %v2886, %v2885
  %v2897 = vpack.c.b16 %v2888, %v2887
  %v2898 = vpack.c.b16 %v2890, %v2889
  %v2899 = vpack.c.b16 %v2892, %v2891
  %v2900 = vpack.c.b16 %v2894, %v2893
  %v2913 = vunpack.c.l.b16 %v2859
  %v2914 = vunpack.c.l.b16 %v2860
  %v2915 = vunpack.c.l.b16 %v2861
  %v2916 = vunpack.c.l.b16 %v2862
  %v2917 = vunpack.c.l.b16 %v2863
  %v2918 = vunpack.c.l.b16 %v2864
  %v2919 = vunpack.c.l.b16 %v2865
  %v2920 = vunpack.c.l.b16 %v2866
  %v2921 = vunpack.c.l.b16 %v2867
  %v2922 = vunpack.c.l.b16 %v2868
  %v2923 = vunpack.c.l.b16 %v2869
  %v2924 = vunpack.c.l.b16 %v2870
  %v2925 = vpack.c.b16 %v2914, %v2913
  %v2926 = vpack.c.b16 %v2916, %v2915
  %v2927 = vpack.c.b16 %v2918, %v2917
  %v2928 = vpack.c.b16 %v2920, %v2919
  %v2929 = vpack.c.b16 %v2922, %v2921
  %v2930 = vpack.c.b16 %v2924, %v2923
  %v2938 = vsel %vm143, %v2895, 0
  %v2941 = vsel %vm143, %v2896, 0
  %v2944 = vsel %vm143, %v2897, 0
  %v2947 = vsel %vm143, %v2898, 0
  %v2950 = vsel %vm143, %v2899, 0
  %v2953 = vsel %vm143, %v2900, 0
  %2955 = vmatprep.subr.bf16.mxu0 0
  %2956 = vmatpush1.bf16.msra.mxu0 %v2925
  %2957 = vmatprep.subr.bf16.mxu0 0
  %2958 = vmatpush1.bf16.msra.mxu0 %v2926
  %2959 = vmatprep.subr.bf16.mxu0 0
  %2960 = vmatpush1.bf16.msra.mxu0 %v2927
  %2961 = vmatprep.subr.bf16.mxu0 0
  %2962 = vmatpush1.bf16.msra.mxu0 %v2928
  %2963 = vmatprep.subr.bf16.mxu0 0
  %2964 = vmatpush1.bf16.msra.mxu0 %v2929
  %2965 = vmatprep.subr.bf16.mxu0 0
  %2966 = vmatpush1.bf16.msra.mxu0 %v2930
  %2967 = vmatprep.subr.bf16.mxu0 0
  %2968 = vmatpush1.bf16.msra.mxu0 0
  %2969 = vmatprep.subr.bf16.mxu0 0
  %2970 = vmatpush1.bf16.msra.mxu0 0
  %2971 = vmatprep.subr.bf16.mxu0 0
  %2972 = vmatpush1.bf16.msra.mxu0 0
  %2973 = vmatprep.subr.bf16.mxu0 0
  %2974 = vmatpush1.bf16.msra.mxu0 0
  %2975 = vmatprep.subr.bf16.mxu0 0
  %2976 = vmatpush1.bf16.msra.mxu0 0
  %2977 = vmatprep.subr.bf16.mxu0 0
  %2978 = vmatpush1.bf16.msra.mxu0 0
  %2979 = vmatprep.subr.bf16.mxu0 0
  %2980 = vmatpush1.bf16.msra.mxu0 0
  %2981 = vmatprep.subr.bf16.mxu0 0
  %2982 = vmatpush1.bf16.msra.mxu0 0
  %2983 = vmatprep.subr.bf16.mxu0 0
  %2984 = vmatpush1.bf16.msra.mxu0 0
  %2985 = vmatprep.subr.bf16.mxu0 0
  %2986 = vmatpush1.bf16.msra.mxu0 0
  %2987 = vmatprep.mubr.bf16.mxu0 0
  %2988 = vmatmul.mubr.bf16.gmra.mrb[0].mxu0 %v2938
  %v2989 = vpop.f32.mrb[0].mxu0
  %v2990 = vadd.f32 0.0, %v2989
  %v2991 = vpop.f32.mrb[0].mxu0
  %v2992 = vpop.f32.mrb[0].mxu0
  %v2993 = vadd.f32 0.0, %v2992
  %v2994 = vpop.f32.mrb[0].mxu0
  %2995 = vmatprep.mubr.bf16.mxu0 0
  %2996 = vmatmul.mubr.bf16.gmra.mrb[0].mxu0 %v2941
  %v2997 = vpop.f32.mrb[0].mxu0
  %v2998 = vadd.f32 0.0, %v2997
  %v2999 = vpop.f32.mrb[0].mxu0
  %v3000 = vpop.f32.mrb[0].mxu0
  %v3001 = vadd.f32 0.0, %v3000
  %v3002 = vpop.f32.mrb[0].mxu0
  %3003 = vmatprep.mubr.bf16.mxu0 0
  %3004 = vmatmul.mubr.bf16.gmra.mrb[0].mxu0 %v2944
  %v3005 = vpop.f32.mrb[0].mxu0
  %v3006 = vadd.f32 0.0, %v3005
  %v3007 = vpop.f32.mrb[0].mxu0
  %v3008 = vpop.f32.mrb[0].mxu0
  %v3009 = vadd.f32 0.0, %v3008
  %v3010 = vpop.f32.mrb[0].mxu0
  %3011 = vmatprep.mubr.bf16.mxu0 0
  %3012 = vmatmul.mubr.bf16.gmra.mrb[0].mxu0 %v2947
  %v3013 = vpop.f32.mrb[0].mxu0
  %v3014 = vadd.f32 0.0, %v3013
  %v3015 = vpop.f32.mrb[0].mxu0
  %v3016 = vpop.f32.mrb[0].mxu0
  %v3017 = vadd.f32 0.0, %v3016
  %v3018 = vpop.f32.mrb[0].mxu0
  %3019 = vmatprep.mubr.bf16.mxu0 0
  %3020 = vmatmul.mubr.bf16.gmra.mrb[0].mxu0 %v2950
  %v3021 = vpop.f32.mrb[0].mxu0
  %v3022 = vadd.f32 0.0, %v3021
  %v3023 = vpop.f32.mrb[0].mxu0
  %v3024 = vpop.f32.mrb[0].mxu0
  %v3025 = vadd.f32 0.0, %v3024
  %v3026 = vpop.f32.mrb[0].mxu0
  %3027 = vmatprep.mubr.bf16.mxu0 0
  %3028 = vmatmul.mubr.bf16.gmra.mrb[0].mxu0 %v2953
  %v3029 = vpop.f32.mrb[0].mxu0
  %v3030 = vadd.f32 0.0, %v3029
  %v3031 = vpop.f32.mrb[0].mxu0
  %v3032 = vpop.f32.mrb[0].mxu0
  %v3033 = vadd.f32 0.0, %v3032
  %v3034 = vpop.f32.mrb[0].mxu0
  %3035 = vdwg.mxu0
  %v3036 = vadd.f32 %v2835, %v2990
  %v3037 = vadd.f32 %v2836, %v2993
  %v3038 = vadd.f32 %v2837, %v2998
  %v3039 = vadd.f32 %v2838, %v3001
  %v3040 = vadd.f32 %v2839, %v3006
  %v3041 = vadd.f32 %v2840, %v3009
  %v3042 = vadd.f32 %v2841, %v3014
  %v3043 = vadd.f32 %v2842, %v3017
  %v3044 = vadd.f32 %v2843, %v3022
  %v3045 = vadd.f32 %v2844, %v3025
  %v3046 = vadd.f32 %v2845, %v3030
  %v3047 = vadd.f32 %v2846, %v3033
  %v3048 = vld [vmem:[%s51 + $0x8] sm:$0xf]
  %v3049 = vld [vmem:[%s51 + $0xc] sm:$0xf]
  %v3050 = vld [vmem:[%s51 + $0x10] sm:$0xf]
  %v3051 = vld [vmem:[%s51 + $0x14] sm:$0xf]
  %v3052 = vld [vmem:[%s51 + $0x18] sm:$0xf]
  %v3053 = vld [vmem:[%s51 + $0x1c] sm:$0xf]
  %v3054 = vld [vmem:[%s51 + $0x20] sm:$0xf]
  %v3055 = vld [vmem:[%s51 + $0x24] sm:$0xf]
  %v3056 = vld [vmem:[%s51 + $0x28] sm:$0xf]
  %v3057 = vld [vmem:[%s51 + $0x2c] sm:$0xf]
  %v3058 = vld [vmem:[%s51 + $0x30] sm:$0xf]
  %v3059 = vld [vmem:[%s51 + $0x34] sm:$0xf]
  %v3060 = vld [vmem:[%s1026 + $0x4] sm:$0xf]
  %v3061 = vld [vmem:[%s1026 + $0x10] sm:$0xf]
  %v3062 = vld [vmem:[%s1026 + $0x1c] sm:$0xf]
  %v3063 = vld [vmem:[%s1026 + $0x28] sm:$0xf]
  %v3064 = vld [vmem:[%s1026 + $0x34] sm:$0xf]
  %v3065 = vld [vmem:[%s1026 + $0x40] sm:$0xf]
  %v3066 = vld [vmem:[%s1026 + $0x4c] sm:$0xf]
  %v3067 = vld [vmem:[%s1026 + $0x58] sm:$0xf]
  %v3068 = vld [vmem:[%s1026 + $0x64] sm:$0xf]
  %v3069 = vld [vmem:[%s1026 + $0x70] sm:$0xf]
  %v3070 = vld [vmem:[%s1026 + $0x7c] sm:$0xf]
  %v3071 = vld [vmem:[%s1026 + $0x88] sm:$0xf]
  %v3084 = vunpack.c.l.b16 %v3048
  %v3085 = vunpack.c.l.b16 %v3049
  %v3086 = vunpack.c.l.b16 %v3050
  %v3087 = vunpack.c.l.b16 %v3051
  %v3088 = vunpack.c.l.b16 %v3052
  %v3089 = vunpack.c.l.b16 %v3053
  %v3090 = vunpack.c.l.b16 %v3054
  %v3091 = vunpack.c.l.b16 %v3055
  %v3092 = vunpack.c.l.b16 %v3056
  %v3093 = vunpack.c.l.b16 %v3057
  %v3094 = vunpack.c.l.b16 %v3058
  %v3095 = vunpack.c.l.b16 %v3059
  %v3096 = vpack.c.b16 %v3085, %v3084
  %v3097 = vpack.c.b16 %v3087, %v3086
  %v3098 = vpack.c.b16 %v3089, %v3088
  %v3099 = vpack.c.b16 %v3091, %v3090
  %v3100 = vpack.c.b16 %v3093, %v3092
  %v3101 = vpack.c.b16 %v3095, %v3094
  %v3114 = vunpack.c.l.b16 %v3060
  %v3115 = vunpack.c.l.b16 %v3061
  %v3116 = vunpack.c.l.b16 %v3062
  %v3117 = vunpack.c.l.b16 %v3063
  %v3118 = vunpack.c.l.b16 %v3064
  %v3119 = vunpack.c.l.b16 %v3065
  %v3120 = vunpack.c.l.b16 %v3066
  %v3121 = vunpack.c.l.b16 %v3067
  %v3122 = vunpack.c.l.b16 %v3068
  %v3123 = vunpack.c.l.b16 %v3069
  %v3124 = vunpack.c.l.b16 %v3070
  %v3125 = vunpack.c.l.b16 %v3071
  %v3126 = vpack.c.b16 %v3115, %v3114
  %v3127 = vpack.c.b16 %v3117, %v3116
  %v3128 = vpack.c.b16 %v3119, %v3118
  %v3129 = vpack.c.b16 %v3121, %v3120
  %v3130 = vpack.c.b16 %v3123, %v3122
  %v3131 = vpack.c.b16 %v3125, %v3124
  %v3139 = vsel %vm143, %v3096, 0
  %v3142 = vsel %vm143, %v3097, 0
  %v3145 = vsel %vm143, %v3098, 0
  %v3148 = vsel %vm143, %v3099, 0
  %v3151 = vsel %vm143, %v3100, 0
  %v3154 = vsel %vm143, %v3101, 0
  %3156 = vmatprep.subr.bf16.mxu0 0
  %3157 = vmatpush1.bf16.msra.mxu0 %v3126
  %3158 = vmatprep.subr.bf16.mxu0 0
  %3159 = vmatpush1.bf16.msra.mxu0 %v3127
  %3160 = vmatprep.subr.bf16.mxu0 0
  %3161 = vmatpush1.bf16.msra.mxu0 %v3128
  %3162 = vmatprep.subr.bf16.mxu0 0
  %3163 = vmatpush1.bf16.msra.mxu0 %v3129
  %3164 = vmatprep.subr.bf16.mxu0 0
  %3165 = vmatpush1.bf16.msra.mxu0 %v3130
  %3166 = vmatprep.subr.bf16.mxu0 0
  %3167 = vmatpush1.bf16.msra.mxu0 %v3131
  %3168 = vmatprep.subr.bf16.mxu0 0
  %3169 = vmatpush1.bf16.msra.mxu0 0
  %3170 = vmatprep.subr.bf16.mxu0 0
  %3171 = vmatpush1.bf16.msra.mxu0 0
  %3172 = vmatprep.subr.bf16.mxu0 0
  %3173 = vmatpush1.bf16.msra.mxu0 0
  %3174 = vmatprep.subr.bf16.mxu0 0
  %3175 = vmatpush1.bf16.msra.mxu0 0
  %3176 = vmatprep.subr.bf16.mxu0 0
  %3177 = vmatpush1.bf16.msra.mxu0 0
  %3178 = vmatprep.subr.bf16.mxu0 0
  %3179 = vmatpush1.bf16.msra.mxu0 0
  %3180 = vmatprep.subr.bf16.mxu0 0
  %3181 = vmatpush1.bf16.msra.mxu0 0
  %3182 = vmatprep.subr.bf16.mxu0 0
  %3183 = vmatpush1.bf16.msra.mxu0 0
  %3184 = vmatprep.subr.bf16.mxu0 0
  %3185 = vmatpush1.bf16.msra.mxu0 0
  %3186 = vmatprep.subr.bf16.mxu0 0
  %3187 = vmatpush1.bf16.msra.mxu0 0
  %3188 = vmatprep.mubr.bf16.mxu0 0
  %3189 = vmatmul.mubr.bf16.gmra.mrb[0].mxu0 %v3139
  %v3190 = vpop.f32.mrb[0].mxu0
  %v3191 = vadd.f32 0.0, %v3190
  %v3192 = vpop.f32.mrb[0].mxu0
  %v3193 = vpop.f32.mrb[0].mxu0
  %v3194 = vadd.f32 0.0, %v3193
  %v3195 = vpop.f32.mrb[0].mxu0
  %3196 = vmatprep.mubr.bf16.mxu0 0
  %3197 = vmatmul.mubr.bf16.gmra.mrb[0].mxu0 %v3142
  %v3198 = vpop.f32.mrb[0].mxu0
  %v3199 = vadd.f32 0.0, %v3198
  %v3200 = vpop.f32.mrb[0].mxu0
  %v3201 = vpop.f32.mrb[0].mxu0
  %v3202 = vadd.f32 0.0, %v3201
  %v3203 = vpop.f32.mrb[0].mxu0
  %3204 = vmatprep.mubr.bf16.mxu0 0
  %3205 = vmatmul.mubr.bf16.gmra.mrb[0].mxu0 %v3145
  %v3206 = vpop.f32.mrb[0].mxu0
  %v3207 = vadd.f32 0.0, %v3206
  %v3208 = vpop.f32.mrb[0].mxu0
  %v3209 = vpop.f32.mrb[0].mxu0
  %v3210 = vadd.f32 0.0, %v3209
  %v3211 = vpop.f32.mrb[0].mxu0
  %3212 = vmatprep.mubr.bf16.mxu0 0
  %3213 = vmatmul.mubr.bf16.gmra.mrb[0].mxu0 %v3148
  %v3214 = vpop.f32.mrb[0].mxu0
  %v3215 = vadd.f32 0.0, %v3214
  %v3216 = vpop.f32.mrb[0].mxu0
  %v3217 = vpop.f32.mrb[0].mxu0
  %v3218 = vadd.f32 0.0, %v3217
  %v3219 = vpop.f32.mrb[0].mxu0
  %3220 = vmatprep.mubr.bf16.mxu0 0
  %3221 = vmatmul.mubr.bf16.gmra.mrb[0].mxu0 %v3151
  %v3222 = vpop.f32.mrb[0].mxu0
  %v3223 = vadd.f32 0.0, %v3222
  %v3224 = vpop.f32.mrb[0].mxu0
  %v3225 = vpop.f32.mrb[0].mxu0
  %v3226 = vadd.f32 0.0, %v3225
  %v3227 = vpop.f32.mrb[0].mxu0
  %3228 = vmatprep.mubr.bf16.mxu0 0
  %3229 = vmatmul.mubr.bf16.gmra.mrb[0].mxu0 %v3154
  %v3230 = vpop.f32.mrb[0].mxu0
  %v3231 = vadd.f32 0.0, %v3230
  %v3232 = vpop.f32.mrb[0].mxu0
  %v3233 = vpop.f32.mrb[0].mxu0
  %v3234 = vadd.f32 0.0, %v3233
  %v3235 = vpop.f32.mrb[0].mxu0
  %3236 = vdwg.mxu0
  %v3237 = vadd.f32 %v3036, %v3191
  %v3238 = vadd.f32 %v3037, %v3194
  %v3239 = vadd.f32 %v3038, %v3199
  %v3240 = vadd.f32 %v3039, %v3202
  %v3241 = vadd.f32 %v3040, %v3207
  %v3242 = vadd.f32 %v3041, %v3210
  %v3243 = vadd.f32 %v3042, %v3215
  %v3244 = vadd.f32 %v3043, %v3218
  %v3245 = vadd.f32 %v3044, %v3223
  %v3246 = vadd.f32 %v3045, %v3226
  %v3247 = vadd.f32 %v3046, %v3231
  %v3248 = vadd.f32 %v3047, %v3234
  %v3249 = vld [vmem:[%s0 + $0xc] sm:$0xf]
  %v3250 = vld [vmem:[%s0 + $0x10] sm:$0xf]
  %v3251 = vld [vmem:[%s0 + $0x14] sm:$0xf]
  %v3252 = vld [vmem:[%s0 + $0x18] sm:$0xf]
  %v3253 = vld [vmem:[%s0 + $0x1c] sm:$0xf]
  %v3254 = vld [vmem:[%s0 + $0x20] sm:$0xf]
  %v3255 = vld [vmem:[%s0 + $0x24] sm:$0xf]
  %v3256 = vld [vmem:[%s0 + $0x28] sm:$0xf]
  %v3257 = vld [vmem:[%s0 + $0x2c] sm:$0xf]
  %v3258 = vld [vmem:[%s0 + $0x30] sm:$0xf]
  %v3259 = vld [vmem:[%s0 + $0x34] sm:$0xf]
  %v3260 = vld [vmem:[%s0 + $0x38] sm:$0xf]
  %v3261 = vld [vmem:[%s1228 + $0x4] sm:$0xf]
  %v3262 = vld [vmem:[%s1228 + $0x10] sm:$0xf]
  %v3263 = vld [vmem:[%s1228 + $0x1c] sm:$0xf]
  %v3264 = vld [vmem:[%s1228 + $0x28] sm:$0xf]
  %v3265 = vld [vmem:[%s1228 + $0x34] sm:$0xf]
  %v3266 = vld [vmem:[%s1228 + $0x40] sm:$0xf]
  %v3267 = vld [vmem:[%s1228 + $0x4c] sm:$0xf]
  %v3268 = vld [vmem:[%s1228 + $0x58] sm:$0xf]
  %v3269 = vld [vmem:[%s1228 + $0x64] sm:$0xf]
  %v3270 = vld [vmem:[%s1228 + $0x70] sm:$0xf]
  %v3271 = vld [vmem:[%s1228 + $0x7c] sm:$0xf]
  %v3272 = vld [vmem:[%s1228 + $0x88] sm:$0xf]
  %v3285 = vunpack.c.l.b16 %v3249
  %v3286 = vunpack.c.l.b16 %v3250
  %v3287 = vunpack.c.l.b16 %v3251
  %v3288 = vunpack.c.l.b16 %v3252
  %v3289 = vunpack.c.l.b16 %v3253
  %v3290 = vunpack.c.l.b16 %v3254
  %v3291 = vunpack.c.l.b16 %v3255
  %v3292 = vunpack.c.l.b16 %v3256
  %v3293 = vunpack.c.l.b16 %v3257
  %v3294 = vunpack.c.l.b16 %v3258
  %v3295 = vunpack.c.l.b16 %v3259
  %v3296 = vunpack.c.l.b16 %v3260
  %v3297 = vpack.c.b16 %v3286, %v3285
  %v3298 = vpack.c.b16 %v3288, %v3287
  %v3299 = vpack.c.b16 %v3290, %v3289
  %v3300 = vpack.c.b16 %v3292, %v3291
  %v3301 = vpack.c.b16 %v3294, %v3293
  %v3302 = vpack.c.b16 %v3296, %v3295
  %v3315 = vunpack.c.l.b16 %v3261
  %v3316 = vunpack.c.l.b16 %v3262
  %v3317 = vunpack.c.l.b16 %v3263
  %v3318 = vunpack.c.l.b16 %v3264
  %v3319 = vunpack.c.l.b16 %v3265
  %v3320 = vunpack.c.l.b16 %v3266
  %v3321 = vunpack.c.l.b16 %v3267
  %v3322 = vunpack.c.l.b16 %v3268
  %v3323 = vunpack.c.l.b16 %v3269
  %v3324 = vunpack.c.l.b16 %v3270
  %v3325 = vunpack.c.l.b16 %v3271
  %v3326 = vunpack.c.l.b16 %v3272
  %v3327 = vpack.c.b16 %v3316, %v3315
  %v3328 = vpack.c.b16 %v3318, %v3317
  %v3329 = vpack.c.b16 %v3320, %v3319
  %v3330 = vpack.c.b16 %v3322, %v3321
  %v3331 = vpack.c.b16 %v3324, %v3323
  %v3332 = vpack.c.b16 %v3326, %v3325
  %v3340 = vsel %vm143, %v3297, 0
  %v3343 = vsel %vm143, %v3298, 0
  %v3346 = vsel %vm143, %v3299, 0
  %v3349 = vsel %vm143, %v3300, 0
  %v3352 = vsel %vm143, %v3301, 0
  %v3355 = vsel %vm143, %v3302, 0
  %3357 = vmatprep.subr.bf16.mxu0 0
  %3358 = vmatpush1.bf16.msra.mxu0 %v3327
  %3359 = vmatprep.subr.bf16.mxu0 0
  %3360 = vmatpush1.bf16.msra.mxu0 %v3328
  %3361 = vmatprep.subr.bf16.mxu0 0
  %3362 = vmatpush1.bf16.msra.mxu0 %v3329
  %3363 = vmatprep.subr.bf16.mxu0 0
  %3364 = vmatpush1.bf16.msra.mxu0 %v3330
  %3365 = vmatprep.subr.bf16.mxu0 0
  %3366 = vmatpush1.bf16.msra.mxu0 %v3331
  %3367 = vmatprep.subr.bf16.mxu0 0
  %3368 = vmatpush1.bf16.msra.mxu0 %v3332
  %3369 = vmatprep.subr.bf16.mxu0 0
  %3370 = vmatpush1.bf16.msra.mxu0 0
  %3371 = vmatprep.subr.bf16.mxu0 0
  %3372 = vmatpush1.bf16.msra.mxu0 0
  %3373 = vmatprep.subr.bf16.mxu0 0
  %3374 = vmatpush1.bf16.msra.mxu0 0
  %3375 = vmatprep.subr.bf16.mxu0 0
  %3376 = vmatpush1.bf16.msra.mxu0 0
  %3377 = vmatprep.subr.bf16.mxu0 0
  %3378 = vmatpush1.bf16.msra.mxu0 0
  %3379 = vmatprep.subr.bf16.mxu0 0
  %3380 = vmatpush1.bf16.msra.mxu0 0
  %3381 = vmatprep.subr.bf16.mxu0 0
  %3382 = vmatpush1.bf16.msra.mxu0 0
  %3383 = vmatprep.subr.bf16.mxu0 0
  %3384 = vmatpush1.bf16.msra.mxu0 0
  %3385 = vmatprep.subr.bf16.mxu0 0
  %3386 = vmatpush1.bf16.msra.mxu0 0
  %3387 = vmatprep.subr.bf16.mxu0 0
  %3388 = vmatpush1.bf16.msra.mxu0 0
  %3389 = vmatprep.mubr.bf16.mxu0 0
  %3390 = vmatmul.mubr.bf16.gmra.mrb[0].mxu0 %v3340
  %v3391 = vpop.f32.mrb[0].mxu0
  %v3392 = vadd.f32 0.0, %v3391
  %v3393 = vpop.f32.mrb[0].mxu0
  %v3394 = vpop.f32.mrb[0].mxu0
  %v3395 = vadd.f32 0.0, %v3394
  %v3396 = vpop.f32.mrb[0].mxu0
  %3397 = vmatprep.mubr.bf16.mxu0 0
  %3398 = vmatmul.mubr.bf16.gmra.mrb[0].mxu0 %v3343
  %v3399 = vpop.f32.mrb[0].mxu0
  %v3400 = vadd.f32 0.0, %v3399
  %v3401 = vpop.f32.mrb[0].mxu0
  %v3402 = vpop.f32.mrb[0].mxu0
  %v3403 = vadd.f32 0.0, %v3402
  %v3404 = vpop.f32.mrb[0].mxu0
  %3405 = vmatprep.mubr.bf16.mxu0 0
  %3406 = vmatmul.mubr.bf16.gmra.mrb[0].mxu0 %v3346
  %v3407 = vpop.f32.mrb[0].mxu0
  %v3408 = vadd.f32 0.0, %v3407
  %v3409 = vpop.f32.mrb[0].mxu0
  %v3410 = vpop.f32.mrb[0].mxu0
  %v3411 = vadd.f32 0.0, %v3410
  %v3412 = vpop.f32.mrb[0].mxu0
  %3413 = vmatprep.mubr.bf16.mxu0 0
  %3414 = vmatmul.mubr.bf16.gmra.mrb[0].mxu0 %v3349
  %v3415 = vpop.f32.mrb[0].mxu0
  %v3416 = vadd.f32 0.0, %v3415
  %v3417 = vpop.f32.mrb[0].mxu0
  %v3418 = vpop.f32.mrb[0].mxu0
  %v3419 = vadd.f32 0.0, %v3418
  %v3420 = vpop.f32.mrb[0].mxu0
  %3421 = vmatprep.mubr.bf16.mxu0 0
  %3422 = vmatmul.mubr.bf16.gmra.mrb[0].mxu0 %v3352
  %v3423 = vpop.f32.mrb[0].mxu0
  %v3424 = vadd.f32 0.0, %v3423
  %v3425 = vpop.f32.mrb[0].mxu0
  %v3426 = vpop.f32.mrb[0].mxu0
  %v3427 = vadd.f32 0.0, %v3426
  %v3428 = vpop.f32.mrb[0].mxu0
  %3429 = vmatprep.mubr.bf16.mxu0 0
  %3430 = vmatmul.mubr.bf16.gmra.mrb[0].mxu0 %v3355
  %v3431 = vpop.f32.mrb[0].mxu0
  %v3432 = vadd.f32 0.0, %v3431
  %v3433 = vpop.f32.mrb[0].mxu0
  %v3434 = vpop.f32.mrb[0].mxu0
  %v3435 = vadd.f32 0.0, %v3434
  %v3436 = vpop.f32.mrb[0].mxu0
  %3437 = vdwg.mxu0
  %v3438 = vadd.f32 %v3237, %v3392
  %v3439 = vadd.f32 %v3238, %v3395
  %v3440 = vadd.f32 %v3239, %v3400
  %v3441 = vadd.f32 %v3240, %v3403
  %v3442 = vadd.f32 %v3241, %v3408
  %v3443 = vadd.f32 %v3242, %v3411
  %v3444 = vadd.f32 %v3243, %v3416
  %v3445 = vadd.f32 %v3244, %v3419
  %v3446 = vadd.f32 %v3245, %v3424
  %v3447 = vadd.f32 %v3246, %v3427
  %v3448 = vadd.f32 %v3247, %v3432
  %v3449 = vadd.f32 %v3248, %v3435
  %v3450 = vld [vmem:[%s51 + $0xc] sm:$0xf]
  %v3451 = vld [vmem:[%s51 + $0x10] sm:$0xf]
  %v3452 = vld [vmem:[%s51 + $0x14] sm:$0xf]
  %v3453 = vld [vmem:[%s51 + $0x18] sm:$0xf]
  %v3454 = vld [vmem:[%s51 + $0x1c] sm:$0xf]
  %v3455 = vld [vmem:[%s51 + $0x20] sm:$0xf]
  %v3456 = vld [vmem:[%s51 + $0x24] sm:$0xf]
  %v3457 = vld [vmem:[%s51 + $0x28] sm:$0xf]
  %v3458 = vld [vmem:[%s51 + $0x2c] sm:$0xf]
  %v3459 = vld [vmem:[%s51 + $0x30] sm:$0xf]
  %v3460 = vld [vmem:[%s51 + $0x34] sm:$0xf]
  %v3461 = vld [vmem:[%s51 + $0x38] sm:$0xf]
  %v3462 = vld [vmem:[%s1430 + $0x4] sm:$0xf]
  %v3463 = vld [vmem:[%s1430 + $0x10] sm:$0xf]
  %v3464 = vld [vmem:[%s1430 + $0x1c] sm:$0xf]
  %v3465 = vld [vmem:[%s1430 + $0x28] sm:$0xf]
  %v3466 = vld [vmem:[%s1430 + $0x34] sm:$0xf]
  %v3467 = vld [vmem:[%s1430 + $0x40] sm:$0xf]
  %v3468 = vld [vmem:[%s1430 + $0x4c] sm:$0xf]
  %v3469 = vld [vmem:[%s1430 + $0x58] sm:$0xf]
  %v3470 = vld [vmem:[%s1430 + $0x64] sm:$0xf]
  %v3471 = vld [vmem:[%s1430 + $0x70] sm:$0xf]
  %v3472 = vld [vmem:[%s1430 + $0x7c] sm:$0xf]
  %v3473 = vld [vmem:[%s1430 + $0x88] sm:$0xf]
  %v3486 = vunpack.c.l.b16 %v3450
  %v3487 = vunpack.c.l.b16 %v3451
  %v3488 = vunpack.c.l.b16 %v3452
  %v3489 = vunpack.c.l.b16 %v3453
  %v3490 = vunpack.c.l.b16 %v3454
  %v3491 = vunpack.c.l.b16 %v3455
  %v3492 = vunpack.c.l.b16 %v3456
  %v3493 = vunpack.c.l.b16 %v3457
  %v3494 = vunpack.c.l.b16 %v3458
  %v3495 = vunpack.c.l.b16 %v3459
  %v3496 = vunpack.c.l.b16 %v3460
  %v3497 = vunpack.c.l.b16 %v3461
  %v3498 = vpack.c.b16 %v3487, %v3486
  %v3499 = vpack.c.b16 %v3489, %v3488
  %v3500 = vpack.c.b16 %v3491, %v3490
  %v3501 = vpack.c.b16 %v3493, %v3492
  %v3502 = vpack.c.b16 %v3495, %v3494
  %v3503 = vpack.c.b16 %v3497, %v3496
  %v3516 = vunpack.c.l.b16 %v3462
  %v3517 = vunpack.c.l.b16 %v3463
  %v3518 = vunpack.c.l.b16 %v3464
  %v3519 = vunpack.c.l.b16 %v3465
  %v3520 = vunpack.c.l.b16 %v3466
  %v3521 = vunpack.c.l.b16 %v3467
  %v3522 = vunpack.c.l.b16 %v3468
  %v3523 = vunpack.c.l.b16 %v3469
  %v3524 = vunpack.c.l.b16 %v3470
  %v3525 = vunpack.c.l.b16 %v3471
  %v3526 = vunpack.c.l.b16 %v3472
  %v3527 = vunpack.c.l.b16 %v3473
  %v3528 = vpack.c.b16 %v3517, %v3516
  %v3529 = vpack.c.b16 %v3519, %v3518
  %v3530 = vpack.c.b16 %v3521, %v3520
  %v3531 = vpack.c.b16 %v3523, %v3522
  %v3532 = vpack.c.b16 %v3525, %v3524
  %v3533 = vpack.c.b16 %v3527, %v3526
  %v3541 = vsel %vm143, %v3498, 0
  %v3544 = vsel %vm143, %v3499, 0
  %v3547 = vsel %vm143, %v3500, 0
  %v3550 = vsel %vm143, %v3501, 0
  %v3553 = vsel %vm143, %v3502, 0
  %v3556 = vsel %vm143, %v3503, 0
  %3558 = vmatprep.subr.bf16.mxu0 0
  %3559 = vmatpush1.bf16.msra.mxu0 %v3528
  %3560 = vmatprep.subr.bf16.mxu0 0
  %3561 = vmatpush1.bf16.msra.mxu0 %v3529
  %3562 = vmatprep.subr.bf16.mxu0 0
  %3563 = vmatpush1.bf16.msra.mxu0 %v3530
  %3564 = vmatprep.subr.bf16.mxu0 0
  %3565 = vmatpush1.bf16.msra.mxu0 %v3531
  %3566 = vmatprep.subr.bf16.mxu0 0
  %3567 = vmatpush1.bf16.msra.mxu0 %v3532
  %3568 = vmatprep.subr.bf16.mxu0 0
  %3569 = vmatpush1.bf16.msra.mxu0 %v3533
  %3570 = vmatprep.subr.bf16.mxu0 0
  %3571 = vmatpush1.bf16.msra.mxu0 0
  %3572 = vmatprep.subr.bf16.mxu0 0
  %3573 = vmatpush1.bf16.msra.mxu0 0
  %3574 = vmatprep.subr.bf16.mxu0 0
  %3575 = vmatpush1.bf16.msra.mxu0 0
  %3576 = vmatprep.subr.bf16.mxu0 0
  %3577 = vmatpush1.bf16.msra.mxu0 0
  %3578 = vmatprep.subr.bf16.mxu0 0
  %3579 = vmatpush1.bf16.msra.mxu0 0
  %3580 = vmatprep.subr.bf16.mxu0 0
  %3581 = vmatpush1.bf16.msra.mxu0 0
  %3582 = vmatprep.subr.bf16.mxu0 0
  %3583 = vmatpush1.bf16.msra.mxu0 0
  %3584 = vmatprep.subr.bf16.mxu0 0
  %3585 = vmatpush1.bf16.msra.mxu0 0
  %3586 = vmatprep.subr.bf16.mxu0 0
  %3587 = vmatpush1.bf16.msra.mxu0 0
  %3588 = vmatprep.subr.bf16.mxu0 0
  %3589 = vmatpush1.bf16.msra.mxu0 0
  %3590 = vmatprep.mubr.bf16.mxu0 0
  %3591 = vmatmul.mubr.bf16.gmra.mrb[0].mxu0 %v3541
  %v3592 = vpop.f32.mrb[0].mxu0
  %v3593 = vadd.f32 0.0, %v3592
  %v3594 = vpop.f32.mrb[0].mxu0
  %v3595 = vpop.f32.mrb[0].mxu0
  %v3596 = vadd.f32 0.0, %v3595
  %v3597 = vpop.f32.mrb[0].mxu0
  %3598 = vmatprep.mubr.bf16.mxu0 0
  %3599 = vmatmul.mubr.bf16.gmra.mrb[0].mxu0 %v3544
  %v3600 = vpop.f32.mrb[0].mxu0
  %v3601 = vadd.f32 0.0, %v3600
  %v3602 = vpop.f32.mrb[0].mxu0
  %v3603 = vpop.f32.mrb[0].mxu0
  %v3604 = vadd.f32 0.0, %v3603
  %v3605 = vpop.f32.mrb[0].mxu0
  %3606 = vmatprep.mubr.bf16.mxu0 0
  %3607 = vmatmul.mubr.bf16.gmra.mrb[0].mxu0 %v3547
  %v3608 = vpop.f32.mrb[0].mxu0
  %v3609 = vadd.f32 0.0, %v3608
  %v3610 = vpop.f32.mrb[0].mxu0
  %v3611 = vpop.f32.mrb[0].mxu0
  %v3612 = vadd.f32 0.0, %v3611
  %v3613 = vpop.f32.mrb[0].mxu0
  %3614 = vmatprep.mubr.bf16.mxu0 0
  %3615 = vmatmul.mubr.bf16.gmra.mrb[0].mxu0 %v3550
  %v3616 = vpop.f32.mrb[0].mxu0
  %v3617 = vadd.f32 0.0, %v3616
  %v3618 = vpop.f32.mrb[0].mxu0
  %v3619 = vpop.f32.mrb[0].mxu0
  %v3620 = vadd.f32 0.0, %v3619
  %v3621 = vpop.f32.mrb[0].mxu0
  %3622 = vmatprep.mubr.bf16.mxu0 0
  %3623 = vmatmul.mubr.bf16.gmra.mrb[0].mxu0 %v3553
  %v3624 = vpop.f32.mrb[0].mxu0
  %v3625 = vadd.f32 0.0, %v3624
  %v3626 = vpop.f32.mrb[0].mxu0
  %v3627 = vpop.f32.mrb[0].mxu0
  %v3628 = vadd.f32 0.0, %v3627
  %v3629 = vpop.f32.mrb[0].mxu0
  %3630 = vmatprep.mubr.bf16.mxu0 0
  %3631 = vmatmul.mubr.bf16.gmra.mrb[0].mxu0 %v3556
  %v3632 = vpop.f32.mrb[0].mxu0
  %v3633 = vadd.f32 0.0, %v3632
  %v3634 = vpop.f32.mrb[0].mxu0
  %v3635 = vpop.f32.mrb[0].mxu0
  %v3636 = vadd.f32 0.0, %v3635
  %v3637 = vpop.f32.mrb[0].mxu0
  %3638 = vdwg.mxu0
  %v3639 = vadd.f32 %v3438, %v3593
  %v3640 = vadd.f32 %v3439, %v3596
  %v3641 = vadd.f32 %v3440, %v3601
  %v3642 = vadd.f32 %v3441, %v3604
  %v3643 = vadd.f32 %v3442, %v3609
  %v3644 = vadd.f32 %v3443, %v3612
  %v3645 = vadd.f32 %v3444, %v3617
  %v3646 = vadd.f32 %v3445, %v3620
  %v3647 = vadd.f32 %v3446, %v3625
  %v3648 = vadd.f32 %v3447, %v3628
  %v3649 = vadd.f32 %v3448, %v3633
  %v3650 = vadd.f32 %v3449, %v3636
  %v3651 = vld [vmem:[%s0 + $0x10] sm:$0xf]
  %v3652 = vld [vmem:[%s0 + $0x14] sm:$0xf]
  %v3653 = vld [vmem:[%s0 + $0x18] sm:$0xf]
  %v3654 = vld [vmem:[%s0 + $0x1c] sm:$0xf]
  %v3655 = vld [vmem:[%s0 + $0x20] sm:$0xf]
  %v3656 = vld [vmem:[%s0 + $0x24] sm:$0xf]
  %v3657 = vld [vmem:[%s0 + $0x28] sm:$0xf]
  %v3658 = vld [vmem:[%s0 + $0x2c] sm:$0xf]
  %v3659 = vld [vmem:[%s0 + $0x30] sm:$0xf]
  %v3660 = vld [vmem:[%s0 + $0x34] sm:$0xf]
  %v3661 = vld [vmem:[%s0 + $0x38] sm:$0xf]
  %v3662 = vld [vmem:[%s0 + $0x3c] sm:$0xf]
  %v3663 = vld [vmem:[%s1632 + $0x4] sm:$0xf]
  %v3664 = vld [vmem:[%s1632 + $0x10] sm:$0xf]
  %v3665 = vld [vmem:[%s1632 + $0x1c] sm:$0xf]
  %v3666 = vld [vmem:[%s1632 + $0x28] sm:$0xf]
  %v3667 = vld [vmem:[%s1632 + $0x34] sm:$0xf]
  %v3668 = vld [vmem:[%s1632 + $0x40] sm:$0xf]
  %v3669 = vld [vmem:[%s1632 + $0x4c] sm:$0xf]
  %v3670 = vld [vmem:[%s1632 + $0x58] sm:$0xf]
  %v3671 = vld [vmem:[%s1632 + $0x64] sm:$0xf]
  %v3672 = vld [vmem:[%s1632 + $0x70] sm:$0xf]
  %v3673 = vld [vmem:[%s1632 + $0x7c] sm:$0xf]
  %v3674 = vld [vmem:[%s1632 + $0x88] sm:$0xf]
  %v3687 = vunpack.c.l.b16 %v3651
  %v3688 = vunpack.c.l.b16 %v3652
  %v3689 = vunpack.c.l.b16 %v3653
  %v3690 = vunpack.c.l.b16 %v3654
  %v3691 = vunpack.c.l.b16 %v3655
  %v3692 = vunpack.c.l.b16 %v3656
  %v3693 = vunpack.c.l.b16 %v3657
  %v3694 = vunpack.c.l.b16 %v3658
  %v3695 = vunpack.c.l.b16 %v3659
  %v3696 = vunpack.c.l.b16 %v3660
  %v3697 = vunpack.c.l.b16 %v3661
  %v3698 = vunpack.c.l.b16 %v3662
  %v3699 = vpack.c.b16 %v3688, %v3687
  %v3700 = vpack.c.b16 %v3690, %v3689
  %v3701 = vpack.c.b16 %v3692, %v3691
  %v3702 = vpack.c.b16 %v3694, %v3693
  %v3703 = vpack.c.b16 %v3696, %v3695
  %v3704 = vpack.c.b16 %v3698, %v3697
  %v3717 = vunpack.c.l.b16 %v3663
  %v3718 = vunpack.c.l.b16 %v3664
  %v3719 = vunpack.c.l.b16 %v3665
  %v3720 = vunpack.c.l.b16 %v3666
  %v3721 = vunpack.c.l.b16 %v3667
  %v3722 = vunpack.c.l.b16 %v3668
  %v3723 = vunpack.c.l.b16 %v3669
  %v3724 = vunpack.c.l.b16 %v3670
  %v3725 = vunpack.c.l.b16 %v3671
  %v3726 = vunpack.c.l.b16 %v3672
  %v3727 = vunpack.c.l.b16 %v3673
  %v3728 = vunpack.c.l.b16 %v3674
  %v3729 = vpack.c.b16 %v3718, %v3717
  %v3730 = vpack.c.b16 %v3720, %v3719
  %v3731 = vpack.c.b16 %v3722, %v3721
  %v3732 = vpack.c.b16 %v3724, %v3723
  %v3733 = vpack.c.b16 %v3726, %v3725
  %v3734 = vpack.c.b16 %v3728, %v3727
  %v3742 = vsel %vm143, %v3699, 0
  %v3745 = vsel %vm143, %v3700, 0
  %v3748 = vsel %vm143, %v3701, 0
  %v3751 = vsel %vm143, %v3702, 0
  %v3754 = vsel %vm143, %v3703, 0
  %v3757 = vsel %vm143, %v3704, 0
  %3759 = vmatprep.subr.bf16.mxu0 0
  %3760 = vmatpush1.bf16.msra.mxu0 %v3729
  %3761 = vmatprep.subr.bf16.mxu0 0
  %3762 = vmatpush1.bf16.msra.mxu0 %v3730
  %3763 = vmatprep.subr.bf16.mxu0 0
  %3764 = vmatpush1.bf16.msra.mxu0 %v3731
  %3765 = vmatprep.subr.bf16.mxu0 0
  %3766 = vmatpush1.bf16.msra.mxu0 %v3732
  %3767 = vmatprep.subr.bf16.mxu0 0
  %3768 = vmatpush1.bf16.msra.mxu0 %v3733
  %3769 = vmatprep.subr.bf16.mxu0 0
  %3770 = vmatpush1.bf16.msra.mxu0 %v3734
  %3771 = vmatprep.subr.bf16.mxu0 0
  %3772 = vmatpush1.bf16.msra.mxu0 0
  %3773 = vmatprep.subr.bf16.mxu0 0
  %3774 = vmatpush1.bf16.msra.mxu0 0
  %3775 = vmatprep.subr.bf16.mxu0 0
  %3776 = vmatpush1.bf16.msra.mxu0 0
  %3777 = vmatprep.subr.bf16.mxu0 0
  %3778 = vmatpush1.bf16.msra.mxu0 0
  %3779 = vmatprep.subr.bf16.mxu0 0
  %3780 = vmatpush1.bf16.msra.mxu0 0
  %3781 = vmatprep.subr.bf16.mxu0 0
  %3782 = vmatpush1.bf16.msra.mxu0 0
  %3783 = vmatprep.subr.bf16.mxu0 0
  %3784 = vmatpush1.bf16.msra.mxu0 0
  %3785 = vmatprep.subr.bf16.mxu0 0
  %3786 = vmatpush1.bf16.msra.mxu0 0
  %3787 = vmatprep.subr.bf16.mxu0 0
  %3788 = vmatpush1.bf16.msra.mxu0 0
  %3789 = vmatprep.subr.bf16.mxu0 0
  %3790 = vmatpush1.bf16.msra.mxu0 0
  %3791 = vmatprep.mubr.bf16.mxu0 0
  %3792 = vmatmul.mubr.bf16.gmra.mrb[0].mxu0 %v3742
  %v3793 = vpop.f32.mrb[0].mxu0
  %v3794 = vadd.f32 0.0, %v3793
  %v3795 = vpop.f32.mrb[0].mxu0
  %v3796 = vpop.f32.mrb[0].mxu0
  %v3797 = vadd.f32 0.0, %v3796
  %v3798 = vpop.f32.mrb[0].mxu0
  %3799 = vmatprep.mubr.bf16.mxu0 0
  %3800 = vmatmul.mubr.bf16.gmra.mrb[0].mxu0 %v3745
  %v3801 = vpop.f32.mrb[0].mxu0
  %v3802 = vadd.f32 0.0, %v3801
  %v3803 = vpop.f32.mrb[0].mxu0
  %v3804 = vpop.f32.mrb[0].mxu0
  %v3805 = vadd.f32 0.0, %v3804
  %v3806 = vpop.f32.mrb[0].mxu0
  %3807 = vmatprep.mubr.bf16.mxu0 0
  %3808 = vmatmul.mubr.bf16.gmra.mrb[0].mxu0 %v3748
  %v3809 = vpop.f32.mrb[0].mxu0
  %v3810 = vadd.f32 0.0, %v3809
  %v3811 = vpop.f32.mrb[0].mxu0
  %v3812 = vpop.f32.mrb[0].mxu0
  %v3813 = vadd.f32 0.0, %v3812
  %v3814 = vpop.f32.mrb[0].mxu0
  %3815 = vmatprep.mubr.bf16.mxu0 0
  %3816 = vmatmul.mubr.bf16.gmra.mrb[0].mxu0 %v3751
  %v3817 = vpop.f32.mrb[0].mxu0
  %v3818 = vadd.f32 0.0, %v3817
  %v3819 = vpop.f32.mrb[0].mxu0
  %v3820 = vpop.f32.mrb[0].mxu0
  %v3821 = vadd.f32 0.0, %v3820
  %v3822 = vpop.f32.mrb[0].mxu0
  %3823 = vmatprep.mubr.bf16.mxu0 0
  %3824 = vmatmul.mubr.bf16.gmra.mrb[0].mxu0 %v3754
  %v3825 = vpop.f32.mrb[0].mxu0
  %v3826 = vadd.f32 0.0, %v3825
  %v3827 = vpop.f32.mrb[0].mxu0
  %v3828 = vpop.f32.mrb[0].mxu0
  %v3829 = vadd.f32 0.0, %v3828
  %v3830 = vpop.f32.mrb[0].mxu0
  %3831 = vmatprep.mubr.bf16.mxu0 0
  %3832 = vmatmul.mubr.bf16.gmra.mrb[0].mxu0 %v3757
  %v3833 = vpop.f32.mrb[0].mxu0
  %v3834 = vadd.f32 0.0, %v3833
  %v3835 = vpop.f32.mrb[0].mxu0
  %v3836 = vpop.f32.mrb[0].mxu0
  %v3837 = vadd.f32 0.0, %v3836
  %v3838 = vpop.f32.mrb[0].mxu0
  %3839 = vdwg.mxu0
  %v3840 = vadd.f32 %v3639, %v3794
  %v3841 = vadd.f32 %v3640, %v3797
  %v3842 = vadd.f32 %v3641, %v3802
  %v3843 = vadd.f32 %v3642, %v3805
  %v3844 = vadd.f32 %v3643, %v3810
  %v3845 = vadd.f32 %v3644, %v3813
  %v3846 = vadd.f32 %v3645, %v3818
  %v3847 = vadd.f32 %v3646, %v3821
  %v3848 = vadd.f32 %v3647, %v3826
  %v3849 = vadd.f32 %v3648, %v3829
  %v3850 = vadd.f32 %v3649, %v3834
  %v3851 = vadd.f32 %v3650, %v3837
  %v3852 = vld [vmem:[%s51 + $0x10] sm:$0xf]
  %v3853 = vld [vmem:[%s51 + $0x14] sm:$0xf]
  %v3854 = vld [vmem:[%s51 + $0x18] sm:$0xf]
  %v3855 = vld [vmem:[%s51 + $0x1c] sm:$0xf]
  %v3856 = vld [vmem:[%s51 + $0x20] sm:$0xf]
  %v3857 = vld [vmem:[%s51 + $0x24] sm:$0xf]
  %v3858 = vld [vmem:[%s51 + $0x28] sm:$0xf]
  %v3859 = vld [vmem:[%s51 + $0x2c] sm:$0xf]
  %v3860 = vld [vmem:[%s51 + $0x30] sm:$0xf]
  %v3861 = vld [vmem:[%s51 + $0x34] sm:$0xf]
  %v3862 = vld [vmem:[%s51 + $0x38] sm:$0xf]
  %v3863 = vld [vmem:[%s51 + $0x3c] sm:$0xf]
  %v3864 = vld [vmem:[%s1834 + $0x4] sm:$0xf]
  %v3865 = vld [vmem:[%s1834 + $0x10] sm:$0xf]
  %v3866 = vld [vmem:[%s1834 + $0x1c] sm:$0xf]
  %v3867 = vld [vmem:[%s1834 + $0x28] sm:$0xf]
  %v3868 = vld [vmem:[%s1834 + $0x34] sm:$0xf]
  %v3869 = vld [vmem:[%s1834 + $0x40] sm:$0xf]
  %v3870 = vld [vmem:[%s1834 + $0x4c] sm:$0xf]
  %v3871 = vld [vmem:[%s1834 + $0x58] sm:$0xf]
  %v3872 = vld [vmem:[%s1834 + $0x64] sm:$0xf]
  %v3873 = vld [vmem:[%s1834 + $0x70] sm:$0xf]
  %v3874 = vld [vmem:[%s1834 + $0x7c] sm:$0xf]
  %v3875 = vld [vmem:[%s1834 + $0x88] sm:$0xf]
  %v3888 = vunpack.c.l.b16 %v3852
  %v3889 = vunpack.c.l.b16 %v3853
  %v3890 = vunpack.c.l.b16 %v3854
  %v3891 = vunpack.c.l.b16 %v3855
  %v3892 = vunpack.c.l.b16 %v3856
  %v3893 = vunpack.c.l.b16 %v3857
  %v3894 = vunpack.c.l.b16 %v3858
  %v3895 = vunpack.c.l.b16 %v3859
  %v3896 = vunpack.c.l.b16 %v3860
  %v3897 = vunpack.c.l.b16 %v3861
  %v3898 = vunpack.c.l.b16 %v3862
  %v3899 = vunpack.c.l.b16 %v3863
  %v3900 = vpack.c.b16 %v3889, %v3888
  %v3901 = vpack.c.b16 %v3891, %v3890
  %v3902 = vpack.c.b16 %v3893, %v3892
  %v3903 = vpack.c.b16 %v3895, %v3894
  %v3904 = vpack.c.b16 %v3897, %v3896
  %v3905 = vpack.c.b16 %v3899, %v3898
  %v3918 = vunpack.c.l.b16 %v3864
  %v3919 = vunpack.c.l.b16 %v3865
  %v3920 = vunpack.c.l.b16 %v3866
  %v3921 = vunpack.c.l.b16 %v3867
  %v3922 = vunpack.c.l.b16 %v3868
  %v3923 = vunpack.c.l.b16 %v3869
  %v3924 = vunpack.c.l.b16 %v3870
  %v3925 = vunpack.c.l.b16 %v3871
  %v3926 = vunpack.c.l.b16 %v3872
  %v3927 = vunpack.c.l.b16 %v3873
  %v3928 = vunpack.c.l.b16 %v3874
  %v3929 = vunpack.c.l.b16 %v3875
  %v3930 = vpack.c.b16 %v3919, %v3918
  %v3931 = vpack.c.b16 %v3921, %v3920
  %v3932 = vpack.c.b16 %v3923, %v3922
  %v3933 = vpack.c.b16 %v3925, %v3924
  %v3934 = vpack.c.b16 %v3927, %v3926
  %v3935 = vpack.c.b16 %v3929, %v3928
  %v3943 = vsel %vm143, %v3900, 0
  %v3946 = vsel %vm143, %v3901, 0
  %v3949 = vsel %vm143, %v3902, 0
  %v3952 = vsel %vm143, %v3903, 0
  %v3955 = vsel %vm143, %v3904, 0
  %v3958 = vsel %vm143, %v3905, 0
  %3960 = vmatprep.subr.bf16.mxu0 0
  %3961 = vmatpush1.bf16.msra.mxu0 %v3930
  %3962 = vmatprep.subr.bf16.mxu0 0
  %3963 = vmatpush1.bf16.msra.mxu0 %v3931
  %3964 = vmatprep.subr.bf16.mxu0 0
  %3965 = vmatpush1.bf16.msra.mxu0 %v3932
  %3966 = vmatprep.subr.bf16.mxu0 0
  %3967 = vmatpush1.bf16.msra.mxu0 %v3933
  %3968 = vmatprep.subr.bf16.mxu0 0
  %3969 = vmatpush1.bf16.msra.mxu0 %v3934
  %3970 = vmatprep.subr.bf16.mxu0 0
  %3971 = vmatpush1.bf16.msra.mxu0 %v3935
  %3972 = vmatprep.subr.bf16.mxu0 0
  %3973 = vmatpush1.bf16.msra.mxu0 0
  %3974 = vmatprep.subr.bf16.mxu0 0
  %3975 = vmatpush1.bf16.msra.mxu0 0
  %3976 = vmatprep.subr.bf16.mxu0 0
  %3977 = vmatpush1.bf16.msra.mxu0 0
  %3978 = vmatprep.subr.bf16.mxu0 0
  %3979 = vmatpush1.bf16.msra.mxu0 0
  %3980 = vmatprep.subr.bf16.mxu0 0
  %3981 = vmatpush1.bf16.msra.mxu0 0
  %3982 = vmatprep.subr.bf16.mxu0 0
  %3983 = vmatpush1.bf16.msra.mxu0 0
  %3984 = vmatprep.subr.bf16.mxu0 0
  %3985 = vmatpush1.bf16.msra.mxu0 0
  %3986 = vmatprep.subr.bf16.mxu0 0
  %3987 = vmatpush1.bf16.msra.mxu0 0
  %3988 = vmatprep.subr.bf16.mxu0 0
  %3989 = vmatpush1.bf16.msra.mxu0 0
  %3990 = vmatprep.subr.bf16.mxu0 0
  %3991 = vmatpush1.bf16.msra.mxu0 0
  %3992 = vmatprep.mubr.bf16.mxu0 0
  %3993 = vmatmul.mubr.bf16.gmra.mrb[0].mxu0 %v3943
  %v3994 = vpop.f32.mrb[0].mxu0
  %v3995 = vadd.f32 0.0, %v3994
  %v3996 = vpop.f32.mrb[0].mxu0
  %v3997 = vpop.f32.mrb[0].mxu0
  %v3998 = vadd.f32 0.0, %v3997
  %v3999 = vpop.f32.mrb[0].mxu0
  %4000 = vmatprep.mubr.bf16.mxu0 0
  %4001 = vmatmul.mubr.bf16.gmra.mrb[0].mxu0 %v3946
  %v4002 = vpop.f32.mrb[0].mxu0
  %v4003 = vadd.f32 0.0, %v4002
  %v4004 = vpop.f32.mrb[0].mxu0
  %v4005 = vpop.f32.mrb[0].mxu0
  %v4006 = vadd.f32 0.0, %v4005
  %v4007 = vpop.f32.mrb[0].mxu0
  %4008 = vmatprep.mubr.bf16.mxu0 0
  %4009 = vmatmul.mubr.bf16.gmra.mrb[0].mxu0 %v3949
  %v4010 = vpop.f32.mrb[0].mxu0
  %v4011 = vadd.f32 0.0, %v4010
  %v4012 = vpop.f32.mrb[0].mxu0
  %v4013 = vpop.f32.mrb[0].mxu0
  %v4014 = vadd.f32 0.0, %v4013
  %v4015 = vpop.f32.mrb[0].mxu0
  %4016 = vmatprep.mubr.bf16.mxu0 0
  %4017 = vmatmul.mubr.bf16.gmra.mrb[0].mxu0 %v3952
  %v4018 = vpop.f32.mrb[0].mxu0
  %v4019 = vadd.f32 0.0, %v4018
  %v4020 = vpop.f32.mrb[0].mxu0
  %v4021 = vpop.f32.mrb[0].mxu0
  %v4022 = vadd.f32 0.0, %v4021
  %v4023 = vpop.f32.mrb[0].mxu0
  %4024 = vmatprep.mubr.bf16.mxu0 0
  %4025 = vmatmul.mubr.bf16.gmra.mrb[0].mxu0 %v3955
  %v4026 = vpop.f32.mrb[0].mxu0
  %v4027 = vadd.f32 0.0, %v4026
  %v4028 = vpop.f32.mrb[0].mxu0
  %v4029 = vpop.f32.mrb[0].mxu0
  %v4030 = vadd.f32 0.0, %v4029
  %v4031 = vpop.f32.mrb[0].mxu0
  %4032 = vmatprep.mubr.bf16.mxu0 0
  %4033 = vmatmul.mubr.bf16.gmra.mrb[0].mxu0 %v3958
  %v4034 = vpop.f32.mrb[0].mxu0
  %v4035 = vadd.f32 0.0, %v4034
  %v4036 = vpop.f32.mrb[0].mxu0
  %v4037 = vpop.f32.mrb[0].mxu0
  %v4038 = vadd.f32 0.0, %v4037
  %v4039 = vpop.f32.mrb[0].mxu0
  %4040 = vdwg.mxu0
  %v4041 = vadd.f32 %v3840, %v3995
  %v4042 = vadd.f32 %v3841, %v3998
  %v4043 = vadd.f32 %v3842, %v4003
  %v4044 = vadd.f32 %v3843, %v4006
  %v4045 = vadd.f32 %v3844, %v4011
  %v4046 = vadd.f32 %v3845, %v4014
  %v4047 = vadd.f32 %v3846, %v4019
  %v4048 = vadd.f32 %v3847, %v4022
  %v4049 = vadd.f32 %v3848, %v4027
  %v4050 = vadd.f32 %v3849, %v4030
  %v4051 = vadd.f32 %v3850, %v4035
  %v4052 = vadd.f32 %v3851, %v4038
  %v4053 = vld [vmem:[%s2 + $0x1] sm:$0x1]
  %v4055 = vlaneseq
  %v4056 = vshrl.u32 %v4055, 7
  %v4057 = vsub.s32 0, %v4056
  %v4058 = vrot.slane %v4053, %v4057
  %v4060 = vadd.f32 %v4041, %v4058
  %v4061 = vadd.f32 %v4042, %v4058
  %v4062 = vadd.f32 %v4043, %v4058
  %v4063 = vadd.f32 %v4044, %v4058
  %v4064 = vadd.f32 %v4045, %v4058
  %v4065 = vadd.f32 %v4046, %v4058
  %v4066 = vadd.f32 %v4047, %v4058
  %v4067 = vadd.f32 %v4048, %v4058
  %v4068 = vadd.f32 %v4049, %v4058
  %v4069 = vadd.f32 %v4050, %v4058
  %v4070 = vadd.f32 %v4051, %v4058
  %v4071 = vadd.f32 %v4052, %v4058
  %v4072 = vmax.f32 %v4060, 0.0
  %v4073 = vmax.f32 %v4061, 0.0
  %v4074 = vmax.f32 %v4062, 0.0
  %v4075 = vmax.f32 %v4063, 0.0
  %v4076 = vmax.f32 %v4064, 0.0
  %v4077 = vmax.f32 %v4065, 0.0
  %v4078 = vmax.f32 %v4066, 0.0
  %v4079 = vmax.f32 %v4067, 0.0
  %v4080 = vmax.f32 %v4068, 0.0
  %v4081 = vmax.f32 %v4069, 0.0
  %v4082 = vmax.f32 %v4070, 0.0
  %v4083 = vmax.f32 %v4071, 0.0
  %v4084 = vpack.c.bf16 %v4073, %v4072
  %v4085 = vpack.c.bf16 %v4075, %v4074
  %v4086 = vpack.c.bf16 %v4077, %v4076
  %v4087 = vpack.c.bf16 %v4079, %v4078
  %v4088 = vpack.c.bf16 %v4081, %v4080
  %v4089 = vpack.c.bf16 %v4083, %v4082
  %4090 = vst [vmem:[#allocation2 + $0x8] sm:$0xff] %v4084
  %4091 = vst [vmem:[#allocation2 + $0x20] sm:$0xff] %v4085
  %4092 = vst [vmem:[#allocation2 + $0x38] sm:$0xff] %v4086
  %4093 = vst [vmem:[#allocation2 + $0x50] sm:$0xff] %v4087
  %4094 = vst [vmem:[#allocation2 + $0x68] sm:$0xff] %v4088
  %4095 = vst [vmem:[#allocation2 + $0x80] sm:$0xff] %v4089
  %v4096 = vld [vmem:[%s0] sm:$0xf]
  %v4097 = vld [vmem:[%s0 + $0x4] sm:$0xf]
  %v4098 = vld [vmem:[%s0 + $0x8] sm:$0xf]
  %v4099 = vld [vmem:[%s0 + $0xc] sm:$0xf]
  %v4100 = vld [vmem:[%s0 + $0x10] sm:$0xf]
  %v4101 = vld [vmem:[%s0 + $0x14] sm:$0xf]
  %v4102 = vld [vmem:[%s0 + $0x18] sm:$0xf]
  %v4103 = vld [vmem:[%s0 + $0x1c] sm:$0xf]
  %v4104 = vld [vmem:[%s0 + $0x20] sm:$0xf]
  %v4105 = vld [vmem:[%s0 + $0x24] sm:$0xf]
  %v4106 = vld [vmem:[%s0 + $0x28] sm:$0xf]
  %v4107 = vld [vmem:[%s0 + $0x2c] sm:$0xf]
  %v4108 = vld [vmem:[%s1 + $0x8] sm:$0xf]
  %v4109 = vld [vmem:[%s1 + $0x14] sm:$0xf]
  %v4110 = vld [vmem:[%s1 + $0x20] sm:$0xf]
  %v4111 = vld [vmem:[%s1 + $0x2c] sm:$0xf]
  %v4112 = vld [vmem:[%s1 + $0x38] sm:$0xf]
  %v4113 = vld [vmem:[%s1 + $0x44] sm:$0xf]
  %v4114 = vld [vmem:[%s1 + $0x50] sm:$0xf]
  %v4115 = vld [vmem:[%s1 + $0x5c] sm:$0xf]
  %v4116 = vld [vmem:[%s1 + $0x68] sm:$0xf]
  %v4117 = vld [vmem:[%s1 + $0x74] sm:$0xf]
  %v4118 = vld [vmem:[%s1 + $0x80] sm:$0xf]
  %v4119 = vld [vmem:[%s1 + $0x8c] sm:$0xf]
  %v4120 = vld [vmem:[%s51] sm:$0xf]
  %v4121 = vld [vmem:[%s51 + $0x4] sm:$0xf]
  %v4122 = vld [vmem:[%s51 + $0x8] sm:$0xf]
  %v4123 = vld [vmem:[%s51 + $0xc] sm:$0xf]
  %v4124 = vld [vmem:[%s51 + $0x10] sm:$0xf]
  %v4125 = vld [vmem:[%s51 + $0x14] sm:$0xf]
  %v4126 = vld [vmem:[%s51 + $0x18] sm:$0xf]
  %v4127 = vld [vmem:[%s51 + $0x1c] sm:$0xf]
  %v4128 = vld [vmem:[%s51 + $0x20] sm:$0xf]
  %v4129 = vld [vmem:[%s51 + $0x24] sm:$0xf]
  %v4130 = vld [vmem:[%s51 + $0x28] sm:$0xf]
  %v4131 = vld [vmem:[%s51 + $0x2c] sm:$0xf]
  %v4132 = vld [vmem:[%s64 + $0x8] sm:$0xf]
  %v4133 = vld [vmem:[%s64 + $0x14] sm:$0xf]
  %v4134 = vld [vmem:[%s64 + $0x20] sm:$0xf]
  %v4135 = vld [vmem:[%s64 + $0x2c] sm:$0xf]
  %v4136 = vld [vmem:[%s64 + $0x38] sm:$0xf]
  %v4137 = vld [vmem:[%s64 + $0x44] sm:$0xf]
  %v4138 = vld [vmem:[%s64 + $0x50] sm:$0xf]
  %v4139 = vld [vmem:[%s64 + $0x5c] sm:$0xf]
  %v4140 = vld [vmem:[%s64 + $0x68] sm:$0xf]
  %v4141 = vld [vmem:[%s64 + $0x74] sm:$0xf]
  %v4142 = vld [vmem:[%s64 + $0x80] sm:$0xf]
  %v4143 = vld [vmem:[%s64 + $0x8c] sm:$0xf]
  %v4156 = vunpack.c.l.b16 %v4120
  %v4157 = vunpack.c.l.b16 %v4121
  %v4158 = vunpack.c.l.b16 %v4122
  %v4159 = vunpack.c.l.b16 %v4123
  %v4160 = vunpack.c.l.b16 %v4124
  %v4161 = vunpack.c.l.b16 %v4125
  %v4162 = vunpack.c.l.b16 %v4126
  %v4163 = vunpack.c.l.b16 %v4127
  %v4164 = vunpack.c.l.b16 %v4128
  %v4165 = vunpack.c.l.b16 %v4129
  %v4166 = vunpack.c.l.b16 %v4130
  %v4167 = vunpack.c.l.b16 %v4131
  %v4168 = vpack.c.b16 %v4157, %v4156
  %v4169 = vpack.c.b16 %v4159, %v4158
  %v4170 = vpack.c.b16 %v4161, %v4160
  %v4171 = vpack.c.b16 %v4163, %v4162
  %v4172 = vpack.c.b16 %v4165, %v4164
  %v4173 = vpack.c.b16 %v4167, %v4166
  %v4186 = vunpack.c.l.b16 %v4132
  %v4187 = vunpack.c.l.b16 %v4133
  %v4188 = vunpack.c.l.b16 %v4134
  %v4189 = vunpack.c.l.b16 %v4135
  %v4190 = vunpack.c.l.b16 %v4136
  %v4191 = vunpack.c.l.b16 %v4137
  %v4192 = vunpack.c.l.b16 %v4138
  %v4193 = vunpack.c.l.b16 %v4139
  %v4194 = vunpack.c.l.b16 %v4140
  %v4195 = vunpack.c.l.b16 %v4141
  %v4196 = vunpack.c.l.b16 %v4142
  %v4197 = vunpack.c.l.b16 %v4143
  %v4198 = vpack.c.b16 %v4187, %v4186
  %v4199 = vpack.c.b16 %v4189, %v4188
  %v4200 = vpack.c.b16 %v4191, %v4190
  %v4201 = vpack.c.b16 %v4193, %v4192
  %v4202 = vpack.c.b16 %v4195, %v4194
  %v4203 = vpack.c.b16 %v4197, %v4196
  %v4211 = vsel %vm143, %v4168, 0
  %v4214 = vsel %vm143, %v4169, 0
  %v4217 = vsel %vm143, %v4170, 0
  %v4220 = vsel %vm143, %v4171, 0
  %v4223 = vsel %vm143, %v4172, 0
  %v4226 = vsel %vm143, %v4173, 0
  %4228 = vmatprep.subr.bf16.mxu0 0
  %4229 = vmatpush1.bf16.msra.mxu0 %v4198
  %4230 = vmatprep.subr.bf16.mxu0 0
  %4231 = vmatpush1.bf16.msra.mxu0 %v4199
  %4232 = vmatprep.subr.bf16.mxu0 0
  %4233 = vmatpush1.bf16.msra.mxu0 %v4200
  %4234 = vmatprep.subr.bf16.mxu0 0
  %4235 = vmatpush1.bf16.msra.mxu0 %v4201
  %4236 = vmatprep.subr.bf16.mxu0 0
  %4237 = vmatpush1.bf16.msra.mxu0 %v4202
  %4238 = vmatprep.subr.bf16.mxu0 0
  %4239 = vmatpush1.bf16.msra.mxu0 %v4203
  %4240 = vmatprep.subr.bf16.mxu0 0
  %4241 = vmatpush1.bf16.msra.mxu0 0
  %4242 = vmatprep.subr.bf16.mxu0 0
  %4243 = vmatpush1.bf16.msra.mxu0 0
  %4244 = vmatprep.subr.bf16.mxu0 0
  %4245 = vmatpush1.bf16.msra.mxu0 0
  %4246 = vmatprep.subr.bf16.mxu0 0
  %4247 = vmatpush1.bf16.msra.mxu0 0
  %4248 = vmatprep.subr.bf16.mxu0 0
  %4249 = vmatpush1.bf16.msra.mxu0 0
  %4250 = vmatprep.subr.bf16.mxu0 0
  %4251 = vmatpush1.bf16.msra.mxu0 0
  %4252 = vmatprep.subr.bf16.mxu0 0
  %4253 = vmatpush1.bf16.msra.mxu0 0
  %4254 = vmatprep.subr.bf16.mxu0 0
  %4255 = vmatpush1.bf16.msra.mxu0 0
  %4256 = vmatprep.subr.bf16.mxu0 0
  %4257 = vmatpush1.bf16.msra.mxu0 0
  %4258 = vmatprep.subr.bf16.mxu0 0
  %4259 = vmatpush1.bf16.msra.mxu0 0
  %4260 = vmatprep.mubr.bf16.mxu0 0
  %4261 = vmatmul.mubr.bf16.gmra.mrb[0].mxu0 %v4211
  %v4262 = vpop.f32.mrb[0].mxu0
  %v4263 = vadd.f32 0.0, %v4262
  %v4264 = vpop.f32.mrb[0].mxu0
  %v4265 = vpop.f32.mrb[0].mxu0
  %v4266 = vadd.f32 0.0, %v4265
  %v4267 = vpop.f32.mrb[0].mxu0
  %4268 = vmatprep.mubr.bf16.mxu0 0
  %4269 = vmatmul.mubr.bf16.gmra.mrb[0].mxu0 %v4214
  %v4270 = vpop.f32.mrb[0].mxu0
  %v4271 = vadd.f32 0.0, %v4270
  %v4272 = vpop.f32.mrb[0].mxu0
  %v4273 = vpop.f32.mrb[0].mxu0
  %v4274 = vadd.f32 0.0, %v4273
  %v4275 = vpop.f32.mrb[0].mxu0
  %4276 = vmatprep.mubr.bf16.mxu0 0
  %4277 = vmatmul.mubr.bf16.gmra.mrb[0].mxu0 %v4217
  %v4278 = vpop.f32.mrb[0].mxu0
  %v4279 = vadd.f32 0.0, %v4278
  %v4280 = vpop.f32.mrb[0].mxu0
  %v4281 = vpop.f32.mrb[0].mxu0
  %v4282 = vadd.f32 0.0, %v4281
  %v4283 = vpop.f32.mrb[0].mxu0
  %4284 = vmatprep.mubr.bf16.mxu0 0
  %4285 = vmatmul.mubr.bf16.gmra.mrb[0].mxu0 %v4220
  %v4286 = vpop.f32.mrb[0].mxu0
  %v4287 = vadd.f32 0.0, %v4286
  %v4288 = vpop.f32.mrb[0].mxu0
  %v4289 = vpop.f32.mrb[0].mxu0
  %v4290 = vadd.f32 0.0, %v4289
  %v4291 = vpop.f32.mrb[0].mxu0
  %4292 = vmatprep.mubr.bf16.mxu0 0
  %4293 = vmatmul.mubr.bf16.gmra.mrb[0].mxu0 %v4223
  %v4294 = vpop.f32.mrb[0].mxu0
  %v4295 = vadd.f32 0.0, %v4294
  %v4296 = vpop.f32.mrb[0].mxu0
  %v4297 = vpop.f32.mrb[0].mxu0
  %v4298 = vadd.f32 0.0, %v4297
  %v4299 = vpop.f32.mrb[0].mxu0
  %4300 = vmatprep.mubr.bf16.mxu0 0
  %4301 = vmatmul.mubr.bf16.gmra.mrb[0].mxu0 %v4226
  %v4302 = vpop.f32.mrb[0].mxu0
  %v4303 = vadd.f32 0.0, %v4302
  %v4304 = vpop.f32.mrb[0].mxu0
  %v4305 = vpop.f32.mrb[0].mxu0
  %v4306 = vadd.f32 0.0, %v4305
  %v4307 = vpop.f32.mrb[0].mxu0
  %4308 = vdwg.mxu0
  %v4321 = vunpack.c.l.b16 %v4096
  %v4322 = vunpack.c.l.b16 %v4097
  %v4323 = vunpack.c.l.b16 %v4098
  %v4324 = vunpack.c.l.b16 %v4099
  %v4325 = vunpack.c.l.b16 %v4100
  %v4326 = vunpack.c.l.b16 %v4101
  %v4327 = vunpack.c.l.b16 %v4102
  %v4328 = vunpack.c.l.b16 %v4103
  %v4329 = vunpack.c.l.b16 %v4104
  %v4330 = vunpack.c.l.b16 %v4105
  %v4331 = vunpack.c.l.b16 %v4106
  %v4332 = vunpack.c.l.b16 %v4107
  %v4333 = vpack.c.b16 %v4322, %v4321
  %v4334 = vpack.c.b16 %v4324, %v4323
  %v4335 = vpack.c.b16 %v4326, %v4325
  %v4336 = vpack.c.b16 %v4328, %v4327
  %v4337 = vpack.c.b16 %v4330, %v4329
  %v4338 = vpack.c.b16 %v4332, %v4331
  %v4351 = vunpack.c.l.b16 %v4108
  %v4352 = vunpack.c.l.b16 %v4109
  %v4353 = vunpack.c.l.b16 %v4110
  %v4354 = vunpack.c.l.b16 %v4111
  %v4355 = vunpack.c.l.b16 %v4112
  %v4356 = vunpack.c.l.b16 %v4113
  %v4357 = vunpack.c.l.b16 %v4114
  %v4358 = vunpack.c.l.b16 %v4115
  %v4359 = vunpack.c.l.b16 %v4116
  %v4360 = vunpack.c.l.b16 %v4117
  %v4361 = vunpack.c.l.b16 %v4118
  %v4362 = vunpack.c.l.b16 %v4119
  %v4363 = vpack.c.b16 %v4352, %v4351
  %v4364 = vpack.c.b16 %v4354, %v4353
  %v4365 = vpack.c.b16 %v4356, %v4355
  %v4366 = vpack.c.b16 %v4358, %v4357
  %v4367 = vpack.c.b16 %v4360, %v4359
  %v4368 = vpack.c.b16 %v4362, %v4361
  %v4376 = vsel %vm143, %v4333, 0
  %v4379 = vsel %vm143, %v4334, 0
  %v4382 = vsel %vm143, %v4335, 0
  %v4385 = vsel %vm143, %v4336, 0
  %v4388 = vsel %vm143, %v4337, 0
  %v4391 = vsel %vm143, %v4338, 0
  %4393 = vmatprep.subr.bf16.mxu0 0
  %4394 = vmatpush1.bf16.msra.mxu0 %v4363
  %4395 = vmatprep.subr.bf16.mxu0 0
  %4396 = vmatpush1.bf16.msra.mxu0 %v4364
  %4397 = vmatprep.subr.bf16.mxu0 0
  %4398 = vmatpush1.bf16.msra.mxu0 %v4365
  %4399 = vmatprep.subr.bf16.mxu0 0
  %4400 = vmatpush1.bf16.msra.mxu0 %v4366
  %4401 = vmatprep.subr.bf16.mxu0 0
  %4402 = vmatpush1.bf16.msra.mxu0 %v4367
  %4403 = vmatprep.subr.bf16.mxu0 0
  %4404 = vmatpush1.bf16.msra.mxu0 %v4368
  %4405 = vmatprep.subr.bf16.mxu0 0
  %4406 = vmatpush1.bf16.msra.mxu0 0
  %4407 = vmatprep.subr.bf16.mxu0 0
  %4408 = vmatpush1.bf16.msra.mxu0 0
  %4409 = vmatprep.subr.bf16.mxu0 0
  %4410 = vmatpush1.bf16.msra.mxu0 0
  %4411 = vmatprep.subr.bf16.mxu0 0
  %4412 = vmatpush1.bf16.msra.mxu0 0
  %4413 = vmatprep.subr.bf16.mxu0 0
  %4414 = vmatpush1.bf16.msra.mxu0 0
  %4415 = vmatprep.subr.bf16.mxu0 0
  %4416 = vmatpush1.bf16.msra.mxu0 0
  %4417 = vmatprep.subr.bf16.mxu0 0
  %4418 = vmatpush1.bf16.msra.mxu0 0
  %4419 = vmatprep.subr.bf16.mxu0 0
  %4420 = vmatpush1.bf16.msra.mxu0 0
  %4421 = vmatprep.subr.bf16.mxu0 0
  %4422 = vmatpush1.bf16.msra.mxu0 0
  %4423 = vmatprep.subr.bf16.mxu0 0
  %4424 = vmatpush1.bf16.msra.mxu0 0
  %4425 = vmatprep.mubr.bf16.mxu0 0
  %4426 = vmatmul.mubr.bf16.gmra.mrb[0].mxu0 %v4376
  %v4427 = vpop.f32.mrb[0].mxu0
  %v4428 = vadd.f32 %v4263, %v4427
  %v4429 = vpop.f32.mrb[0].mxu0
  %v4430 = vpop.f32.mrb[0].mxu0
  %v4431 = vadd.f32 %v4266, %v4430
  %v4432 = vpop.f32.mrb[0].mxu0
  %4433 = vmatprep.mubr.bf16.mxu0 0
  %4434 = vmatmul.mubr.bf16.gmra.mrb[0].mxu0 %v4379
  %v4435 = vpop.f32.mrb[0].mxu0
  %v4436 = vadd.f32 %v4271, %v4435
  %v4437 = vpop.f32.mrb[0].mxu0
  %v4438 = vpop.f32.mrb[0].mxu0
  %v4439 = vadd.f32 %v4274, %v4438
  %v4440 = vpop.f32.mrb[0].mxu0
  %4441 = vmatprep.mubr.bf16.mxu0 0
  %4442 = vmatmul.mubr.bf16.gmra.mrb[0].mxu0 %v4382
  %v4443 = vpop.f32.mrb[0].mxu0
  %v4444 = vadd.f32 %v4279, %v4443
  %v4445 = vpop.f32.mrb[0].mxu0
  %v4446 = vpop.f32.mrb[0].mxu0
  %v4447 = vadd.f32 %v4282, %v4446
  %v4448 = vpop.f32.mrb[0].mxu0
  %4449 = vmatprep.mubr.bf16.mxu0 0
  %4450 = vmatmul.mubr.bf16.gmra.mrb[0].mxu0 %v4385
  %v4451 = vpop.f32.mrb[0].mxu0
  %v4452 = vadd.f32 %v4287, %v4451
  %v4453 = vpop.f32.mrb[0].mxu0
  %v4454 = vpop.f32.mrb[0].mxu0
  %v4455 = vadd.f32 %v4290, %v4454
  %v4456 = vpop.f32.mrb[0].mxu0
  %4457 = vmatprep.mubr.bf16.mxu0 0
  %4458 = vmatmul.mubr.bf16.gmra.mrb[0].mxu0 %v4388
  %v4459 = vpop.f32.mrb[0].mxu0
  %v4460 = vadd.f32 %v4295, %v4459
  %v4461 = vpop.f32.mrb[0].mxu0
  %v4462 = vpop.f32.mrb[0].mxu0
  %v4463 = vadd.f32 %v4298, %v4462
  %v4464 = vpop.f32.mrb[0].mxu0
  %4465 = vmatprep.mubr.bf16.mxu0 0
  %4466 = vmatmul.mubr.bf16.gmra.mrb[0].mxu0 %v4391
  %v4467 = vpop.f32.mrb[0].mxu0
  %v4468 = vadd.f32 %v4303, %v4467
  %v4469 = vpop.f32.mrb[0].mxu0
  %v4470 = vpop.f32.mrb[0].mxu0
  %v4471 = vadd.f32 %v4306, %v4470
  %v4472 = vpop.f32.mrb[0].mxu0
  %4473 = vdwg.mxu0
  %v4474 = vld [vmem:[%s0 + $0x4] sm:$0xf]
  %v4475 = vld [vmem:[%s0 + $0x8] sm:$0xf]
  %v4476 = vld [vmem:[%s0 + $0xc] sm:$0xf]
  %v4477 = vld [vmem:[%s0 + $0x10] sm:$0xf]
  %v4478 = vld [vmem:[%s0 + $0x14] sm:$0xf]
  %v4479 = vld [vmem:[%s0 + $0x18] sm:$0xf]
  %v4480 = vld [vmem:[%s0 + $0x1c] sm:$0xf]
  %v4481 = vld [vmem:[%s0 + $0x20] sm:$0xf]
  %v4482 = vld [vmem:[%s0 + $0x24] sm:$0xf]
  %v4483 = vld [vmem:[%s0 + $0x28] sm:$0xf]
  %v4484 = vld [vmem:[%s0 + $0x2c] sm:$0xf]
  %v4485 = vld [vmem:[%s0 + $0x30] sm:$0xf]
  %v4486 = vld [vmem:[%s420 + $0x8] sm:$0xf]
  %v4487 = vld [vmem:[%s420 + $0x14] sm:$0xf]
  %v4488 = vld [vmem:[%s420 + $0x20] sm:$0xf]
  %v4489 = vld [vmem:[%s420 + $0x2c] sm:$0xf]
  %v4490 = vld [vmem:[%s420 + $0x38] sm:$0xf]
  %v4491 = vld [vmem:[%s420 + $0x44] sm:$0xf]
  %v4492 = vld [vmem:[%s420 + $0x50] sm:$0xf]
  %v4493 = vld [vmem:[%s420 + $0x5c] sm:$0xf]
  %v4494 = vld [vmem:[%s420 + $0x68] sm:$0xf]
  %v4495 = vld [vmem:[%s420 + $0x74] sm:$0xf]
  %v4496 = vld [vmem:[%s420 + $0x80] sm:$0xf]
  %v4497 = vld [vmem:[%s420 + $0x8c] sm:$0xf]
  %v4510 = vunpack.c.l.b16 %v4474
  %v4511 = vunpack.c.l.b16 %v4475
  %v4512 = vunpack.c.l.b16 %v4476
  %v4513 = vunpack.c.l.b16 %v4477
  %v4514 = vunpack.c.l.b16 %v4478
  %v4515 = vunpack.c.l.b16 %v4479
  %v4516 = vunpack.c.l.b16 %v4480
  %v4517 = vunpack.c.l.b16 %v4481
  %v4518 = vunpack.c.l.b16 %v4482
  %v4519 = vunpack.c.l.b16 %v4483
  %v4520 = vunpack.c.l.b16 %v4484
  %v4521 = vunpack.c.l.b16 %v4485
  %v4522 = vpack.c.b16 %v4511, %v4510
  %v4523 = vpack.c.b16 %v4513, %v4512
  %v4524 = vpack.c.b16 %v4515, %v4514
  %v4525 = vpack.c.b16 %v4517, %v4516
  %v4526 = vpack.c.b16 %v4519, %v4518
  %v4527 = vpack.c.b16 %v4521, %v4520
  %v4540 = vunpack.c.l.b16 %v4486
  %v4541 = vunpack.c.l.b16 %v4487
  %v4542 = vunpack.c.l.b16 %v4488
  %v4543 = vunpack.c.l.b16 %v4489
  %v4544 = vunpack.c.l.b16 %v4490
  %v4545 = vunpack.c.l.b16 %v4491
  %v4546 = vunpack.c.l.b16 %v4492
  %v4547 = vunpack.c.l.b16 %v4493
  %v4548 = vunpack.c.l.b16 %v4494
  %v4549 = vunpack.c.l.b16 %v4495
  %v4550 = vunpack.c.l.b16 %v4496
  %v4551 = vunpack.c.l.b16 %v4497
  %v4552 = vpack.c.b16 %v4541, %v4540
  %v4553 = vpack.c.b16 %v4543, %v4542
  %v4554 = vpack.c.b16 %v4545, %v4544
  %v4555 = vpack.c.b16 %v4547, %v4546
  %v4556 = vpack.c.b16 %v4549, %v4548
  %v4557 = vpack.c.b16 %v4551, %v4550
  %v4565 = vsel %vm143, %v4522, 0
  %v4568 = vsel %vm143, %v4523, 0
  %v4571 = vsel %vm143, %v4524, 0
  %v4574 = vsel %vm143, %v4525, 0
  %v4577 = vsel %vm143, %v4526, 0
  %v4580 = vsel %vm143, %v4527, 0
  %4582 = vmatprep.subr.bf16.mxu0 0
  %4583 = vmatpush1.bf16.msra.mxu0 %v4552
  %4584 = vmatprep.subr.bf16.mxu0 0
  %4585 = vmatpush1.bf16.msra.mxu0 %v4553
  %4586 = vmatprep.subr.bf16.mxu0 0
  %4587 = vmatpush1.bf16.msra.mxu0 %v4554
  %4588 = vmatprep.subr.bf16.mxu0 0
  %4589 = vmatpush1.bf16.msra.mxu0 %v4555
  %4590 = vmatprep.subr.bf16.mxu0 0
  %4591 = vmatpush1.bf16.msra.mxu0 %v4556
  %4592 = vmatprep.subr.bf16.mxu0 0
  %4593 = vmatpush1.bf16.msra.mxu0 %v4557
  %4594 = vmatprep.subr.bf16.mxu0 0
  %4595 = vmatpush1.bf16.msra.mxu0 0
  %4596 = vmatprep.subr.bf16.mxu0 0
  %4597 = vmatpush1.bf16.msra.mxu0 0
  %4598 = vmatprep.subr.bf16.mxu0 0
  %4599 = vmatpush1.bf16.msra.mxu0 0
  %4600 = vmatprep.subr.bf16.mxu0 0
  %4601 = vmatpush1.bf16.msra.mxu0 0
  %4602 = vmatprep.subr.bf16.mxu0 0
  %4603 = vmatpush1.bf16.msra.mxu0 0
  %4604 = vmatprep.subr.bf16.mxu0 0
  %4605 = vmatpush1.bf16.msra.mxu0 0
  %4606 = vmatprep.subr.bf16.mxu0 0
  %4607 = vmatpush1.bf16.msra.mxu0 0
  %4608 = vmatprep.subr.bf16.mxu0 0
  %4609 = vmatpush1.bf16.msra.mxu0 0
  %4610 = vmatprep.subr.bf16.mxu0 0
  %4611 = vmatpush1.bf16.msra.mxu0 0
  %4612 = vmatprep.subr.bf16.mxu0 0
  %4613 = vmatpush1.bf16.msra.mxu0 0
  %4614 = vmatprep.mubr.bf16.mxu0 0
  %4615 = vmatmul.mubr.bf16.gmra.mrb[0].mxu0 %v4565
  %v4616 = vpop.f32.mrb[0].mxu0
  %v4617 = vadd.f32 0.0, %v4616
  %v4618 = vpop.f32.mrb[0].mxu0
  %v4619 = vpop.f32.mrb[0].mxu0
  %v4620 = vadd.f32 0.0, %v4619
  %v4621 = vpop.f32.mrb[0].mxu0
  %4622 = vmatprep.mubr.bf16.mxu0 0
  %4623 = vmatmul.mubr.bf16.gmra.mrb[0].mxu0 %v4568
  %v4624 = vpop.f32.mrb[0].mxu0
  %v4625 = vadd.f32 0.0, %v4624
  %v4626 = vpop.f32.mrb[0].mxu0
  %v4627 = vpop.f32.mrb[0].mxu0
  %v4628 = vadd.f32 0.0, %v4627
  %v4629 = vpop.f32.mrb[0].mxu0
  %4630 = vmatprep.mubr.bf16.mxu0 0
  %4631 = vmatmul.mubr.bf16.gmra.mrb[0].mxu0 %v4571
  %v4632 = vpop.f32.mrb[0].mxu0
  %v4633 = vadd.f32 0.0, %v4632
  %v4634 = vpop.f32.mrb[0].mxu0
  %v4635 = vpop.f32.mrb[0].mxu0
  %v4636 = vadd.f32 0.0, %v4635
  %v4637 = vpop.f32.mrb[0].mxu0
  %4638 = vmatprep.mubr.bf16.mxu0 0
  %4639 = vmatmul.mubr.bf16.gmra.mrb[0].mxu0 %v4574
  %v4640 = vpop.f32.mrb[0].mxu0
  %v4641 = vadd.f32 0.0, %v4640
  %v4642 = vpop.f32.mrb[0].mxu0
  %v4643 = vpop.f32.mrb[0].mxu0
  %v4644 = vadd.f32 0.0, %v4643
  %v4645 = vpop.f32.mrb[0].mxu0
  %4646 = vmatprep.mubr.bf16.mxu0 0
  %4647 = vmatmul.mubr.bf16.gmra.mrb[0].mxu0 %v4577
  %v4648 = vpop.f32.mrb[0].mxu0
  %v4649 = vadd.f32 0.0, %v4648
  %v4650 = vpop.f32.mrb[0].mxu0
  %v4651 = vpop.f32.mrb[0].mxu0
  %v4652 = vadd.f32 0.0, %v4651
  %v4653 = vpop.f32.mrb[0].mxu0
  %4654 = vmatprep.mubr.bf16.mxu0 0
  %4655 = vmatmul.mubr.bf16.gmra.mrb[0].mxu0 %v4580
  %v4656 = vpop.f32.mrb[0].mxu0
  %v4657 = vadd.f32 0.0, %v4656
  %v4658 = vpop.f32.mrb[0].mxu0
  %v4659 = vpop.f32.mrb[0].mxu0
  %v4660 = vadd.f32 0.0, %v4659
  %v4661 = vpop.f32.mrb[0].mxu0
  %4662 = vdwg.mxu0
  %v4663 = vadd.f32 %v4428, %v4617
  %v4664 = vadd.f32 %v4431, %v4620
  %v4665 = vadd.f32 %v4436, %v4625
  %v4666 = vadd.f32 %v4439, %v4628
  %v4667 = vadd.f32 %v4444, %v4633
  %v4668 = vadd.f32 %v4447, %v4636
  %v4669 = vadd.f32 %v4452, %v4641
  %v4670 = vadd.f32 %v4455, %v4644
  %v4671 = vadd.f32 %v4460, %v4649
  %v4672 = vadd.f32 %v4463, %v4652
  %v4673 = vadd.f32 %v4468, %v4657
  %v4674 = vadd.f32 %v4471, %v4660
  %v4675 = vld [vmem:[%s51 + $0x4] sm:$0xf]
  %v4676 = vld [vmem:[%s51 + $0x8] sm:$0xf]
  %v4677 = vld [vmem:[%s51 + $0xc] sm:$0xf]
  %v4678 = vld [vmem:[%s51 + $0x10] sm:$0xf]
  %v4679 = vld [vmem:[%s51 + $0x14] sm:$0xf]
  %v4680 = vld [vmem:[%s51 + $0x18] sm:$0xf]
  %v4681 = vld [vmem:[%s51 + $0x1c] sm:$0xf]
  %v4682 = vld [vmem:[%s51 + $0x20] sm:$0xf]
  %v4683 = vld [vmem:[%s51 + $0x24] sm:$0xf]
  %v4684 = vld [vmem:[%s51 + $0x28] sm:$0xf]
  %v4685 = vld [vmem:[%s51 + $0x2c] sm:$0xf]
  %v4686 = vld [vmem:[%s51 + $0x30] sm:$0xf]
  %v4687 = vld [vmem:[%s622 + $0x8] sm:$0xf]
  %v4688 = vld [vmem:[%s622 + $0x14] sm:$0xf]
  %v4689 = vld [vmem:[%s622 + $0x20] sm:$0xf]
  %v4690 = vld [vmem:[%s622 + $0x2c] sm:$0xf]
  %v4691 = vld [vmem:[%s622 + $0x38] sm:$0xf]
  %v4692 = vld [vmem:[%s622 + $0x44] sm:$0xf]
  %v4693 = vld [vmem:[%s622 + $0x50] sm:$0xf]
  %v4694 = vld [vmem:[%s622 + $0x5c] sm:$0xf]
  %v4695 = vld [vmem:[%s622 + $0x68] sm:$0xf]
  %v4696 = vld [vmem:[%s622 + $0x74] sm:$0xf]
  %v4697 = vld [vmem:[%s622 + $0x80] sm:$0xf]
  %v4698 = vld [vmem:[%s622 + $0x8c] sm:$0xf]
  %v4711 = vunpack.c.l.b16 %v4675
  %v4712 = vunpack.c.l.b16 %v4676
  %v4713 = vunpack.c.l.b16 %v4677
  %v4714 = vunpack.c.l.b16 %v4678
  %v4715 = vunpack.c.l.b16 %v4679
  %v4716 = vunpack.c.l.b16 %v4680
  %v4717 = vunpack.c.l.b16 %v4681
  %v4718 = vunpack.c.l.b16 %v4682
  %v4719 = vunpack.c.l.b16 %v4683
  %v4720 = vunpack.c.l.b16 %v4684
  %v4721 = vunpack.c.l.b16 %v4685
  %v4722 = vunpack.c.l.b16 %v4686
  %v4723 = vpack.c.b16 %v4712, %v4711
  %v4724 = vpack.c.b16 %v4714, %v4713
  %v4725 = vpack.c.b16 %v4716, %v4715
  %v4726 = vpack.c.b16 %v4718, %v4717
  %v4727 = vpack.c.b16 %v4720, %v4719
  %v4728 = vpack.c.b16 %v4722, %v4721
  %v4741 = vunpack.c.l.b16 %v4687
  %v4742 = vunpack.c.l.b16 %v4688
  %v4743 = vunpack.c.l.b16 %v4689
  %v4744 = vunpack.c.l.b16 %v4690
  %v4745 = vunpack.c.l.b16 %v4691
  %v4746 = vunpack.c.l.b16 %v4692
  %v4747 = vunpack.c.l.b16 %v4693
  %v4748 = vunpack.c.l.b16 %v4694
  %v4749 = vunpack.c.l.b16 %v4695
  %v4750 = vunpack.c.l.b16 %v4696
  %v4751 = vunpack.c.l.b16 %v4697
  %v4752 = vunpack.c.l.b16 %v4698
  %v4753 = vpack.c.b16 %v4742, %v4741
  %v4754 = vpack.c.b16 %v4744, %v4743
  %v4755 = vpack.c.b16 %v4746, %v4745
  %v4756 = vpack.c.b16 %v4748, %v4747
  %v4757 = vpack.c.b16 %v4750, %v4749
  %v4758 = vpack.c.b16 %v4752, %v4751
  %v4766 = vsel %vm143, %v4723, 0
  %v4769 = vsel %vm143, %v4724, 0
  %v4772 = vsel %vm143, %v4725, 0
  %v4775 = vsel %vm143, %v4726, 0
  %v4778 = vsel %vm143, %v4727, 0
  %v4781 = vsel %vm143, %v4728, 0
  %4783 = vmatprep.subr.bf16.mxu0 0
  %4784 = vmatpush1.bf16.msra.mxu0 %v4753
  %4785 = vmatprep.subr.bf16.mxu0 0
  %4786 = vmatpush1.bf16.msra.mxu0 %v4754
  %4787 = vmatprep.subr.bf16.mxu0 0
  %4788 = vmatpush1.bf16.msra.mxu0 %v4755
  %4789 = vmatprep.subr.bf16.mxu0 0
  %4790 = vmatpush1.bf16.msra.mxu0 %v4756
  %4791 = vmatprep.subr.bf16.mxu0 0
  %4792 = vmatpush1.bf16.msra.mxu0 %v4757
  %4793 = vmatprep.subr.bf16.mxu0 0
  %4794 = vmatpush1.bf16.msra.mxu0 %v4758
  %4795 = vmatprep.subr.bf16.mxu0 0
  %4796 = vmatpush1.bf16.msra.mxu0 0
  %4797 = vmatprep.subr.bf16.mxu0 0
  %4798 = vmatpush1.bf16.msra.mxu0 0
  %4799 = vmatprep.subr.bf16.mxu0 0
  %4800 = vmatpush1.bf16.msra.mxu0 0
  %4801 = vmatprep.subr.bf16.mxu0 0
  %4802 = vmatpush1.bf16.msra.mxu0 0
  %4803 = vmatprep.subr.bf16.mxu0 0
  %4804 = vmatpush1.bf16.msra.mxu0 0
  %4805 = vmatprep.subr.bf16.mxu0 0
  %4806 = vmatpush1.bf16.msra.mxu0 0
  %4807 = vmatprep.subr.bf16.mxu0 0
  %4808 = vmatpush1.bf16.msra.mxu0 0
  %4809 = vmatprep.subr.bf16.mxu0 0
  %4810 = vmatpush1.bf16.msra.mxu0 0
  %4811 = vmatprep.subr.bf16.mxu0 0
  %4812 = vmatpush1.bf16.msra.mxu0 0
  %4813 = vmatprep.subr.bf16.mxu0 0
  %4814 = vmatpush1.bf16.msra.mxu0 0
  %4815 = vmatprep.mubr.bf16.mxu0 0
  %4816 = vmatmul.mubr.bf16.gmra.mrb[0].mxu0 %v4766
  %v4817 = vpop.f32.mrb[0].mxu0
  %v4818 = vadd.f32 0.0, %v4817
  %v4819 = vpop.f32.mrb[0].mxu0
  %v4820 = vpop.f32.mrb[0].mxu0
  %v4821 = vadd.f32 0.0, %v4820
  %v4822 = vpop.f32.mrb[0].mxu0
  %4823 = vmatprep.mubr.bf16.mxu0 0
  %4824 = vmatmul.mubr.bf16.gmra.mrb[0].mxu0 %v4769
  %v4825 = vpop.f32.mrb[0].mxu0
  %v4826 = vadd.f32 0.0, %v4825
  %v4827 = vpop.f32.mrb[0].mxu0
  %v4828 = vpop.f32.mrb[0].mxu0
  %v4829 = vadd.f32 0.0, %v4828
  %v4830 = vpop.f32.mrb[0].mxu0
  %4831 = vmatprep.mubr.bf16.mxu0 0
  %4832 = vmatmul.mubr.bf16.gmra.mrb[0].mxu0 %v4772
  %v4833 = vpop.f32.mrb[0].mxu0
  %v4834 = vadd.f32 0.0, %v4833
  %v4835 = vpop.f32.mrb[0].mxu0
  %v4836 = vpop.f32.mrb[0].mxu0
  %v4837 = vadd.f32 0.0, %v4836
  %v4838 = vpop.f32.mrb[0].mxu0
  %4839 = vmatprep.mubr.bf16.mxu0 0
  %4840 = vmatmul.mubr.bf16.gmra.mrb[0].mxu0 %v4775
  %v4841 = vpop.f32.mrb[0].mxu0
  %v4842 = vadd.f32 0.0, %v4841
  %v4843 = vpop.f32.mrb[0].mxu0
  %v4844 = vpop.f32.mrb[0].mxu0
  %v4845 = vadd.f32 0.0, %v4844
  %v4846 = vpop.f32.mrb[0].mxu0
  %4847 = vmatprep.mubr.bf16.mxu0 0
  %4848 = vmatmul.mubr.bf16.gmra.mrb[0].mxu0 %v4778
  %v4849 = vpop.f32.mrb[0].mxu0
  %v4850 = vadd.f32 0.0, %v4849
  %v4851 = vpop.f32.mrb[0].mxu0
  %v4852 = vpop.f32.mrb[0].mxu0
  %v4853 = vadd.f32 0.0, %v4852
  %v4854 = vpop.f32.mrb[0].mxu0
  %4855 = vmatprep.mubr.bf16.mxu0 0
  %4856 = vmatmul.mubr.bf16.gmra.mrb[0].mxu0 %v4781
  %v4857 = vpop.f32.mrb[0].mxu0
  %v4858 = vadd.f32 0.0, %v4857
  %v4859 = vpop.f32.mrb[0].mxu0
  %v4860 = vpop.f32.mrb[0].mxu0
  %v4861 = vadd.f32 0.0, %v4860
  %v4862 = vpop.f32.mrb[0].mxu0
  %4863 = vdwg.mxu0
  %v4864 = vadd.f32 %v4663, %v4818
  %v4865 = vadd.f32 %v4664, %v4821
  %v4866 = vadd.f32 %v4665, %v4826
  %v4867 = vadd.f32 %v4666, %v4829
  %v4868 = vadd.f32 %v4667, %v4834
  %v4869 = vadd.f32 %v4668, %v4837
  %v4870 = vadd.f32 %v4669, %v4842
  %v4871 = vadd.f32 %v4670, %v4845
  %v4872 = vadd.f32 %v4671, %v4850
  %v4873 = vadd.f32 %v4672, %v4853
  %v4874 = vadd.f32 %v4673, %v4858
  %v4875 = vadd.f32 %v4674, %v4861
  %v4876 = vld [vmem:[%s0 + $0x8] sm:$0xf]
  %v4877 = vld [vmem:[%s0 + $0xc] sm:$0xf]
  %v4878 = vld [vmem:[%s0 + $0x10] sm:$0xf]
  %v4879 = vld [vmem:[%s0 + $0x14] sm:$0xf]
  %v4880 = vld [vmem:[%s0 + $0x18] sm:$0xf]
  %v4881 = vld [vmem:[%s0 + $0x1c] sm:$0xf]
  %v4882 = vld [vmem:[%s0 + $0x20] sm:$0xf]
  %v4883 = vld [vmem:[%s0 + $0x24] sm:$0xf]
  %v4884 = vld [vmem:[%s0 + $0x28] sm:$0xf]
  %v4885 = vld [vmem:[%s0 + $0x2c] sm:$0xf]
  %v4886 = vld [vmem:[%s0 + $0x30] sm:$0xf]
  %v4887 = vld [vmem:[%s0 + $0x34] sm:$0xf]
  %v4888 = vld [vmem:[%s824 + $0x8] sm:$0xf]
  %v4889 = vld [vmem:[%s824 + $0x14] sm:$0xf]
  %v4890 = vld [vmem:[%s824 + $0x20] sm:$0xf]
  %v4891 = vld [vmem:[%s824 + $0x2c] sm:$0xf]
  %v4892 = vld [vmem:[%s824 + $0x38] sm:$0xf]
  %v4893 = vld [vmem:[%s824 + $0x44] sm:$0xf]
  %v4894 = vld [vmem:[%s824 + $0x50] sm:$0xf]
  %v4895 = vld [vmem:[%s824 + $0x5c] sm:$0xf]
  %v4896 = vld [vmem:[%s824 + $0x68] sm:$0xf]
  %v4897 = vld [vmem:[%s824 + $0x74] sm:$0xf]
  %v4898 = vld [vmem:[%s824 + $0x80] sm:$0xf]
  %v4899 = vld [vmem:[%s824 + $0x8c] sm:$0xf]
  %v4912 = vunpack.c.l.b16 %v4876
  %v4913 = vunpack.c.l.b16 %v4877
  %v4914 = vunpack.c.l.b16 %v4878
  %v4915 = vunpack.c.l.b16 %v4879
  %v4916 = vunpack.c.l.b16 %v4880
  %v4917 = vunpack.c.l.b16 %v4881
  %v4918 = vunpack.c.l.b16 %v4882
  %v4919 = vunpack.c.l.b16 %v4883
  %v4920 = vunpack.c.l.b16 %v4884
  %v4921 = vunpack.c.l.b16 %v4885
  %v4922 = vunpack.c.l.b16 %v4886
  %v4923 = vunpack.c.l.b16 %v4887
  %v4924 = vpack.c.b16 %v4913, %v4912
  %v4925 = vpack.c.b16 %v4915, %v4914
  %v4926 = vpack.c.b16 %v4917, %v4916
  %v4927 = vpack.c.b16 %v4919, %v4918
  %v4928 = vpack.c.b16 %v4921, %v4920
  %v4929 = vpack.c.b16 %v4923, %v4922
  %v4942 = vunpack.c.l.b16 %v4888
  %v4943 = vunpack.c.l.b16 %v4889
  %v4944 = vunpack.c.l.b16 %v4890
  %v4945 = vunpack.c.l.b16 %v4891
  %v4946 = vunpack.c.l.b16 %v4892
  %v4947 = vunpack.c.l.b16 %v4893
  %v4948 = vunpack.c.l.b16 %v4894
  %v4949 = vunpack.c.l.b16 %v4895
  %v4950 = vunpack.c.l.b16 %v4896
  %v4951 = vunpack.c.l.b16 %v4897
  %v4952 = vunpack.c.l.b16 %v4898
  %v4953 = vunpack.c.l.b16 %v4899
  %v4954 = vpack.c.b16 %v4943, %v4942
  %v4955 = vpack.c.b16 %v4945, %v4944
  %v4956 = vpack.c.b16 %v4947, %v4946
  %v4957 = vpack.c.b16 %v4949, %v4948
  %v4958 = vpack.c.b16 %v4951, %v4950
  %v4959 = vpack.c.b16 %v4953, %v4952
  %v4967 = vsel %vm143, %v4924, 0
  %v4970 = vsel %vm143, %v4925, 0
  %v4973 = vsel %vm143, %v4926, 0
  %v4976 = vsel %vm143, %v4927, 0
  %v4979 = vsel %vm143, %v4928, 0
  %v4982 = vsel %vm143, %v4929, 0
  %4984 = vmatprep.subr.bf16.mxu0 0
  %4985 = vmatpush1.bf16.msra.mxu0 %v4954
  %4986 = vmatprep.subr.bf16.mxu0 0
  %4987 = vmatpush1.bf16.msra.mxu0 %v4955
  %4988 = vmatprep.subr.bf16.mxu0 0
  %4989 = vmatpush1.bf16.msra.mxu0 %v4956
  %4990 = vmatprep.subr.bf16.mxu0 0
  %4991 = vmatpush1.bf16.msra.mxu0 %v4957
  %4992 = vmatprep.subr.bf16.mxu0 0
  %4993 = vmatpush1.bf16.msra.mxu0 %v4958
  %4994 = vmatprep.subr.bf16.mxu0 0
  %4995 = vmatpush1.bf16.msra.mxu0 %v4959
  %4996 = vmatprep.subr.bf16.mxu0 0
  %4997 = vmatpush1.bf16.msra.mxu0 0
  %4998 = vmatprep.subr.bf16.mxu0 0
  %4999 = vmatpush1.bf16.msra.mxu0 0
  %5000 = vmatprep.subr.bf16.mxu0 0
  %5001 = vmatpush1.bf16.msra.mxu0 0
  %5002 = vmatprep.subr.bf16.mxu0 0
  %5003 = vmatpush1.bf16.msra.mxu0 0
  %5004 = vmatprep.subr.bf16.mxu0 0
  %5005 = vmatpush1.bf16.msra.mxu0 0
  %5006 = vmatprep.subr.bf16.mxu0 0
  %5007 = vmatpush1.bf16.msra.mxu0 0
  %5008 = vmatprep.subr.bf16.mxu0 0
  %5009 = vmatpush1.bf16.msra.mxu0 0
  %5010 = vmatprep.subr.bf16.mxu0 0
  %5011 = vmatpush1.bf16.msra.mxu0 0
  %5012 = vmatprep.subr.bf16.mxu0 0
  %5013 = vmatpush1.bf16.msra.mxu0 0
  %5014 = vmatprep.subr.bf16.mxu0 0
  %5015 = vmatpush1.bf16.msra.mxu0 0
  %5016 = vmatprep.mubr.bf16.mxu0 0
  %5017 = vmatmul.mubr.bf16.gmra.mrb[0].mxu0 %v4967
  %v5018 = vpop.f32.mrb[0].mxu0
  %v5019 = vadd.f32 0.0, %v5018
  %v5020 = vpop.f32.mrb[0].mxu0
  %v5021 = vpop.f32.mrb[0].mxu0
  %v5022 = vadd.f32 0.0, %v5021
  %v5023 = vpop.f32.mrb[0].mxu0
  %5024 = vmatprep.mubr.bf16.mxu0 0
  %5025 = vmatmul.mubr.bf16.gmra.mrb[0].mxu0 %v4970
  %v5026 = vpop.f32.mrb[0].mxu0
  %v5027 = vadd.f32 0.0, %v5026
  %v5028 = vpop.f32.mrb[0].mxu0
  %v5029 = vpop.f32.mrb[0].mxu0
  %v5030 = vadd.f32 0.0, %v5029
  %v5031 = vpop.f32.mrb[0].mxu0
  %5032 = vmatprep.mubr.bf16.mxu0 0
  %5033 = vmatmul.mubr.bf16.gmra.mrb[0].mxu0 %v4973
  %v5034 = vpop.f32.mrb[0].mxu0
  %v5035 = vadd.f32 0.0, %v5034
  %v5036 = vpop.f32.mrb[0].mxu0
  %v5037 = vpop.f32.mrb[0].mxu0
  %v5038 = vadd.f32 0.0, %v5037
  %v5039 = vpop.f32.mrb[0].mxu0
  %5040 = vmatprep.mubr.bf16.mxu0 0
  %5041 = vmatmul.mubr.bf16.gmra.mrb[0].mxu0 %v4976
  %v5042 = vpop.f32.mrb[0].mxu0
  %v5043 = vadd.f32 0.0, %v5042
  %v5044 = vpop.f32.mrb[0].mxu0
  %v5045 = vpop.f32.mrb[0].mxu0
  %v5046 = vadd.f32 0.0, %v5045
  %v5047 = vpop.f32.mrb[0].mxu0
  %5048 = vmatprep.mubr.bf16.mxu0 0
  %5049 = vmatmul.mubr.bf16.gmra.mrb[0].mxu0 %v4979
  %v5050 = vpop.f32.mrb[0].mxu0
  %v5051 = vadd.f32 0.0, %v5050
  %v5052 = vpop.f32.mrb[0].mxu0
  %v5053 = vpop.f32.mrb[0].mxu0
  %v5054 = vadd.f32 0.0, %v5053
  %v5055 = vpop.f32.mrb[0].mxu0
  %5056 = vmatprep.mubr.bf16.mxu0 0
  %5057 = vmatmul.mubr.bf16.gmra.mrb[0].mxu0 %v4982
  %v5058 = vpop.f32.mrb[0].mxu0
  %v5059 = vadd.f32 0.0, %v5058
  %v5060 = vpop.f32.mrb[0].mxu0
  %v5061 = vpop.f32.mrb[0].mxu0
  %v5062 = vadd.f32 0.0, %v5061
  %v5063 = vpop.f32.mrb[0].mxu0
  %5064 = vdwg.mxu0
  %v5065 = vadd.f32 %v4864, %v5019
  %v5066 = vadd.f32 %v4865, %v5022
  %v5067 = vadd.f32 %v4866, %v5027
  %v5068 = vadd.f32 %v4867, %v5030
  %v5069 = vadd.f32 %v4868, %v5035
  %v5070 = vadd.f32 %v4869, %v5038
  %v5071 = vadd.f32 %v4870, %v5043
  %v5072 = vadd.f32 %v4871, %v5046
  %v5073 = vadd.f32 %v4872, %v5051
  %v5074 = vadd.f32 %v4873, %v5054
  %v5075 = vadd.f32 %v4874, %v5059
  %v5076 = vadd.f32 %v4875, %v5062
  %v5077 = vld [vmem:[%s51 + $0x8] sm:$0xf]
  %v5078 = vld [vmem:[%s51 + $0xc] sm:$0xf]
  %v5079 = vld [vmem:[%s51 + $0x10] sm:$0xf]
  %v5080 = vld [vmem:[%s51 + $0x14] sm:$0xf]
  %v5081 = vld [vmem:[%s51 + $0x18] sm:$0xf]
  %v5082 = vld [vmem:[%s51 + $0x1c] sm:$0xf]
  %v5083 = vld [vmem:[%s51 + $0x20] sm:$0xf]
  %v5084 = vld [vmem:[%s51 + $0x24] sm:$0xf]
  %v5085 = vld [vmem:[%s51 + $0x28] sm:$0xf]
  %v5086 = vld [vmem:[%s51 + $0x2c] sm:$0xf]
  %v5087 = vld [vmem:[%s51 + $0x30] sm:$0xf]
  %v5088 = vld [vmem:[%s51 + $0x34] sm:$0xf]
  %v5089 = vld [vmem:[%s1026 + $0x8] sm:$0xf]
  %v5090 = vld [vmem:[%s1026 + $0x14] sm:$0xf]
  %v5091 = vld [vmem:[%s1026 + $0x20] sm:$0xf]
  %v5092 = vld [vmem:[%s1026 + $0x2c] sm:$0xf]
  %v5093 = vld [vmem:[%s1026 + $0x38] sm:$0xf]
  %v5094 = vld [vmem:[%s1026 + $0x44] sm:$0xf]
  %v5095 = vld [vmem:[%s1026 + $0x50] sm:$0xf]
  %v5096 = vld [vmem:[%s1026 + $0x5c] sm:$0xf]
  %v5097 = vld [vmem:[%s1026 + $0x68] sm:$0xf]
  %v5098 = vld [vmem:[%s1026 + $0x74] sm:$0xf]
  %v5099 = vld [vmem:[%s1026 + $0x80] sm:$0xf]
  %v5100 = vld [vmem:[%s1026 + $0x8c] sm:$0xf]
  %v5113 = vunpack.c.l.b16 %v5077
  %v5114 = vunpack.c.l.b16 %v5078
  %v5115 = vunpack.c.l.b16 %v5079
  %v5116 = vunpack.c.l.b16 %v5080
  %v5117 = vunpack.c.l.b16 %v5081
  %v5118 = vunpack.c.l.b16 %v5082
  %v5119 = vunpack.c.l.b16 %v5083
  %v5120 = vunpack.c.l.b16 %v5084
  %v5121 = vunpack.c.l.b16 %v5085
  %v5122 = vunpack.c.l.b16 %v5086
  %v5123 = vunpack.c.l.b16 %v5087
  %v5124 = vunpack.c.l.b16 %v5088
  %v5125 = vpack.c.b16 %v5114, %v5113
  %v5126 = vpack.c.b16 %v5116, %v5115
  %v5127 = vpack.c.b16 %v5118, %v5117
  %v5128 = vpack.c.b16 %v5120, %v5119
  %v5129 = vpack.c.b16 %v5122, %v5121
  %v5130 = vpack.c.b16 %v5124, %v5123
  %v5143 = vunpack.c.l.b16 %v5089
  %v5144 = vunpack.c.l.b16 %v5090
  %v5145 = vunpack.c.l.b16 %v5091
  %v5146 = vunpack.c.l.b16 %v5092
  %v5147 = vunpack.c.l.b16 %v5093
  %v5148 = vunpack.c.l.b16 %v5094
  %v5149 = vunpack.c.l.b16 %v5095
  %v5150 = vunpack.c.l.b16 %v5096
  %v5151 = vunpack.c.l.b16 %v5097
  %v5152 = vunpack.c.l.b16 %v5098
  %v5153 = vunpack.c.l.b16 %v5099
  %v5154 = vunpack.c.l.b16 %v5100
  %v5155 = vpack.c.b16 %v5144, %v5143
  %v5156 = vpack.c.b16 %v5146, %v5145
  %v5157 = vpack.c.b16 %v5148, %v5147
  %v5158 = vpack.c.b16 %v5150, %v5149
  %v5159 = vpack.c.b16 %v5152, %v5151
  %v5160 = vpack.c.b16 %v5154, %v5153
  %v5168 = vsel %vm143, %v5125, 0
  %v5171 = vsel %vm143, %v5126, 0
  %v5174 = vsel %vm143, %v5127, 0
  %v5177 = vsel %vm143, %v5128, 0
  %v5180 = vsel %vm143, %v5129, 0
  %v5183 = vsel %vm143, %v5130, 0
  %5185 = vmatprep.subr.bf16.mxu0 0
  %5186 = vmatpush1.bf16.msra.mxu0 %v5155
  %5187 = vmatprep.subr.bf16.mxu0 0
  %5188 = vmatpush1.bf16.msra.mxu0 %v5156
  %5189 = vmatprep.subr.bf16.mxu0 0
  %5190 = vmatpush1.bf16.msra.mxu0 %v5157
  %5191 = vmatprep.subr.bf16.mxu0 0
  %5192 = vmatpush1.bf16.msra.mxu0 %v5158
  %5193 = vmatprep.subr.bf16.mxu0 0
  %5194 = vmatpush1.bf16.msra.mxu0 %v5159
  %5195 = vmatprep.subr.bf16.mxu0 0
  %5196 = vmatpush1.bf16.msra.mxu0 %v5160
  %5197 = vmatprep.subr.bf16.mxu0 0
  %5198 = vmatpush1.bf16.msra.mxu0 0
  %5199 = vmatprep.subr.bf16.mxu0 0
  %5200 = vmatpush1.bf16.msra.mxu0 0
  %5201 = vmatprep.subr.bf16.mxu0 0
  %5202 = vmatpush1.bf16.msra.mxu0 0
  %5203 = vmatprep.subr.bf16.mxu0 0
  %5204 = vmatpush1.bf16.msra.mxu0 0
  %5205 = vmatprep.subr.bf16.mxu0 0
  %5206 = vmatpush1.bf16.msra.mxu0 0
  %5207 = vmatprep.subr.bf16.mxu0 0
  %5208 = vmatpush1.bf16.msra.mxu0 0
  %5209 = vmatprep.subr.bf16.mxu0 0
  %5210 = vmatpush1.bf16.msra.mxu0 0
  %5211 = vmatprep.subr.bf16.mxu0 0
  %5212 = vmatpush1.bf16.msra.mxu0 0
  %5213 = vmatprep.subr.bf16.mxu0 0
  %5214 = vmatpush1.bf16.msra.mxu0 0
  %5215 = vmatprep.subr.bf16.mxu0 0
  %5216 = vmatpush1.bf16.msra.mxu0 0
  %5217 = vmatprep.mubr.bf16.mxu0 0
  %5218 = vmatmul.mubr.bf16.gmra.mrb[0].mxu0 %v5168
  %v5219 = vpop.f32.mrb[0].mxu0
  %v5220 = vadd.f32 0.0, %v5219
  %v5221 = vpop.f32.mrb[0].mxu0
  %v5222 = vpop.f32.mrb[0].mxu0
  %v5223 = vadd.f32 0.0, %v5222
  %v5224 = vpop.f32.mrb[0].mxu0
  %5225 = vmatprep.mubr.bf16.mxu0 0
  %5226 = vmatmul.mubr.bf16.gmra.mrb[0].mxu0 %v5171
  %v5227 = vpop.f32.mrb[0].mxu0
  %v5228 = vadd.f32 0.0, %v5227
  %v5229 = vpop.f32.mrb[0].mxu0
  %v5230 = vpop.f32.mrb[0].mxu0
  %v5231 = vadd.f32 0.0, %v5230
  %v5232 = vpop.f32.mrb[0].mxu0
  %5233 = vmatprep.mubr.bf16.mxu0 0
  %5234 = vmatmul.mubr.bf16.gmra.mrb[0].mxu0 %v5174
  %v5235 = vpop.f32.mrb[0].mxu0
  %v5236 = vadd.f32 0.0, %v5235
  %v5237 = vpop.f32.mrb[0].mxu0
  %v5238 = vpop.f32.mrb[0].mxu0
  %v5239 = vadd.f32 0.0, %v5238
  %v5240 = vpop.f32.mrb[0].mxu0
  %5241 = vmatprep.mubr.bf16.mxu0 0
  %5242 = vmatmul.mubr.bf16.gmra.mrb[0].mxu0 %v5177
  %v5243 = vpop.f32.mrb[0].mxu0
  %v5244 = vadd.f32 0.0, %v5243
  %v5245 = vpop.f32.mrb[0].mxu0
  %v5246 = vpop.f32.mrb[0].mxu0
  %v5247 = vadd.f32 0.0, %v5246
  %v5248 = vpop.f32.mrb[0].mxu0
  %5249 = vmatprep.mubr.bf16.mxu0 0
  %5250 = vmatmul.mubr.bf16.gmra.mrb[0].mxu0 %v5180
  %v5251 = vpop.f32.mrb[0].mxu0
  %v5252 = vadd.f32 0.0, %v5251
  %v5253 = vpop.f32.mrb[0].mxu0
  %v5254 = vpop.f32.mrb[0].mxu0
  %v5255 = vadd.f32 0.0, %v5254
  %v5256 = vpop.f32.mrb[0].mxu0
  %5257 = vmatprep.mubr.bf16.mxu0 0
  %5258 = vmatmul.mubr.bf16.gmra.mrb[0].mxu0 %v5183
  %v5259 = vpop.f32.mrb[0].mxu0
  %v5260 = vadd.f32 0.0, %v5259
  %v5261 = vpop.f32.mrb[0].mxu0
  %v5262 = vpop.f32.mrb[0].mxu0
  %v5263 = vadd.f32 0.0, %v5262
  %v5264 = vpop.f32.mrb[0].mxu0
  %5265 = vdwg.mxu0
  %v5266 = vadd.f32 %v5065, %v5220
  %v5267 = vadd.f32 %v5066, %v5223
  %v5268 = vadd.f32 %v5067, %v5228
  %v5269 = vadd.f32 %v5068, %v5231
  %v5270 = vadd.f32 %v5069, %v5236
  %v5271 = vadd.f32 %v5070, %v5239
  %v5272 = vadd.f32 %v5071, %v5244
  %v5273 = vadd.f32 %v5072, %v5247
  %v5274 = vadd.f32 %v5073, %v5252
  %v5275 = vadd.f32 %v5074, %v5255
  %v5276 = vadd.f32 %v5075, %v5260
  %v5277 = vadd.f32 %v5076, %v5263
  %v5278 = vld [vmem:[%s0 + $0xc] sm:$0xf]
  %v5279 = vld [vmem:[%s0 + $0x10] sm:$0xf]
  %v5280 = vld [vmem:[%s0 + $0x14] sm:$0xf]
  %v5281 = vld [vmem:[%s0 + $0x18] sm:$0xf]
  %v5282 = vld [vmem:[%s0 + $0x1c] sm:$0xf]
  %v5283 = vld [vmem:[%s0 + $0x20] sm:$0xf]
  %v5284 = vld [vmem:[%s0 + $0x24] sm:$0xf]
  %v5285 = vld [vmem:[%s0 + $0x28] sm:$0xf]
  %v5286 = vld [vmem:[%s0 + $0x2c] sm:$0xf]
  %v5287 = vld [vmem:[%s0 + $0x30] sm:$0xf]
  %v5288 = vld [vmem:[%s0 + $0x34] sm:$0xf]
  %v5289 = vld [vmem:[%s0 + $0x38] sm:$0xf]
  %v5290 = vld [vmem:[%s1228 + $0x8] sm:$0xf]
  %v5291 = vld [vmem:[%s1228 + $0x14] sm:$0xf]
  %v5292 = vld [vmem:[%s1228 + $0x20] sm:$0xf]
  %v5293 = vld [vmem:[%s1228 + $0x2c] sm:$0xf]
  %v5294 = vld [vmem:[%s1228 + $0x38] sm:$0xf]
  %v5295 = vld [vmem:[%s1228 + $0x44] sm:$0xf]
  %v5296 = vld [vmem:[%s1228 + $0x50] sm:$0xf]
  %v5297 = vld [vmem:[%s1228 + $0x5c] sm:$0xf]
  %v5298 = vld [vmem:[%s1228 + $0x68] sm:$0xf]
  %v5299 = vld [vmem:[%s1228 + $0x74] sm:$0xf]
  %v5300 = vld [vmem:[%s1228 + $0x80] sm:$0xf]
  %v5301 = vld [vmem:[%s1228 + $0x8c] sm:$0xf]
  %v5314 = vunpack.c.l.b16 %v5278
  %v5315 = vunpack.c.l.b16 %v5279
  %v5316 = vunpack.c.l.b16 %v5280
  %v5317 = vunpack.c.l.b16 %v5281
  %v5318 = vunpack.c.l.b16 %v5282
  %v5319 = vunpack.c.l.b16 %v5283
  %v5320 = vunpack.c.l.b16 %v5284
  %v5321 = vunpack.c.l.b16 %v5285
  %v5322 = vunpack.c.l.b16 %v5286
  %v5323 = vunpack.c.l.b16 %v5287
  %v5324 = vunpack.c.l.b16 %v5288
  %v5325 = vunpack.c.l.b16 %v5289
  %v5326 = vpack.c.b16 %v5315, %v5314
  %v5327 = vpack.c.b16 %v5317, %v5316
  %v5328 = vpack.c.b16 %v5319, %v5318
  %v5329 = vpack.c.b16 %v5321, %v5320
  %v5330 = vpack.c.b16 %v5323, %v5322
  %v5331 = vpack.c.b16 %v5325, %v5324
  %v5344 = vunpack.c.l.b16 %v5290
  %v5345 = vunpack.c.l.b16 %v5291
  %v5346 = vunpack.c.l.b16 %v5292
  %v5347 = vunpack.c.l.b16 %v5293
  %v5348 = vunpack.c.l.b16 %v5294
  %v5349 = vunpack.c.l.b16 %v5295
  %v5350 = vunpack.c.l.b16 %v5296
  %v5351 = vunpack.c.l.b16 %v5297
  %v5352 = vunpack.c.l.b16 %v5298
  %v5353 = vunpack.c.l.b16 %v5299
  %v5354 = vunpack.c.l.b16 %v5300
  %v5355 = vunpack.c.l.b16 %v5301
  %v5356 = vpack.c.b16 %v5345, %v5344
  %v5357 = vpack.c.b16 %v5347, %v5346
  %v5358 = vpack.c.b16 %v5349, %v5348
  %v5359 = vpack.c.b16 %v5351, %v5350
  %v5360 = vpack.c.b16 %v5353, %v5352
  %v5361 = vpack.c.b16 %v5355, %v5354
  %v5369 = vsel %vm143, %v5326, 0
  %v5372 = vsel %vm143, %v5327, 0
  %v5375 = vsel %vm143, %v5328, 0
  %v5378 = vsel %vm143, %v5329, 0
  %v5381 = vsel %vm143, %v5330, 0
  %v5384 = vsel %vm143, %v5331, 0
  %5386 = vmatprep.subr.bf16.mxu0 0
  %5387 = vmatpush1.bf16.msra.mxu0 %v5356
  %5388 = vmatprep.subr.bf16.mxu0 0
  %5389 = vmatpush1.bf16.msra.mxu0 %v5357
  %5390 = vmatprep.subr.bf16.mxu0 0
  %5391 = vmatpush1.bf16.msra.mxu0 %v5358
  %5392 = vmatprep.subr.bf16.mxu0 0
  %5393 = vmatpush1.bf16.msra.mxu0 %v5359
  %5394 = vmatprep.subr.bf16.mxu0 0
  %5395 = vmatpush1.bf16.msra.mxu0 %v5360
  %5396 = vmatprep.subr.bf16.mxu0 0
  %5397 = vmatpush1.bf16.msra.mxu0 %v5361
  %5398 = vmatprep.subr.bf16.mxu0 0
  %5399 = vmatpush1.bf16.msra.mxu0 0
  %5400 = vmatprep.subr.bf16.mxu0 0
  %5401 = vmatpush1.bf16.msra.mxu0 0
  %5402 = vmatprep.subr.bf16.mxu0 0
  %5403 = vmatpush1.bf16.msra.mxu0 0
  %5404 = vmatprep.subr.bf16.mxu0 0
  %5405 = vmatpush1.bf16.msra.mxu0 0
  %5406 = vmatprep.subr.bf16.mxu0 0
  %5407 = vmatpush1.bf16.msra.mxu0 0
  %5408 = vmatprep.subr.bf16.mxu0 0
  %5409 = vmatpush1.bf16.msra.mxu0 0
  %5410 = vmatprep.subr.bf16.mxu0 0
  %5411 = vmatpush1.bf16.msra.mxu0 0
  %5412 = vmatprep.subr.bf16.mxu0 0
  %5413 = vmatpush1.bf16.msra.mxu0 0
  %5414 = vmatprep.subr.bf16.mxu0 0
  %5415 = vmatpush1.bf16.msra.mxu0 0
  %5416 = vmatprep.subr.bf16.mxu0 0
  %5417 = vmatpush1.bf16.msra.mxu0 0
  %5418 = vmatprep.mubr.bf16.mxu0 0
  %5419 = vmatmul.mubr.bf16.gmra.mrb[0].mxu0 %v5369
  %v5420 = vpop.f32.mrb[0].mxu0
  %v5421 = vadd.f32 0.0, %v5420
  %v5422 = vpop.f32.mrb[0].mxu0
  %v5423 = vpop.f32.mrb[0].mxu0
  %v5424 = vadd.f32 0.0, %v5423
  %v5425 = vpop.f32.mrb[0].mxu0
  %5426 = vmatprep.mubr.bf16.mxu0 0
  %5427 = vmatmul.mubr.bf16.gmra.mrb[0].mxu0 %v5372
  %v5428 = vpop.f32.mrb[0].mxu0
  %v5429 = vadd.f32 0.0, %v5428
  %v5430 = vpop.f32.mrb[0].mxu0
  %v5431 = vpop.f32.mrb[0].mxu0
  %v5432 = vadd.f32 0.0, %v5431
  %v5433 = vpop.f32.mrb[0].mxu0
  %5434 = vmatprep.mubr.bf16.mxu0 0
  %5435 = vmatmul.mubr.bf16.gmra.mrb[0].mxu0 %v5375
  %v5436 = vpop.f32.mrb[0].mxu0
  %v5437 = vadd.f32 0.0, %v5436
  %v5438 = vpop.f32.mrb[0].mxu0
  %v5439 = vpop.f32.mrb[0].mxu0
  %v5440 = vadd.f32 0.0, %v5439
  %v5441 = vpop.f32.mrb[0].mxu0
  %5442 = vmatprep.mubr.bf16.mxu0 0
  %5443 = vmatmul.mubr.bf16.gmra.mrb[0].mxu0 %v5378
  %v5444 = vpop.f32.mrb[0].mxu0
  %v5445 = vadd.f32 0.0, %v5444
  %v5446 = vpop.f32.mrb[0].mxu0
  %v5447 = vpop.f32.mrb[0].mxu0
  %v5448 = vadd.f32 0.0, %v5447
  %v5449 = vpop.f32.mrb[0].mxu0
  %5450 = vmatprep.mubr.bf16.mxu0 0
  %5451 = vmatmul.mubr.bf16.gmra.mrb[0].mxu0 %v5381
  %v5452 = vpop.f32.mrb[0].mxu0
  %v5453 = vadd.f32 0.0, %v5452
  %v5454 = vpop.f32.mrb[0].mxu0
  %v5455 = vpop.f32.mrb[0].mxu0
  %v5456 = vadd.f32 0.0, %v5455
  %v5457 = vpop.f32.mrb[0].mxu0
  %5458 = vmatprep.mubr.bf16.mxu0 0
  %5459 = vmatmul.mubr.bf16.gmra.mrb[0].mxu0 %v5384
  %v5460 = vpop.f32.mrb[0].mxu0
  %v5461 = vadd.f32 0.0, %v5460
  %v5462 = vpop.f32.mrb[0].mxu0
  %v5463 = vpop.f32.mrb[0].mxu0
  %v5464 = vadd.f32 0.0, %v5463
  %v5465 = vpop.f32.mrb[0].mxu0
  %5466 = vdwg.mxu0
  %v5467 = vadd.f32 %v5266, %v5421
  %v5468 = vadd.f32 %v5267, %v5424
  %v5469 = vadd.f32 %v5268, %v5429
  %v5470 = vadd.f32 %v5269, %v5432
  %v5471 = vadd.f32 %v5270, %v5437
  %v5472 = vadd.f32 %v5271, %v5440
  %v5473 = vadd.f32 %v5272, %v5445
  %v5474 = vadd.f32 %v5273, %v5448
  %v5475 = vadd.f32 %v5274, %v5453
  %v5476 = vadd.f32 %v5275, %v5456
  %v5477 = vadd.f32 %v5276, %v5461
  %v5478 = vadd.f32 %v5277, %v5464
  %v5479 = vld [vmem:[%s51 + $0xc] sm:$0xf]
  %v5480 = vld [vmem:[%s51 + $0x10] sm:$0xf]
  %v5481 = vld [vmem:[%s51 + $0x14] sm:$0xf]
  %v5482 = vld [vmem:[%s51 + $0x18] sm:$0xf]
  %v5483 = vld [vmem:[%s51 + $0x1c] sm:$0xf]
  %v5484 = vld [vmem:[%s51 + $0x20] sm:$0xf]
  %v5485 = vld [vmem:[%s51 + $0x24] sm:$0xf]
  %v5486 = vld [vmem:[%s51 + $0x28] sm:$0xf]
  %v5487 = vld [vmem:[%s51 + $0x2c] sm:$0xf]
  %v5488 = vld [vmem:[%s51 + $0x30] sm:$0xf]
  %v5489 = vld [vmem:[%s51 + $0x34] sm:$0xf]
  %v5490 = vld [vmem:[%s51 + $0x38] sm:$0xf]
  %v5491 = vld [vmem:[%s1430 + $0x8] sm:$0xf]
  %v5492 = vld [vmem:[%s1430 + $0x14] sm:$0xf]
  %v5493 = vld [vmem:[%s1430 + $0x20] sm:$0xf]
  %v5494 = vld [vmem:[%s1430 + $0x2c] sm:$0xf]
  %v5495 = vld [vmem:[%s1430 + $0x38] sm:$0xf]
  %v5496 = vld [vmem:[%s1430 + $0x44] sm:$0xf]
  %v5497 = vld [vmem:[%s1430 + $0x50] sm:$0xf]
  %v5498 = vld [vmem:[%s1430 + $0x5c] sm:$0xf]
  %v5499 = vld [vmem:[%s1430 + $0x68] sm:$0xf]
  %v5500 = vld [vmem:[%s1430 + $0x74] sm:$0xf]
  %v5501 = vld [vmem:[%s1430 + $0x80] sm:$0xf]
  %v5502 = vld [vmem:[%s1430 + $0x8c] sm:$0xf]
  %v5515 = vunpack.c.l.b16 %v5479
  %v5516 = vunpack.c.l.b16 %v5480
  %v5517 = vunpack.c.l.b16 %v5481
  %v5518 = vunpack.c.l.b16 %v5482
  %v5519 = vunpack.c.l.b16 %v5483
  %v5520 = vunpack.c.l.b16 %v5484
  %v5521 = vunpack.c.l.b16 %v5485
  %v5522 = vunpack.c.l.b16 %v5486
  %v5523 = vunpack.c.l.b16 %v5487
  %v5524 = vunpack.c.l.b16 %v5488
  %v5525 = vunpack.c.l.b16 %v5489
  %v5526 = vunpack.c.l.b16 %v5490
  %v5527 = vpack.c.b16 %v5516, %v5515
  %v5528 = vpack.c.b16 %v5518, %v5517
  %v5529 = vpack.c.b16 %v5520, %v5519
  %v5530 = vpack.c.b16 %v5522, %v5521
  %v5531 = vpack.c.b16 %v5524, %v5523
  %v5532 = vpack.c.b16 %v5526, %v5525
  %v5545 = vunpack.c.l.b16 %v5491
  %v5546 = vunpack.c.l.b16 %v5492
  %v5547 = vunpack.c.l.b16 %v5493
  %v5548 = vunpack.c.l.b16 %v5494
  %v5549 = vunpack.c.l.b16 %v5495
  %v5550 = vunpack.c.l.b16 %v5496
  %v5551 = vunpack.c.l.b16 %v5497
  %v5552 = vunpack.c.l.b16 %v5498
  %v5553 = vunpack.c.l.b16 %v5499
  %v5554 = vunpack.c.l.b16 %v5500
  %v5555 = vunpack.c.l.b16 %v5501
  %v5556 = vunpack.c.l.b16 %v5502
  %v5557 = vpack.c.b16 %v5546, %v5545
  %v5558 = vpack.c.b16 %v5548, %v5547
  %v5559 = vpack.c.b16 %v5550, %v5549
  %v5560 = vpack.c.b16 %v5552, %v5551
  %v5561 = vpack.c.b16 %v5554, %v5553
  %v5562 = vpack.c.b16 %v5556, %v5555
  %v5570 = vsel %vm143, %v5527, 0
  %v5573 = vsel %vm143, %v5528, 0
  %v5576 = vsel %vm143, %v5529, 0
  %v5579 = vsel %vm143, %v5530, 0
  %v5582 = vsel %vm143, %v5531, 0
  %v5585 = vsel %vm143, %v5532, 0
  %5587 = vmatprep.subr.bf16.mxu0 0
  %5588 = vmatpush1.bf16.msra.mxu0 %v5557
  %5589 = vmatprep.subr.bf16.mxu0 0
  %5590 = vmatpush1.bf16.msra.mxu0 %v5558
  %5591 = vmatprep.subr.bf16.mxu0 0
  %5592 = vmatpush1.bf16.msra.mxu0 %v5559
  %5593 = vmatprep.subr.bf16.mxu0 0
  %5594 = vmatpush1.bf16.msra.mxu0 %v5560
  %5595 = vmatprep.subr.bf16.mxu0 0
  %5596 = vmatpush1.bf16.msra.mxu0 %v5561
  %5597 = vmatprep.subr.bf16.mxu0 0
  %5598 = vmatpush1.bf16.msra.mxu0 %v5562
  %5599 = vmatprep.subr.bf16.mxu0 0
  %5600 = vmatpush1.bf16.msra.mxu0 0
  %5601 = vmatprep.subr.bf16.mxu0 0
  %5602 = vmatpush1.bf16.msra.mxu0 0
  %5603 = vmatprep.subr.bf16.mxu0 0
  %5604 = vmatpush1.bf16.msra.mxu0 0
  %5605 = vmatprep.subr.bf16.mxu0 0
  %5606 = vmatpush1.bf16.msra.mxu0 0
  %5607 = vmatprep.subr.bf16.mxu0 0
  %5608 = vmatpush1.bf16.msra.mxu0 0
  %5609 = vmatprep.subr.bf16.mxu0 0
  %5610 = vmatpush1.bf16.msra.mxu0 0
  %5611 = vmatprep.subr.bf16.mxu0 0
  %5612 = vmatpush1.bf16.msra.mxu0 0
  %5613 = vmatprep.subr.bf16.mxu0 0
  %5614 = vmatpush1.bf16.msra.mxu0 0
  %5615 = vmatprep.subr.bf16.mxu0 0
  %5616 = vmatpush1.bf16.msra.mxu0 0
  %5617 = vmatprep.subr.bf16.mxu0 0
  %5618 = vmatpush1.bf16.msra.mxu0 0
  %5619 = vmatprep.mubr.bf16.mxu0 0
  %5620 = vmatmul.mubr.bf16.gmra.mrb[0].mxu0 %v5570
  %v5621 = vpop.f32.mrb[0].mxu0
  %v5622 = vadd.f32 0.0, %v5621
  %v5623 = vpop.f32.mrb[0].mxu0
  %v5624 = vpop.f32.mrb[0].mxu0
  %v5625 = vadd.f32 0.0, %v5624
  %v5626 = vpop.f32.mrb[0].mxu0
  %5627 = vmatprep.mubr.bf16.mxu0 0
  %5628 = vmatmul.mubr.bf16.gmra.mrb[0].mxu0 %v5573
  %v5629 = vpop.f32.mrb[0].mxu0
  %v5630 = vadd.f32 0.0, %v5629
  %v5631 = vpop.f32.mrb[0].mxu0
  %v5632 = vpop.f32.mrb[0].mxu0
  %v5633 = vadd.f32 0.0, %v5632
  %v5634 = vpop.f32.mrb[0].mxu0
  %5635 = vmatprep.mubr.bf16.mxu0 0
  %5636 = vmatmul.mubr.bf16.gmra.mrb[0].mxu0 %v5576
  %v5637 = vpop.f32.mrb[0].mxu0
  %v5638 = vadd.f32 0.0, %v5637
  %v5639 = vpop.f32.mrb[0].mxu0
  %v5640 = vpop.f32.mrb[0].mxu0
  %v5641 = vadd.f32 0.0, %v5640
  %v5642 = vpop.f32.mrb[0].mxu0
  %5643 = vmatprep.mubr.bf16.mxu0 0
  %5644 = vmatmul.mubr.bf16.gmra.mrb[0].mxu0 %v5579
  %v5645 = vpop.f32.mrb[0].mxu0
  %v5646 = vadd.f32 0.0, %v5645
  %v5647 = vpop.f32.mrb[0].mxu0
  %v5648 = vpop.f32.mrb[0].mxu0
  %v5649 = vadd.f32 0.0, %v5648
  %v5650 = vpop.f32.mrb[0].mxu0
  %5651 = vmatprep.mubr.bf16.mxu0 0
  %5652 = vmatmul.mubr.bf16.gmra.mrb[0].mxu0 %v5582
  %v5653 = vpop.f32.mrb[0].mxu0
  %v5654 = vadd.f32 0.0, %v5653
  %v5655 = vpop.f32.mrb[0].mxu0
  %v5656 = vpop.f32.mrb[0].mxu0
  %v5657 = vadd.f32 0.0, %v5656
  %v5658 = vpop.f32.mrb[0].mxu0
  %5659 = vmatprep.mubr.bf16.mxu0 0
  %5660 = vmatmul.mubr.bf16.gmra.mrb[0].mxu0 %v5585
  %v5661 = vpop.f32.mrb[0].mxu0
  %v5662 = vadd.f32 0.0, %v5661
  %v5663 = vpop.f32.mrb[0].mxu0
  %v5664 = vpop.f32.mrb[0].mxu0
  %v5665 = vadd.f32 0.0, %v5664
  %v5666 = vpop.f32.mrb[0].mxu0
  %5667 = vdwg.mxu0
  %v5668 = vadd.f32 %v5467, %v5622
  %v5669 = vadd.f32 %v5468, %v5625
  %v5670 = vadd.f32 %v5469, %v5630
  %v5671 = vadd.f32 %v5470, %v5633
  %v5672 = vadd.f32 %v5471, %v5638
  %v5673 = vadd.f32 %v5472, %v5641
  %v5674 = vadd.f32 %v5473, %v5646
  %v5675 = vadd.f32 %v5474, %v5649
  %v5676 = vadd.f32 %v5475, %v5654
  %v5677 = vadd.f32 %v5476, %v5657
  %v5678 = vadd.f32 %v5477, %v5662
  %v5679 = vadd.f32 %v5478, %v5665
  %v5680 = vld [vmem:[%s0 + $0x10] sm:$0xf]
  %v5681 = vld [vmem:[%s0 + $0x14] sm:$0xf]
  %v5682 = vld [vmem:[%s0 + $0x18] sm:$0xf]
  %v5683 = vld [vmem:[%s0 + $0x1c] sm:$0xf]
  %v5684 = vld [vmem:[%s0 + $0x20] sm:$0xf]
  %v5685 = vld [vmem:[%s0 + $0x24] sm:$0xf]
  %v5686 = vld [vmem:[%s0 + $0x28] sm:$0xf]
  %v5687 = vld [vmem:[%s0 + $0x2c] sm:$0xf]
  %v5688 = vld [vmem:[%s0 + $0x30] sm:$0xf]
  %v5689 = vld [vmem:[%s0 + $0x34] sm:$0xf]
  %v5690 = vld [vmem:[%s0 + $0x38] sm:$0xf]
  %v5691 = vld [vmem:[%s0 + $0x3c] sm:$0xf]
  %v5692 = vld [vmem:[%s1632 + $0x8] sm:$0xf]
  %v5693 = vld [vmem:[%s1632 + $0x14] sm:$0xf]
  %v5694 = vld [vmem:[%s1632 + $0x20] sm:$0xf]
  %v5695 = vld [vmem:[%s1632 + $0x2c] sm:$0xf]
  %v5696 = vld [vmem:[%s1632 + $0x38] sm:$0xf]
  %v5697 = vld [vmem:[%s1632 + $0x44] sm:$0xf]
  %v5698 = vld [vmem:[%s1632 + $0x50] sm:$0xf]
  %v5699 = vld [vmem:[%s1632 + $0x5c] sm:$0xf]
  %v5700 = vld [vmem:[%s1632 + $0x68] sm:$0xf]
  %v5701 = vld [vmem:[%s1632 + $0x74] sm:$0xf]
  %v5702 = vld [vmem:[%s1632 + $0x80] sm:$0xf]
  %v5703 = vld [vmem:[%s1632 + $0x8c] sm:$0xf]
  %v5716 = vunpack.c.l.b16 %v5680
  %v5717 = vunpack.c.l.b16 %v5681
  %v5718 = vunpack.c.l.b16 %v5682
  %v5719 = vunpack.c.l.b16 %v5683
  %v5720 = vunpack.c.l.b16 %v5684
  %v5721 = vunpack.c.l.b16 %v5685
  %v5722 = vunpack.c.l.b16 %v5686
  %v5723 = vunpack.c.l.b16 %v5687
  %v5724 = vunpack.c.l.b16 %v5688
  %v5725 = vunpack.c.l.b16 %v5689
  %v5726 = vunpack.c.l.b16 %v5690
  %v5727 = vunpack.c.l.b16 %v5691
  %v5728 = vpack.c.b16 %v5717, %v5716
  %v5729 = vpack.c.b16 %v5719, %v5718
  %v5730 = vpack.c.b16 %v5721, %v5720
  %v5731 = vpack.c.b16 %v5723, %v5722
  %v5732 = vpack.c.b16 %v5725, %v5724
  %v5733 = vpack.c.b16 %v5727, %v5726
  %v5746 = vunpack.c.l.b16 %v5692
  %v5747 = vunpack.c.l.b16 %v5693
  %v5748 = vunpack.c.l.b16 %v5694
  %v5749 = vunpack.c.l.b16 %v5695
  %v5750 = vunpack.c.l.b16 %v5696
  %v5751 = vunpack.c.l.b16 %v5697
  %v5752 = vunpack.c.l.b16 %v5698
  %v5753 = vunpack.c.l.b16 %v5699
  %v5754 = vunpack.c.l.b16 %v5700
  %v5755 = vunpack.c.l.b16 %v5701
  %v5756 = vunpack.c.l.b16 %v5702
  %v5757 = vunpack.c.l.b16 %v5703
  %v5758 = vpack.c.b16 %v5747, %v5746
  %v5759 = vpack.c.b16 %v5749, %v5748
  %v5760 = vpack.c.b16 %v5751, %v5750
  %v5761 = vpack.c.b16 %v5753, %v5752
  %v5762 = vpack.c.b16 %v5755, %v5754
  %v5763 = vpack.c.b16 %v5757, %v5756
  %v5771 = vsel %vm143, %v5728, 0
  %v5774 = vsel %vm143, %v5729, 0
  %v5777 = vsel %vm143, %v5730, 0
  %v5780 = vsel %vm143, %v5731, 0
  %v5783 = vsel %vm143, %v5732, 0
  %v5786 = vsel %vm143, %v5733, 0
  %5788 = vmatprep.subr.bf16.mxu0 0
  %5789 = vmatpush1.bf16.msra.mxu0 %v5758
  %5790 = vmatprep.subr.bf16.mxu0 0
  %5791 = vmatpush1.bf16.msra.mxu0 %v5759
  %5792 = vmatprep.subr.bf16.mxu0 0
  %5793 = vmatpush1.bf16.msra.mxu0 %v5760
  %5794 = vmatprep.subr.bf16.mxu0 0
  %5795 = vmatpush1.bf16.msra.mxu0 %v5761
  %5796 = vmatprep.subr.bf16.mxu0 0
  %5797 = vmatpush1.bf16.msra.mxu0 %v5762
  %5798 = vmatprep.subr.bf16.mxu0 0
  %5799 = vmatpush1.bf16.msra.mxu0 %v5763
  %5800 = vmatprep.subr.bf16.mxu0 0
  %5801 = vmatpush1.bf16.msra.mxu0 0
  %5802 = vmatprep.subr.bf16.mxu0 0
  %5803 = vmatpush1.bf16.msra.mxu0 0
  %5804 = vmatprep.subr.bf16.mxu0 0
  %5805 = vmatpush1.bf16.msra.mxu0 0
  %5806 = vmatprep.subr.bf16.mxu0 0
  %5807 = vmatpush1.bf16.msra.mxu0 0
  %5808 = vmatprep.subr.bf16.mxu0 0
  %5809 = vmatpush1.bf16.msra.mxu0 0
  %5810 = vmatprep.subr.bf16.mxu0 0
  %5811 = vmatpush1.bf16.msra.mxu0 0
  %5812 = vmatprep.subr.bf16.mxu0 0
  %5813 = vmatpush1.bf16.msra.mxu0 0
  %5814 = vmatprep.subr.bf16.mxu0 0
  %5815 = vmatpush1.bf16.msra.mxu0 0
  %5816 = vmatprep.subr.bf16.mxu0 0
  %5817 = vmatpush1.bf16.msra.mxu0 0
  %5818 = vmatprep.subr.bf16.mxu0 0
  %5819 = vmatpush1.bf16.msra.mxu0 0
  %5820 = vmatprep.mubr.bf16.mxu0 0
  %5821 = vmatmul.mubr.bf16.gmra.mrb[0].mxu0 %v5771
  %v5822 = vpop.f32.mrb[0].mxu0
  %v5823 = vadd.f32 0.0, %v5822
  %v5824 = vpop.f32.mrb[0].mxu0
  %v5825 = vpop.f32.mrb[0].mxu0
  %v5826 = vadd.f32 0.0, %v5825
  %v5827 = vpop.f32.mrb[0].mxu0
  %5828 = vmatprep.mubr.bf16.mxu0 0
  %5829 = vmatmul.mubr.bf16.gmra.mrb[0].mxu0 %v5774
  %v5830 = vpop.f32.mrb[0].mxu0
  %v5831 = vadd.f32 0.0, %v5830
  %v5832 = vpop.f32.mrb[0].mxu0
  %v5833 = vpop.f32.mrb[0].mxu0
  %v5834 = vadd.f32 0.0, %v5833
  %v5835 = vpop.f32.mrb[0].mxu0
  %5836 = vmatprep.mubr.bf16.mxu0 0
  %5837 = vmatmul.mubr.bf16.gmra.mrb[0].mxu0 %v5777
  %v5838 = vpop.f32.mrb[0].mxu0
  %v5839 = vadd.f32 0.0, %v5838
  %v5840 = vpop.f32.mrb[0].mxu0
  %v5841 = vpop.f32.mrb[0].mxu0
  %v5842 = vadd.f32 0.0, %v5841
  %v5843 = vpop.f32.mrb[0].mxu0
  %5844 = vmatprep.mubr.bf16.mxu0 0
  %5845 = vmatmul.mubr.bf16.gmra.mrb[0].mxu0 %v5780
  %v5846 = vpop.f32.mrb[0].mxu0
  %v5847 = vadd.f32 0.0, %v5846
  %v5848 = vpop.f32.mrb[0].mxu0
  %v5849 = vpop.f32.mrb[0].mxu0
  %v5850 = vadd.f32 0.0, %v5849
  %v5851 = vpop.f32.mrb[0].mxu0
  %5852 = vmatprep.mubr.bf16.mxu0 0
  %5853 = vmatmul.mubr.bf16.gmra.mrb[0].mxu0 %v5783
  %v5854 = vpop.f32.mrb[0].mxu0
  %v5855 = vadd.f32 0.0, %v5854
  %v5856 = vpop.f32.mrb[0].mxu0
  %v5857 = vpop.f32.mrb[0].mxu0
  %v5858 = vadd.f32 0.0, %v5857
  %v5859 = vpop.f32.mrb[0].mxu0
  %5860 = vmatprep.mubr.bf16.mxu0 0
  %5861 = vmatmul.mubr.bf16.gmra.mrb[0].mxu0 %v5786
  %v5862 = vpop.f32.mrb[0].mxu0
  %v5863 = vadd.f32 0.0, %v5862
  %v5864 = vpop.f32.mrb[0].mxu0
  %v5865 = vpop.f32.mrb[0].mxu0
  %v5866 = vadd.f32 0.0, %v5865
  %v5867 = vpop.f32.mrb[0].mxu0
  %5868 = vdwg.mxu0
  %v5869 = vadd.f32 %v5668, %v5823
  %v5870 = vadd.f32 %v5669, %v5826
  %v5871 = vadd.f32 %v5670, %v5831
  %v5872 = vadd.f32 %v5671, %v5834
  %v5873 = vadd.f32 %v5672, %v5839
  %v5874 = vadd.f32 %v5673, %v5842
  %v5875 = vadd.f32 %v5674, %v5847
  %v5876 = vadd.f32 %v5675, %v5850
  %v5877 = vadd.f32 %v5676, %v5855
  %v5878 = vadd.f32 %v5677, %v5858
  %v5879 = vadd.f32 %v5678, %v5863
  %v5880 = vadd.f32 %v5679, %v5866
  %v5881 = vld [vmem:[%s51 + $0x10] sm:$0xf]
  %v5882 = vld [vmem:[%s51 + $0x14] sm:$0xf]
  %v5883 = vld [vmem:[%s51 + $0x18] sm:$0xf]
  %v5884 = vld [vmem:[%s51 + $0x1c] sm:$0xf]
  %v5885 = vld [vmem:[%s51 + $0x20] sm:$0xf]
  %v5886 = vld [vmem:[%s51 + $0x24] sm:$0xf]
  %v5887 = vld [vmem:[%s51 + $0x28] sm:$0xf]
  %v5888 = vld [vmem:[%s51 + $0x2c] sm:$0xf]
  %v5889 = vld [vmem:[%s51 + $0x30] sm:$0xf]
  %v5890 = vld [vmem:[%s51 + $0x34] sm:$0xf]
  %v5891 = vld [vmem:[%s51 + $0x38] sm:$0xf]
  %v5892 = vld [vmem:[%s51 + $0x3c] sm:$0xf]
  %v5893 = vld [vmem:[%s1834 + $0x8] sm:$0xf]
  %v5894 = vld [vmem:[%s1834 + $0x14] sm:$0xf]
  %v5895 = vld [vmem:[%s1834 + $0x20] sm:$0xf]
  %v5896 = vld [vmem:[%s1834 + $0x2c] sm:$0xf]
  %v5897 = vld [vmem:[%s1834 + $0x38] sm:$0xf]
  %v5898 = vld [vmem:[%s1834 + $0x44] sm:$0xf]
  %v5899 = vld [vmem:[%s1834 + $0x50] sm:$0xf]
  %v5900 = vld [vmem:[%s1834 + $0x5c] sm:$0xf]
  %v5901 = vld [vmem:[%s1834 + $0x68] sm:$0xf]
  %v5902 = vld [vmem:[%s1834 + $0x74] sm:$0xf]
  %v5903 = vld [vmem:[%s1834 + $0x80] sm:$0xf]
  %v5904 = vld [vmem:[%s1834 + $0x8c] sm:$0xf]
  %v5917 = vunpack.c.l.b16 %v5881
  %v5918 = vunpack.c.l.b16 %v5882
  %v5919 = vunpack.c.l.b16 %v5883
  %v5920 = vunpack.c.l.b16 %v5884
  %v5921 = vunpack.c.l.b16 %v5885
  %v5922 = vunpack.c.l.b16 %v5886
  %v5923 = vunpack.c.l.b16 %v5887
  %v5924 = vunpack.c.l.b16 %v5888
  %v5925 = vunpack.c.l.b16 %v5889
  %v5926 = vunpack.c.l.b16 %v5890
  %v5927 = vunpack.c.l.b16 %v5891
  %v5928 = vunpack.c.l.b16 %v5892
  %v5929 = vpack.c.b16 %v5918, %v5917
  %v5930 = vpack.c.b16 %v5920, %v5919
  %v5931 = vpack.c.b16 %v5922, %v5921
  %v5932 = vpack.c.b16 %v5924, %v5923
  %v5933 = vpack.c.b16 %v5926, %v5925
  %v5934 = vpack.c.b16 %v5928, %v5927
  %v5947 = vunpack.c.l.b16 %v5893
  %v5948 = vunpack.c.l.b16 %v5894
  %v5949 = vunpack.c.l.b16 %v5895
  %v5950 = vunpack.c.l.b16 %v5896
  %v5951 = vunpack.c.l.b16 %v5897
  %v5952 = vunpack.c.l.b16 %v5898
  %v5953 = vunpack.c.l.b16 %v5899
  %v5954 = vunpack.c.l.b16 %v5900
  %v5955 = vunpack.c.l.b16 %v5901
  %v5956 = vunpack.c.l.b16 %v5902
  %v5957 = vunpack.c.l.b16 %v5903
  %v5958 = vunpack.c.l.b16 %v5904
  %v5959 = vpack.c.b16 %v5948, %v5947
  %v5960 = vpack.c.b16 %v5950, %v5949
  %v5961 = vpack.c.b16 %v5952, %v5951
  %v5962 = vpack.c.b16 %v5954, %v5953
  %v5963 = vpack.c.b16 %v5956, %v5955
  %v5964 = vpack.c.b16 %v5958, %v5957
  %v5972 = vsel %vm143, %v5929, 0
  %v5975 = vsel %vm143, %v5930, 0
  %v5978 = vsel %vm143, %v5931, 0
  %v5981 = vsel %vm143, %v5932, 0
  %v5984 = vsel %vm143, %v5933, 0
  %v5987 = vsel %vm143, %v5934, 0
  %5989 = vmatprep.subr.bf16.mxu0 0
  %5990 = vmatpush1.bf16.msra.mxu0 %v5959
  %5991 = vmatprep.subr.bf16.mxu0 0
  %5992 = vmatpush1.bf16.msra.mxu0 %v5960
  %5993 = vmatprep.subr.bf16.mxu0 0
  %5994 = vmatpush1.bf16.msra.mxu0 %v5961
  %5995 = vmatprep.subr.bf16.mxu0 0
  %5996 = vmatpush1.bf16.msra.mxu0 %v5962
  %5997 = vmatprep.subr.bf16.mxu0 0
  %5998 = vmatpush1.bf16.msra.mxu0 %v5963
  %5999 = vmatprep.subr.bf16.mxu0 0
  %6000 = vmatpush1.bf16.msra.mxu0 %v5964
  %6001 = vmatprep.subr.bf16.mxu0 0
  %6002 = vmatpush1.bf16.msra.mxu0 0
  %6003 = vmatprep.subr.bf16.mxu0 0
  %6004 = vmatpush1.bf16.msra.mxu0 0
  %6005 = vmatprep.subr.bf16.mxu0 0
  %6006 = vmatpush1.bf16.msra.mxu0 0
  %6007 = vmatprep.subr.bf16.mxu0 0
  %6008 = vmatpush1.bf16.msra.mxu0 0
  %6009 = vmatprep.subr.bf16.mxu0 0
  %6010 = vmatpush1.bf16.msra.mxu0 0
  %6011 = vmatprep.subr.bf16.mxu0 0
  %6012 = vmatpush1.bf16.msra.mxu0 0
  %6013 = vmatprep.subr.bf16.mxu0 0
  %6014 = vmatpush1.bf16.msra.mxu0 0
  %6015 = vmatprep.subr.bf16.mxu0 0
  %6016 = vmatpush1.bf16.msra.mxu0 0
  %6017 = vmatprep.subr.bf16.mxu0 0
  %6018 = vmatpush1.bf16.msra.mxu0 0
  %6019 = vmatprep.subr.bf16.mxu0 0
  %6020 = vmatpush1.bf16.msra.mxu0 0
  %6021 = vmatprep.mubr.bf16.mxu0 0
  %6022 = vmatmul.mubr.bf16.gmra.mrb[0].mxu0 %v5972
  %v6023 = vpop.f32.mrb[0].mxu0
  %v6024 = vadd.f32 0.0, %v6023
  %v6025 = vpop.f32.mrb[0].mxu0
  %v6026 = vpop.f32.mrb[0].mxu0
  %v6027 = vadd.f32 0.0, %v6026
  %v6028 = vpop.f32.mrb[0].mxu0
  %6029 = vmatprep.mubr.bf16.mxu0 0
  %6030 = vmatmul.mubr.bf16.gmra.mrb[0].mxu0 %v5975
  %v6031 = vpop.f32.mrb[0].mxu0
  %v6032 = vadd.f32 0.0, %v6031
  %v6033 = vpop.f32.mrb[0].mxu0
  %v6034 = vpop.f32.mrb[0].mxu0
  %v6035 = vadd.f32 0.0, %v6034
  %v6036 = vpop.f32.mrb[0].mxu0
  %6037 = vmatprep.mubr.bf16.mxu0 0
  %6038 = vmatmul.mubr.bf16.gmra.mrb[0].mxu0 %v5978
  %v6039 = vpop.f32.mrb[0].mxu0
  %v6040 = vadd.f32 0.0, %v6039
  %v6041 = vpop.f32.mrb[0].mxu0
  %v6042 = vpop.f32.mrb[0].mxu0
  %v6043 = vadd.f32 0.0, %v6042
  %v6044 = vpop.f32.mrb[0].mxu0
  %6045 = vmatprep.mubr.bf16.mxu0 0
  %6046 = vmatmul.mubr.bf16.gmra.mrb[0].mxu0 %v5981
  %v6047 = vpop.f32.mrb[0].mxu0
  %v6048 = vadd.f32 0.0, %v6047
  %v6049 = vpop.f32.mrb[0].mxu0
  %v6050 = vpop.f32.mrb[0].mxu0
  %v6051 = vadd.f32 0.0, %v6050
  %v6052 = vpop.f32.mrb[0].mxu0
  %6053 = vmatprep.mubr.bf16.mxu0 0
  %6054 = vmatmul.mubr.bf16.gmra.mrb[0].mxu0 %v5984
  %v6055 = vpop.f32.mrb[0].mxu0
  %v6056 = vadd.f32 0.0, %v6055
  %v6057 = vpop.f32.mrb[0].mxu0
  %v6058 = vpop.f32.mrb[0].mxu0
  %v6059 = vadd.f32 0.0, %v6058
  %v6060 = vpop.f32.mrb[0].mxu0
  %6061 = vmatprep.mubr.bf16.mxu0 0
  %6062 = vmatmul.mubr.bf16.gmra.mrb[0].mxu0 %v5987
  %v6063 = vpop.f32.mrb[0].mxu0
  %v6064 = vadd.f32 0.0, %v6063
  %v6065 = vpop.f32.mrb[0].mxu0
  %v6066 = vpop.f32.mrb[0].mxu0
  %v6067 = vadd.f32 0.0, %v6066
  %v6068 = vpop.f32.mrb[0].mxu0
  %6069 = vdwg.mxu0
  %v6070 = vadd.f32 %v5869, %v6024
  %v6071 = vadd.f32 %v5870, %v6027
  %v6072 = vadd.f32 %v5871, %v6032
  %v6073 = vadd.f32 %v5872, %v6035
  %v6074 = vadd.f32 %v5873, %v6040
  %v6075 = vadd.f32 %v5874, %v6043
  %v6076 = vadd.f32 %v5875, %v6048
  %v6077 = vadd.f32 %v5876, %v6051
  %v6078 = vadd.f32 %v5877, %v6056
  %v6079 = vadd.f32 %v5878, %v6059
  %v6080 = vadd.f32 %v5879, %v6064
  %v6081 = vadd.f32 %v5880, %v6067
  %v6082 = vld [vmem:[%s2 + $0x2] sm:$0x1]
  %v6084 = vlaneseq
  %v6085 = vshrl.u32 %v6084, 7
  %v6086 = vsub.s32 0, %v6085
  %v6087 = vrot.slane %v6082, %v6086
  %v6089 = vadd.f32 %v6070, %v6087
  %v6090 = vadd.f32 %v6071, %v6087
  %v6091 = vadd.f32 %v6072, %v6087
  %v6092 = vadd.f32 %v6073, %v6087
  %v6093 = vadd.f32 %v6074, %v6087
  %v6094 = vadd.f32 %v6075, %v6087
  %v6095 = vadd.f32 %v6076, %v6087
  %v6096 = vadd.f32 %v6077, %v6087
  %v6097 = vadd.f32 %v6078, %v6087
  %v6098 = vadd.f32 %v6079, %v6087
  %v6099 = vadd.f32 %v6080, %v6087
  %v6100 = vadd.f32 %v6081, %v6087
  %v6101 = vmax.f32 %v6089, 0.0
  %v6102 = vmax.f32 %v6090, 0.0
  %v6103 = vmax.f32 %v6091, 0.0
  %v6104 = vmax.f32 %v6092, 0.0
  %v6105 = vmax.f32 %v6093, 0.0
  %v6106 = vmax.f32 %v6094, 0.0
  %v6107 = vmax.f32 %v6095, 0.0
  %v6108 = vmax.f32 %v6096, 0.0
  %v6109 = vmax.f32 %v6097, 0.0
  %v6110 = vmax.f32 %v6098, 0.0
  %v6111 = vmax.f32 %v6099, 0.0
  %v6112 = vmax.f32 %v6100, 0.0
  %v6113 = vpack.c.bf16 %v6102, %v6101
  %v6114 = vpack.c.bf16 %v6104, %v6103
  %v6115 = vpack.c.bf16 %v6106, %v6105
  %v6116 = vpack.c.bf16 %v6108, %v6107
  %v6117 = vpack.c.bf16 %v6110, %v6109
  %v6118 = vpack.c.bf16 %v6112, %v6111
  %6119 = vst [vmem:[#allocation2 + $0x10] sm:$0xff] %v6113
  %6120 = vst [vmem:[#allocation2 + $0x28] sm:$0xff] %v6114
  %6121 = vst [vmem:[#allocation2 + $0x40] sm:$0xff] %v6115
  %6122 = vst [vmem:[#allocation2 + $0x58] sm:$0xff] %v6116
  %6123 = vst [vmem:[#allocation2 + $0x70] sm:$0xff] %v6117
  %6124 = vst [vmem:[#allocation2 + $0x88] sm:$0xff] %v6118
  %v6125 = vld [vmem:[#allocation2] sm:$0xff]
  %v6126 = vld [vmem:[#allocation2 + $0x8] sm:$0xff]
  %v6127 = vld [vmem:[#allocation2 + $0x10] sm:$0xff]
  %v6128 = vld [vmem:[#allocation2 + $0x18] sm:$0xff]
  %v6129 = vld [vmem:[#allocation2 + $0x20] sm:$0xff]
  %v6130 = vld [vmem:[#allocation2 + $0x28] sm:$0xff]
  %v6131 = vld [vmem:[#allocation2 + $0x30] sm:$0xff]
  %v6132 = vld [vmem:[#allocation2 + $0x38] sm:$0xff]
  %v6133 = vld [vmem:[#allocation2 + $0x40] sm:$0xff]
  %v6134 = vld [vmem:[%s3] sm:$0xff]
  %v6135 = vld [vmem:[%s3 + $0x8] sm:$0xff]
  %v6136 = vld [vmem:[%s3 + $0x10] sm:$0xff]
  %v6137 = vld [vmem:[%s3 + $0x18] sm:$0xff]
  %v6138 = vld [vmem:[%s3 + $0x20] sm:$0xff]
  %v6139 = vld [vmem:[%s3 + $0x28] sm:$0xff]
  %v6140 = vld [vmem:[%s3 + $0x30] sm:$0xff]
  %v6141 = vld [vmem:[%s3 + $0x38] sm:$0xff]
  %v6142 = vld [vmem:[%s3 + $0x40] sm:$0xff]
  %v6143 = vld [vmem:[%s3 + $0x48] sm:$0xff]
  %v6144 = vld [vmem:[%s3 + $0x50] sm:$0xff]
  %v6145 = vld [vmem:[%s3 + $0x58] sm:$0xff]
  %v6146 = vld [vmem:[%s3 + $0x60] sm:$0xff]
  %v6147 = vld [vmem:[%s3 + $0x68] sm:$0xff]
  %v6148 = vld [vmem:[%s3 + $0x70] sm:$0xff]
  %v6149 = vld [vmem:[%s3 + $0x78] sm:$0xff]
  %v6150 = vld [vmem:[%s3 + $0x80] sm:$0xff]
  %v6151 = vld [vmem:[%s3 + $0x88] sm:$0xff]
  %v6152 = vld [vmem:[%s3 + $0x90] sm:$0xff]
  %v6153 = vld [vmem:[%s3 + $0x98] sm:$0xff]
  %v6154 = vld [vmem:[%s3 + $0xa0] sm:$0xff]
  %v6155 = vld [vmem:[%s3 + $0xa8] sm:$0xff]
  %v6156 = vld [vmem:[%s3 + $0xb0] sm:$0xff]
  %v6157 = vld [vmem:[%s3 + $0xb8] sm:$0xff]
  %v6158 = vld [vmem:[%s3 + $0xc0] sm:$0xff]
  %v6159 = vld [vmem:[%s3 + $0xc8] sm:$0xff]
  %v6160 = vld [vmem:[%s3 + $0xd0] sm:$0xff]
  %v6161 = vld [vmem:[%s3 + $0xd8] sm:$0xff]
  %v6162 = vld [vmem:[%s3 + $0xe0] sm:$0xff]
  %v6163 = vld [vmem:[%s3 + $0xe8] sm:$0xff]
  %v6164 = vld [vmem:[%s3 + $0xf0] sm:$0xff]
  %v6165 = vld [vmem:[%s3 + $0xf8] sm:$0xff]
  %v6166 = vld [vmem:[%s3 + $0x100] sm:$0xff]
  %v6167 = vld [vmem:[%s3 + $0x108] sm:$0xff]
  %v6168 = vld [vmem:[%s3 + $0x110] sm:$0xff]
  %v6169 = vld [vmem:[%s3 + $0x118] sm:$0xff]
  %v6170 = vld [vmem:[%s3 + $0x120] sm:$0xff]
  %v6171 = vld [vmem:[%s3 + $0x128] sm:$0xff]
  %v6172 = vld [vmem:[%s3 + $0x130] sm:$0xff]
  %v6173 = vld [vmem:[%s3 + $0x138] sm:$0xff]
  %v6174 = vld [vmem:[%s3 + $0x140] sm:$0xff]
  %v6175 = vld [vmem:[%s3 + $0x148] sm:$0xff]
  %v6176 = vld [vmem:[%s3 + $0x150] sm:$0xff]
  %v6177 = vld [vmem:[%s3 + $0x158] sm:$0xff]
  %v6178 = vld [vmem:[%s3 + $0x160] sm:$0xff]
  %v6179 = vld [vmem:[%s3 + $0x168] sm:$0xff]
  %v6180 = vld [vmem:[%s3 + $0x170] sm:$0xff]
  %v6181 = vld [vmem:[%s3 + $0x178] sm:$0xff]
  %v6182 = vld [vmem:[#allocation2] sm:$0xf0]
  %v6183 = vld [vmem:[#allocation2 + $0x8] sm:$0xf0]
  %v6184 = vld [vmem:[#allocation2 + $0x10] sm:$0xf0]
  %v6185 = vld [vmem:[#allocation2 + $0x48] sm:$0xf]
  %v6186 = vld [vmem:[#allocation2 + $0x50] sm:$0xf]
  %v6187 = vld [vmem:[#allocation2 + $0x58] sm:$0xf]
  %s6188 = scalar_lea.vmem %s3, 384
  %v6189 = vld [vmem:[%s6188] sm:$0xff]
  %v6190 = vld [vmem:[%s6188 + $0x8] sm:$0xff]
  %v6191 = vld [vmem:[%s6188 + $0x10] sm:$0xff]
  %v6192 = vld [vmem:[%s6188 + $0x18] sm:$0xff]
  %v6193 = vld [vmem:[%s6188 + $0x20] sm:$0xff]
  %v6194 = vld [vmem:[%s6188 + $0x28] sm:$0xff]
  %v6195 = vld [vmem:[%s6188 + $0x30] sm:$0xff]
  %v6196 = vld [vmem:[%s6188 + $0x38] sm:$0xff]
  %v6197 = vld [vmem:[%s6188 + $0x40] sm:$0xff]
  %v6198 = vld [vmem:[%s6188 + $0x48] sm:$0xff]
  %v6199 = vld [vmem:[%s6188 + $0x50] sm:$0xff]
  %v6200 = vld [vmem:[%s6188 + $0x58] sm:$0xff]
  %v6201 = vld [vmem:[%s6188 + $0x60] sm:$0xff]
  %v6202 = vld [vmem:[%s6188 + $0x68] sm:$0xff]
  %v6203 = vld [vmem:[%s6188 + $0x70] sm:$0xff]
  %v6204 = vld [vmem:[%s6188 + $0x78] sm:$0xff]
  %v6205 = vld [vmem:[%s6188 + $0x80] sm:$0xff]
  %v6206 = vld [vmem:[%s6188 + $0x88] sm:$0xff]
  %v6207 = vld [vmem:[%s6188 + $0x90] sm:$0xff]
  %v6208 = vld [vmem:[%s6188 + $0x98] sm:$0xff]
  %v6209 = vld [vmem:[%s6188 + $0xa0] sm:$0xff]
  %v6210 = vld [vmem:[%s6188 + $0xa8] sm:$0xff]
  %v6211 = vld [vmem:[%s6188 + $0xb0] sm:$0xff]
  %v6212 = vld [vmem:[%s6188 + $0xb8] sm:$0xff]
  %v6213 = vld [vmem:[%s6188 + $0xc0] sm:$0xff]
  %v6214 = vld [vmem:[%s6188 + $0xc8] sm:$0xff]
  %v6215 = vld [vmem:[%s6188 + $0xd0] sm:$0xff]
  %v6216 = vld [vmem:[%s6188 + $0xd8] sm:$0xff]
  %v6217 = vld [vmem:[%s6188 + $0xe0] sm:$0xff]
  %v6218 = vld [vmem:[%s6188 + $0xe8] sm:$0xff]
  %v6219 = vld [vmem:[%s6188 + $0xf0] sm:$0xff]
  %v6220 = vld [vmem:[%s6188 + $0xf8] sm:$0xff]
  %v6221 = vld [vmem:[%s6188 + $0x100] sm:$0xff]
  %v6222 = vld [vmem:[%s6188 + $0x108] sm:$0xff]
  %v6223 = vld [vmem:[%s6188 + $0x110] sm:$0xff]
  %v6224 = vld [vmem:[%s6188 + $0x118] sm:$0xff]
  %v6225 = vld [vmem:[%s6188 + $0x120] sm:$0xff]
  %v6226 = vld [vmem:[%s6188 + $0x128] sm:$0xff]
  %v6227 = vld [vmem:[%s6188 + $0x130] sm:$0xff]
  %v6228 = vld [vmem:[%s6188 + $0x138] sm:$0xff]
  %v6229 = vld [vmem:[%s6188 + $0x140] sm:$0xff]
  %v6230 = vld [vmem:[%s6188 + $0x148] sm:$0xff]
  %v6231 = vld [vmem:[%s6188 + $0x150] sm:$0xff]
  %v6232 = vld [vmem:[%s6188 + $0x158] sm:$0xff]
  %v6233 = vld [vmem:[%s6188 + $0x160] sm:$0xff]
  %v6234 = vld [vmem:[%s6188 + $0x168] sm:$0xff]
  %v6235 = vld [vmem:[%s6188 + $0x170] sm:$0xff]
  %v6236 = vld [vmem:[%s6188 + $0x178] sm:$0xff]
  %vm6249 = vcmask 1043456
  %v6250 = vrot.slane %v6182, 4
  %v6251 = vrot.slane %v6128, 4
  %v6252 = vsel %vm6249, %v6250, %v6251
  %v6253 = vrot.slane %v6183, 4
  %v6254 = vrot.slane %v6129, 4
  %v6255 = vsel %vm6249, %v6253, %v6254
  %v6256 = vrot.slane %v6184, 4
  %v6257 = vrot.slane %v6130, 4
  %v6258 = vsel %vm6249, %v6256, %v6257
  %v6259 = vrot.slane %v6131, 4
  %v6260 = vsel %vm6249, %v6251, %v6259
  %v6261 = vrot.slane %v6132, 4
  %v6262 = vsel %vm6249, %v6254, %v6261
  %v6263 = vrot.slane %v6133, 4
  %v6264 = vsel %vm6249, %v6257, %v6263
  %v6265 = vrot.slane %v6185, 4
  %v6266 = vsel %vm6249, %v6259, %v6265
  %v6267 = vrot.slane %v6186, 4
  %v6268 = vsel %vm6249, %v6261, %v6267
  %v6269 = vrot.slane %v6187, 4
  %v6270 = vsel %vm6249, %v6263, %v6269
  %v6328 = vunpack.c.l.b16 %v6189
  %v6329 = vunpack.c.h.b16 %v6189
  %v6330 = vunpack.c.l.b16 %v6190
  %v6331 = vunpack.c.h.b16 %v6190
  %v6332 = vunpack.c.l.b16 %v6191
  %v6333 = vunpack.c.h.b16 %v6191
  %v6334 = vunpack.c.l.b16 %v6192
  %v6335 = vunpack.c.h.b16 %v6192
  %v6336 = vunpack.c.l.b16 %v6193
  %v6337 = vunpack.c.h.b16 %v6193
  %v6338 = vunpack.c.l.b16 %v6194
  %v6339 = vunpack.c.h.b16 %v6194
  %v6340 = vunpack.c.l.b16 %v6195
  %v6341 = vunpack.c.h.b16 %v6195
  %v6342 = vunpack.c.l.b16 %v6196
  %v6343 = vunpack.c.h.b16 %v6196
  %v6344 = vunpack.c.l.b16 %v6197
  %v6345 = vunpack.c.h.b16 %v6197
  %v6346 = vunpack.c.l.b16 %v6198
  %v6347 = vunpack.c.h.b16 %v6198
  %v6348 = vunpack.c.l.b16 %v6199
  %v6349 = vunpack.c.h.b16 %v6199
  %v6350 = vunpack.c.l.b16 %v6200
  %v6351 = vunpack.c.h.b16 %v6200
  %v6352 = vunpack.c.l.b16 %v6201
  %v6353 = vunpack.c.h.b16 %v6201
  %v6354 = vunpack.c.l.b16 %v6202
  %v6355 = vunpack.c.h.b16 %v6202
  %v6356 = vunpack.c.l.b16 %v6203
  %v6357 = vunpack.c.h.b16 %v6203
  %v6358 = vunpack.c.l.b16 %v6204
  %v6359 = vunpack.c.h.b16 %v6204
  %v6360 = vunpack.c.l.b16 %v6205
  %v6361 = vunpack.c.h.b16 %v6205
  %v6362 = vunpack.c.l.b16 %v6206
  %v6363 = vunpack.c.h.b16 %v6206
  %v6364 = vunpack.c.l.b16 %v6207
  %v6365 = vunpack.c.h.b16 %v6207
  %v6366 = vunpack.c.l.b16 %v6208
  %v6367 = vunpack.c.h.b16 %v6208
  %v6368 = vunpack.c.l.b16 %v6209
  %v6369 = vunpack.c.h.b16 %v6209
  %v6370 = vunpack.c.l.b16 %v6210
  %v6371 = vunpack.c.h.b16 %v6210
  %v6372 = vunpack.c.l.b16 %v6211
  %v6373 = vunpack.c.h.b16 %v6211
  %v6374 = vunpack.c.l.b16 %v6212
  %v6375 = vunpack.c.h.b16 %v6212
  %v6376 = vunpack.c.l.b16 %v6213
  %v6377 = vunpack.c.h.b16 %v6213
  %v6378 = vunpack.c.l.b16 %v6214
  %v6379 = vunpack.c.h.b16 %v6214
  %v6380 = vunpack.c.l.b16 %v6215
  %v6381 = vunpack.c.h.b16 %v6215
  %v6382 = vunpack.c.l.b16 %v6216
  %v6383 = vunpack.c.h.b16 %v6216
  %v6384 = vunpack.c.l.b16 %v6217
  %v6385 = vunpack.c.h.b16 %v6217
  %v6386 = vunpack.c.l.b16 %v6218
  %v6387 = vunpack.c.h.b16 %v6218
  %v6388 = vunpack.c.l.b16 %v6219
  %v6389 = vunpack.c.h.b16 %v6219
  %v6390 = vunpack.c.l.b16 %v6220
  %v6391 = vunpack.c.h.b16 %v6220
  %v6392 = vunpack.c.l.b16 %v6221
  %v6393 = vunpack.c.h.b16 %v6221
  %v6394 = vunpack.c.l.b16 %v6222
  %v6395 = vunpack.c.h.b16 %v6222
  %v6396 = vunpack.c.l.b16 %v6223
  %v6397 = vunpack.c.h.b16 %v6223
  %v6398 = vunpack.c.l.b16 %v6224
  %v6399 = vunpack.c.h.b16 %v6224
  %v6400 = vunpack.c.l.b16 %v6225
  %v6401 = vunpack.c.h.b16 %v6225
  %v6402 = vunpack.c.l.b16 %v6226
  %v6403 = vunpack.c.h.b16 %v6226
  %v6404 = vunpack.c.l.b16 %v6227
  %v6405 = vunpack.c.h.b16 %v6227
  %v6406 = vunpack.c.l.b16 %v6228
  %v6407 = vunpack.c.h.b16 %v6228
  %v6408 = vunpack.c.l.b16 %v6229
  %v6409 = vunpack.c.h.b16 %v6229
  %v6410 = vunpack.c.l.b16 %v6230
  %v6411 = vunpack.c.h.b16 %v6230
  %v6412 = vunpack.c.l.b16 %v6231
  %v6413 = vunpack.c.h.b16 %v6231
  %v6414 = vunpack.c.l.b16 %v6232
  %v6415 = vunpack.c.h.b16 %v6232
  %v6416 = vunpack.c.l.b16 %v6233
  %v6417 = vunpack.c.h.b16 %v6233
  %v6418 = vunpack.c.l.b16 %v6234
  %v6419 = vunpack.c.h.b16 %v6234
  %v6420 = vunpack.c.l.b16 %v6235
  %v6421 = vunpack.c.h.b16 %v6235
  %v6422 = vunpack.c.l.b16 %v6236
  %v6423 = vunpack.c.h.b16 %v6236
  %v6424 = vpack.c.b16 %v6330, %v6328
  %v6425 = vpack.c.b16 %v6331, %v6329
  %v6426 = vpack.c.b16 %v6334, %v6332
  %v6427 = vpack.c.b16 %v6335, %v6333
  %v6428 = vpack.c.b16 %v6338, %v6336
  %v6429 = vpack.c.b16 %v6339, %v6337
  %v6430 = vpack.c.b16 %v6342, %v6340
  %v6431 = vpack.c.b16 %v6343, %v6341
  %v6432 = vpack.c.b16 %v6346, %v6344
  %v6433 = vpack.c.b16 %v6347, %v6345
  %v6434 = vpack.c.b16 %v6350, %v6348
  %v6435 = vpack.c.b16 %v6351, %v6349
  %v6436 = vpack.c.b16 %v6354, %v6352
  %v6437 = vpack.c.b16 %v6355, %v6353
  %v6438 = vpack.c.b16 %v6358, %v6356
  %v6439 = vpack.c.b16 %v6359, %v6357
  %v6440 = vpack.c.b16 %v6362, %v6360
  %v6441 = vpack.c.b16 %v6363, %v6361
  %v6442 = vpack.c.b16 %v6366, %v6364
  %v6443 = vpack.c.b16 %v6367, %v6365
  %v6444 = vpack.c.b16 %v6370, %v6368
  %v6445 = vpack.c.b16 %v6371, %v6369
  %v6446 = vpack.c.b16 %v6374, %v6372
  %v6447 = vpack.c.b16 %v6375, %v6373
  %v6448 = vpack.c.b16 %v6378, %v6376
  %v6449 = vpack.c.b16 %v6379, %v6377
  %v6450 = vpack.c.b16 %v6382, %v6380
  %v6451 = vpack.c.b16 %v6383, %v6381
  %v6452 = vpack.c.b16 %v6386, %v6384
  %v6453 = vpack.c.b16 %v6387, %v6385
  %v6454 = vpack.c.b16 %v6390, %v6388
  %v6455 = vpack.c.b16 %v6391, %v6389
  %v6456 = vpack.c.b16 %v6394, %v6392
  %v6457 = vpack.c.b16 %v6395, %v6393
  %v6458 = vpack.c.b16 %v6398, %v6396
  %v6459 = vpack.c.b16 %v6399, %v6397
  %v6460 = vpack.c.b16 %v6402, %v6400
  %v6461 = vpack.c.b16 %v6403, %v6401
  %v6462 = vpack.c.b16 %v6406, %v6404
  %v6463 = vpack.c.b16 %v6407, %v6405
  %v6464 = vpack.c.b16 %v6410, %v6408
  %v6465 = vpack.c.b16 %v6411, %v6409
  %v6466 = vpack.c.b16 %v6414, %v6412
  %v6467 = vpack.c.b16 %v6415, %v6413
  %v6468 = vpack.c.b16 %v6418, %v6416
  %v6469 = vpack.c.b16 %v6419, %v6417
  %v6470 = vpack.c.b16 %v6422, %v6420
  %v6471 = vpack.c.b16 %v6423, %v6421
  %6520 = vmatprep.subr.bf16.mxu0 %v6425
  %6521 = vmatpush1.bf16.msra.mxu0 %v6424
  %6522 = vmatprep.subr.bf16.mxu0 %v6427
  %6523 = vmatpush1.bf16.msra.mxu0 %v6426
  %6524 = vmatprep.subr.bf16.mxu0 %v6429
  %6525 = vmatpush1.bf16.msra.mxu0 %v6428
  %6526 = vmatprep.subr.bf16.mxu0 %v6431
  %6527 = vmatpush1.bf16.msra.mxu0 %v6430
  %6528 = vmatprep.subr.bf16.mxu0 %v6433
  %6529 = vmatpush1.bf16.msra.mxu0 %v6432
  %6530 = vmatprep.subr.bf16.mxu0 %v6435
  %6531 = vmatpush1.bf16.msra.mxu0 %v6434
  %6532 = vmatprep.subr.bf16.mxu0 %v6437
  %6533 = vmatpush1.bf16.msra.mxu0 %v6436
  %6534 = vmatprep.subr.bf16.mxu0 %v6439
  %6535 = vmatpush1.bf16.msra.mxu0 %v6438
  %6536 = vmatprep.subr.bf16.mxu0 %v6441
  %6537 = vmatpush1.bf16.msra.mxu0 %v6440
  %6538 = vmatprep.subr.bf16.mxu0 %v6443
  %6539 = vmatpush1.bf16.msra.mxu0 %v6442
  %6540 = vmatprep.subr.bf16.mxu0 %v6445
  %6541 = vmatpush1.bf16.msra.mxu0 %v6444
  %6542 = vmatprep.subr.bf16.mxu0 %v6447
  %6543 = vmatpush1.bf16.msra.mxu0 %v6446
  %6544 = vmatprep.subr.bf16.mxu0 %v6449
  %6545 = vmatpush1.bf16.msra.mxu0 %v6448
  %6546 = vmatprep.subr.bf16.mxu0 %v6451
  %6547 = vmatpush1.bf16.msra.mxu0 %v6450
  %6548 = vmatprep.subr.bf16.mxu0 %v6453
  %6549 = vmatpush1.bf16.msra.mxu0 %v6452
  %6550 = vmatprep.subr.bf16.mxu0 %v6455
  %6551 = vmatpush1.bf16.msra.mxu0 %v6454
  %6552 = vmatprep.mubr.bf16.mxu0 %v6255
  %6553 = vmatmul.mubr.bf16.gmra.mrb[0].mxu0 %v6252
  %v6554 = vpop.f32.mrb[0].mxu0
  %v6555 = vadd.f32 0.0, %v6554
  %v6556 = vpop.f32.mrb[0].mxu0
  %v6557 = vadd.f32 0.0, %v6556
  %v6558 = vpop.f32.mrb[0].mxu0
  %v6559 = vadd.f32 0.0, %v6558
  %v6560 = vpop.f32.mrb[0].mxu0
  %v6561 = vadd.f32 0.0, %v6560
  %6562 = vmatprep.mubr.bf16.mxu0 %v6262
  %6563 = vmatmul.mubr.bf16.gmra.mrb[0].mxu0 %v6260
  %v6564 = vpop.f32.mrb[0].mxu0
  %v6565 = vadd.f32 0.0, %v6564
  %v6566 = vpop.f32.mrb[0].mxu0
  %v6567 = vadd.f32 0.0, %v6566
  %v6568 = vpop.f32.mrb[0].mxu0
  %v6569 = vadd.f32 0.0, %v6568
  %v6570 = vpop.f32.mrb[0].mxu0
  %v6571 = vadd.f32 0.0, %v6570
  %6572 = vmatprep.mubr.bf16.mxu0 %v6268
  %6573 = vmatmul.mubr.bf16.gmra.mrb[0].mxu0 %v6266
  %v6574 = vpop.f32.mrb[0].mxu0
  %v6575 = vadd.f32 0.0, %v6574
  %v6576 = vpop.f32.mrb[0].mxu0
  %v6577 = vadd.f32 0.0, %v6576
  %v6578 = vpop.f32.mrb[0].mxu0
  %v6579 = vadd.f32 0.0, %v6578
  %v6580 = vpop.f32.mrb[0].mxu0
  %v6581 = vadd.f32 0.0, %v6580
  %6582 = vdwg.mxu0
  %6583 = vmatprep.subr.bf16.mxu0 %v6457
  %6584 = vmatpush1.bf16.msra.mxu0 %v6456
  %6585 = vmatprep.subr.bf16.mxu0 %v6459
  %6586 = vmatpush1.bf16.msra.mxu0 %v6458
  %6587 = vmatprep.subr.bf16.mxu0 %v6461
  %6588 = vmatpush1.bf16.msra.mxu0 %v6460
  %6589 = vmatprep.subr.bf16.mxu0 %v6463
  %6590 = vmatpush1.bf16.msra.mxu0 %v6462
  %6591 = vmatprep.subr.bf16.mxu0 %v6465
  %6592 = vmatpush1.bf16.msra.mxu0 %v6464
  %6593 = vmatprep.subr.bf16.mxu0 %v6467
  %6594 = vmatpush1.bf16.msra.mxu0 %v6466
  %6595 = vmatprep.subr.bf16.mxu0 %v6469
  %6596 = vmatpush1.bf16.msra.mxu0 %v6468
  %6597 = vmatprep.subr.bf16.mxu0 %v6471
  %6598 = vmatpush1.bf16.msra.mxu0 %v6470
  %6599 = vmatprep.subr.bf16.mxu0 0
  %6600 = vmatpush1.bf16.msra.mxu0 0
  %6601 = vmatprep.subr.bf16.mxu0 0
  %6602 = vmatpush1.bf16.msra.mxu0 0
  %6603 = vmatprep.subr.bf16.mxu0 0
  %6604 = vmatpush1.bf16.msra.mxu0 0
  %6605 = vmatprep.subr.bf16.mxu0 0
  %6606 = vmatpush1.bf16.msra.mxu0 0
  %6607 = vmatprep.subr.bf16.mxu0 0
  %6608 = vmatpush1.bf16.msra.mxu0 0
  %6609 = vmatprep.subr.bf16.mxu0 0
  %6610 = vmatpush1.bf16.msra.mxu0 0
  %6611 = vmatprep.subr.bf16.mxu0 0
  %6612 = vmatpush1.bf16.msra.mxu0 0
  %6613 = vmatprep.subr.bf16.mxu0 0
  %6614 = vmatpush1.bf16.msra.mxu0 0
  %6615 = vmatprep.mubr.bf16.mxu0 0
  %6616 = vmatmul.mubr.bf16.gmra.mrb[0].mxu0 %v6258
  %v6617 = vpop.f32.mrb[0].mxu0
  %v6618 = vadd.f32 %v6555, %v6617
  %v6619 = vpop.f32.mrb[0].mxu0
  %v6620 = vadd.f32 %v6557, %v6619
  %v6621 = vpop.f32.mrb[0].mxu0
  %v6622 = vadd.f32 %v6559, %v6621
  %v6623 = vpop.f32.mrb[0].mxu0
  %v6624 = vadd.f32 %v6561, %v6623
  %6625 = vmatprep.mubr.bf16.mxu0 0
  %6626 = vmatmul.mubr.bf16.gmra.mrb[0].mxu0 %v6264
  %v6627 = vpop.f32.mrb[0].mxu0
  %v6628 = vadd.f32 %v6565, %v6627
  %v6629 = vpop.f32.mrb[0].mxu0
  %v6630 = vadd.f32 %v6567, %v6629
  %v6631 = vpop.f32.mrb[0].mxu0
  %v6632 = vadd.f32 %v6569, %v6631
  %v6633 = vpop.f32.mrb[0].mxu0
  %v6634 = vadd.f32 %v6571, %v6633
  %6635 = vmatprep.mubr.bf16.mxu0 0
  %6636 = vmatmul.mubr.bf16.gmra.mrb[0].mxu0 %v6270
  %v6637 = vpop.f32.mrb[0].mxu0
  %v6638 = vadd.f32 %v6575, %v6637
  %v6639 = vpop.f32.mrb[0].mxu0
  %v6640 = vadd.f32 %v6577, %v6639
  %v6641 = vpop.f32.mrb[0].mxu0
  %v6642 = vadd.f32 %v6579, %v6641
  %v6643 = vpop.f32.mrb[0].mxu0
  %v6644 = vadd.f32 %v6581, %v6643
  %6645 = vdwg.mxu0
  %v6694 = vunpack.c.l.b16 %v6134
  %v6695 = vunpack.c.h.b16 %v6134
  %v6696 = vunpack.c.l.b16 %v6135
  %v6697 = vunpack.c.h.b16 %v6135
  %v6698 = vunpack.c.l.b16 %v6136
  %v6699 = vunpack.c.h.b16 %v6136
  %v6700 = vunpack.c.l.b16 %v6137
  %v6701 = vunpack.c.h.b16 %v6137
  %v6702 = vunpack.c.l.b16 %v6138
  %v6703 = vunpack.c.h.b16 %v6138
  %v6704 = vunpack.c.l.b16 %v6139
  %v6705 = vunpack.c.h.b16 %v6139
  %v6706 = vunpack.c.l.b16 %v6140
  %v6707 = vunpack.c.h.b16 %v6140
  %v6708 = vunpack.c.l.b16 %v6141
  %v6709 = vunpack.c.h.b16 %v6141
  %v6710 = vunpack.c.l.b16 %v6142
  %v6711 = vunpack.c.h.b16 %v6142
  %v6712 = vunpack.c.l.b16 %v6143
  %v6713 = vunpack.c.h.b16 %v6143
  %v6714 = vunpack.c.l.b16 %v6144
  %v6715 = vunpack.c.h.b16 %v6144
  %v6716 = vunpack.c.l.b16 %v6145
  %v6717 = vunpack.c.h.b16 %v6145
  %v6718 = vunpack.c.l.b16 %v6146
  %v6719 = vunpack.c.h.b16 %v6146
  %v6720 = vunpack.c.l.b16 %v6147
  %v6721 = vunpack.c.h.b16 %v6147
  %v6722 = vunpack.c.l.b16 %v6148
  %v6723 = vunpack.c.h.b16 %v6148
  %v6724 = vunpack.c.l.b16 %v6149
  %v6725 = vunpack.c.h.b16 %v6149
  %v6726 = vunpack.c.l.b16 %v6150
  %v6727 = vunpack.c.h.b16 %v6150
  %v6728 = vunpack.c.l.b16 %v6151
  %v6729 = vunpack.c.h.b16 %v6151
  %v6730 = vunpack.c.l.b16 %v6152
  %v6731 = vunpack.c.h.b16 %v6152
  %v6732 = vunpack.c.l.b16 %v6153
  %v6733 = vunpack.c.h.b16 %v6153
  %v6734 = vunpack.c.l.b16 %v6154
  %v6735 = vunpack.c.h.b16 %v6154
  %v6736 = vunpack.c.l.b16 %v6155
  %v6737 = vunpack.c.h.b16 %v6155
  %v6738 = vunpack.c.l.b16 %v6156
  %v6739 = vunpack.c.h.b16 %v6156
  %v6740 = vunpack.c.l.b16 %v6157
  %v6741 = vunpack.c.h.b16 %v6157
  %v6742 = vunpack.c.l.b16 %v6158
  %v6743 = vunpack.c.h.b16 %v6158
  %v6744 = vunpack.c.l.b16 %v6159
  %v6745 = vunpack.c.h.b16 %v6159
  %v6746 = vunpack.c.l.b16 %v6160
  %v6747 = vunpack.c.h.b16 %v6160
  %v6748 = vunpack.c.l.b16 %v6161
  %v6749 = vunpack.c.h.b16 %v6161
  %v6750 = vunpack.c.l.b16 %v6162
  %v6751 = vunpack.c.h.b16 %v6162
  %v6752 = vunpack.c.l.b16 %v6163
  %v6753 = vunpack.c.h.b16 %v6163
  %v6754 = vunpack.c.l.b16 %v6164
  %v6755 = vunpack.c.h.b16 %v6164
  %v6756 = vunpack.c.l.b16 %v6165
  %v6757 = vunpack.c.h.b16 %v6165
  %v6758 = vunpack.c.l.b16 %v6166
  %v6759 = vunpack.c.h.b16 %v6166
  %v6760 = vunpack.c.l.b16 %v6167
  %v6761 = vunpack.c.h.b16 %v6167
  %v6762 = vunpack.c.l.b16 %v6168
  %v6763 = vunpack.c.h.b16 %v6168
  %v6764 = vunpack.c.l.b16 %v6169
  %v6765 = vunpack.c.h.b16 %v6169
  %v6766 = vunpack.c.l.b16 %v6170
  %v6767 = vunpack.c.h.b16 %v6170
  %v6768 = vunpack.c.l.b16 %v6171
  %v6769 = vunpack.c.h.b16 %v6171
  %v6770 = vunpack.c.l.b16 %v6172
  %v6771 = vunpack.c.h.b16 %v6172
  %v6772 = vunpack.c.l.b16 %v6173
  %v6773 = vunpack.c.h.b16 %v6173
  %v6774 = vunpack.c.l.b16 %v6174
  %v6775 = vunpack.c.h.b16 %v6174
  %v6776 = vunpack.c.l.b16 %v6175
  %v6777 = vunpack.c.h.b16 %v6175
  %v6778 = vunpack.c.l.b16 %v6176
  %v6779 = vunpack.c.h.b16 %v6176
  %v6780 = vunpack.c.l.b16 %v6177
  %v6781 = vunpack.c.h.b16 %v6177
  %v6782 = vunpack.c.l.b16 %v6178
  %v6783 = vunpack.c.h.b16 %v6178
  %v6784 = vunpack.c.l.b16 %v6179
  %v6785 = vunpack.c.h.b16 %v6179
  %v6786 = vunpack.c.l.b16 %v6180
  %v6787 = vunpack.c.h.b16 %v6180
  %v6788 = vunpack.c.l.b16 %v6181
  %v6789 = vunpack.c.h.b16 %v6181
  %v6790 = vpack.c.b16 %v6696, %v6694
  %v6791 = vpack.c.b16 %v6697, %v6695
  %v6792 = vpack.c.b16 %v6700, %v6698
  %v6793 = vpack.c.b16 %v6701, %v6699
  %v6794 = vpack.c.b16 %v6704, %v6702
  %v6795 = vpack.c.b16 %v6705, %v6703
  %v6796 = vpack.c.b16 %v6708, %v6706
  %v6797 = vpack.c.b16 %v6709, %v6707
  %v6798 = vpack.c.b16 %v6712, %v6710
  %v6799 = vpack.c.b16 %v6713, %v6711
  %v6800 = vpack.c.b16 %v6716, %v6714
  %v6801 = vpack.c.b16 %v6717, %v6715
  %v6802 = vpack.c.b16 %v6720, %v6718
  %v6803 = vpack.c.b16 %v6721, %v6719
  %v6804 = vpack.c.b16 %v6724, %v6722
  %v6805 = vpack.c.b16 %v6725, %v6723
  %v6806 = vpack.c.b16 %v6728, %v6726
  %v6807 = vpack.c.b16 %v6729, %v6727
  %v6808 = vpack.c.b16 %v6732, %v6730
  %v6809 = vpack.c.b16 %v6733, %v6731
  %v6810 = vpack.c.b16 %v6736, %v6734
  %v6811 = vpack.c.b16 %v6737, %v6735
  %v6812 = vpack.c.b16 %v6740, %v6738
  %v6813 = vpack.c.b16 %v6741, %v6739
  %v6814 = vpack.c.b16 %v6744, %v6742
  %v6815 = vpack.c.b16 %v6745, %v6743
  %v6816 = vpack.c.b16 %v6748, %v6746
  %v6817 = vpack.c.b16 %v6749, %v6747
  %v6818 = vpack.c.b16 %v6752, %v6750
  %v6819 = vpack.c.b16 %v6753, %v6751
  %v6820 = vpack.c.b16 %v6756, %v6754
  %v6821 = vpack.c.b16 %v6757, %v6755
  %v6822 = vpack.c.b16 %v6760, %v6758
  %v6823 = vpack.c.b16 %v6761, %v6759
  %v6824 = vpack.c.b16 %v6764, %v6762
  %v6825 = vpack.c.b16 %v6765, %v6763
  %v6826 = vpack.c.b16 %v6768, %v6766
  %v6827 = vpack.c.b16 %v6769, %v6767
  %v6828 = vpack.c.b16 %v6772, %v6770
  %v6829 = vpack.c.b16 %v6773, %v6771
  %v6830 = vpack.c.b16 %v6776, %v6774
  %v6831 = vpack.c.b16 %v6777, %v6775
  %v6832 = vpack.c.b16 %v6780, %v6778
  %v6833 = vpack.c.b16 %v6781, %v6779
  %v6834 = vpack.c.b16 %v6784, %v6782
  %v6835 = vpack.c.b16 %v6785, %v6783
  %v6836 = vpack.c.b16 %v6788, %v6786
  %v6837 = vpack.c.b16 %v6789, %v6787
  %6886 = vmatprep.subr.bf16.mxu0 %v6791
  %6887 = vmatpush1.bf16.msra.mxu0 %v6790
  %6888 = vmatprep.subr.bf16.mxu0 %v6793
  %6889 = vmatpush1.bf16.msra.mxu0 %v6792
  %6890 = vmatprep.subr.bf16.mxu0 %v6795
  %6891 = vmatpush1.bf16.msra.mxu0 %v6794
  %6892 = vmatprep.subr.bf16.mxu0 %v6797
  %6893 = vmatpush1.bf16.msra.mxu0 %v6796
  %6894 = vmatprep.subr.bf16.mxu0 %v6799
  %6895 = vmatpush1.bf16.msra.mxu0 %v6798
  %6896 = vmatprep.subr.bf16.mxu0 %v6801
  %6897 = vmatpush1.bf16.msra.mxu0 %v6800
  %6898 = vmatprep.subr.bf16.mxu0 %v6803
  %6899 = vmatpush1.bf16.msra.mxu0 %v6802
  %6900 = vmatprep.subr.bf16.mxu0 %v6805
  %6901 = vmatpush1.bf16.msra.mxu0 %v6804
  %6902 = vmatprep.subr.bf16.mxu0 %v6807
  %6903 = vmatpush1.bf16.msra.mxu0 %v6806
  %6904 = vmatprep.subr.bf16.mxu0 %v6809
  %6905 = vmatpush1.bf16.msra.mxu0 %v6808
  %6906 = vmatprep.subr.bf16.mxu0 %v6811
  %6907 = vmatpush1.bf16.msra.mxu0 %v6810
  %6908 = vmatprep.subr.bf16.mxu0 %v6813
  %6909 = vmatpush1.bf16.msra.mxu0 %v6812
  %6910 = vmatprep.subr.bf16.mxu0 %v6815
  %6911 = vmatpush1.bf16.msra.mxu0 %v6814
  %6912 = vmatprep.subr.bf16.mxu0 %v6817
  %6913 = vmatpush1.bf16.msra.mxu0 %v6816
  %6914 = vmatprep.subr.bf16.mxu0 %v6819
  %6915 = vmatpush1.bf16.msra.mxu0 %v6818
  %6916 = vmatprep.subr.bf16.mxu0 %v6821
  %6917 = vmatpush1.bf16.msra.mxu0 %v6820
  %6918 = vmatprep.mubr.bf16.mxu0 %v6126
  %6919 = vmatmul.mubr.bf16.gmra.mrb[0].mxu0 %v6125
  %v6920 = vpop.f32.mrb[0].mxu0
  %v6921 = vadd.f32 %v6618, %v6920
  %v6922 = vpop.f32.mrb[0].mxu0
  %v6923 = vadd.f32 %v6620, %v6922
  %v6924 = vpop.f32.mrb[0].mxu0
  %v6925 = vadd.f32 %v6622, %v6924
  %v6926 = vpop.f32.mrb[0].mxu0
  %v6927 = vadd.f32 %v6624, %v6926
  %6928 = vmatprep.mubr.bf16.mxu0 %v6129
  %6929 = vmatmul.mubr.bf16.gmra.mrb[0].mxu0 %v6128
  %v6930 = vpop.f32.mrb[0].mxu0
  %v6931 = vadd.f32 %v6628, %v6930
  %v6932 = vpop.f32.mrb[0].mxu0
  %v6933 = vadd.f32 %v6630, %v6932
  %v6934 = vpop.f32.mrb[0].mxu0
  %v6935 = vadd.f32 %v6632, %v6934
  %v6936 = vpop.f32.mrb[0].mxu0
  %v6937 = vadd.f32 %v6634, %v6936
  %6938 = vmatprep.mubr.bf16.mxu0 %v6132
  %6939 = vmatmul.mubr.bf16.gmra.mrb[0].mxu0 %v6131
  %v6940 = vpop.f32.mrb[0].mxu0
  %v6941 = vadd.f32 %v6638, %v6940
  %v6942 = vpop.f32.mrb[0].mxu0
  %v6943 = vadd.f32 %v6640, %v6942
  %v6944 = vpop.f32.mrb[0].mxu0
  %v6945 = vadd.f32 %v6642, %v6944
  %v6946 = vpop.f32.mrb[0].mxu0
  %v6947 = vadd.f32 %v6644, %v6946
  %6948 = vdwg.mxu0
  %6949 = vmatprep.subr.bf16.mxu0 %v6823
  %6950 = vmatpush1.bf16.msra.mxu0 %v6822
  %6951 = vmatprep.subr.bf16.mxu0 %v6825
  %6952 = vmatpush1.bf16.msra.mxu0 %v6824
  %6953 = vmatprep.subr.bf16.mxu0 %v6827
  %6954 = vmatpush1.bf16.msra.mxu0 %v6826
  %6955 = vmatprep.subr.bf16.mxu0 %v6829
  %6956 = vmatpush1.bf16.msra.mxu0 %v6828
  %6957 = vmatprep.subr.bf16.mxu0 %v6831
  %6958 = vmatpush1.bf16.msra.mxu0 %v6830
  %6959 = vmatprep.subr.bf16.mxu0 %v6833
  %6960 = vmatpush1.bf16.msra.mxu0 %v6832
  %6961 = vmatprep.subr.bf16.mxu0 %v6835
  %6962 = vmatpush1.bf16.msra.mxu0 %v6834
  %6963 = vmatprep.subr.bf16.mxu0 %v6837
  %6964 = vmatpush1.bf16.msra.mxu0 %v6836
  %6965 = vmatprep.subr.bf16.mxu0 0
  %6966 = vmatpush1.bf16.msra.mxu0 0
  %6967 = vmatprep.subr.bf16.mxu0 0
  %6968 = vmatpush1.bf16.msra.mxu0 0
  %6969 = vmatprep.subr.bf16.mxu0 0
  %6970 = vmatpush1.bf16.msra.mxu0 0
  %6971 = vmatprep.subr.bf16.mxu0 0
  %6972 = vmatpush1.bf16.msra.mxu0 0
  %6973 = vmatprep.subr.bf16.mxu0 0
  %6974 = vmatpush1.bf16.msra.mxu0 0
  %6975 = vmatprep.subr.bf16.mxu0 0
  %6976 = vmatpush1.bf16.msra.mxu0 0
  %6977 = vmatprep.subr.bf16.mxu0 0
  %6978 = vmatpush1.bf16.msra.mxu0 0
  %6979 = vmatprep.subr.bf16.mxu0 0
  %6980 = vmatpush1.bf16.msra.mxu0 0
  %6981 = vmatprep.mubr.bf16.mxu0 0
  %6982 = vmatmul.mubr.bf16.gmra.mrb[0].mxu0 %v6127
  %v6983 = vpop.f32.mrb[0].mxu0
  %v6984 = vadd.f32 %v6921, %v6983
  %v6985 = vpop.f32.mrb[0].mxu0
  %v6986 = vadd.f32 %v6923, %v6985
  %v6987 = vpop.f32.mrb[0].mxu0
  %v6988 = vadd.f32 %v6925, %v6987
  %v6989 = vpop.f32.mrb[0].mxu0
  %v6990 = vadd.f32 %v6927, %v6989
  %6991 = vmatprep.mubr.bf16.mxu0 0
  %6992 = vmatmul.mubr.bf16.gmra.mrb[0].mxu0 %v6130
  %v6993 = vpop.f32.mrb[0].mxu0
  %v6994 = vadd.f32 %v6931, %v6993
  %v6995 = vpop.f32.mrb[0].mxu0
  %v6996 = vadd.f32 %v6933, %v6995
  %v6997 = vpop.f32.mrb[0].mxu0
  %v6998 = vadd.f32 %v6935, %v6997
  %v6999 = vpop.f32.mrb[0].mxu0
  %v7000 = vadd.f32 %v6937, %v6999
  %7001 = vmatprep.mubr.bf16.mxu0 0
  %7002 = vmatmul.mubr.bf16.gmra.mrb[0].mxu0 %v6133
  %v7003 = vpop.f32.mrb[0].mxu0
  %v7004 = vadd.f32 %v6941, %v7003
  %v7005 = vpop.f32.mrb[0].mxu0
  %v7006 = vadd.f32 %v6943, %v7005
  %v7007 = vpop.f32.mrb[0].mxu0
  %v7008 = vadd.f32 %v6945, %v7007
  %v7009 = vpop.f32.mrb[0].mxu0
  %v7010 = vadd.f32 %v6947, %v7009
  %7011 = vdwg.mxu0
  %v7012 = vld [vmem:[#allocation2 + $0x48] sm:$0xff]
  %v7013 = vld [vmem:[#allocation2 + $0x50] sm:$0xff]
  %v7014 = vld [vmem:[#allocation2 + $0x58] sm:$0xff]
  %s7015 = scalar_lea.vmem %s3, 768
  %v7016 = vld [vmem:[%s7015] sm:$0xff]
  %v7017 = vld [vmem:[%s7015 + $0x8] sm:$0xff]
  %v7018 = vld [vmem:[%s7015 + $0x10] sm:$0xff]
  %v7019 = vld [vmem:[%s7015 + $0x18] sm:$0xff]
  %v7020 = vld [vmem:[%s7015 + $0x20] sm:$0xff]
  %v7021 = vld [vmem:[%s7015 + $0x28] sm:$0xff]
  %v7022 = vld [vmem:[%s7015 + $0x30] sm:$0xff]
  %v7023 = vld [vmem:[%s7015 + $0x38] sm:$0xff]
  %v7024 = vld [vmem:[%s7015 + $0x40] sm:$0xff]
  %v7025 = vld [vmem:[%s7015 + $0x48] sm:$0xff]
  %v7026 = vld [vmem:[%s7015 + $0x50] sm:$0xff]
  %v7027 = vld [vmem:[%s7015 + $0x58] sm:$0xff]
  %v7028 = vld [vmem:[%s7015 + $0x60] sm:$0xff]
  %v7029 = vld [vmem:[%s7015 + $0x68] sm:$0xff]
  %v7030 = vld [vmem:[%s7015 + $0x70] sm:$0xff]
  %v7031 = vld [vmem:[%s7015 + $0x78] sm:$0xff]
  %v7032 = vld [vmem:[%s7015 + $0x80] sm:$0xff]
  %v7033 = vld [vmem:[%s7015 + $0x88] sm:$0xff]
  %v7034 = vld [vmem:[%s7015 + $0x90] sm:$0xff]
  %v7035 = vld [vmem:[%s7015 + $0x98] sm:$0xff]
  %v7036 = vld [vmem:[%s7015 + $0xa0] sm:$0xff]
  %v7037 = vld [vmem:[%s7015 + $0xa8] sm:$0xff]
  %v7038 = vld [vmem:[%s7015 + $0xb0] sm:$0xff]
  %v7039 = vld [vmem:[%s7015 + $0xb8] sm:$0xff]
  %v7040 = vld [vmem:[%s7015 + $0xc0] sm:$0xff]
  %v7041 = vld [vmem:[%s7015 + $0xc8] sm:$0xff]
  %v7042 = vld [vmem:[%s7015 + $0xd0] sm:$0xff]
  %v7043 = vld [vmem:[%s7015 + $0xd8] sm:$0xff]
  %v7044 = vld [vmem:[%s7015 + $0xe0] sm:$0xff]
  %v7045 = vld [vmem:[%s7015 + $0xe8] sm:$0xff]
  %v7046 = vld [vmem:[%s7015 + $0xf0] sm:$0xff]
  %v7047 = vld [vmem:[%s7015 + $0xf8] sm:$0xff]
  %v7048 = vld [vmem:[%s7015 + $0x100] sm:$0xff]
  %v7049 = vld [vmem:[%s7015 + $0x108] sm:$0xff]
  %v7050 = vld [vmem:[%s7015 + $0x110] sm:$0xff]
  %v7051 = vld [vmem:[%s7015 + $0x118] sm:$0xff]
  %v7052 = vld [vmem:[%s7015 + $0x120] sm:$0xff]
  %v7053 = vld [vmem:[%s7015 + $0x128] sm:$0xff]
  %v7054 = vld [vmem:[%s7015 + $0x130] sm:$0xff]
  %v7055 = vld [vmem:[%s7015 + $0x138] sm:$0xff]
  %v7056 = vld [vmem:[%s7015 + $0x140] sm:$0xff]
  %v7057 = vld [vmem:[%s7015 + $0x148] sm:$0xff]
  %v7058 = vld [vmem:[%s7015 + $0x150] sm:$0xff]
  %v7059 = vld [vmem:[%s7015 + $0x158] sm:$0xff]
  %v7060 = vld [vmem:[%s7015 + $0x160] sm:$0xff]
  %v7061 = vld [vmem:[%s7015 + $0x168] sm:$0xff]
  %v7062 = vld [vmem:[%s7015 + $0x170] sm:$0xff]
  %v7063 = vld [vmem:[%s7015 + $0x178] sm:$0xff]
  %v7112 = vunpack.c.l.b16 %v7016
  %v7113 = vunpack.c.h.b16 %v7016
  %v7114 = vunpack.c.l.b16 %v7017
  %v7115 = vunpack.c.h.b16 %v7017
  %v7116 = vunpack.c.l.b16 %v7018
  %v7117 = vunpack.c.h.b16 %v7018
  %v7118 = vunpack.c.l.b16 %v7019
  %v7119 = vunpack.c.h.b16 %v7019
  %v7120 = vunpack.c.l.b16 %v7020
  %v7121 = vunpack.c.h.b16 %v7020
  %v7122 = vunpack.c.l.b16 %v7021
  %v7123 = vunpack.c.h.b16 %v7021
  %v7124 = vunpack.c.l.b16 %v7022
  %v7125 = vunpack.c.h.b16 %v7022
  %v7126 = vunpack.c.l.b16 %v7023
  %v7127 = vunpack.c.h.b16 %v7023
  %v7128 = vunpack.c.l.b16 %v7024
  %v7129 = vunpack.c.h.b16 %v7024
  %v7130 = vunpack.c.l.b16 %v7025
  %v7131 = vunpack.c.h.b16 %v7025
  %v7132 = vunpack.c.l.b16 %v7026
  %v7133 = vunpack.c.h.b16 %v7026
  %v7134 = vunpack.c.l.b16 %v7027
  %v7135 = vunpack.c.h.b16 %v7027
  %v7136 = vunpack.c.l.b16 %v7028
  %v7137 = vunpack.c.h.b16 %v7028
  %v7138 = vunpack.c.l.b16 %v7029
  %v7139 = vunpack.c.h.b16 %v7029
  %v7140 = vunpack.c.l.b16 %v7030
  %v7141 = vunpack.c.h.b16 %v7030
  %v7142 = vunpack.c.l.b16 %v7031
  %v7143 = vunpack.c.h.b16 %v7031
  %v7144 = vunpack.c.l.b16 %v7032
  %v7145 = vunpack.c.h.b16 %v7032
  %v7146 = vunpack.c.l.b16 %v7033
  %v7147 = vunpack.c.h.b16 %v7033
  %v7148 = vunpack.c.l.b16 %v7034
  %v7149 = vunpack.c.h.b16 %v7034
  %v7150 = vunpack.c.l.b16 %v7035
  %v7151 = vunpack.c.h.b16 %v7035
  %v7152 = vunpack.c.l.b16 %v7036
  %v7153 = vunpack.c.h.b16 %v7036
  %v7154 = vunpack.c.l.b16 %v7037
  %v7155 = vunpack.c.h.b16 %v7037
  %v7156 = vunpack.c.l.b16 %v7038
  %v7157 = vunpack.c.h.b16 %v7038
  %v7158 = vunpack.c.l.b16 %v7039
  %v7159 = vunpack.c.h.b16 %v7039
  %v7160 = vunpack.c.l.b16 %v7040
  %v7161 = vunpack.c.h.b16 %v7040
  %v7162 = vunpack.c.l.b16 %v7041
  %v7163 = vunpack.c.h.b16 %v7041
  %v7164 = vunpack.c.l.b16 %v7042
  %v7165 = vunpack.c.h.b16 %v7042
  %v7166 = vunpack.c.l.b16 %v7043
  %v7167 = vunpack.c.h.b16 %v7043
  %v7168 = vunpack.c.l.b16 %v7044
  %v7169 = vunpack.c.h.b16 %v7044
  %v7170 = vunpack.c.l.b16 %v7045
  %v7171 = vunpack.c.h.b16 %v7045
  %v7172 = vunpack.c.l.b16 %v7046
  %v7173 = vunpack.c.h.b16 %v7046
  %v7174 = vunpack.c.l.b16 %v7047
  %v7175 = vunpack.c.h.b16 %v7047
  %v7176 = vunpack.c.l.b16 %v7048
  %v7177 = vunpack.c.h.b16 %v7048
  %v7178 = vunpack.c.l.b16 %v7049
  %v7179 = vunpack.c.h.b16 %v7049
  %v7180 = vunpack.c.l.b16 %v7050
  %v7181 = vunpack.c.h.b16 %v7050
  %v7182 = vunpack.c.l.b16 %v7051
  %v7183 = vunpack.c.h.b16 %v7051
  %v7184 = vunpack.c.l.b16 %v7052
  %v7185 = vunpack.c.h.b16 %v7052
  %v7186 = vunpack.c.l.b16 %v7053
  %v7187 = vunpack.c.h.b16 %v7053
  %v7188 = vunpack.c.l.b16 %v7054
  %v7189 = vunpack.c.h.b16 %v7054
  %v7190 = vunpack.c.l.b16 %v7055
  %v7191 = vunpack.c.h.b16 %v7055
  %v7192 = vunpack.c.l.b16 %v7056
  %v7193 = vunpack.c.h.b16 %v7056
  %v7194 = vunpack.c.l.b16 %v7057
  %v7195 = vunpack.c.h.b16 %v7057
  %v7196 = vunpack.c.l.b16 %v7058
  %v7197 = vunpack.c.h.b16 %v7058
  %v7198 = vunpack.c.l.b16 %v7059
  %v7199 = vunpack.c.h.b16 %v7059
  %v7200 = vunpack.c.l.b16 %v7060
  %v7201 = vunpack.c.h.b16 %v7060
  %v7202 = vunpack.c.l.b16 %v7061
  %v7203 = vunpack.c.h.b16 %v7061
  %v7204 = vunpack.c.l.b16 %v7062
  %v7205 = vunpack.c.h.b16 %v7062
  %v7206 = vunpack.c.l.b16 %v7063
  %v7207 = vunpack.c.h.b16 %v7063
  %v7208 = vpack.c.b16 %v7114, %v7112
  %v7209 = vpack.c.b16 %v7115, %v7113
  %v7210 = vpack.c.b16 %v7118, %v7116
  %v7211 = vpack.c.b16 %v7119, %v7117
  %v7212 = vpack.c.b16 %v7122, %v7120
  %v7213 = vpack.c.b16 %v7123, %v7121
  %v7214 = vpack.c.b16 %v7126, %v7124
  %v7215 = vpack.c.b16 %v7127, %v7125
  %v7216 = vpack.c.b16 %v7130, %v7128
  %v7217 = vpack.c.b16 %v7131, %v7129
  %v7218 = vpack.c.b16 %v7134, %v7132
  %v7219 = vpack.c.b16 %v7135, %v7133
  %v7220 = vpack.c.b16 %v7138, %v7136
  %v7221 = vpack.c.b16 %v7139, %v7137
  %v7222 = vpack.c.b16 %v7142, %v7140
  %v7223 = vpack.c.b16 %v7143, %v7141
  %v7224 = vpack.c.b16 %v7146, %v7144
  %v7225 = vpack.c.b16 %v7147, %v7145
  %v7226 = vpack.c.b16 %v7150, %v7148
  %v7227 = vpack.c.b16 %v7151, %v7149
  %v7228 = vpack.c.b16 %v7154, %v7152
  %v7229 = vpack.c.b16 %v7155, %v7153
  %v7230 = vpack.c.b16 %v7158, %v7156
  %v7231 = vpack.c.b16 %v7159, %v7157
  %v7232 = vpack.c.b16 %v7162, %v7160
  %v7233 = vpack.c.b16 %v7163, %v7161
  %v7234 = vpack.c.b16 %v7166, %v7164
  %v7235 = vpack.c.b16 %v7167, %v7165
  %v7236 = vpack.c.b16 %v7170, %v7168
  %v7237 = vpack.c.b16 %v7171, %v7169
  %v7238 = vpack.c.b16 %v7174, %v7172
  %v7239 = vpack.c.b16 %v7175, %v7173
  %v7240 = vpack.c.b16 %v7178, %v7176
  %v7241 = vpack.c.b16 %v7179, %v7177
  %v7242 = vpack.c.b16 %v7182, %v7180
  %v7243 = vpack.c.b16 %v7183, %v7181
  %v7244 = vpack.c.b16 %v7186, %v7184
  %v7245 = vpack.c.b16 %v7187, %v7185
  %v7246 = vpack.c.b16 %v7190, %v7188
  %v7247 = vpack.c.b16 %v7191, %v7189
  %v7248 = vpack.c.b16 %v7194, %v7192
  %v7249 = vpack.c.b16 %v7195, %v7193
  %v7250 = vpack.c.b16 %v7198, %v7196
  %v7251 = vpack.c.b16 %v7199, %v7197
  %v7252 = vpack.c.b16 %v7202, %v7200
  %v7253 = vpack.c.b16 %v7203, %v7201
  %v7254 = vpack.c.b16 %v7206, %v7204
  %v7255 = vpack.c.b16 %v7207, %v7205
  %7304 = vmatprep.subr.bf16.mxu0 %v7209
  %7305 = vmatpush1.bf16.msra.mxu0 %v7208
  %7306 = vmatprep.subr.bf16.mxu0 %v7211
  %7307 = vmatpush1.bf16.msra.mxu0 %v7210
  %7308 = vmatprep.subr.bf16.mxu0 %v7213
  %7309 = vmatpush1.bf16.msra.mxu0 %v7212
  %7310 = vmatprep.subr.bf16.mxu0 %v7215
  %7311 = vmatpush1.bf16.msra.mxu0 %v7214
  %7312 = vmatprep.subr.bf16.mxu0 %v7217
  %7313 = vmatpush1.bf16.msra.mxu0 %v7216
  %7314 = vmatprep.subr.bf16.mxu0 %v7219
  %7315 = vmatpush1.bf16.msra.mxu0 %v7218
  %7316 = vmatprep.subr.bf16.mxu0 %v7221
  %7317 = vmatpush1.bf16.msra.mxu0 %v7220
  %7318 = vmatprep.subr.bf16.mxu0 %v7223
  %7319 = vmatpush1.bf16.msra.mxu0 %v7222
  %7320 = vmatprep.subr.bf16.mxu0 %v7225
  %7321 = vmatpush1.bf16.msra.mxu0 %v7224
  %7322 = vmatprep.subr.bf16.mxu0 %v7227
  %7323 = vmatpush1.bf16.msra.mxu0 %v7226
  %7324 = vmatprep.subr.bf16.mxu0 %v7229
  %7325 = vmatpush1.bf16.msra.mxu0 %v7228
  %7326 = vmatprep.subr.bf16.mxu0 %v7231
  %7327 = vmatpush1.bf16.msra.mxu0 %v7230
  %7328 = vmatprep.subr.bf16.mxu0 %v7233
  %7329 = vmatpush1.bf16.msra.mxu0 %v7232
  %7330 = vmatprep.subr.bf16.mxu0 %v7235
  %7331 = vmatpush1.bf16.msra.mxu0 %v7234
  %7332 = vmatprep.subr.bf16.mxu0 %v7237
  %7333 = vmatpush1.bf16.msra.mxu0 %v7236
  %7334 = vmatprep.subr.bf16.mxu0 %v7239
  %7335 = vmatpush1.bf16.msra.mxu0 %v7238
  %7336 = vmatprep.mubr.bf16.mxu0 %v6129
  %7337 = vmatmul.mubr.bf16.gmra.mrb[0].mxu0 %v6128
  %v7338 = vpop.f32.mrb[0].mxu0
  %v7339 = vadd.f32 0.0, %v7338
  %v7340 = vpop.f32.mrb[0].mxu0
  %v7341 = vadd.f32 0.0, %v7340
  %v7342 = vpop.f32.mrb[0].mxu0
  %v7343 = vadd.f32 0.0, %v7342
  %v7344 = vpop.f32.mrb[0].mxu0
  %v7345 = vadd.f32 0.0, %v7344
  %7346 = vmatprep.mubr.bf16.mxu0 %v6132
  %7347 = vmatmul.mubr.bf16.gmra.mrb[0].mxu0 %v6131
  %v7348 = vpop.f32.mrb[0].mxu0
  %v7349 = vadd.f32 0.0, %v7348
  %v7350 = vpop.f32.mrb[0].mxu0
  %v7351 = vadd.f32 0.0, %v7350
  %v7352 = vpop.f32.mrb[0].mxu0
  %v7353 = vadd.f32 0.0, %v7352
  %v7354 = vpop.f32.mrb[0].mxu0
  %v7355 = vadd.f32 0.0, %v7354
  %7356 = vmatprep.mubr.bf16.mxu0 %v7013
  %7357 = vmatmul.mubr.bf16.gmra.mrb[0].mxu0 %v7012
  %v7358 = vpop.f32.mrb[0].mxu0
  %v7359 = vadd.f32 0.0, %v7358
  %v7360 = vpop.f32.mrb[0].mxu0
  %v7361 = vadd.f32 0.0, %v7360
  %v7362 = vpop.f32.mrb[0].mxu0
  %v7363 = vadd.f32 0.0, %v7362
  %v7364 = vpop.f32.mrb[0].mxu0
  %v7365 = vadd.f32 0.0, %v7364
  %7366 = vdwg.mxu0
  %7367 = vmatprep.subr.bf16.mxu0 %v7241
  %7368 = vmatpush1.bf16.msra.mxu0 %v7240
  %7369 = vmatprep.subr.bf16.mxu0 %v7243
  %7370 = vmatpush1.bf16.msra.mxu0 %v7242
  %7371 = vmatprep.subr.bf16.mxu0 %v7245
  %7372 = vmatpush1.bf16.msra.mxu0 %v7244
  %7373 = vmatprep.subr.bf16.mxu0 %v7247
  %7374 = vmatpush1.bf16.msra.mxu0 %v7246
  %7375 = vmatprep.subr.bf16.mxu0 %v7249
  %7376 = vmatpush1.bf16.msra.mxu0 %v7248
  %7377 = vmatprep.subr.bf16.mxu0 %v7251
  %7378 = vmatpush1.bf16.msra.mxu0 %v7250
  %7379 = vmatprep.subr.bf16.mxu0 %v7253
  %7380 = vmatpush1.bf16.msra.mxu0 %v7252
  %7381 = vmatprep.subr.bf16.mxu0 %v7255
  %7382 = vmatpush1.bf16.msra.mxu0 %v7254
  %7383 = vmatprep.subr.bf16.mxu0 0
  %7384 = vmatpush1.bf16.msra.mxu0 0
  %7385 = vmatprep.subr.bf16.mxu0 0
  %7386 = vmatpush1.bf16.msra.mxu0 0
  %7387 = vmatprep.subr.bf16.mxu0 0
  %7388 = vmatpush1.bf16.msra.mxu0 0
  %7389 = vmatprep.subr.bf16.mxu0 0
  %7390 = vmatpush1.bf16.msra.mxu0 0
  %7391 = vmatprep.subr.bf16.mxu0 0
  %7392 = vmatpush1.bf16.msra.mxu0 0
  %7393 = vmatprep.subr.bf16.mxu0 0
  %7394 = vmatpush1.bf16.msra.mxu0 0
  %7395 = vmatprep.subr.bf16.mxu0 0
  %7396 = vmatpush1.bf16.msra.mxu0 0
  %7397 = vmatprep.subr.bf16.mxu0 0
  %7398 = vmatpush1.bf16.msra.mxu0 0
  %7399 = vmatprep.mubr.bf16.mxu0 0
  %7400 = vmatmul.mubr.bf16.gmra.mrb[0].mxu0 %v6130
  %v7401 = vpop.f32.mrb[0].mxu0
  %v7402 = vadd.f32 %v7339, %v7401
  %v7403 = vpop.f32.mrb[0].mxu0
  %v7404 = vadd.f32 %v7341, %v7403
  %v7405 = vpop.f32.mrb[0].mxu0
  %v7406 = vadd.f32 %v7343, %v7405
  %v7407 = vpop.f32.mrb[0].mxu0
  %v7408 = vadd.f32 %v7345, %v7407
  %7409 = vmatprep.mubr.bf16.mxu0 0
  %7410 = vmatmul.mubr.bf16.gmra.mrb[0].mxu0 %v6133
  %v7411 = vpop.f32.mrb[0].mxu0
  %v7412 = vadd.f32 %v7349, %v7411
  %v7413 = vpop.f32.mrb[0].mxu0
  %v7414 = vadd.f32 %v7351, %v7413
  %v7415 = vpop.f32.mrb[0].mxu0
  %v7416 = vadd.f32 %v7353, %v7415
  %v7417 = vpop.f32.mrb[0].mxu0
  %v7418 = vadd.f32 %v7355, %v7417
  %7419 = vmatprep.mubr.bf16.mxu0 0
  %7420 = vmatmul.mubr.bf16.gmra.mrb[0].mxu0 %v7014
  %v7421 = vpop.f32.mrb[0].mxu0
  %v7422 = vadd.f32 %v7359, %v7421
  %v7423 = vpop.f32.mrb[0].mxu0
  %v7424 = vadd.f32 %v7361, %v7423
  %v7425 = vpop.f32.mrb[0].mxu0
  %v7426 = vadd.f32 %v7363, %v7425
  %v7427 = vpop.f32.mrb[0].mxu0
  %v7428 = vadd.f32 %v7365, %v7427
  %7429 = vdwg.mxu0
  %v7430 = vadd.f32 %v6984, %v7402
  %v7431 = vadd.f32 %v6986, %v7404
  %v7432 = vadd.f32 %v6988, %v7406
  %v7433 = vadd.f32 %v6990, %v7408
  %v7434 = vadd.f32 %v6994, %v7412
  %v7435 = vadd.f32 %v6996, %v7414
  %v7436 = vadd.f32 %v6998, %v7416
  %v7437 = vadd.f32 %v7000, %v7418
  %v7438 = vadd.f32 %v7004, %v7422
  %v7439 = vadd.f32 %v7006, %v7424
  %v7440 = vadd.f32 %v7008, %v7426
  %v7441 = vadd.f32 %v7010, %v7428
  %v7442 = vld [vmem:[#allocation2 + $0x18] sm:$0xf0]
  %v7443 = vld [vmem:[#allocation2 + $0x20] sm:$0xf0]
  %v7444 = vld [vmem:[#allocation2 + $0x28] sm:$0xf0]
  %v7445 = vld [vmem:[#allocation2 + $0x30] sm:$0xff]
  %v7446 = vld [vmem:[#allocation2 + $0x38] sm:$0xff]
  %v7447 = vld [vmem:[#allocation2 + $0x40] sm:$0xff]
  %v7448 = vld [vmem:[#allocation2 + $0x48] sm:$0xff]
  %v7449 = vld [vmem:[#allocation2 + $0x50] sm:$0xff]
  %v7450 = vld [vmem:[#allocation2 + $0x58] sm:$0xff]
  %v7451 = vld [vmem:[#allocation2 + $0x60] sm:$0xf]
  %v7452 = vld [vmem:[#allocation2 + $0x68] sm:$0xf]
  %v7453 = vld [vmem:[#allocation2 + $0x70] sm:$0xf]
  %s7454 = scalar_lea.vmem %s3, 1152
  %v7455 = vld [vmem:[%s7454] sm:$0xff]
  %v7456 = vld [vmem:[%s7454 + $0x8] sm:$0xff]
  %v7457 = vld [vmem:[%s7454 + $0x10] sm:$0xff]
  %v7458 = vld [vmem:[%s7454 + $0x18] sm:$0xff]
  %v7459 = vld [vmem:[%s7454 + $0x20] sm:$0xff]
  %v7460 = vld [vmem:[%s7454 + $0x28] sm:$0xff]
  %v7461 = vld [vmem:[%s7454 + $0x30] sm:$0xff]
  %v7462 = vld [vmem:[%s7454 + $0x38] sm:$0xff]
  %v7463 = vld [vmem:[%s7454 + $0x40] sm:$0xff]
  %v7464 = vld [vmem:[%s7454 + $0x48] sm:$0xff]
  %v7465 = vld [vmem:[%s7454 + $0x50] sm:$0xff]
  %v7466 = vld [vmem:[%s7454 + $0x58] sm:$0xff]
  %v7467 = vld [vmem:[%s7454 + $0x60] sm:$0xff]
  %v7468 = vld [vmem:[%s7454 + $0x68] sm:$0xff]
  %v7469 = vld [vmem:[%s7454 + $0x70] sm:$0xff]
  %v7470 = vld [vmem:[%s7454 + $0x78] sm:$0xff]
  %v7471 = vld [vmem:[%s7454 + $0x80] sm:$0xff]
  %v7472 = vld [vmem:[%s7454 + $0x88] sm:$0xff]
  %v7473 = vld [vmem:[%s7454 + $0x90] sm:$0xff]
  %v7474 = vld [vmem:[%s7454 + $0x98] sm:$0xff]
  %v7475 = vld [vmem:[%s7454 + $0xa0] sm:$0xff]
  %v7476 = vld [vmem:[%s7454 + $0xa8] sm:$0xff]
  %v7477 = vld [vmem:[%s7454 + $0xb0] sm:$0xff]
  %v7478 = vld [vmem:[%s7454 + $0xb8] sm:$0xff]
  %v7479 = vld [vmem:[%s7454 + $0xc0] sm:$0xff]
  %v7480 = vld [vmem:[%s7454 + $0xc8] sm:$0xff]
  %v7481 = vld [vmem:[%s7454 + $0xd0] sm:$0xff]
  %v7482 = vld [vmem:[%s7454 + $0xd8] sm:$0xff]
  %v7483 = vld [vmem:[%s7454 + $0xe0] sm:$0xff]
  %v7484 = vld [vmem:[%s7454 + $0xe8] sm:$0xff]
  %v7485 = vld [vmem:[%s7454 + $0xf0] sm:$0xff]
  %v7486 = vld [vmem:[%s7454 + $0xf8] sm:$0xff]
  %v7487 = vld [vmem:[%s7454 + $0x100] sm:$0xff]
  %v7488 = vld [vmem:[%s7454 + $0x108] sm:$0xff]
  %v7489 = vld [vmem:[%s7454 + $0x110] sm:$0xff]
  %v7490 = vld [vmem:[%s7454 + $0x118] sm:$0xff]
  %v7491 = vld [vmem:[%s7454 + $0x120] sm:$0xff]
  %v7492 = vld [vmem:[%s7454 + $0x128] sm:$0xff]
  %v7493 = vld [vmem:[%s7454 + $0x130] sm:$0xff]
  %v7494 = vld [vmem:[%s7454 + $0x138] sm:$0xff]
  %v7495 = vld [vmem:[%s7454 + $0x140] sm:$0xff]
  %v7496 = vld [vmem:[%s7454 + $0x148] sm:$0xff]
  %v7497 = vld [vmem:[%s7454 + $0x150] sm:$0xff]
  %v7498 = vld [vmem:[%s7454 + $0x158] sm:$0xff]
  %v7499 = vld [vmem:[%s7454 + $0x160] sm:$0xff]
  %v7500 = vld [vmem:[%s7454 + $0x168] sm:$0xff]
  %v7501 = vld [vmem:[%s7454 + $0x170] sm:$0xff]
  %v7502 = vld [vmem:[%s7454 + $0x178] sm:$0xff]
  %v7515 = vrot.slane %v7442, 4
  %v7516 = vrot.slane %v7445, 4
  %v7517 = vsel %vm6249, %v7515, %v7516
  %v7518 = vrot.slane %v7443, 4
  %v7519 = vrot.slane %v7446, 4
  %v7520 = vsel %vm6249, %v7518, %v7519
  %v7521 = vrot.slane %v7444, 4
  %v7522 = vrot.slane %v7447, 4
  %v7523 = vsel %vm6249, %v7521, %v7522
  %v7524 = vrot.slane %v7448, 4
  %v7525 = vsel %vm6249, %v7516, %v7524
  %v7526 = vrot.slane %v7449, 4
  %v7527 = vsel %vm6249, %v7519, %v7526
  %v7528 = vrot.slane %v7450, 4
  %v7529 = vsel %vm6249, %v7522, %v7528
  %v7530 = vrot.slane %v7451, 4
  %v7531 = vsel %vm6249, %v7524, %v7530
  %v7532 = vrot.slane %v7452, 4
  %v7533 = vsel %vm6249, %v7526, %v7532
  %v7534 = vrot.slane %v7453, 4
  %v7535 = vsel %vm6249, %v7528, %v7534
  %v7593 = vunpack.c.l.b16 %v7455
  %v7594 = vunpack.c.h.b16 %v7455
  %v7595 = vunpack.c.l.b16 %v7456
  %v7596 = vunpack.c.h.b16 %v7456
  %v7597 = vunpack.c.l.b16 %v7457
  %v7598 = vunpack.c.h.b16 %v7457
  %v7599 = vunpack.c.l.b16 %v7458
  %v7600 = vunpack.c.h.b16 %v7458
  %v7601 = vunpack.c.l.b16 %v7459
  %v7602 = vunpack.c.h.b16 %v7459
  %v7603 = vunpack.c.l.b16 %v7460
  %v7604 = vunpack.c.h.b16 %v7460
  %v7605 = vunpack.c.l.b16 %v7461
  %v7606 = vunpack.c.h.b16 %v7461
  %v7607 = vunpack.c.l.b16 %v7462
  %v7608 = vunpack.c.h.b16 %v7462
  %v7609 = vunpack.c.l.b16 %v7463
  %v7610 = vunpack.c.h.b16 %v7463
  %v7611 = vunpack.c.l.b16 %v7464
  %v7612 = vunpack.c.h.b16 %v7464
  %v7613 = vunpack.c.l.b16 %v7465
  %v7614 = vunpack.c.h.b16 %v7465
  %v7615 = vunpack.c.l.b16 %v7466
  %v7616 = vunpack.c.h.b16 %v7466
  %v7617 = vunpack.c.l.b16 %v7467
  %v7618 = vunpack.c.h.b16 %v7467
  %v7619 = vunpack.c.l.b16 %v7468
  %v7620 = vunpack.c.h.b16 %v7468
  %v7621 = vunpack.c.l.b16 %v7469
  %v7622 = vunpack.c.h.b16 %v7469
  %v7623 = vunpack.c.l.b16 %v7470
  %v7624 = vunpack.c.h.b16 %v7470
  %v7625 = vunpack.c.l.b16 %v7471
  %v7626 = vunpack.c.h.b16 %v7471
  %v7627 = vunpack.c.l.b16 %v7472
  %v7628 = vunpack.c.h.b16 %v7472
  %v7629 = vunpack.c.l.b16 %v7473
  %v7630 = vunpack.c.h.b16 %v7473
  %v7631 = vunpack.c.l.b16 %v7474
  %v7632 = vunpack.c.h.b16 %v7474
  %v7633 = vunpack.c.l.b16 %v7475
  %v7634 = vunpack.c.h.b16 %v7475
  %v7635 = vunpack.c.l.b16 %v7476
  %v7636 = vunpack.c.h.b16 %v7476
  %v7637 = vunpack.c.l.b16 %v7477
  %v7638 = vunpack.c.h.b16 %v7477
  %v7639 = vunpack.c.l.b16 %v7478
  %v7640 = vunpack.c.h.b16 %v7478
  %v7641 = vunpack.c.l.b16 %v7479
  %v7642 = vunpack.c.h.b16 %v7479
  %v7643 = vunpack.c.l.b16 %v7480
  %v7644 = vunpack.c.h.b16 %v7480
  %v7645 = vunpack.c.l.b16 %v7481
  %v7646 = vunpack.c.h.b16 %v7481
  %v7647 = vunpack.c.l.b16 %v7482
  %v7648 = vunpack.c.h.b16 %v7482
  %v7649 = vunpack.c.l.b16 %v7483
  %v7650 = vunpack.c.h.b16 %v7483
  %v7651 = vunpack.c.l.b16 %v7484
  %v7652 = vunpack.c.h.b16 %v7484
  %v7653 = vunpack.c.l.b16 %v7485
  %v7654 = vunpack.c.h.b16 %v7485
  %v7655 = vunpack.c.l.b16 %v7486
  %v7656 = vunpack.c.h.b16 %v7486
  %v7657 = vunpack.c.l.b16 %v7487
  %v7658 = vunpack.c.h.b16 %v7487
  %v7659 = vunpack.c.l.b16 %v7488
  %v7660 = vunpack.c.h.b16 %v7488
  %v7661 = vunpack.c.l.b16 %v7489
  %v7662 = vunpack.c.h.b16 %v7489
  %v7663 = vunpack.c.l.b16 %v7490
  %v7664 = vunpack.c.h.b16 %v7490
  %v7665 = vunpack.c.l.b16 %v7491
  %v7666 = vunpack.c.h.b16 %v7491
  %v7667 = vunpack.c.l.b16 %v7492
  %v7668 = vunpack.c.h.b16 %v7492
  %v7669 = vunpack.c.l.b16 %v7493
  %v7670 = vunpack.c.h.b16 %v7493
  %v7671 = vunpack.c.l.b16 %v7494
  %v7672 = vunpack.c.h.b16 %v7494
  %v7673 = vunpack.c.l.b16 %v7495
  %v7674 = vunpack.c.h.b16 %v7495
  %v7675 = vunpack.c.l.b16 %v7496
  %v7676 = vunpack.c.h.b16 %v7496
  %v7677 = vunpack.c.l.b16 %v7497
  %v7678 = vunpack.c.h.b16 %v7497
  %v7679 = vunpack.c.l.b16 %v7498
  %v7680 = vunpack.c.h.b16 %v7498
  %v7681 = vunpack.c.l.b16 %v7499
  %v7682 = vunpack.c.h.b16 %v7499
  %v7683 = vunpack.c.l.b16 %v7500
  %v7684 = vunpack.c.h.b16 %v7500
  %v7685 = vunpack.c.l.b16 %v7501
  %v7686 = vunpack.c.h.b16 %v7501
  %v7687 = vunpack.c.l.b16 %v7502
  %v7688 = vunpack.c.h.b16 %v7502
  %v7689 = vpack.c.b16 %v7595, %v7593
  %v7690 = vpack.c.b16 %v7596, %v7594
  %v7691 = vpack.c.b16 %v7599, %v7597
  %v7692 = vpack.c.b16 %v7600, %v7598
  %v7693 = vpack.c.b16 %v7603, %v7601
  %v7694 = vpack.c.b16 %v7604, %v7602
  %v7695 = vpack.c.b16 %v7607, %v7605
  %v7696 = vpack.c.b16 %v7608, %v7606
  %v7697 = vpack.c.b16 %v7611, %v7609
  %v7698 = vpack.c.b16 %v7612, %v7610
  %v7699 = vpack.c.b16 %v7615, %v7613
  %v7700 = vpack.c.b16 %v7616, %v7614
  %v7701 = vpack.c.b16 %v7619, %v7617
  %v7702 = vpack.c.b16 %v7620, %v7618
  %v7703 = vpack.c.b16 %v7623, %v7621
  %v7704 = vpack.c.b16 %v7624, %v7622
  %v7705 = vpack.c.b16 %v7627, %v7625
  %v7706 = vpack.c.b16 %v7628, %v7626
  %v7707 = vpack.c.b16 %v7631, %v7629
  %v7708 = vpack.c.b16 %v7632, %v7630
  %v7709 = vpack.c.b16 %v7635, %v7633
  %v7710 = vpack.c.b16 %v7636, %v7634
  %v7711 = vpack.c.b16 %v7639, %v7637
  %v7712 = vpack.c.b16 %v7640, %v7638
  %v7713 = vpack.c.b16 %v7643, %v7641
  %v7714 = vpack.c.b16 %v7644, %v7642
  %v7715 = vpack.c.b16 %v7647, %v7645
  %v7716 = vpack.c.b16 %v7648, %v7646
  %v7717 = vpack.c.b16 %v7651, %v7649
  %v7718 = vpack.c.b16 %v7652, %v7650
  %v7719 = vpack.c.b16 %v7655, %v7653
  %v7720 = vpack.c.b16 %v7656, %v7654
  %v7721 = vpack.c.b16 %v7659, %v7657
  %v7722 = vpack.c.b16 %v7660, %v7658
  %v7723 = vpack.c.b16 %v7663, %v7661
  %v7724 = vpack.c.b16 %v7664, %v7662
  %v7725 = vpack.c.b16 %v7667, %v7665
  %v7726 = vpack.c.b16 %v7668, %v7666
  %v7727 = vpack.c.b16 %v7671, %v7669
  %v7728 = vpack.c.b16 %v7672, %v7670
  %v7729 = vpack.c.b16 %v7675, %v7673
  %v7730 = vpack.c.b16 %v7676, %v7674
  %v7731 = vpack.c.b16 %v7679, %v7677
  %v7732 = vpack.c.b16 %v7680, %v7678
  %v7733 = vpack.c.b16 %v7683, %v7681
  %v7734 = vpack.c.b16 %v7684, %v7682
  %v7735 = vpack.c.b16 %v7687, %v7685
  %v7736 = vpack.c.b16 %v7688, %v7686
  %7785 = vmatprep.subr.bf16.mxu0 %v7690
  %7786 = vmatpush1.bf16.msra.mxu0 %v7689
  %7787 = vmatprep.subr.bf16.mxu0 %v7692
  %7788 = vmatpush1.bf16.msra.mxu0 %v7691
  %7789 = vmatprep.subr.bf16.mxu0 %v7694
  %7790 = vmatpush1.bf16.msra.mxu0 %v7693
  %7791 = vmatprep.subr.bf16.mxu0 %v7696
  %7792 = vmatpush1.bf16.msra.mxu0 %v7695
  %7793 = vmatprep.subr.bf16.mxu0 %v7698
  %7794 = vmatpush1.bf16.msra.mxu0 %v7697
  %7795 = vmatprep.subr.bf16.mxu0 %v7700
  %7796 = vmatpush1.bf16.msra.mxu0 %v7699
  %7797 = vmatprep.subr.bf16.mxu0 %v7702
  %7798 = vmatpush1.bf16.msra.mxu0 %v7701
  %7799 = vmatprep.subr.bf16.mxu0 %v7704
  %7800 = vmatpush1.bf16.msra.mxu0 %v7703
  %7801 = vmatprep.subr.bf16.mxu0 %v7706
  %7802 = vmatpush1.bf16.msra.mxu0 %v7705
  %7803 = vmatprep.subr.bf16.mxu0 %v7708
  %7804 = vmatpush1.bf16.msra.mxu0 %v7707
  %7805 = vmatprep.subr.bf16.mxu0 %v7710
  %7806 = vmatpush1.bf16.msra.mxu0 %v7709
  %7807 = vmatprep.subr.bf16.mxu0 %v7712
  %7808 = vmatpush1.bf16.msra.mxu0 %v7711
  %7809 = vmatprep.subr.bf16.mxu0 %v7714
  %7810 = vmatpush1.bf16.msra.mxu0 %v7713
  %7811 = vmatprep.subr.bf16.mxu0 %v7716
  %7812 = vmatpush1.bf16.msra.mxu0 %v7715
  %7813 = vmatprep.subr.bf16.mxu0 %v7718
  %7814 = vmatpush1.bf16.msra.mxu0 %v7717
  %7815 = vmatprep.subr.bf16.mxu0 %v7720
  %7816 = vmatpush1.bf16.msra.mxu0 %v7719
  %7817 = vmatprep.mubr.bf16.mxu0 %v7520
  %7818 = vmatmul.mubr.bf16.gmra.mrb[0].mxu0 %v7517
  %v7819 = vpop.f32.mrb[0].mxu0
  %v7820 = vadd.f32 0.0, %v7819
  %v7821 = vpop.f32.mrb[0].mxu0
  %v7822 = vadd.f32 0.0, %v7821
  %v7823 = vpop.f32.mrb[0].mxu0
  %v7824 = vadd.f32 0.0, %v7823
  %v7825 = vpop.f32.mrb[0].mxu0
  %v7826 = vadd.f32 0.0, %v7825
  %7827 = vmatprep.mubr.bf16.mxu0 %v7527
  %7828 = vmatmul.mubr.bf16.gmra.mrb[0].mxu0 %v7525
  %v7829 = vpop.f32.mrb[0].mxu0
  %v7830 = vadd.f32 0.0, %v7829
  %v7831 = vpop.f32.mrb[0].mxu0
  %v7832 = vadd.f32 0.0, %v7831
  %v7833 = vpop.f32.mrb[0].mxu0
  %v7834 = vadd.f32 0.0, %v7833
  %v7835 = vpop.f32.mrb[0].mxu0
  %v7836 = vadd.f32 0.0, %v7835
  %7837 = vmatprep.mubr.bf16.mxu0 %v7533
  %7838 = vmatmul.mubr.bf16.gmra.mrb[0].mxu0 %v7531
  %v7839 = vpop.f32.mrb[0].mxu0
  %v7840 = vadd.f32 0.0, %v7839
  %v7841 = vpop.f32.mrb[0].mxu0
  %v7842 = vadd.f32 0.0, %v7841
  %v7843 = vpop.f32.mrb[0].mxu0
  %v7844 = vadd.f32 0.0, %v7843
  %v7845 = vpop.f32.mrb[0].mxu0
  %v7846 = vadd.f32 0.0, %v7845
  %7847 = vdwg.mxu0
  %7848 = vmatprep.subr.bf16.mxu0 %v7722
  %7849 = vmatpush1.bf16.msra.mxu0 %v7721
  %7850 = vmatprep.subr.bf16.mxu0 %v7724
  %7851 = vmatpush1.bf16.msra.mxu0 %v7723
  %7852 = vmatprep.subr.bf16.mxu0 %v7726
  %7853 = vmatpush1.bf16.msra.mxu0 %v7725
  %7854 = vmatprep.subr.bf16.mxu0 %v7728
  %7855 = vmatpush1.bf16.msra.mxu0 %v7727
  %7856 = vmatprep.subr.bf16.mxu0 %v7730
  %7857 = vmatpush1.bf16.msra.mxu0 %v7729
  %7858 = vmatprep.subr.bf16.mxu0 %v7732
  %7859 = vmatpush1.bf16.msra.mxu0 %v7731
  %7860 = vmatprep.subr.bf16.mxu0 %v7734
  %7861 = vmatpush1.bf16.msra.mxu0 %v7733
  %7862 = vmatprep.subr.bf16.mxu0 %v7736
  %7863 = vmatpush1.bf16.msra.mxu0 %v7735
  %7864 = vmatprep.subr.bf16.mxu0 0
  %7865 = vmatpush1.bf16.msra.mxu0 0
  %7866 = vmatprep.subr.bf16.mxu0 0
  %7867 = vmatpush1.bf16.msra.mxu0 0
  %7868 = vmatprep.subr.bf16.mxu0 0
  %7869 = vmatpush1.bf16.msra.mxu0 0
  %7870 = vmatprep.subr.bf16.mxu0 0
  %7871 = vmatpush1.bf16.msra.mxu0 0
  %7872 = vmatprep.subr.bf16.mxu0 0
  %7873 = vmatpush1.bf16.msra.mxu0 0
  %7874 = vmatprep.subr.bf16.mxu0 0
  %7875 = vmatpush1.bf16.msra.mxu0 0
  %7876 = vmatprep.subr.bf16.mxu0 0
  %7877 = vmatpush1.bf16.msra.mxu0 0
  %7878 = vmatprep.subr.bf16.mxu0 0
  %7879 = vmatpush1.bf16.msra.mxu0 0
  %7880 = vmatprep.mubr.bf16.mxu0 0
  %7881 = vmatmul.mubr.bf16.gmra.mrb[0].mxu0 %v7523
  %v7882 = vpop.f32.mrb[0].mxu0
  %v7883 = vadd.f32 %v7820, %v7882
  %v7884 = vpop.f32.mrb[0].mxu0
  %v7885 = vadd.f32 %v7822, %v7884
  %v7886 = vpop.f32.mrb[0].mxu0
  %v7887 = vadd.f32 %v7824, %v7886
  %v7888 = vpop.f32.mrb[0].mxu0
  %v7889 = vadd.f32 %v7826, %v7888
  %7890 = vmatprep.mubr.bf16.mxu0 0
  %7891 = vmatmul.mubr.bf16.gmra.mrb[0].mxu0 %v7529
  %v7892 = vpop.f32.mrb[0].mxu0
  %v7893 = vadd.f32 %v7830, %v7892
  %v7894 = vpop.f32.mrb[0].mxu0
  %v7895 = vadd.f32 %v7832, %v7894
  %v7896 = vpop.f32.mrb[0].mxu0
  %v7897 = vadd.f32 %v7834, %v7896
  %v7898 = vpop.f32.mrb[0].mxu0
  %v7899 = vadd.f32 %v7836, %v7898
  %7900 = vmatprep.mubr.bf16.mxu0 0
  %7901 = vmatmul.mubr.bf16.gmra.mrb[0].mxu0 %v7535
  %v7902 = vpop.f32.mrb[0].mxu0
  %v7903 = vadd.f32 %v7840, %v7902
  %v7904 = vpop.f32.mrb[0].mxu0
  %v7905 = vadd.f32 %v7842, %v7904
  %v7906 = vpop.f32.mrb[0].mxu0
  %v7907 = vadd.f32 %v7844, %v7906
  %v7908 = vpop.f32.mrb[0].mxu0
  %v7909 = vadd.f32 %v7846, %v7908
  %7910 = vdwg.mxu0
  %v7911 = vadd.f32 %v7430, %v7883
  %v7912 = vadd.f32 %v7431, %v7885
  %v7913 = vadd.f32 %v7432, %v7887
  %v7914 = vadd.f32 %v7433, %v7889
  %v7915 = vadd.f32 %v7434, %v7893
  %v7916 = vadd.f32 %v7435, %v7895
  %v7917 = vadd.f32 %v7436, %v7897
  %v7918 = vadd.f32 %v7437, %v7899
  %v7919 = vadd.f32 %v7438, %v7903
  %v7920 = vadd.f32 %v7439, %v7905
  %v7921 = vadd.f32 %v7440, %v7907
  %v7922 = vadd.f32 %v7441, %v7909
  %v7923 = vld [vmem:[#allocation2 + $0x60] sm:$0xff]
  %v7924 = vld [vmem:[#allocation2 + $0x68] sm:$0xff]
  %v7925 = vld [vmem:[#allocation2 + $0x70] sm:$0xff]
  %s7926 = scalar_lea.vmem %s3, 1536
  %v7927 = vld [vmem:[%s7926] sm:$0xff]
  %v7928 = vld [vmem:[%s7926 + $0x8] sm:$0xff]
  %v7929 = vld [vmem:[%s7926 + $0x10] sm:$0xff]
  %v7930 = vld [vmem:[%s7926 + $0x18] sm:$0xff]
  %v7931 = vld [vmem:[%s7926 + $0x20] sm:$0xff]
  %v7932 = vld [vmem:[%s7926 + $0x28] sm:$0xff]
  %v7933 = vld [vmem:[%s7926 + $0x30] sm:$0xff]
  %v7934 = vld [vmem:[%s7926 + $0x38] sm:$0xff]
  %v7935 = vld [vmem:[%s7926 + $0x40] sm:$0xff]
  %v7936 = vld [vmem:[%s7926 + $0x48] sm:$0xff]
  %v7937 = vld [vmem:[%s7926 + $0x50] sm:$0xff]
  %v7938 = vld [vmem:[%s7926 + $0x58] sm:$0xff]
  %v7939 = vld [vmem:[%s7926 + $0x60] sm:$0xff]
  %v7940 = vld [vmem:[%s7926 + $0x68] sm:$0xff]
  %v7941 = vld [vmem:[%s7926 + $0x70] sm:$0xff]
  %v7942 = vld [vmem:[%s7926 + $0x78] sm:$0xff]
  %v7943 = vld [vmem:[%s7926 + $0x80] sm:$0xff]
  %v7944 = vld [vmem:[%s7926 + $0x88] sm:$0xff]
  %v7945 = vld [vmem:[%s7926 + $0x90] sm:$0xff]
  %v7946 = vld [vmem:[%s7926 + $0x98] sm:$0xff]
  %v7947 = vld [vmem:[%s7926 + $0xa0] sm:$0xff]
  %v7948 = vld [vmem:[%s7926 + $0xa8] sm:$0xff]
  %v7949 = vld [vmem:[%s7926 + $0xb0] sm:$0xff]
  %v7950 = vld [vmem:[%s7926 + $0xb8] sm:$0xff]
  %v7951 = vld [vmem:[%s7926 + $0xc0] sm:$0xff]
  %v7952 = vld [vmem:[%s7926 + $0xc8] sm:$0xff]
  %v7953 = vld [vmem:[%s7926 + $0xd0] sm:$0xff]
  %v7954 = vld [vmem:[%s7926 + $0xd8] sm:$0xff]
  %v7955 = vld [vmem:[%s7926 + $0xe0] sm:$0xff]
  %v7956 = vld [vmem:[%s7926 + $0xe8] sm:$0xff]
  %v7957 = vld [vmem:[%s7926 + $0xf0] sm:$0xff]
  %v7958 = vld [vmem:[%s7926 + $0xf8] sm:$0xff]
  %v7959 = vld [vmem:[%s7926 + $0x100] sm:$0xff]
  %v7960 = vld [vmem:[%s7926 + $0x108] sm:$0xff]
  %v7961 = vld [vmem:[%s7926 + $0x110] sm:$0xff]
  %v7962 = vld [vmem:[%s7926 + $0x118] sm:$0xff]
  %v7963 = vld [vmem:[%s7926 + $0x120] sm:$0xff]
  %v7964 = vld [vmem:[%s7926 + $0x128] sm:$0xff]
  %v7965 = vld [vmem:[%s7926 + $0x130] sm:$0xff]
  %v7966 = vld [vmem:[%s7926 + $0x138] sm:$0xff]
  %v7967 = vld [vmem:[%s7926 + $0x140] sm:$0xff]
  %v7968 = vld [vmem:[%s7926 + $0x148] sm:$0xff]
  %v7969 = vld [vmem:[%s7926 + $0x150] sm:$0xff]
  %v7970 = vld [vmem:[%s7926 + $0x158] sm:$0xff]
  %v7971 = vld [vmem:[%s7926 + $0x160] sm:$0xff]
  %v7972 = vld [vmem:[%s7926 + $0x168] sm:$0xff]
  %v7973 = vld [vmem:[%s7926 + $0x170] sm:$0xff]
  %v7974 = vld [vmem:[%s7926 + $0x178] sm:$0xff]
  %v8023 = vunpack.c.l.b16 %v7927
  %v8024 = vunpack.c.h.b16 %v7927
  %v8025 = vunpack.c.l.b16 %v7928
  %v8026 = vunpack.c.h.b16 %v7928
  %v8027 = vunpack.c.l.b16 %v7929
  %v8028 = vunpack.c.h.b16 %v7929
  %v8029 = vunpack.c.l.b16 %v7930
  %v8030 = vunpack.c.h.b16 %v7930
  %v8031 = vunpack.c.l.b16 %v7931
  %v8032 = vunpack.c.h.b16 %v7931
  %v8033 = vunpack.c.l.b16 %v7932
  %v8034 = vunpack.c.h.b16 %v7932
  %v8035 = vunpack.c.l.b16 %v7933
  %v8036 = vunpack.c.h.b16 %v7933
  %v8037 = vunpack.c.l.b16 %v7934
  %v8038 = vunpack.c.h.b16 %v7934
  %v8039 = vunpack.c.l.b16 %v7935
  %v8040 = vunpack.c.h.b16 %v7935
  %v8041 = vunpack.c.l.b16 %v7936
  %v8042 = vunpack.c.h.b16 %v7936
  %v8043 = vunpack.c.l.b16 %v7937
  %v8044 = vunpack.c.h.b16 %v7937
  %v8045 = vunpack.c.l.b16 %v7938
  %v8046 = vunpack.c.h.b16 %v7938
  %v8047 = vunpack.c.l.b16 %v7939
  %v8048 = vunpack.c.h.b16 %v7939
  %v8049 = vunpack.c.l.b16 %v7940
  %v8050 = vunpack.c.h.b16 %v7940
  %v8051 = vunpack.c.l.b16 %v7941
  %v8052 = vunpack.c.h.b16 %v7941
  %v8053 = vunpack.c.l.b16 %v7942
  %v8054 = vunpack.c.h.b16 %v7942
  %v8055 = vunpack.c.l.b16 %v7943
  %v8056 = vunpack.c.h.b16 %v7943
  %v8057 = vunpack.c.l.b16 %v7944
  %v8058 = vunpack.c.h.b16 %v7944
  %v8059 = vunpack.c.l.b16 %v7945
  %v8060 = vunpack.c.h.b16 %v7945
  %v8061 = vunpack.c.l.b16 %v7946
  %v8062 = vunpack.c.h.b16 %v7946
  %v8063 = vunpack.c.l.b16 %v7947
  %v8064 = vunpack.c.h.b16 %v7947
  %v8065 = vunpack.c.l.b16 %v7948
  %v8066 = vunpack.c.h.b16 %v7948
  %v8067 = vunpack.c.l.b16 %v7949
  %v8068 = vunpack.c.h.b16 %v7949
  %v8069 = vunpack.c.l.b16 %v7950
  %v8070 = vunpack.c.h.b16 %v7950
  %v8071 = vunpack.c.l.b16 %v7951
  %v8072 = vunpack.c.h.b16 %v7951
  %v8073 = vunpack.c.l.b16 %v7952
  %v8074 = vunpack.c.h.b16 %v7952
  %v8075 = vunpack.c.l.b16 %v7953
  %v8076 = vunpack.c.h.b16 %v7953
  %v8077 = vunpack.c.l.b16 %v7954
  %v8078 = vunpack.c.h.b16 %v7954
  %v8079 = vunpack.c.l.b16 %v7955
  %v8080 = vunpack.c.h.b16 %v7955
  %v8081 = vunpack.c.l.b16 %v7956
  %v8082 = vunpack.c.h.b16 %v7956
  %v8083 = vunpack.c.l.b16 %v7957
  %v8084 = vunpack.c.h.b16 %v7957
  %v8085 = vunpack.c.l.b16 %v7958
  %v8086 = vunpack.c.h.b16 %v7958
  %v8087 = vunpack.c.l.b16 %v7959
  %v8088 = vunpack.c.h.b16 %v7959
  %v8089 = vunpack.c.l.b16 %v7960
  %v8090 = vunpack.c.h.b16 %v7960
  %v8091 = vunpack.c.l.b16 %v7961
  %v8092 = vunpack.c.h.b16 %v7961
  %v8093 = vunpack.c.l.b16 %v7962
  %v8094 = vunpack.c.h.b16 %v7962
  %v8095 = vunpack.c.l.b16 %v7963
  %v8096 = vunpack.c.h.b16 %v7963
  %v8097 = vunpack.c.l.b16 %v7964
  %v8098 = vunpack.c.h.b16 %v7964
  %v8099 = vunpack.c.l.b16 %v7965
  %v8100 = vunpack.c.h.b16 %v7965
  %v8101 = vunpack.c.l.b16 %v7966
  %v8102 = vunpack.c.h.b16 %v7966
  %v8103 = vunpack.c.l.b16 %v7967
  %v8104 = vunpack.c.h.b16 %v7967
  %v8105 = vunpack.c.l.b16 %v7968
  %v8106 = vunpack.c.h.b16 %v7968
  %v8107 = vunpack.c.l.b16 %v7969
  %v8108 = vunpack.c.h.b16 %v7969
  %v8109 = vunpack.c.l.b16 %v7970
  %v8110 = vunpack.c.h.b16 %v7970
  %v8111 = vunpack.c.l.b16 %v7971
  %v8112 = vunpack.c.h.b16 %v7971
  %v8113 = vunpack.c.l.b16 %v7972
  %v8114 = vunpack.c.h.b16 %v7972
  %v8115 = vunpack.c.l.b16 %v7973
  %v8116 = vunpack.c.h.b16 %v7973
  %v8117 = vunpack.c.l.b16 %v7974
  %v8118 = vunpack.c.h.b16 %v7974
  %v8119 = vpack.c.b16 %v8025, %v8023
  %v8120 = vpack.c.b16 %v8026, %v8024
  %v8121 = vpack.c.b16 %v8029, %v8027
  %v8122 = vpack.c.b16 %v8030, %v8028
  %v8123 = vpack.c.b16 %v8033, %v8031
  %v8124 = vpack.c.b16 %v8034, %v8032
  %v8125 = vpack.c.b16 %v8037, %v8035
  %v8126 = vpack.c.b16 %v8038, %v8036
  %v8127 = vpack.c.b16 %v8041, %v8039
  %v8128 = vpack.c.b16 %v8042, %v8040
  %v8129 = vpack.c.b16 %v8045, %v8043
  %v8130 = vpack.c.b16 %v8046, %v8044
  %v8131 = vpack.c.b16 %v8049, %v8047
  %v8132 = vpack.c.b16 %v8050, %v8048
  %v8133 = vpack.c.b16 %v8053, %v8051
  %v8134 = vpack.c.b16 %v8054, %v8052
  %v8135 = vpack.c.b16 %v8057, %v8055
  %v8136 = vpack.c.b16 %v8058, %v8056
  %v8137 = vpack.c.b16 %v8061, %v8059
  %v8138 = vpack.c.b16 %v8062, %v8060
  %v8139 = vpack.c.b16 %v8065, %v8063
  %v8140 = vpack.c.b16 %v8066, %v8064
  %v8141 = vpack.c.b16 %v8069, %v8067
  %v8142 = vpack.c.b16 %v8070, %v8068
  %v8143 = vpack.c.b16 %v8073, %v8071
  %v8144 = vpack.c.b16 %v8074, %v8072
  %v8145 = vpack.c.b16 %v8077, %v8075
  %v8146 = vpack.c.b16 %v8078, %v8076
  %v8147 = vpack.c.b16 %v8081, %v8079
  %v8148 = vpack.c.b16 %v8082, %v8080
  %v8149 = vpack.c.b16 %v8085, %v8083
  %v8150 = vpack.c.b16 %v8086, %v8084
  %v8151 = vpack.c.b16 %v8089, %v8087
  %v8152 = vpack.c.b16 %v8090, %v8088
  %v8153 = vpack.c.b16 %v8093, %v8091
  %v8154 = vpack.c.b16 %v8094, %v8092
  %v8155 = vpack.c.b16 %v8097, %v8095
  %v8156 = vpack.c.b16 %v8098, %v8096
  %v8157 = vpack.c.b16 %v8101, %v8099
  %v8158 = vpack.c.b16 %v8102, %v8100
  %v8159 = vpack.c.b16 %v8105, %v8103
  %v8160 = vpack.c.b16 %v8106, %v8104
  %v8161 = vpack.c.b16 %v8109, %v8107
  %v8162 = vpack.c.b16 %v8110, %v8108
  %v8163 = vpack.c.b16 %v8113, %v8111
  %v8164 = vpack.c.b16 %v8114, %v8112
  %v8165 = vpack.c.b16 %v8117, %v8115
  %v8166 = vpack.c.b16 %v8118, %v8116
  %8215 = vmatprep.subr.bf16.mxu0 %v8120
  %8216 = vmatpush1.bf16.msra.mxu0 %v8119
  %8217 = vmatprep.subr.bf16.mxu0 %v8122
  %8218 = vmatpush1.bf16.msra.mxu0 %v8121
  %8219 = vmatprep.subr.bf16.mxu0 %v8124
  %8220 = vmatpush1.bf16.msra.mxu0 %v8123
  %8221 = vmatprep.subr.bf16.mxu0 %v8126
  %8222 = vmatpush1.bf16.msra.mxu0 %v8125
  %8223 = vmatprep.subr.bf16.mxu0 %v8128
  %8224 = vmatpush1.bf16.msra.mxu0 %v8127
  %8225 = vmatprep.subr.bf16.mxu0 %v8130
  %8226 = vmatpush1.bf16.msra.mxu0 %v8129
  %8227 = vmatprep.subr.bf16.mxu0 %v8132
  %8228 = vmatpush1.bf16.msra.mxu0 %v8131
  %8229 = vmatprep.subr.bf16.mxu0 %v8134
  %8230 = vmatpush1.bf16.msra.mxu0 %v8133
  %8231 = vmatprep.subr.bf16.mxu0 %v8136
  %8232 = vmatpush1.bf16.msra.mxu0 %v8135
  %8233 = vmatprep.subr.bf16.mxu0 %v8138
  %8234 = vmatpush1.bf16.msra.mxu0 %v8137
  %8235 = vmatprep.subr.bf16.mxu0 %v8140
  %8236 = vmatpush1.bf16.msra.mxu0 %v8139
  %8237 = vmatprep.subr.bf16.mxu0 %v8142
  %8238 = vmatpush1.bf16.msra.mxu0 %v8141
  %8239 = vmatprep.subr.bf16.mxu0 %v8144
  %8240 = vmatpush1.bf16.msra.mxu0 %v8143
  %8241 = vmatprep.subr.bf16.mxu0 %v8146
  %8242 = vmatpush1.bf16.msra.mxu0 %v8145
  %8243 = vmatprep.subr.bf16.mxu0 %v8148
  %8244 = vmatpush1.bf16.msra.mxu0 %v8147
  %8245 = vmatprep.subr.bf16.mxu0 %v8150
  %8246 = vmatpush1.bf16.msra.mxu0 %v8149
  %8247 = vmatprep.mubr.bf16.mxu0 %v7446
  %8248 = vmatmul.mubr.bf16.gmra.mrb[0].mxu0 %v7445
  %v8249 = vpop.f32.mrb[0].mxu0
  %v8250 = vadd.f32 0.0, %v8249
  %v8251 = vpop.f32.mrb[0].mxu0
  %v8252 = vadd.f32 0.0, %v8251
  %v8253 = vpop.f32.mrb[0].mxu0
  %v8254 = vadd.f32 0.0, %v8253
  %v8255 = vpop.f32.mrb[0].mxu0
  %v8256 = vadd.f32 0.0, %v8255
  %8257 = vmatprep.mubr.bf16.mxu0 %v7449
  %8258 = vmatmul.mubr.bf16.gmra.mrb[0].mxu0 %v7448
  %v8259 = vpop.f32.mrb[0].mxu0
  %v8260 = vadd.f32 0.0, %v8259
  %v8261 = vpop.f32.mrb[0].mxu0
  %v8262 = vadd.f32 0.0, %v8261
  %v8263 = vpop.f32.mrb[0].mxu0
  %v8264 = vadd.f32 0.0, %v8263
  %v8265 = vpop.f32.mrb[0].mxu0
  %v8266 = vadd.f32 0.0, %v8265
  %8267 = vmatprep.mubr.bf16.mxu0 %v7924
  %8268 = vmatmul.mubr.bf16.gmra.mrb[0].mxu0 %v7923
  %v8269 = vpop.f32.mrb[0].mxu0
  %v8270 = vadd.f32 0.0, %v8269
  %v8271 = vpop.f32.mrb[0].mxu0
  %v8272 = vadd.f32 0.0, %v8271
  %v8273 = vpop.f32.mrb[0].mxu0
  %v8274 = vadd.f32 0.0, %v8273
  %v8275 = vpop.f32.mrb[0].mxu0
  %v8276 = vadd.f32 0.0, %v8275
  %8277 = vdwg.mxu0
  %8278 = vmatprep.subr.bf16.mxu0 %v8152
  %8279 = vmatpush1.bf16.msra.mxu0 %v8151
  %8280 = vmatprep.subr.bf16.mxu0 %v8154
  %8281 = vmatpush1.bf16.msra.mxu0 %v8153
  %8282 = vmatprep.subr.bf16.mxu0 %v8156
  %8283 = vmatpush1.bf16.msra.mxu0 %v8155
  %8284 = vmatprep.subr.bf16.mxu0 %v8158
  %8285 = vmatpush1.bf16.msra.mxu0 %v8157
  %8286 = vmatprep.subr.bf16.mxu0 %v8160
  %8287 = vmatpush1.bf16.msra.mxu0 %v8159
  %8288 = vmatprep.subr.bf16.mxu0 %v8162
  %8289 = vmatpush1.bf16.msra.mxu0 %v8161
  %8290 = vmatprep.subr.bf16.mxu0 %v8164
  %8291 = vmatpush1.bf16.msra.mxu0 %v8163
  %8292 = vmatprep.subr.bf16.mxu0 %v8166
  %8293 = vmatpush1.bf16.msra.mxu0 %v8165
  %8294 = vmatprep.subr.bf16.mxu0 0
  %8295 = vmatpush1.bf16.msra.mxu0 0
  %8296 = vmatprep.subr.bf16.mxu0 0
  %8297 = vmatpush1.bf16.msra.mxu0 0
  %8298 = vmatprep.subr.bf16.mxu0 0
  %8299 = vmatpush1.bf16.msra.mxu0 0
  %8300 = vmatprep.subr.bf16.mxu0 0
  %8301 = vmatpush1.bf16.msra.mxu0 0
  %8302 = vmatprep.subr.bf16.mxu0 0
  %8303 = vmatpush1.bf16.msra.mxu0 0
  %8304 = vmatprep.subr.bf16.mxu0 0
  %8305 = vmatpush1.bf16.msra.mxu0 0
  %8306 = vmatprep.subr.bf16.mxu0 0
  %8307 = vmatpush1.bf16.msra.mxu0 0
  %8308 = vmatprep.subr.bf16.mxu0 0
  %8309 = vmatpush1.bf16.msra.mxu0 0
  %8310 = vmatprep.mubr.bf16.mxu0 0
  %8311 = vmatmul.mubr.bf16.gmra.mrb[0].mxu0 %v7447
  %v8312 = vpop.f32.mrb[0].mxu0
  %v8313 = vadd.f32 %v8250, %v8312
  %v8314 = vpop.f32.mrb[0].mxu0
  %v8315 = vadd.f32 %v8252, %v8314
  %v8316 = vpop.f32.mrb[0].mxu0
  %v8317 = vadd.f32 %v8254, %v8316
  %v8318 = vpop.f32.mrb[0].mxu0
  %v8319 = vadd.f32 %v8256, %v8318
  %8320 = vmatprep.mubr.bf16.mxu0 0
  %8321 = vmatmul.mubr.bf16.gmra.mrb[0].mxu0 %v7450
  %v8322 = vpop.f32.mrb[0].mxu0
  %v8323 = vadd.f32 %v8260, %v8322
  %v8324 = vpop.f32.mrb[0].mxu0
  %v8325 = vadd.f32 %v8262, %v8324
  %v8326 = vpop.f32.mrb[0].mxu0
  %v8327 = vadd.f32 %v8264, %v8326
  %v8328 = vpop.f32.mrb[0].mxu0
  %v8329 = vadd.f32 %v8266, %v8328
  %8330 = vmatprep.mubr.bf16.mxu0 0
  %8331 = vmatmul.mubr.bf16.gmra.mrb[0].mxu0 %v7925
  %v8332 = vpop.f32.mrb[0].mxu0
  %v8333 = vadd.f32 %v8270, %v8332
  %v8334 = vpop.f32.mrb[0].mxu0
  %v8335 = vadd.f32 %v8272, %v8334
  %v8336 = vpop.f32.mrb[0].mxu0
  %v8337 = vadd.f32 %v8274, %v8336
  %v8338 = vpop.f32.mrb[0].mxu0
  %v8339 = vadd.f32 %v8276, %v8338
  %8340 = vdwg.mxu0
  %v8341 = vadd.f32 %v7911, %v8313
  %v8342 = vadd.f32 %v7912, %v8315
  %v8343 = vadd.f32 %v7913, %v8317
  %v8344 = vadd.f32 %v7914, %v8319
  %v8345 = vadd.f32 %v7915, %v8323
  %v8346 = vadd.f32 %v7916, %v8325
  %v8347 = vadd.f32 %v7917, %v8327
  %v8348 = vadd.f32 %v7918, %v8329
  %v8349 = vadd.f32 %v7919, %v8333
  %v8350 = vadd.f32 %v7920, %v8335
  %v8351 = vadd.f32 %v7921, %v8337
  %v8352 = vadd.f32 %v7922, %v8339
  %v8353 = vld [vmem:[#allocation2 + $0x30] sm:$0xf0]
  %v8354 = vld [vmem:[#allocation2 + $0x38] sm:$0xf0]
  %v8355 = vld [vmem:[#allocation2 + $0x40] sm:$0xf0]
  %v8356 = vld [vmem:[#allocation2 + $0x48] sm:$0xff]
  %v8357 = vld [vmem:[#allocation2 + $0x50] sm:$0xff]
  %v8358 = vld [vmem:[#allocation2 + $0x58] sm:$0xff]
  %v8359 = vld [vmem:[#allocation2 + $0x60] sm:$0xff]
  %v8360 = vld [vmem:[#allocation2 + $0x68] sm:$0xff]
  %v8361 = vld [vmem:[#allocation2 + $0x70] sm:$0xff]
  %v8362 = vld [vmem:[#allocation2 + $0x78] sm:$0xf]
  %v8363 = vld [vmem:[#allocation2 + $0x80] sm:$0xf]
  %v8364 = vld [vmem:[#allocation2 + $0x88] sm:$0xf]
  %s8365 = scalar_lea.vmem %s3, 1920
  %v8366 = vld [vmem:[%s8365] sm:$0xff]
  %v8367 = vld [vmem:[%s8365 + $0x8] sm:$0xff]
  %v8368 = vld [vmem:[%s8365 + $0x10] sm:$0xff]
  %v8369 = vld [vmem:[%s8365 + $0x18] sm:$0xff]
  %v8370 = vld [vmem:[%s8365 + $0x20] sm:$0xff]
  %v8371 = vld [vmem:[%s8365 + $0x28] sm:$0xff]
  %v8372 = vld [vmem:[%s8365 + $0x30] sm:$0xff]
  %v8373 = vld [vmem:[%s8365 + $0x38] sm:$0xff]
  %v8374 = vld [vmem:[%s8365 + $0x40] sm:$0xff]
  %v8375 = vld [vmem:[%s8365 + $0x48] sm:$0xff]
  %v8376 = vld [vmem:[%s8365 + $0x50] sm:$0xff]
  %v8377 = vld [vmem:[%s8365 + $0x58] sm:$0xff]
  %v8378 = vld [vmem:[%s8365 + $0x60] sm:$0xff]
  %v8379 = vld [vmem:[%s8365 + $0x68] sm:$0xff]
  %v8380 = vld [vmem:[%s8365 + $0x70] sm:$0xff]
  %v8381 = vld [vmem:[%s8365 + $0x78] sm:$0xff]
  %v8382 = vld [vmem:[%s8365 + $0x80] sm:$0xff]
  %v8383 = vld [vmem:[%s8365 + $0x88] sm:$0xff]
  %v8384 = vld [vmem:[%s8365 + $0x90] sm:$0xff]
  %v8385 = vld [vmem:[%s8365 + $0x98] sm:$0xff]
  %v8386 = vld [vmem:[%s8365 + $0xa0] sm:$0xff]
  %v8387 = vld [vmem:[%s8365 + $0xa8] sm:$0xff]
  %v8388 = vld [vmem:[%s8365 + $0xb0] sm:$0xff]
  %v8389 = vld [vmem:[%s8365 + $0xb8] sm:$0xff]
  %v8390 = vld [vmem:[%s8365 + $0xc0] sm:$0xff]
  %v8391 = vld [vmem:[%s8365 + $0xc8] sm:$0xff]
  %v8392 = vld [vmem:[%s8365 + $0xd0] sm:$0xff]
  %v8393 = vld [vmem:[%s8365 + $0xd8] sm:$0xff]
  %v8394 = vld [vmem:[%s8365 + $0xe0] sm:$0xff]
  %v8395 = vld [vmem:[%s8365 + $0xe8] sm:$0xff]
  %v8396 = vld [vmem:[%s8365 + $0xf0] sm:$0xff]
  %v8397 = vld [vmem:[%s8365 + $0xf8] sm:$0xff]
  %v8398 = vld [vmem:[%s8365 + $0x100] sm:$0xff]
  %v8399 = vld [vmem:[%s8365 + $0x108] sm:$0xff]
  %v8400 = vld [vmem:[%s8365 + $0x110] sm:$0xff]
  %v8401 = vld [vmem:[%s8365 + $0x118] sm:$0xff]
  %v8402 = vld [vmem:[%s8365 + $0x120] sm:$0xff]
  %v8403 = vld [vmem:[%s8365 + $0x128] sm:$0xff]
  %v8404 = vld [vmem:[%s8365 + $0x130] sm:$0xff]
  %v8405 = vld [vmem:[%s8365 + $0x138] sm:$0xff]
  %v8406 = vld [vmem:[%s8365 + $0x140] sm:$0xff]
  %v8407 = vld [vmem:[%s8365 + $0x148] sm:$0xff]
  %v8408 = vld [vmem:[%s8365 + $0x150] sm:$0xff]
  %v8409 = vld [vmem:[%s8365 + $0x158] sm:$0xff]
  %v8410 = vld [vmem:[%s8365 + $0x160] sm:$0xff]
  %v8411 = vld [vmem:[%s8365 + $0x168] sm:$0xff]
  %v8412 = vld [vmem:[%s8365 + $0x170] sm:$0xff]
  %v8413 = vld [vmem:[%s8365 + $0x178] sm:$0xff]
  %v8426 = vrot.slane %v8353, 4
  %v8427 = vrot.slane %v8356, 4
  %v8428 = vsel %vm6249, %v8426, %v8427
  %v8429 = vrot.slane %v8354, 4
  %v8430 = vrot.slane %v8357, 4
  %v8431 = vsel %vm6249, %v8429, %v8430
  %v8432 = vrot.slane %v8355, 4
  %v8433 = vrot.slane %v8358, 4
  %v8434 = vsel %vm6249, %v8432, %v8433
  %v8435 = vrot.slane %v8359, 4
  %v8436 = vsel %vm6249, %v8427, %v8435
  %v8437 = vrot.slane %v8360, 4
  %v8438 = vsel %vm6249, %v8430, %v8437
  %v8439 = vrot.slane %v8361, 4
  %v8440 = vsel %vm6249, %v8433, %v8439
  %v8441 = vrot.slane %v8362, 4
  %v8442 = vsel %vm6249, %v8435, %v8441
  %v8443 = vrot.slane %v8363, 4
  %v8444 = vsel %vm6249, %v8437, %v8443
  %v8445 = vrot.slane %v8364, 4
  %v8446 = vsel %vm6249, %v8439, %v8445
  %v8504 = vunpack.c.l.b16 %v8366
  %v8505 = vunpack.c.h.b16 %v8366
  %v8506 = vunpack.c.l.b16 %v8367
  %v8507 = vunpack.c.h.b16 %v8367
  %v8508 = vunpack.c.l.b16 %v8368
  %v8509 = vunpack.c.h.b16 %v8368
  %v8510 = vunpack.c.l.b16 %v8369
  %v8511 = vunpack.c.h.b16 %v8369
  %v8512 = vunpack.c.l.b16 %v8370
  %v8513 = vunpack.c.h.b16 %v8370
  %v8514 = vunpack.c.l.b16 %v8371
  %v8515 = vunpack.c.h.b16 %v8371
  %v8516 = vunpack.c.l.b16 %v8372
  %v8517 = vunpack.c.h.b16 %v8372
  %v8518 = vunpack.c.l.b16 %v8373
  %v8519 = vunpack.c.h.b16 %v8373
  %v8520 = vunpack.c.l.b16 %v8374
  %v8521 = vunpack.c.h.b16 %v8374
  %v8522 = vunpack.c.l.b16 %v8375
  %v8523 = vunpack.c.h.b16 %v8375
  %v8524 = vunpack.c.l.b16 %v8376
  %v8525 = vunpack.c.h.b16 %v8376
  %v8526 = vunpack.c.l.b16 %v8377
  %v8527 = vunpack.c.h.b16 %v8377
  %v8528 = vunpack.c.l.b16 %v8378
  %v8529 = vunpack.c.h.b16 %v8378
  %v8530 = vunpack.c.l.b16 %v8379
  %v8531 = vunpack.c.h.b16 %v8379
  %v8532 = vunpack.c.l.b16 %v8380
  %v8533 = vunpack.c.h.b16 %v8380
  %v8534 = vunpack.c.l.b16 %v8381
  %v8535 = vunpack.c.h.b16 %v8381
  %v8536 = vunpack.c.l.b16 %v8382
  %v8537 = vunpack.c.h.b16 %v8382
  %v8538 = vunpack.c.l.b16 %v8383
  %v8539 = vunpack.c.h.b16 %v8383
  %v8540 = vunpack.c.l.b16 %v8384
  %v8541 = vunpack.c.h.b16 %v8384
  %v8542 = vunpack.c.l.b16 %v8385
  %v8543 = vunpack.c.h.b16 %v8385
  %v8544 = vunpack.c.l.b16 %v8386
  %v8545 = vunpack.c.h.b16 %v8386
  %v8546 = vunpack.c.l.b16 %v8387
  %v8547 = vunpack.c.h.b16 %v8387
  %v8548 = vunpack.c.l.b16 %v8388
  %v8549 = vunpack.c.h.b16 %v8388
  %v8550 = vunpack.c.l.b16 %v8389
  %v8551 = vunpack.c.h.b16 %v8389
  %v8552 = vunpack.c.l.b16 %v8390
  %v8553 = vunpack.c.h.b16 %v8390
  %v8554 = vunpack.c.l.b16 %v8391
  %v8555 = vunpack.c.h.b16 %v8391
  %v8556 = vunpack.c.l.b16 %v8392
  %v8557 = vunpack.c.h.b16 %v8392
  %v8558 = vunpack.c.l.b16 %v8393
  %v8559 = vunpack.c.h.b16 %v8393
  %v8560 = vunpack.c.l.b16 %v8394
  %v8561 = vunpack.c.h.b16 %v8394
  %v8562 = vunpack.c.l.b16 %v8395
  %v8563 = vunpack.c.h.b16 %v8395
  %v8564 = vunpack.c.l.b16 %v8396
  %v8565 = vunpack.c.h.b16 %v8396
  %v8566 = vunpack.c.l.b16 %v8397
  %v8567 = vunpack.c.h.b16 %v8397
  %v8568 = vunpack.c.l.b16 %v8398
  %v8569 = vunpack.c.h.b16 %v8398
  %v8570 = vunpack.c.l.b16 %v8399
  %v8571 = vunpack.c.h.b16 %v8399
  %v8572 = vunpack.c.l.b16 %v8400
  %v8573 = vunpack.c.h.b16 %v8400
  %v8574 = vunpack.c.l.b16 %v8401
  %v8575 = vunpack.c.h.b16 %v8401
  %v8576 = vunpack.c.l.b16 %v8402
  %v8577 = vunpack.c.h.b16 %v8402
  %v8578 = vunpack.c.l.b16 %v8403
  %v8579 = vunpack.c.h.b16 %v8403
  %v8580 = vunpack.c.l.b16 %v8404
  %v8581 = vunpack.c.h.b16 %v8404
  %v8582 = vunpack.c.l.b16 %v8405
  %v8583 = vunpack.c.h.b16 %v8405
  %v8584 = vunpack.c.l.b16 %v8406
  %v8585 = vunpack.c.h.b16 %v8406
  %v8586 = vunpack.c.l.b16 %v8407
  %v8587 = vunpack.c.h.b16 %v8407
  %v8588 = vunpack.c.l.b16 %v8408
  %v8589 = vunpack.c.h.b16 %v8408
  %v8590 = vunpack.c.l.b16 %v8409
  %v8591 = vunpack.c.h.b16 %v8409
  %v8592 = vunpack.c.l.b16 %v8410
  %v8593 = vunpack.c.h.b16 %v8410
  %v8594 = vunpack.c.l.b16 %v8411
  %v8595 = vunpack.c.h.b16 %v8411
  %v8596 = vunpack.c.l.b16 %v8412
  %v8597 = vunpack.c.h.b16 %v8412
  %v8598 = vunpack.c.l.b16 %v8413
  %v8599 = vunpack.c.h.b16 %v8413
  %v8600 = vpack.c.b16 %v8506, %v8504
  %v8601 = vpack.c.b16 %v8507, %v8505
  %v8602 = vpack.c.b16 %v8510, %v8508
  %v8603 = vpack.c.b16 %v8511, %v8509
  %v8604 = vpack.c.b16 %v8514, %v8512
  %v8605 = vpack.c.b16 %v8515, %v8513
  %v8606 = vpack.c.b16 %v8518, %v8516
  %v8607 = vpack.c.b16 %v8519, %v8517
  %v8608 = vpack.c.b16 %v8522, %v8520
  %v8609 = vpack.c.b16 %v8523, %v8521
  %v8610 = vpack.c.b16 %v8526, %v8524
  %v8611 = vpack.c.b16 %v8527, %v8525
  %v8612 = vpack.c.b16 %v8530, %v8528
  %v8613 = vpack.c.b16 %v8531, %v8529
  %v8614 = vpack.c.b16 %v8534, %v8532
  %v8615 = vpack.c.b16 %v8535, %v8533
  %v8616 = vpack.c.b16 %v8538, %v8536
  %v8617 = vpack.c.b16 %v8539, %v8537
  %v8618 = vpack.c.b16 %v8542, %v8540
  %v8619 = vpack.c.b16 %v8543, %v8541
  %v8620 = vpack.c.b16 %v8546, %v8544
  %v8621 = vpack.c.b16 %v8547, %v8545
  %v8622 = vpack.c.b16 %v8550, %v8548
  %v8623 = vpack.c.b16 %v8551, %v8549
  %v8624 = vpack.c.b16 %v8554, %v8552
  %v8625 = vpack.c.b16 %v8555, %v8553
  %v8626 = vpack.c.b16 %v8558, %v8556
  %v8627 = vpack.c.b16 %v8559, %v8557
  %v8628 = vpack.c.b16 %v8562, %v8560
  %v8629 = vpack.c.b16 %v8563, %v8561
  %v8630 = vpack.c.b16 %v8566, %v8564
  %v8631 = vpack.c.b16 %v8567, %v8565
  %v8632 = vpack.c.b16 %v8570, %v8568
  %v8633 = vpack.c.b16 %v8571, %v8569
  %v8634 = vpack.c.b16 %v8574, %v8572
  %v8635 = vpack.c.b16 %v8575, %v8573
  %v8636 = vpack.c.b16 %v8578, %v8576
  %v8637 = vpack.c.b16 %v8579, %v8577
  %v8638 = vpack.c.b16 %v8582, %v8580
  %v8639 = vpack.c.b16 %v8583, %v8581
  %v8640 = vpack.c.b16 %v8586, %v8584
  %v8641 = vpack.c.b16 %v8587, %v8585
  %v8642 = vpack.c.b16 %v8590, %v8588
  %v8643 = vpack.c.b16 %v8591, %v8589
  %v8644 = vpack.c.b16 %v8594, %v8592
  %v8645 = vpack.c.b16 %v8595, %v8593
  %v8646 = vpack.c.b16 %v8598, %v8596
  %v8647 = vpack.c.b16 %v8599, %v8597
  %8696 = vmatprep.subr.bf16.mxu0 %v8601
  %8697 = vmatpush1.bf16.msra.mxu0 %v8600
  %8698 = vmatprep.subr.bf16.mxu0 %v8603
  %8699 = vmatpush1.bf16.msra.mxu0 %v8602
  %8700 = vmatprep.subr.bf16.mxu0 %v8605
  %8701 = vmatpush1.bf16.msra.mxu0 %v8604
  %8702 = vmatprep.subr.bf16.mxu0 %v8607
  %8703 = vmatpush1.bf16.msra.mxu0 %v8606
  %8704 = vmatprep.subr.bf16.mxu0 %v8609
  %8705 = vmatpush1.bf16.msra.mxu0 %v8608
  %8706 = vmatprep.subr.bf16.mxu0 %v8611
  %8707 = vmatpush1.bf16.msra.mxu0 %v8610
  %8708 = vmatprep.subr.bf16.mxu0 %v8613
  %8709 = vmatpush1.bf16.msra.mxu0 %v8612
  %8710 = vmatprep.subr.bf16.mxu0 %v8615
  %8711 = vmatpush1.bf16.msra.mxu0 %v8614
  %8712 = vmatprep.subr.bf16.mxu0 %v8617
  %8713 = vmatpush1.bf16.msra.mxu0 %v8616
  %8714 = vmatprep.subr.bf16.mxu0 %v8619
  %8715 = vmatpush1.bf16.msra.mxu0 %v8618
  %8716 = vmatprep.subr.bf16.mxu0 %v8621
  %8717 = vmatpush1.bf16.msra.mxu0 %v8620
  %8718 = vmatprep.subr.bf16.mxu0 %v8623
  %8719 = vmatpush1.bf16.msra.mxu0 %v8622
  %8720 = vmatprep.subr.bf16.mxu0 %v8625
  %8721 = vmatpush1.bf16.msra.mxu0 %v8624
  %8722 = vmatprep.subr.bf16.mxu0 %v8627
  %8723 = vmatpush1.bf16.msra.mxu0 %v8626
  %8724 = vmatprep.subr.bf16.mxu0 %v8629
  %8725 = vmatpush1.bf16.msra.mxu0 %v8628
  %8726 = vmatprep.subr.bf16.mxu0 %v8631
  %8727 = vmatpush1.bf16.msra.mxu0 %v8630
  %8728 = vmatprep.mubr.bf16.mxu0 %v8431
  %8729 = vmatmul.mubr.bf16.gmra.mrb[0].mxu0 %v8428
  %v8730 = vpop.f32.mrb[0].mxu0
  %v8731 = vadd.f32 0.0, %v8730
  %v8732 = vpop.f32.mrb[0].mxu0
  %v8733 = vadd.f32 0.0, %v8732
  %v8734 = vpop.f32.mrb[0].mxu0
  %v8735 = vadd.f32 0.0, %v8734
  %v8736 = vpop.f32.mrb[0].mxu0
  %v8737 = vadd.f32 0.0, %v8736
  %8738 = vmatprep.mubr.bf16.mxu0 %v8438
  %8739 = vmatmul.mubr.bf16.gmra.mrb[0].mxu0 %v8436
  %v8740 = vpop.f32.mrb[0].mxu0
  %v8741 = vadd.f32 0.0, %v8740
  %v8742 = vpop.f32.mrb[0].mxu0
  %v8743 = vadd.f32 0.0, %v8742
  %v8744 = vpop.f32.mrb[0].mxu0
  %v8745 = vadd.f32 0.0, %v8744
  %v8746 = vpop.f32.mrb[0].mxu0
  %v8747 = vadd.f32 0.0, %v8746
  %8748 = vmatprep.mubr.bf16.mxu0 %v8444
  %8749 = vmatmul.mubr.bf16.gmra.mrb[0].mxu0 %v8442
  %v8750 = vpop.f32.mrb[0].mxu0
  %v8751 = vadd.f32 0.0, %v8750
  %v8752 = vpop.f32.mrb[0].mxu0
  %v8753 = vadd.f32 0.0, %v8752
  %v8754 = vpop.f32.mrb[0].mxu0
  %v8755 = vadd.f32 0.0, %v8754
  %v8756 = vpop.f32.mrb[0].mxu0
  %v8757 = vadd.f32 0.0, %v8756
  %8758 = vdwg.mxu0
  %8759 = vmatprep.subr.bf16.mxu0 %v8633
  %8760 = vmatpush1.bf16.msra.mxu0 %v8632
  %8761 = vmatprep.subr.bf16.mxu0 %v8635
  %8762 = vmatpush1.bf16.msra.mxu0 %v8634
  %8763 = vmatprep.subr.bf16.mxu0 %v8637
  %8764 = vmatpush1.bf16.msra.mxu0 %v8636
  %8765 = vmatprep.subr.bf16.mxu0 %v8639
  %8766 = vmatpush1.bf16.msra.mxu0 %v8638
  %8767 = vmatprep.subr.bf16.mxu0 %v8641
  %8768 = vmatpush1.bf16.msra.mxu0 %v8640
  %8769 = vmatprep.subr.bf16.mxu0 %v8643
  %8770 = vmatpush1.bf16.msra.mxu0 %v8642
  %8771 = vmatprep.subr.bf16.mxu0 %v8645
  %8772 = vmatpush1.bf16.msra.mxu0 %v8644
  %8773 = vmatprep.subr.bf16.mxu0 %v8647
  %8774 = vmatpush1.bf16.msra.mxu0 %v8646
  %8775 = vmatprep.subr.bf16.mxu0 0
  %8776 = vmatpush1.bf16.msra.mxu0 0
  %8777 = vmatprep.subr.bf16.mxu0 0
  %8778 = vmatpush1.bf16.msra.mxu0 0
  %8779 = vmatprep.subr.bf16.mxu0 0
  %8780 = vmatpush1.bf16.msra.mxu0 0
  %8781 = vmatprep.subr.bf16.mxu0 0
  %8782 = vmatpush1.bf16.msra.mxu0 0
  %8783 = vmatprep.subr.bf16.mxu0 0
  %8784 = vmatpush1.bf16.msra.mxu0 0
  %8785 = vmatprep.subr.bf16.mxu0 0
  %8786 = vmatpush1.bf16.msra.mxu0 0
  %8787 = vmatprep.subr.bf16.mxu0 0
  %8788 = vmatpush1.bf16.msra.mxu0 0
  %8789 = vmatprep.subr.bf16.mxu0 0
  %8790 = vmatpush1.bf16.msra.mxu0 0
  %8791 = vmatprep.mubr.bf16.mxu0 0
  %8792 = vmatmul.mubr.bf16.gmra.mrb[0].mxu0 %v8434
  %v8793 = vpop.f32.mrb[0].mxu0
  %v8794 = vadd.f32 %v8731, %v8793
  %v8795 = vpop.f32.mrb[0].mxu0
  %v8796 = vadd.f32 %v8733, %v8795
  %v8797 = vpop.f32.mrb[0].mxu0
  %v8798 = vadd.f32 %v8735, %v8797
  %v8799 = vpop.f32.mrb[0].mxu0
  %v8800 = vadd.f32 %v8737, %v8799
  %8801 = vmatprep.mubr.bf16.mxu0 0
  %8802 = vmatmul.mubr.bf16.gmra.mrb[0].mxu0 %v8440
  %v8803 = vpop.f32.mrb[0].mxu0
  %v8804 = vadd.f32 %v8741, %v8803
  %v8805 = vpop.f32.mrb[0].mxu0
  %v8806 = vadd.f32 %v8743, %v8805
  %v8807 = vpop.f32.mrb[0].mxu0
  %v8808 = vadd.f32 %v8745, %v8807
  %v8809 = vpop.f32.mrb[0].mxu0
  %v8810 = vadd.f32 %v8747, %v8809
  %8811 = vmatprep.mubr.bf16.mxu0 0
  %8812 = vmatmul.mubr.bf16.gmra.mrb[0].mxu0 %v8446
  %v8813 = vpop.f32.mrb[0].mxu0
  %v8814 = vadd.f32 %v8751, %v8813
  %v8815 = vpop.f32.mrb[0].mxu0
  %v8816 = vadd.f32 %v8753, %v8815
  %v8817 = vpop.f32.mrb[0].mxu0
  %v8818 = vadd.f32 %v8755, %v8817
  %v8819 = vpop.f32.mrb[0].mxu0
  %v8820 = vadd.f32 %v8757, %v8819
  %8821 = vdwg.mxu0
  %v8822 = vadd.f32 %v8341, %v8794
  %v8823 = vadd.f32 %v8342, %v8796
  %v8824 = vadd.f32 %v8343, %v8798
  %v8825 = vadd.f32 %v8344, %v8800
  %v8826 = vadd.f32 %v8345, %v8804
  %v8827 = vadd.f32 %v8346, %v8806
  %v8828 = vadd.f32 %v8347, %v8808
  %v8829 = vadd.f32 %v8348, %v8810
  %v8830 = vadd.f32 %v8349, %v8814
  %v8831 = vadd.f32 %v8350, %v8816
  %v8832 = vadd.f32 %v8351, %v8818
  %v8833 = vadd.f32 %v8352, %v8820
  %v8834 = vld [vmem:[#allocation2 + $0x78] sm:$0xff]
  %v8835 = vld [vmem:[#allocation2 + $0x80] sm:$0xff]
  %v8836 = vld [vmem:[#allocation2 + $0x88] sm:$0xff]
  %s8837 = scalar_lea.vmem %s3, 2304
  %v8838 = vld [vmem:[%s8837] sm:$0xff]
  %v8839 = vld [vmem:[%s8837 + $0x8] sm:$0xff]
  %v8840 = vld [vmem:[%s8837 + $0x10] sm:$0xff]
  %v8841 = vld [vmem:[%s8837 + $0x18] sm:$0xff]
  %v8842 = vld [vmem:[%s8837 + $0x20] sm:$0xff]
  %v8843 = vld [vmem:[%s8837 + $0x28] sm:$0xff]
  %v8844 = vld [vmem:[%s8837 + $0x30] sm:$0xff]
  %v8845 = vld [vmem:[%s8837 + $0x38] sm:$0xff]
  %v8846 = vld [vmem:[%s8837 + $0x40] sm:$0xff]
  %v8847 = vld [vmem:[%s8837 + $0x48] sm:$0xff]
  %v8848 = vld [vmem:[%s8837 + $0x50] sm:$0xff]
  %v8849 = vld [vmem:[%s8837 + $0x58] sm:$0xff]
  %v8850 = vld [vmem:[%s8837 + $0x60] sm:$0xff]
  %v8851 = vld [vmem:[%s8837 + $0x68] sm:$0xff]
  %v8852 = vld [vmem:[%s8837 + $0x70] sm:$0xff]
  %v8853 = vld [vmem:[%s8837 + $0x78] sm:$0xff]
  %v8854 = vld [vmem:[%s8837 + $0x80] sm:$0xff]
  %v8855 = vld [vmem:[%s8837 + $0x88] sm:$0xff]
  %v8856 = vld [vmem:[%s8837 + $0x90] sm:$0xff]
  %v8857 = vld [vmem:[%s8837 + $0x98] sm:$0xff]
  %v8858 = vld [vmem:[%s8837 + $0xa0] sm:$0xff]
  %v8859 = vld [vmem:[%s8837 + $0xa8] sm:$0xff]
  %v8860 = vld [vmem:[%s8837 + $0xb0] sm:$0xff]
  %v8861 = vld [vmem:[%s8837 + $0xb8] sm:$0xff]
  %v8862 = vld [vmem:[%s8837 + $0xc0] sm:$0xff]
  %v8863 = vld [vmem:[%s8837 + $0xc8] sm:$0xff]
  %v8864 = vld [vmem:[%s8837 + $0xd0] sm:$0xff]
  %v8865 = vld [vmem:[%s8837 + $0xd8] sm:$0xff]
  %v8866 = vld [vmem:[%s8837 + $0xe0] sm:$0xff]
  %v8867 = vld [vmem:[%s8837 + $0xe8] sm:$0xff]
  %v8868 = vld [vmem:[%s8837 + $0xf0] sm:$0xff]
  %v8869 = vld [vmem:[%s8837 + $0xf8] sm:$0xff]
  %v8870 = vld [vmem:[%s8837 + $0x100] sm:$0xff]
  %v8871 = vld [vmem:[%s8837 + $0x108] sm:$0xff]
  %v8872 = vld [vmem:[%s8837 + $0x110] sm:$0xff]
  %v8873 = vld [vmem:[%s8837 + $0x118] sm:$0xff]
  %v8874 = vld [vmem:[%s8837 + $0x120] sm:$0xff]
  %v8875 = vld [vmem:[%s8837 + $0x128] sm:$0xff]
  %v8876 = vld [vmem:[%s8837 + $0x130] sm:$0xff]
  %v8877 = vld [vmem:[%s8837 + $0x138] sm:$0xff]
  %v8878 = vld [vmem:[%s8837 + $0x140] sm:$0xff]
  %v8879 = vld [vmem:[%s8837 + $0x148] sm:$0xff]
  %v8880 = vld [vmem:[%s8837 + $0x150] sm:$0xff]
  %v8881 = vld [vmem:[%s8837 + $0x158] sm:$0xff]
  %v8882 = vld [vmem:[%s8837 + $0x160] sm:$0xff]
  %v8883 = vld [vmem:[%s8837 + $0x168] sm:$0xff]
  %v8884 = vld [vmem:[%s8837 + $0x170] sm:$0xff]
  %v8885 = vld [vmem:[%s8837 + $0x178] sm:$0xff]
  %v8934 = vunpack.c.l.b16 %v8838
  %v8935 = vunpack.c.h.b16 %v8838
  %v8936 = vunpack.c.l.b16 %v8839
  %v8937 = vunpack.c.h.b16 %v8839
  %v8938 = vunpack.c.l.b16 %v8840
  %v8939 = vunpack.c.h.b16 %v8840
  %v8940 = vunpack.c.l.b16 %v8841
  %v8941 = vunpack.c.h.b16 %v8841
  %v8942 = vunpack.c.l.b16 %v8842
  %v8943 = vunpack.c.h.b16 %v8842
  %v8944 = vunpack.c.l.b16 %v8843
  %v8945 = vunpack.c.h.b16 %v8843
  %v8946 = vunpack.c.l.b16 %v8844
  %v8947 = vunpack.c.h.b16 %v8844
  %v8948 = vunpack.c.l.b16 %v8845
  %v8949 = vunpack.c.h.b16 %v8845
  %v8950 = vunpack.c.l.b16 %v8846
  %v8951 = vunpack.c.h.b16 %v8846
  %v8952 = vunpack.c.l.b16 %v8847
  %v8953 = vunpack.c.h.b16 %v8847
  %v8954 = vunpack.c.l.b16 %v8848
  %v8955 = vunpack.c.h.b16 %v8848
  %v8956 = vunpack.c.l.b16 %v8849
  %v8957 = vunpack.c.h.b16 %v8849
  %v8958 = vunpack.c.l.b16 %v8850
  %v8959 = vunpack.c.h.b16 %v8850
  %v8960 = vunpack.c.l.b16 %v8851
  %v8961 = vunpack.c.h.b16 %v8851
  %v8962 = vunpack.c.l.b16 %v8852
  %v8963 = vunpack.c.h.b16 %v8852
  %v8964 = vunpack.c.l.b16 %v8853
  %v8965 = vunpack.c.h.b16 %v8853
  %v8966 = vunpack.c.l.b16 %v8854
  %v8967 = vunpack.c.h.b16 %v8854
  %v8968 = vunpack.c.l.b16 %v8855
  %v8969 = vunpack.c.h.b16 %v8855
  %v8970 = vunpack.c.l.b16 %v8856
  %v8971 = vunpack.c.h.b16 %v8856
  %v8972 = vunpack.c.l.b16 %v8857
  %v8973 = vunpack.c.h.b16 %v8857
  %v8974 = vunpack.c.l.b16 %v8858
  %v8975 = vunpack.c.h.b16 %v8858
  %v8976 = vunpack.c.l.b16 %v8859
  %v8977 = vunpack.c.h.b16 %v8859
  %v8978 = vunpack.c.l.b16 %v8860
  %v8979 = vunpack.c.h.b16 %v8860
  %v8980 = vunpack.c.l.b16 %v8861
  %v8981 = vunpack.c.h.b16 %v8861
  %v8982 = vunpack.c.l.b16 %v8862
  %v8983 = vunpack.c.h.b16 %v8862
  %v8984 = vunpack.c.l.b16 %v8863
  %v8985 = vunpack.c.h.b16 %v8863
  %v8986 = vunpack.c.l.b16 %v8864
  %v8987 = vunpack.c.h.b16 %v8864
  %v8988 = vunpack.c.l.b16 %v8865
  %v8989 = vunpack.c.h.b16 %v8865
  %v8990 = vunpack.c.l.b16 %v8866
  %v8991 = vunpack.c.h.b16 %v8866
  %v8992 = vunpack.c.l.b16 %v8867
  %v8993 = vunpack.c.h.b16 %v8867
  %v8994 = vunpack.c.l.b16 %v8868
  %v8995 = vunpack.c.h.b16 %v8868
  %v8996 = vunpack.c.l.b16 %v8869
  %v8997 = vunpack.c.h.b16 %v8869
  %v8998 = vunpack.c.l.b16 %v8870
  %v8999 = vunpack.c.h.b16 %v8870
  %v9000 = vunpack.c.l.b16 %v8871
  %v9001 = vunpack.c.h.b16 %v8871
  %v9002 = vunpack.c.l.b16 %v8872
  %v9003 = vunpack.c.h.b16 %v8872
  %v9004 = vunpack.c.l.b16 %v8873
  %v9005 = vunpack.c.h.b16 %v8873
  %v9006 = vunpack.c.l.b16 %v8874
  %v9007 = vunpack.c.h.b16 %v8874
  %v9008 = vunpack.c.l.b16 %v8875
  %v9009 = vunpack.c.h.b16 %v8875
  %v9010 = vunpack.c.l.b16 %v8876
  %v9011 = vunpack.c.h.b16 %v8876
  %v9012 = vunpack.c.l.b16 %v8877
  %v9013 = vunpack.c.h.b16 %v8877
  %v9014 = vunpack.c.l.b16 %v8878
  %v9015 = vunpack.c.h.b16 %v8878
  %v9016 = vunpack.c.l.b16 %v8879
  %v9017 = vunpack.c.h.b16 %v8879
  %v9018 = vunpack.c.l.b16 %v8880
  %v9019 = vunpack.c.h.b16 %v8880
  %v9020 = vunpack.c.l.b16 %v8881
  %v9021 = vunpack.c.h.b16 %v8881
  %v9022 = vunpack.c.l.b16 %v8882
  %v9023 = vunpack.c.h.b16 %v8882
  %v9024 = vunpack.c.l.b16 %v8883
  %v9025 = vunpack.c.h.b16 %v8883
  %v9026 = vunpack.c.l.b16 %v8884
  %v9027 = vunpack.c.h.b16 %v8884
  %v9028 = vunpack.c.l.b16 %v8885
  %v9029 = vunpack.c.h.b16 %v8885
  %v9030 = vpack.c.b16 %v8936, %v8934
  %v9031 = vpack.c.b16 %v8937, %v8935
  %v9032 = vpack.c.b16 %v8940, %v8938
  %v9033 = vpack.c.b16 %v8941, %v8939
  %v9034 = vpack.c.b16 %v8944, %v8942
  %v9035 = vpack.c.b16 %v8945, %v8943
  %v9036 = vpack.c.b16 %v8948, %v8946
  %v9037 = vpack.c.b16 %v8949, %v8947
  %v9038 = vpack.c.b16 %v8952, %v8950
  %v9039 = vpack.c.b16 %v8953, %v8951
  %v9040 = vpack.c.b16 %v8956, %v8954
  %v9041 = vpack.c.b16 %v8957, %v8955
  %v9042 = vpack.c.b16 %v8960, %v8958
  %v9043 = vpack.c.b16 %v8961, %v8959
  %v9044 = vpack.c.b16 %v8964, %v8962
  %v9045 = vpack.c.b16 %v8965, %v8963
  %v9046 = vpack.c.b16 %v8968, %v8966
  %v9047 = vpack.c.b16 %v8969, %v8967
  %v9048 = vpack.c.b16 %v8972, %v8970
  %v9049 = vpack.c.b16 %v8973, %v8971
  %v9050 = vpack.c.b16 %v8976, %v8974
  %v9051 = vpack.c.b16 %v8977, %v8975
  %v9052 = vpack.c.b16 %v8980, %v8978
  %v9053 = vpack.c.b16 %v8981, %v8979
  %v9054 = vpack.c.b16 %v8984, %v8982
  %v9055 = vpack.c.b16 %v8985, %v8983
  %v9056 = vpack.c.b16 %v8988, %v8986
  %v9057 = vpack.c.b16 %v8989, %v8987
  %v9058 = vpack.c.b16 %v8992, %v8990
  %v9059 = vpack.c.b16 %v8993, %v8991
  %v9060 = vpack.c.b16 %v8996, %v8994
  %v9061 = vpack.c.b16 %v8997, %v8995
  %v9062 = vpack.c.b16 %v9000, %v8998
  %v9063 = vpack.c.b16 %v9001, %v8999
  %v9064 = vpack.c.b16 %v9004, %v9002
  %v9065 = vpack.c.b16 %v9005, %v9003
  %v9066 = vpack.c.b16 %v9008, %v9006
  %v9067 = vpack.c.b16 %v9009, %v9007
  %v9068 = vpack.c.b16 %v9012, %v9010
  %v9069 = vpack.c.b16 %v9013, %v9011
  %v9070 = vpack.c.b16 %v9016, %v9014
  %v9071 = vpack.c.b16 %v9017, %v9015
  %v9072 = vpack.c.b16 %v9020, %v9018
  %v9073 = vpack.c.b16 %v9021, %v9019
  %v9074 = vpack.c.b16 %v9024, %v9022
  %v9075 = vpack.c.b16 %v9025, %v9023
  %v9076 = vpack.c.b16 %v9028, %v9026
  %v9077 = vpack.c.b16 %v9029, %v9027
  %9126 = vmatprep.subr.bf16.mxu0 %v9031
  %9127 = vmatpush1.bf16.msra.mxu0 %v9030
  %9128 = vmatprep.subr.bf16.mxu0 %v9033
  %9129 = vmatpush1.bf16.msra.mxu0 %v9032
  %9130 = vmatprep.subr.bf16.mxu0 %v9035
  %9131 = vmatpush1.bf16.msra.mxu0 %v9034
  %9132 = vmatprep.subr.bf16.mxu0 %v9037
  %9133 = vmatpush1.bf16.msra.mxu0 %v9036
  %9134 = vmatprep.subr.bf16.mxu0 %v9039
  %9135 = vmatpush1.bf16.msra.mxu0 %v9038
  %9136 = vmatprep.subr.bf16.mxu0 %v9041
  %9137 = vmatpush1.bf16.msra.mxu0 %v9040
  %9138 = vmatprep.subr.bf16.mxu0 %v9043
  %9139 = vmatpush1.bf16.msra.mxu0 %v9042
  %9140 = vmatprep.subr.bf16.mxu0 %v9045
  %9141 = vmatpush1.bf16.msra.mxu0 %v9044
  %9142 = vmatprep.subr.bf16.mxu0 %v9047
  %9143 = vmatpush1.bf16.msra.mxu0 %v9046
  %9144 = vmatprep.subr.bf16.mxu0 %v9049
  %9145 = vmatpush1.bf16.msra.mxu0 %v9048
  %9146 = vmatprep.subr.bf16.mxu0 %v9051
  %9147 = vmatpush1.bf16.msra.mxu0 %v9050
  %9148 = vmatprep.subr.bf16.mxu0 %v9053
  %9149 = vmatpush1.bf16.msra.mxu0 %v9052
  %9150 = vmatprep.subr.bf16.mxu0 %v9055
  %9151 = vmatpush1.bf16.msra.mxu0 %v9054
  %9152 = vmatprep.subr.bf16.mxu0 %v9057
  %9153 = vmatpush1.bf16.msra.mxu0 %v9056
  %9154 = vmatprep.subr.bf16.mxu0 %v9059
  %9155 = vmatpush1.bf16.msra.mxu0 %v9058
  %9156 = vmatprep.subr.bf16.mxu0 %v9061
  %9157 = vmatpush1.bf16.msra.mxu0 %v9060
  %9158 = vmatprep.mubr.bf16.mxu0 %v8357
  %9159 = vmatmul.mubr.bf16.gmra.mrb[0].mxu0 %v8356
  %v9160 = vpop.f32.mrb[0].mxu0
  %v9161 = vadd.f32 0.0, %v9160
  %v9162 = vpop.f32.mrb[0].mxu0
  %v9163 = vadd.f32 0.0, %v9162
  %v9164 = vpop.f32.mrb[0].mxu0
  %v9165 = vadd.f32 0.0, %v9164
  %v9166 = vpop.f32.mrb[0].mxu0
  %v9167 = vadd.f32 0.0, %v9166
  %9168 = vmatprep.mubr.bf16.mxu0 %v8360
  %9169 = vmatmul.mubr.bf16.gmra.mrb[0].mxu0 %v8359
  %v9170 = vpop.f32.mrb[0].mxu0
  %v9171 = vadd.f32 0.0, %v9170
  %v9172 = vpop.f32.mrb[0].mxu0
  %v9173 = vadd.f32 0.0, %v9172
  %v9174 = vpop.f32.mrb[0].mxu0
  %v9175 = vadd.f32 0.0, %v9174
  %v9176 = vpop.f32.mrb[0].mxu0
  %v9177 = vadd.f32 0.0, %v9176
  %9178 = vmatprep.mubr.bf16.mxu0 %v8835
  %9179 = vmatmul.mubr.bf16.gmra.mrb[0].mxu0 %v8834
  %v9180 = vpop.f32.mrb[0].mxu0
  %v9181 = vadd.f32 0.0, %v9180
  %v9182 = vpop.f32.mrb[0].mxu0
  %v9183 = vadd.f32 0.0, %v9182
  %v9184 = vpop.f32.mrb[0].mxu0
  %v9185 = vadd.f32 0.0, %v9184
  %v9186 = vpop.f32.mrb[0].mxu0
  %v9187 = vadd.f32 0.0, %v9186
  %9188 = vdwg.mxu0
  %9189 = vmatprep.subr.bf16.mxu0 %v9063
  %9190 = vmatpush1.bf16.msra.mxu0 %v9062
  %9191 = vmatprep.subr.bf16.mxu0 %v9065
  %9192 = vmatpush1.bf16.msra.mxu0 %v9064
  %9193 = vmatprep.subr.bf16.mxu0 %v9067
  %9194 = vmatpush1.bf16.msra.mxu0 %v9066
  %9195 = vmatprep.subr.bf16.mxu0 %v9069
  %9196 = vmatpush1.bf16.msra.mxu0 %v9068
  %9197 = vmatprep.subr.bf16.mxu0 %v9071
  %9198 = vmatpush1.bf16.msra.mxu0 %v9070
  %9199 = vmatprep.subr.bf16.mxu0 %v9073
  %9200 = vmatpush1.bf16.msra.mxu0 %v9072
  %9201 = vmatprep.subr.bf16.mxu0 %v9075
  %9202 = vmatpush1.bf16.msra.mxu0 %v9074
  %9203 = vmatprep.subr.bf16.mxu0 %v9077
  %9204 = vmatpush1.bf16.msra.mxu0 %v9076
  %9205 = vmatprep.subr.bf16.mxu0 0
  %9206 = vmatpush1.bf16.msra.mxu0 0
  %9207 = vmatprep.subr.bf16.mxu0 0
  %9208 = vmatpush1.bf16.msra.mxu0 0
  %9209 = vmatprep.subr.bf16.mxu0 0
  %9210 = vmatpush1.bf16.msra.mxu0 0
  %9211 = vmatprep.subr.bf16.mxu0 0
  %9212 = vmatpush1.bf16.msra.mxu0 0
  %9213 = vmatprep.subr.bf16.mxu0 0
  %9214 = vmatpush1.bf16.msra.mxu0 0
  %9215 = vmatprep.subr.bf16.mxu0 0
  %9216 = vmatpush1.bf16.msra.mxu0 0
  %9217 = vmatprep.subr.bf16.mxu0 0
  %9218 = vmatpush1.bf16.msra.mxu0 0
  %9219 = vmatprep.subr.bf16.mxu0 0
  %9220 = vmatpush1.bf16.msra.mxu0 0
  %9221 = vmatprep.mubr.bf16.mxu0 0
  %9222 = vmatmul.mubr.bf16.gmra.mrb[0].mxu0 %v8358
  %v9223 = vpop.f32.mrb[0].mxu0
  %v9224 = vadd.f32 %v9161, %v9223
  %v9225 = vpop.f32.mrb[0].mxu0
  %v9226 = vadd.f32 %v9163, %v9225
  %v9227 = vpop.f32.mrb[0].mxu0
  %v9228 = vadd.f32 %v9165, %v9227
  %v9229 = vpop.f32.mrb[0].mxu0
  %v9230 = vadd.f32 %v9167, %v9229
  %9231 = vmatprep.mubr.bf16.mxu0 0
  %9232 = vmatmul.mubr.bf16.gmra.mrb[0].mxu0 %v8361
  %v9233 = vpop.f32.mrb[0].mxu0
  %v9234 = vadd.f32 %v9171, %v9233
  %v9235 = vpop.f32.mrb[0].mxu0
  %v9236 = vadd.f32 %v9173, %v9235
  %v9237 = vpop.f32.mrb[0].mxu0
  %v9238 = vadd.f32 %v9175, %v9237
  %v9239 = vpop.f32.mrb[0].mxu0
  %v9240 = vadd.f32 %v9177, %v9239
  %9241 = vmatprep.mubr.bf16.mxu0 0
  %9242 = vmatmul.mubr.bf16.gmra.mrb[0].mxu0 %v8836
  %v9243 = vpop.f32.mrb[0].mxu0
  %v9244 = vadd.f32 %v9181, %v9243
  %v9245 = vpop.f32.mrb[0].mxu0
  %v9246 = vadd.f32 %v9183, %v9245
  %v9247 = vpop.f32.mrb[0].mxu0
  %v9248 = vadd.f32 %v9185, %v9247
  %v9249 = vpop.f32.mrb[0].mxu0
  %v9250 = vadd.f32 %v9187, %v9249
  %9251 = vdwg.mxu0
  %v9252 = vadd.f32 %v8822, %v9224
  %v9253 = vadd.f32 %v8823, %v9226
  %v9254 = vadd.f32 %v8824, %v9228
  %v9255 = vadd.f32 %v8825, %v9230
  %v9256 = vadd.f32 %v8826, %v9234
  %v9257 = vadd.f32 %v8827, %v9236
  %v9258 = vadd.f32 %v8828, %v9238
  %v9259 = vadd.f32 %v8829, %v9240
  %v9260 = vadd.f32 %v8830, %v9244
  %v9261 = vadd.f32 %v8831, %v9246
  %v9262 = vadd.f32 %v8832, %v9248
  %v9263 = vadd.f32 %v8833, %v9250
  %v9264 = vld [vmem:[%s4] sm:$0x3]
  %v9266 = vlaneseq
  %v9267 = vshrl.u32 %v9266, 7
  %v9268 = vsub.s32 0, %v9267
  %v9269 = vrot.slane %v9264, %v9268
  %v9270 = vlaneseq
  %v9271 = vshrl.u32 %v9270, 7
  %v9272 = vsub.s32 1, %v9271
  %v9273 = vrot.slane %v9264, %v9272
  %v9276 = vadd.f32 %v9252, %v9269
  %v9277 = vadd.f32 %v9253, %v9273
  %v9278 = vadd.f32 %v9254, %v9269
  %v9279 = vadd.f32 %v9255, %v9273
  %v9280 = vadd.f32 %v9256, %v9269
  %v9281 = vadd.f32 %v9257, %v9273
  %v9282 = vadd.f32 %v9258, %v9269
  %v9283 = vadd.f32 %v9259, %v9273
  %v9284 = vadd.f32 %v9260, %v9269
  %v9285 = vadd.f32 %v9261, %v9273
  %v9286 = vadd.f32 %v9262, %v9269
  %v9287 = vadd.f32 %v9263, %v9273
  %v9288 = vmax.f32 %v9276, 0.0
  %v9289 = vmax.f32 %v9277, 0.0
  %v9290 = vmax.f32 %v9278, 0.0
  %v9291 = vmax.f32 %v9279, 0.0
  %v9292 = vmax.f32 %v9280, 0.0
  %v9293 = vmax.f32 %v9281, 0.0
  %v9294 = vmax.f32 %v9282, 0.0
  %v9295 = vmax.f32 %v9283, 0.0
  %v9296 = vmax.f32 %v9284, 0.0
  %v9297 = vmax.f32 %v9285, 0.0
  %v9298 = vmax.f32 %v9286, 0.0
  %v9299 = vmax.f32 %v9287, 0.0
  %v9300 = vpack.c.bf16 %v9290, %v9288
  %v9301 = vpack.c.bf16 %v9291, %v9289
  %v9302 = vpack.c.bf16 %v9294, %v9292
  %v9303 = vpack.c.bf16 %v9295, %v9293
  %v9304 = vpack.c.bf16 %v9298, %v9296
  %v9305 = vpack.c.bf16 %v9299, %v9297
  %9306 = vst [vmem:[#allocation3] sm:$0xff] %v9300
  %vm9307 = vcmask 523264
  %9308 = vst.msk [vmem:[#allocation3 + $0x8] sm:$0xff] %vm9307, %v9301
  %9309 = vst [vmem:[#allocation3 + $0x10] sm:$0xff] %v9302
  %9310 = vst.msk [vmem:[#allocation3 + $0x18] sm:$0xff] %vm9307, %v9303
  %9311 = vst [vmem:[#allocation3 + $0x20] sm:$0xff] %v9304
  %9312 = vst.msk [vmem:[#allocation3 + $0x28] sm:$0xff] %vm9307, %v9305
  %v9313 = vld [vmem:[#allocation3] sm:$0xf]
  %v9314 = vld [vmem:[#allocation3 + $0x8] sm:$0xf]
  %v9315 = vld [vmem:[%s5] sm:$0xf]
  %v9316 = vld [vmem:[%s5 + $0x4] sm:$0xf]
  %v9317 = vld [vmem:[%s5 + $0x8] sm:$0xf]
  %v9318 = vld [vmem:[%s5 + $0xc] sm:$0xf]
  %v9319 = vld [vmem:[%s5 + $0x10] sm:$0xf]
  %v9320 = vld [vmem:[%s5 + $0x14] sm:$0xf]
  %v9321 = vld [vmem:[%s5 + $0x18] sm:$0xf]
  %v9322 = vld [vmem:[%s5 + $0x1c] sm:$0xf]
  %v9323 = vld [vmem:[%s5 + $0x20] sm:$0xf]
  %v9324 = vld [vmem:[%s5 + $0x24] sm:$0xf]
  %v9325 = vld [vmem:[%s5 + $0x28] sm:$0xf]
  %v9326 = vld [vmem:[%s5 + $0x2c] sm:$0xf]
  %v9327 = vld [vmem:[%s5 + $0x30] sm:$0xf]
  %v9328 = vld [vmem:[%s5 + $0x34] sm:$0xf]
  %v9329 = vld [vmem:[%s5 + $0x38] sm:$0xf]
  %v9330 = vld [vmem:[%s5 + $0x3c] sm:$0xf]
  %v9331 = vld [vmem:[%s5 + $0x40] sm:$0xf]
  %v9332 = vld [vmem:[%s5 + $0x44] sm:$0xf]
  %v9333 = vld [vmem:[%s5 + $0x48] sm:$0xf]
  %v9334 = vld [vmem:[%s5 + $0x4c] sm:$0xf]
  %v9335 = vld [vmem:[%s5 + $0x50] sm:$0xf]
  %v9336 = vld [vmem:[%s5 + $0x54] sm:$0xf]
  %v9337 = vld [vmem:[%s5 + $0x58] sm:$0xf]
  %v9338 = vld [vmem:[%s5 + $0x5c] sm:$0xf]
  %v9339 = vld [vmem:[#allocation3] sm:$0xf0]
  %v9340 = vld [vmem:[#allocation3 + $0x8] sm:$0xf0]
  %s9341 = scalar_lea.vmem %s5, 96
  %v9342 = vld [vmem:[%s9341] sm:$0xf]
  %v9343 = vld [vmem:[%s9341 + $0x4] sm:$0xf]
  %v9344 = vld [vmem:[%s9341 + $0x8] sm:$0xf]
  %v9345 = vld [vmem:[%s9341 + $0xc] sm:$0xf]
  %v9346 = vld [vmem:[%s9341 + $0x10] sm:$0xf]
  %v9347 = vld [vmem:[%s9341 + $0x14] sm:$0xf]
  %v9348 = vld [vmem:[%s9341 + $0x18] sm:$0xf]
  %v9349 = vld [vmem:[%s9341 + $0x1c] sm:$0xf]
  %v9350 = vld [vmem:[%s9341 + $0x20] sm:$0xf]
  %v9351 = vld [vmem:[%s9341 + $0x24] sm:$0xf]
  %v9352 = vld [vmem:[%s9341 + $0x28] sm:$0xf]
  %v9353 = vld [vmem:[%s9341 + $0x2c] sm:$0xf]
  %v9354 = vld [vmem:[%s9341 + $0x30] sm:$0xf]
  %v9355 = vld [vmem:[%s9341 + $0x34] sm:$0xf]
  %v9356 = vld [vmem:[%s9341 + $0x38] sm:$0xf]
  %v9357 = vld [vmem:[%s9341 + $0x3c] sm:$0xf]
  %v9358 = vld [vmem:[%s9341 + $0x40] sm:$0xf]
  %v9359 = vld [vmem:[%s9341 + $0x44] sm:$0xf]
  %v9360 = vld [vmem:[%s9341 + $0x48] sm:$0xf]
  %v9361 = vld [vmem:[%s9341 + $0x4c] sm:$0xf]
  %v9362 = vld [vmem:[%s9341 + $0x50] sm:$0xf]
  %v9363 = vld [vmem:[%s9341 + $0x54] sm:$0xf]
  %v9364 = vld [vmem:[%s9341 + $0x58] sm:$0xf]
  %v9365 = vld [vmem:[%s9341 + $0x5c] sm:$0xf]
  %v9368 = vrot.slane %v9339, 4
  %v9369 = vrot.slane %v9340, 4
  %v9395 = vunpack.c.l.b16 %v9342
  %v9396 = vunpack.c.l.b16 %v9343
  %v9397 = vunpack.c.l.b16 %v9344
  %v9398 = vunpack.c.l.b16 %v9345
  %v9399 = vunpack.c.l.b16 %v9346
  %v9400 = vunpack.c.l.b16 %v9347
  %v9401 = vunpack.c.l.b16 %v9348
  %v9402 = vunpack.c.l.b16 %v9349
  %v9403 = vunpack.c.l.b16 %v9350
  %v9404 = vunpack.c.l.b16 %v9351
  %v9405 = vunpack.c.l.b16 %v9352
  %v9406 = vunpack.c.l.b16 %v9353
  %v9407 = vunpack.c.l.b16 %v9354
  %v9408 = vunpack.c.l.b16 %v9355
  %v9409 = vunpack.c.l.b16 %v9356
  %v9410 = vunpack.c.l.b16 %v9357
  %v9411 = vunpack.c.l.b16 %v9358
  %v9412 = vunpack.c.l.b16 %v9359
  %v9413 = vunpack.c.l.b16 %v9360
  %v9414 = vunpack.c.l.b16 %v9361
  %v9415 = vunpack.c.l.b16 %v9362
  %v9416 = vunpack.c.l.b16 %v9363
  %v9417 = vunpack.c.l.b16 %v9364
  %v9418 = vunpack.c.l.b16 %v9365
  %v9419 = vpack.c.b16 %v9396, %v9395
  %v9420 = vpack.c.b16 %v9398, %v9397
  %v9421 = vpack.c.b16 %v9400, %v9399
  %v9422 = vpack.c.b16 %v9402, %v9401
  %v9423 = vpack.c.b16 %v9404, %v9403
  %v9424 = vpack.c.b16 %v9406, %v9405
  %v9425 = vpack.c.b16 %v9408, %v9407
  %v9426 = vpack.c.b16 %v9410, %v9409
  %v9427 = vpack.c.b16 %v9412, %v9411
  %v9428 = vpack.c.b16 %v9414, %v9413
  %v9429 = vpack.c.b16 %v9416, %v9415
  %v9430 = vpack.c.b16 %v9418, %v9417
  %v9444 = vsel %vm9307, %v9369, 0
  %9446 = vmatprep.subr.bf16.mxu0 0
  %9447 = vmatpush1.bf16.msra.mxu0 %v9419
  %9448 = vmatprep.subr.bf16.mxu0 0
  %9449 = vmatpush1.bf16.msra.mxu0 %v9420
  %9450 = vmatprep.subr.bf16.mxu0 0
  %9451 = vmatpush1.bf16.msra.mxu0 %v9421
  %9452 = vmatprep.subr.bf16.mxu0 0
  %9453 = vmatpush1.bf16.msra.mxu0 %v9422
  %9454 = vmatprep.subr.bf16.mxu0 0
  %9455 = vmatpush1.bf16.msra.mxu0 %v9423
  %9456 = vmatprep.subr.bf16.mxu0 0
  %9457 = vmatpush1.bf16.msra.mxu0 %v9424
  %9458 = vmatprep.subr.bf16.mxu0 0
  %9459 = vmatpush1.bf16.msra.mxu0 %v9425
  %9460 = vmatprep.subr.bf16.mxu0 0
  %9461 = vmatpush1.bf16.msra.mxu0 %v9426
  %9462 = vmatprep.subr.bf16.mxu0 0
  %9463 = vmatpush1.bf16.msra.mxu0 %v9427
  %9464 = vmatprep.subr.bf16.mxu0 0
  %9465 = vmatpush1.bf16.msra.mxu0 %v9428
  %9466 = vmatprep.subr.bf16.mxu0 0
  %9467 = vmatpush1.bf16.msra.mxu0 %v9429
  %9468 = vmatprep.subr.bf16.mxu0 0
  %9469 = vmatpush1.bf16.msra.mxu0 %v9430
  %9470 = vmatprep.subr.bf16.mxu0 0
  %9471 = vmatpush1.bf16.msra.mxu0 0
  %9472 = vmatprep.subr.bf16.mxu0 0
  %9473 = vmatpush1.bf16.msra.mxu0 0
  %9474 = vmatprep.subr.bf16.mxu0 0
  %9475 = vmatpush1.bf16.msra.mxu0 0
  %9476 = vmatprep.subr.bf16.mxu0 0
  %9477 = vmatpush1.bf16.msra.mxu0 0
  %9478 = vmatprep.mubr.bf16.mxu0 %v9444
  %9479 = vmatmul.mubr.bf16.gmra.mrb[0].mxu0 %v9368
  %v9480 = vpop.f32.mrb[0].mxu0
  %v9481 = vadd.f32 0.0, %v9480
  %v9482 = vpop.f32.mrb[0].mxu0
  %v9483 = vpop.f32.mrb[0].mxu0
  %v9484 = vpop.f32.mrb[0].mxu0
  %9485 = vdwg.mxu0
  %v9510 = vunpack.c.l.b16 %v9315
  %v9511 = vunpack.c.l.b16 %v9316
  %v9512 = vunpack.c.l.b16 %v9317
  %v9513 = vunpack.c.l.b16 %v9318
  %v9514 = vunpack.c.l.b16 %v9319
  %v9515 = vunpack.c.l.b16 %v9320
  %v9516 = vunpack.c.l.b16 %v9321
  %v9517 = vunpack.c.l.b16 %v9322
  %v9518 = vunpack.c.l.b16 %v9323
  %v9519 = vunpack.c.l.b16 %v9324
  %v9520 = vunpack.c.l.b16 %v9325
  %v9521 = vunpack.c.l.b16 %v9326
  %v9522 = vunpack.c.l.b16 %v9327
  %v9523 = vunpack.c.l.b16 %v9328
  %v9524 = vunpack.c.l.b16 %v9329
  %v9525 = vunpack.c.l.b16 %v9330
  %v9526 = vunpack.c.l.b16 %v9331
  %v9527 = vunpack.c.l.b16 %v9332
  %v9528 = vunpack.c.l.b16 %v9333
  %v9529 = vunpack.c.l.b16 %v9334
  %v9530 = vunpack.c.l.b16 %v9335
  %v9531 = vunpack.c.l.b16 %v9336
  %v9532 = vunpack.c.l.b16 %v9337
  %v9533 = vunpack.c.l.b16 %v9338
  %v9534 = vpack.c.b16 %v9511, %v9510
  %v9535 = vpack.c.b16 %v9513, %v9512
  %v9536 = vpack.c.b16 %v9515, %v9514
  %v9537 = vpack.c.b16 %v9517, %v9516
  %v9538 = vpack.c.b16 %v9519, %v9518
  %v9539 = vpack.c.b16 %v9521, %v9520
  %v9540 = vpack.c.b16 %v9523, %v9522
  %v9541 = vpack.c.b16 %v9525, %v9524
  %v9542 = vpack.c.b16 %v9527, %v9526
  %v9543 = vpack.c.b16 %v9529, %v9528
  %v9544 = vpack.c.b16 %v9531, %v9530
  %v9545 = vpack.c.b16 %v9533, %v9532
  %v9559 = vsel %vm9307, %v9314, 0
  %9561 = vmatprep.subr.bf16.mxu0 0
  %9562 = vmatpush1.bf16.msra.mxu0 %v9534
  %9563 = vmatprep.subr.bf16.mxu0 0
  %9564 = vmatpush1.bf16.msra.mxu0 %v9535
  %9565 = vmatprep.subr.bf16.mxu0 0
  %9566 = vmatpush1.bf16.msra.mxu0 %v9536
  %9567 = vmatprep.subr.bf16.mxu0 0
  %9568 = vmatpush1.bf16.msra.mxu0 %v9537
  %9569 = vmatprep.subr.bf16.mxu0 0
  %9570 = vmatpush1.bf16.msra.mxu0 %v9538
  %9571 = vmatprep.subr.bf16.mxu0 0
  %9572 = vmatpush1.bf16.msra.mxu0 %v9539
  %9573 = vmatprep.subr.bf16.mxu0 0
  %9574 = vmatpush1.bf16.msra.mxu0 %v9540
  %9575 = vmatprep.subr.bf16.mxu0 0
  %9576 = vmatpush1.bf16.msra.mxu0 %v9541
  %9577 = vmatprep.subr.bf16.mxu0 0
  %9578 = vmatpush1.bf16.msra.mxu0 %v9542
  %9579 = vmatprep.subr.bf16.mxu0 0
  %9580 = vmatpush1.bf16.msra.mxu0 %v9543
  %9581 = vmatprep.subr.bf16.mxu0 0
  %9582 = vmatpush1.bf16.msra.mxu0 %v9544
  %9583 = vmatprep.subr.bf16.mxu0 0
  %9584 = vmatpush1.bf16.msra.mxu0 %v9545
  %9585 = vmatprep.subr.bf16.mxu0 0
  %9586 = vmatpush1.bf16.msra.mxu0 0
  %9587 = vmatprep.subr.bf16.mxu0 0
  %9588 = vmatpush1.bf16.msra.mxu0 0
  %9589 = vmatprep.subr.bf16.mxu0 0
  %9590 = vmatpush1.bf16.msra.mxu0 0
  %9591 = vmatprep.subr.bf16.mxu0 0
  %9592 = vmatpush1.bf16.msra.mxu0 0
  %9593 = vmatprep.mubr.bf16.mxu0 %v9559
  %9594 = vmatmul.mubr.bf16.gmra.mrb[0].mxu0 %v9313
  %v9595 = vpop.f32.mrb[0].mxu0
  %v9596 = vadd.f32 %v9481, %v9595
  %v9597 = vpop.f32.mrb[0].mxu0
  %v9598 = vpop.f32.mrb[0].mxu0
  %v9599 = vpop.f32.mrb[0].mxu0
  %9600 = vdwg.mxu0
  %v9601 = vld [vmem:[#allocation3 + $0x10] sm:$0xf]
  %v9602 = vld [vmem:[#allocation3 + $0x18] sm:$0xf]
  %s9603 = scalar_lea.vmem %s5, 192
  %v9604 = vld [vmem:[%s9603] sm:$0xf]
  %v9605 = vld [vmem:[%s9603 + $0x4] sm:$0xf]
  %v9606 = vld [vmem:[%s9603 + $0x8] sm:$0xf]
  %v9607 = vld [vmem:[%s9603 + $0xc] sm:$0xf]
  %v9608 = vld [vmem:[%s9603 + $0x10] sm:$0xf]
  %v9609 = vld [vmem:[%s9603 + $0x14] sm:$0xf]
  %v9610 = vld [vmem:[%s9603 + $0x18] sm:$0xf]
  %v9611 = vld [vmem:[%s9603 + $0x1c] sm:$0xf]
  %v9612 = vld [vmem:[%s9603 + $0x20] sm:$0xf]
  %v9613 = vld [vmem:[%s9603 + $0x24] sm:$0xf]
  %v9614 = vld [vmem:[%s9603 + $0x28] sm:$0xf]
  %v9615 = vld [vmem:[%s9603 + $0x2c] sm:$0xf]
  %v9616 = vld [vmem:[%s9603 + $0x30] sm:$0xf]
  %v9617 = vld [vmem:[%s9603 + $0x34] sm:$0xf]
  %v9618 = vld [vmem:[%s9603 + $0x38] sm:$0xf]
  %v9619 = vld [vmem:[%s9603 + $0x3c] sm:$0xf]
  %v9620 = vld [vmem:[%s9603 + $0x40] sm:$0xf]
  %v9621 = vld [vmem:[%s9603 + $0x44] sm:$0xf]
  %v9622 = vld [vmem:[%s9603 + $0x48] sm:$0xf]
  %v9623 = vld [vmem:[%s9603 + $0x4c] sm:$0xf]
  %v9624 = vld [vmem:[%s9603 + $0x50] sm:$0xf]
  %v9625 = vld [vmem:[%s9603 + $0x54] sm:$0xf]
  %v9626 = vld [vmem:[%s9603 + $0x58] sm:$0xf]
  %v9627 = vld [vmem:[%s9603 + $0x5c] sm:$0xf]
  %v9652 = vunpack.c.l.b16 %v9604
  %v9653 = vunpack.c.l.b16 %v9605
  %v9654 = vunpack.c.l.b16 %v9606
  %v9655 = vunpack.c.l.b16 %v9607
  %v9656 = vunpack.c.l.b16 %v9608
  %v9657 = vunpack.c.l.b16 %v9609
  %v9658 = vunpack.c.l.b16 %v9610
  %v9659 = vunpack.c.l.b16 %v9611
  %v9660 = vunpack.c.l.b16 %v9612
  %v9661 = vunpack.c.l.b16 %v9613
  %v9662 = vunpack.c.l.b16 %v9614
  %v9663 = vunpack.c.l.b16 %v9615
  %v9664 = vunpack.c.l.b16 %v9616
  %v9665 = vunpack.c.l.b16 %v9617
  %v9666 = vunpack.c.l.b16 %v9618
  %v9667 = vunpack.c.l.b16 %v9619
  %v9668 = vunpack.c.l.b16 %v9620
  %v9669 = vunpack.c.l.b16 %v9621
  %v9670 = vunpack.c.l.b16 %v9622
  %v9671 = vunpack.c.l.b16 %v9623
  %v9672 = vunpack.c.l.b16 %v9624
  %v9673 = vunpack.c.l.b16 %v9625
  %v9674 = vunpack.c.l.b16 %v9626
  %v9675 = vunpack.c.l.b16 %v9627
  %v9676 = vpack.c.b16 %v9653, %v9652
  %v9677 = vpack.c.b16 %v9655, %v9654
  %v9678 = vpack.c.b16 %v9657, %v9656
  %v9679 = vpack.c.b16 %v9659, %v9658
  %v9680 = vpack.c.b16 %v9661, %v9660
  %v9681 = vpack.c.b16 %v9663, %v9662
  %v9682 = vpack.c.b16 %v9665, %v9664
  %v9683 = vpack.c.b16 %v9667, %v9666
  %v9684 = vpack.c.b16 %v9669, %v9668
  %v9685 = vpack.c.b16 %v9671, %v9670
  %v9686 = vpack.c.b16 %v9673, %v9672
  %v9687 = vpack.c.b16 %v9675, %v9674
  %v9701 = vsel %vm9307, %v9602, 0
  %9703 = vmatprep.subr.bf16.mxu0 0
  %9704 = vmatpush1.bf16.msra.mxu0 %v9676
  %9705 = vmatprep.subr.bf16.mxu0 0
  %9706 = vmatpush1.bf16.msra.mxu0 %v9677
  %9707 = vmatprep.subr.bf16.mxu0 0
  %9708 = vmatpush1.bf16.msra.mxu0 %v9678
  %9709 = vmatprep.subr.bf16.mxu0 0
  %9710 = vmatpush1.bf16.msra.mxu0 %v9679
  %9711 = vmatprep.subr.bf16.mxu0 0
  %9712 = vmatpush1.bf16.msra.mxu0 %v9680
  %9713 = vmatprep.subr.bf16.mxu0 0
  %9714 = vmatpush1.bf16.msra.mxu0 %v9681
  %9715 = vmatprep.subr.bf16.mxu0 0
  %9716 = vmatpush1.bf16.msra.mxu0 %v9682
  %9717 = vmatprep.subr.bf16.mxu0 0
  %9718 = vmatpush1.bf16.msra.mxu0 %v9683
  %9719 = vmatprep.subr.bf16.mxu0 0
  %9720 = vmatpush1.bf16.msra.mxu0 %v9684
  %9721 = vmatprep.subr.bf16.mxu0 0
  %9722 = vmatpush1.bf16.msra.mxu0 %v9685
  %9723 = vmatprep.subr.bf16.mxu0 0
  %9724 = vmatpush1.bf16.msra.mxu0 %v9686
  %9725 = vmatprep.subr.bf16.mxu0 0
  %9726 = vmatpush1.bf16.msra.mxu0 %v9687
  %9727 = vmatprep.subr.bf16.mxu0 0
  %9728 = vmatpush1.bf16.msra.mxu0 0
  %9729 = vmatprep.subr.bf16.mxu0 0
  %9730 = vmatpush1.bf16.msra.mxu0 0
  %9731 = vmatprep.subr.bf16.mxu0 0
  %9732 = vmatpush1.bf16.msra.mxu0 0
  %9733 = vmatprep.subr.bf16.mxu0 0
  %9734 = vmatpush1.bf16.msra.mxu0 0
  %9735 = vmatprep.mubr.bf16.mxu0 %v9701
  %9736 = vmatmul.mubr.bf16.gmra.mrb[0].mxu0 %v9601
  %v9737 = vpop.f32.mrb[0].mxu0
  %v9738 = vadd.f32 0.0, %v9737
  %v9739 = vpop.f32.mrb[0].mxu0
  %v9740 = vpop.f32.mrb[0].mxu0
  %v9741 = vpop.f32.mrb[0].mxu0
  %9742 = vdwg.mxu0
  %v9743 = vadd.f32 %v9596, %v9738
  %v9744 = vld [vmem:[#allocation3 + $0x10] sm:$0xf0]
  %v9745 = vld [vmem:[#allocation3 + $0x18] sm:$0xf0]
  %s9746 = scalar_lea.vmem %s5, 288
  %v9747 = vld [vmem:[%s9746] sm:$0xf]
  %v9748 = vld [vmem:[%s9746 + $0x4] sm:$0xf]
  %v9749 = vld [vmem:[%s9746 + $0x8] sm:$0xf]
  %v9750 = vld [vmem:[%s9746 + $0xc] sm:$0xf]
  %v9751 = vld [vmem:[%s9746 + $0x10] sm:$0xf]
  %v9752 = vld [vmem:[%s9746 + $0x14] sm:$0xf]
  %v9753 = vld [vmem:[%s9746 + $0x18] sm:$0xf]
  %v9754 = vld [vmem:[%s9746 + $0x1c] sm:$0xf]
  %v9755 = vld [vmem:[%s9746 + $0x20] sm:$0xf]
  %v9756 = vld [vmem:[%s9746 + $0x24] sm:$0xf]
  %v9757 = vld [vmem:[%s9746 + $0x28] sm:$0xf]
  %v9758 = vld [vmem:[%s9746 + $0x2c] sm:$0xf]
  %v9759 = vld [vmem:[%s9746 + $0x30] sm:$0xf]
  %v9760 = vld [vmem:[%s9746 + $0x34] sm:$0xf]
  %v9761 = vld [vmem:[%s9746 + $0x38] sm:$0xf]
  %v9762 = vld [vmem:[%s9746 + $0x3c] sm:$0xf]
  %v9763 = vld [vmem:[%s9746 + $0x40] sm:$0xf]
  %v9764 = vld [vmem:[%s9746 + $0x44] sm:$0xf]
  %v9765 = vld [vmem:[%s9746 + $0x48] sm:$0xf]
  %v9766 = vld [vmem:[%s9746 + $0x4c] sm:$0xf]
  %v9767 = vld [vmem:[%s9746 + $0x50] sm:$0xf]
  %v9768 = vld [vmem:[%s9746 + $0x54] sm:$0xf]
  %v9769 = vld [vmem:[%s9746 + $0x58] sm:$0xf]
  %v9770 = vld [vmem:[%s9746 + $0x5c] sm:$0xf]
  %v9773 = vrot.slane %v9744, 4
  %v9774 = vrot.slane %v9745, 4
  %v9800 = vunpack.c.l.b16 %v9747
  %v9801 = vunpack.c.l.b16 %v9748
  %v9802 = vunpack.c.l.b16 %v9749
  %v9803 = vunpack.c.l.b16 %v9750
  %v9804 = vunpack.c.l.b16 %v9751
  %v9805 = vunpack.c.l.b16 %v9752
  %v9806 = vunpack.c.l.b16 %v9753
  %v9807 = vunpack.c.l.b16 %v9754
  %v9808 = vunpack.c.l.b16 %v9755
  %v9809 = vunpack.c.l.b16 %v9756
  %v9810 = vunpack.c.l.b16 %v9757
  %v9811 = vunpack.c.l.b16 %v9758
  %v9812 = vunpack.c.l.b16 %v9759
  %v9813 = vunpack.c.l.b16 %v9760
  %v9814 = vunpack.c.l.b16 %v9761
  %v9815 = vunpack.c.l.b16 %v9762
  %v9816 = vunpack.c.l.b16 %v9763
  %v9817 = vunpack.c.l.b16 %v9764
  %v9818 = vunpack.c.l.b16 %v9765
  %v9819 = vunpack.c.l.b16 %v9766
  %v9820 = vunpack.c.l.b16 %v9767
  %v9821 = vunpack.c.l.b16 %v9768
  %v9822 = vunpack.c.l.b16 %v9769
  %v9823 = vunpack.c.l.b16 %v9770
  %v9824 = vpack.c.b16 %v9801, %v9800
  %v9825 = vpack.c.b16 %v9803, %v9802
  %v9826 = vpack.c.b16 %v9805, %v9804
  %v9827 = vpack.c.b16 %v9807, %v9806
  %v9828 = vpack.c.b16 %v9809, %v9808
  %v9829 = vpack.c.b16 %v9811, %v9810
  %v9830 = vpack.c.b16 %v9813, %v9812
  %v9831 = vpack.c.b16 %v9815, %v9814
  %v9832 = vpack.c.b16 %v9817, %v9816
  %v9833 = vpack.c.b16 %v9819, %v9818
  %v9834 = vpack.c.b16 %v9821, %v9820
  %v9835 = vpack.c.b16 %v9823, %v9822
  %v9849 = vsel %vm9307, %v9774, 0
  %9851 = vmatprep.subr.bf16.mxu0 0
  %9852 = vmatpush1.bf16.msra.mxu0 %v9824
  %9853 = vmatprep.subr.bf16.mxu0 0
  %9854 = vmatpush1.bf16.msra.mxu0 %v9825
  %9855 = vmatprep.subr.bf16.mxu0 0
  %9856 = vmatpush1.bf16.msra.mxu0 %v9826
  %9857 = vmatprep.subr.bf16.mxu0 0
  %9858 = vmatpush1.bf16.msra.mxu0 %v9827
  %9859 = vmatprep.subr.bf16.mxu0 0
  %9860 = vmatpush1.bf16.msra.mxu0 %v9828
  %9861 = vmatprep.subr.bf16.mxu0 0
  %9862 = vmatpush1.bf16.msra.mxu0 %v9829
  %9863 = vmatprep.subr.bf16.mxu0 0
  %9864 = vmatpush1.bf16.msra.mxu0 %v9830
  %9865 = vmatprep.subr.bf16.mxu0 0
  %9866 = vmatpush1.bf16.msra.mxu0 %v9831
  %9867 = vmatprep.subr.bf16.mxu0 0
  %9868 = vmatpush1.bf16.msra.mxu0 %v9832
  %9869 = vmatprep.subr.bf16.mxu0 0
  %9870 = vmatpush1.bf16.msra.mxu0 %v9833
  %9871 = vmatprep.subr.bf16.mxu0 0
  %9872 = vmatpush1.bf16.msra.mxu0 %v9834
  %9873 = vmatprep.subr.bf16.mxu0 0
  %9874 = vmatpush1.bf16.msra.mxu0 %v9835
  %9875 = vmatprep.subr.bf16.mxu0 0
  %9876 = vmatpush1.bf16.msra.mxu0 0
  %9877 = vmatprep.subr.bf16.mxu0 0
  %9878 = vmatpush1.bf16.msra.mxu0 0
  %9879 = vmatprep.subr.bf16.mxu0 0
  %9880 = vmatpush1.bf16.msra.mxu0 0
  %9881 = vmatprep.subr.bf16.mxu0 0
  %9882 = vmatpush1.bf16.msra.mxu0 0
  %9883 = vmatprep.mubr.bf16.mxu0 %v9849
  %9884 = vmatmul.mubr.bf16.gmra.mrb[0].mxu0 %v9773
  %v9885 = vpop.f32.mrb[0].mxu0
  %v9886 = vadd.f32 0.0, %v9885
  %v9887 = vpop.f32.mrb[0].mxu0
  %v9888 = vpop.f32.mrb[0].mxu0
  %v9889 = vpop.f32.mrb[0].mxu0
  %9890 = vdwg.mxu0
  %v9891 = vadd.f32 %v9743, %v9886
  %v9892 = vld [vmem:[#allocation3 + $0x20] sm:$0xf]
  %v9893 = vld [vmem:[#allocation3 + $0x28] sm:$0xf]
  %s9894 = scalar_lea.vmem %s5, 384
  %v9895 = vld [vmem:[%s9894] sm:$0xf]
  %v9896 = vld [vmem:[%s9894 + $0x4] sm:$0xf]
  %v9897 = vld [vmem:[%s9894 + $0x8] sm:$0xf]
  %v9898 = vld [vmem:[%s9894 + $0xc] sm:$0xf]
  %v9899 = vld [vmem:[%s9894 + $0x10] sm:$0xf]
  %v9900 = vld [vmem:[%s9894 + $0x14] sm:$0xf]
  %v9901 = vld [vmem:[%s9894 + $0x18] sm:$0xf]
  %v9902 = vld [vmem:[%s9894 + $0x1c] sm:$0xf]
  %v9903 = vld [vmem:[%s9894 + $0x20] sm:$0xf]
  %v9904 = vld [vmem:[%s9894 + $0x24] sm:$0xf]
  %v9905 = vld [vmem:[%s9894 + $0x28] sm:$0xf]
  %v9906 = vld [vmem:[%s9894 + $0x2c] sm:$0xf]
  %v9907 = vld [vmem:[%s9894 + $0x30] sm:$0xf]
  %v9908 = vld [vmem:[%s9894 + $0x34] sm:$0xf]
  %v9909 = vld [vmem:[%s9894 + $0x38] sm:$0xf]
  %v9910 = vld [vmem:[%s9894 + $0x3c] sm:$0xf]
  %v9911 = vld [vmem:[%s9894 + $0x40] sm:$0xf]
  %v9912 = vld [vmem:[%s9894 + $0x44] sm:$0xf]
  %v9913 = vld [vmem:[%s9894 + $0x48] sm:$0xf]
  %v9914 = vld [vmem:[%s9894 + $0x4c] sm:$0xf]
  %v9915 = vld [vmem:[%s9894 + $0x50] sm:$0xf]
  %v9916 = vld [vmem:[%s9894 + $0x54] sm:$0xf]
  %v9917 = vld [vmem:[%s9894 + $0x58] sm:$0xf]
  %v9918 = vld [vmem:[%s9894 + $0x5c] sm:$0xf]
  %v9943 = vunpack.c.l.b16 %v9895
  %v9944 = vunpack.c.l.b16 %v9896
  %v9945 = vunpack.c.l.b16 %v9897
  %v9946 = vunpack.c.l.b16 %v9898
  %v9947 = vunpack.c.l.b16 %v9899
  %v9948 = vunpack.c.l.b16 %v9900
  %v9949 = vunpack.c.l.b16 %v9901
  %v9950 = vunpack.c.l.b16 %v9902
  %v9951 = vunpack.c.l.b16 %v9903
  %v9952 = vunpack.c.l.b16 %v9904
  %v9953 = vunpack.c.l.b16 %v9905
  %v9954 = vunpack.c.l.b16 %v9906
  %v9955 = vunpack.c.l.b16 %v9907
  %v9956 = vunpack.c.l.b16 %v9908
  %v9957 = vunpack.c.l.b16 %v9909
  %v9958 = vunpack.c.l.b16 %v9910
  %v9959 = vunpack.c.l.b16 %v9911
  %v9960 = vunpack.c.l.b16 %v9912
  %v9961 = vunpack.c.l.b16 %v9913
  %v9962 = vunpack.c.l.b16 %v9914
  %v9963 = vunpack.c.l.b16 %v9915
  %v9964 = vunpack.c.l.b16 %v9916
  %v9965 = vunpack.c.l.b16 %v9917
  %v9966 = vunpack.c.l.b16 %v9918
  %v9967 = vpack.c.b16 %v9944, %v9943
  %v9968 = vpack.c.b16 %v9946, %v9945
  %v9969 = vpack.c.b16 %v9948, %v9947
  %v9970 = vpack.c.b16 %v9950, %v9949
  %v9971 = vpack.c.b16 %v9952, %v9951
  %v9972 = vpack.c.b16 %v9954, %v9953
  %v9973 = vpack.c.b16 %v9956, %v9955
  %v9974 = vpack.c.b16 %v9958, %v9957
  %v9975 = vpack.c.b16 %v9960, %v9959
  %v9976 = vpack.c.b16 %v9962, %v9961
  %v9977 = vpack.c.b16 %v9964, %v9963
  %v9978 = vpack.c.b16 %v9966, %v9965
  %v9992 = vsel %vm9307, %v9893, 0
  %9994 = vmatprep.subr.bf16.mxu0 0
  %9995 = vmatpush1.bf16.msra.mxu0 %v9967
  %9996 = vmatprep.subr.bf16.mxu0 0
  %9997 = vmatpush1.bf16.msra.mxu0 %v9968
  %9998 = vmatprep.subr.bf16.mxu0 0
  %9999 = vmatpush1.bf16.msra.mxu0 %v9969
  %10000 = vmatprep.subr.bf16.mxu0 0
  %10001 = vmatpush1.bf16.msra.mxu0 %v9970
  %10002 = vmatprep.subr.bf16.mxu0 0
  %10003 = vmatpush1.bf16.msra.mxu0 %v9971
  %10004 = vmatprep.subr.bf16.mxu0 0
  %10005 = vmatpush1.bf16.msra.mxu0 %v9972
  %10006 = vmatprep.subr.bf16.mxu0 0
  %10007 = vmatpush1.bf16.msra.mxu0 %v9973
  %10008 = vmatprep.subr.bf16.mxu0 0
  %10009 = vmatpush1.bf16.msra.mxu0 %v9974
  %10010 = vmatprep.subr.bf16.mxu0 0
  %10011 = vmatpush1.bf16.msra.mxu0 %v9975
  %10012 = vmatprep.subr.bf16.mxu0 0
  %10013 = vmatpush1.bf16.msra.mxu0 %v9976
  %10014 = vmatprep.subr.bf16.mxu0 0
  %10015 = vmatpush1.bf16.msra.mxu0 %v9977
  %10016 = vmatprep.subr.bf16.mxu0 0
  %10017 = vmatpush1.bf16.msra.mxu0 %v9978
  %10018 = vmatprep.subr.bf16.mxu0 0
  %10019 = vmatpush1.bf16.msra.mxu0 0
  %10020 = vmatprep.subr.bf16.mxu0 0
  %10021 = vmatpush1.bf16.msra.mxu0 0
  %10022 = vmatprep.subr.bf16.mxu0 0
  %10023 = vmatpush1.bf16.msra.mxu0 0
  %10024 = vmatprep.subr.bf16.mxu0 0
  %10025 = vmatpush1.bf16.msra.mxu0 0
  %10026 = vmatprep.mubr.bf16.mxu0 %v9992
  %10027 = vmatmul.mubr.bf16.gmra.mrb[0].mxu0 %v9892
  %v10028 = vpop.f32.mrb[0].mxu0
  %v10029 = vadd.f32 0.0, %v10028
  %v10030 = vpop.f32.mrb[0].mxu0
  %v10031 = vpop.f32.mrb[0].mxu0
  %v10032 = vpop.f32.mrb[0].mxu0
  %10033 = vdwg.mxu0
  %v10034 = vadd.f32 %v9891, %v10029
  %v10035 = vld [vmem:[#allocation3 + $0x20] sm:$0xf0]
  %v10036 = vld [vmem:[#allocation3 + $0x28] sm:$0xf0]
  %s10037 = scalar_lea.vmem %s5, 480
  %v10038 = vld [vmem:[%s10037] sm:$0xf]
  %v10039 = vld [vmem:[%s10037 + $0x4] sm:$0xf]
  %v10040 = vld [vmem:[%s10037 + $0x8] sm:$0xf]
  %v10041 = vld [vmem:[%s10037 + $0xc] sm:$0xf]
  %v10042 = vld [vmem:[%s10037 + $0x10] sm:$0xf]
  %v10043 = vld [vmem:[%s10037 + $0x14] sm:$0xf]
  %v10044 = vld [vmem:[%s10037 + $0x18] sm:$0xf]
  %v10045 = vld [vmem:[%s10037 + $0x1c] sm:$0xf]
  %v10046 = vld [vmem:[%s10037 + $0x20] sm:$0xf]
  %v10047 = vld [vmem:[%s10037 + $0x24] sm:$0xf]
  %v10048 = vld [vmem:[%s10037 + $0x28] sm:$0xf]
  %v10049 = vld [vmem:[%s10037 + $0x2c] sm:$0xf]
  %v10050 = vld [vmem:[%s10037 + $0x30] sm:$0xf]
  %v10051 = vld [vmem:[%s10037 + $0x34] sm:$0xf]
  %v10052 = vld [vmem:[%s10037 + $0x38] sm:$0xf]
  %v10053 = vld [vmem:[%s10037 + $0x3c] sm:$0xf]
  %v10054 = vld [vmem:[%s10037 + $0x40] sm:$0xf]
  %v10055 = vld [vmem:[%s10037 + $0x44] sm:$0xf]
  %v10056 = vld [vmem:[%s10037 + $0x48] sm:$0xf]
  %v10057 = vld [vmem:[%s10037 + $0x4c] sm:$0xf]
  %v10058 = vld [vmem:[%s10037 + $0x50] sm:$0xf]
  %v10059 = vld [vmem:[%s10037 + $0x54] sm:$0xf]
  %v10060 = vld [vmem:[%s10037 + $0x58] sm:$0xf]
  %v10061 = vld [vmem:[%s10037 + $0x5c] sm:$0xf]
  %v10064 = vrot.slane %v10035, 4
  %v10065 = vrot.slane %v10036, 4
  %v10091 = vunpack.c.l.b16 %v10038
  %v10092 = vunpack.c.l.b16 %v10039
  %v10093 = vunpack.c.l.b16 %v10040
  %v10094 = vunpack.c.l.b16 %v10041
  %v10095 = vunpack.c.l.b16 %v10042
  %v10096 = vunpack.c.l.b16 %v10043
  %v10097 = vunpack.c.l.b16 %v10044
  %v10098 = vunpack.c.l.b16 %v10045
  %v10099 = vunpack.c.l.b16 %v10046
  %v10100 = vunpack.c.l.b16 %v10047
  %v10101 = vunpack.c.l.b16 %v10048
  %v10102 = vunpack.c.l.b16 %v10049
  %v10103 = vunpack.c.l.b16 %v10050
  %v10104 = vunpack.c.l.b16 %v10051
  %v10105 = vunpack.c.l.b16 %v10052
  %v10106 = vunpack.c.l.b16 %v10053
  %v10107 = vunpack.c.l.b16 %v10054
  %v10108 = vunpack.c.l.b16 %v10055
  %v10109 = vunpack.c.l.b16 %v10056
  %v10110 = vunpack.c.l.b16 %v10057
  %v10111 = vunpack.c.l.b16 %v10058
  %v10112 = vunpack.c.l.b16 %v10059
  %v10113 = vunpack.c.l.b16 %v10060
  %v10114 = vunpack.c.l.b16 %v10061
  %v10115 = vpack.c.b16 %v10092, %v10091
  %v10116 = vpack.c.b16 %v10094, %v10093
  %v10117 = vpack.c.b16 %v10096, %v10095
  %v10118 = vpack.c.b16 %v10098, %v10097
  %v10119 = vpack.c.b16 %v10100, %v10099
  %v10120 = vpack.c.b16 %v10102, %v10101
  %v10121 = vpack.c.b16 %v10104, %v10103
  %v10122 = vpack.c.b16 %v10106, %v10105
  %v10123 = vpack.c.b16 %v10108, %v10107
  %v10124 = vpack.c.b16 %v10110, %v10109
  %v10125 = vpack.c.b16 %v10112, %v10111
  %v10126 = vpack.c.b16 %v10114, %v10113
  %v10140 = vsel %vm9307, %v10065, 0
  %10142 = vmatprep.subr.bf16.mxu0 0
  %10143 = vmatpush1.bf16.msra.mxu0 %v10115
  %10144 = vmatprep.subr.bf16.mxu0 0
  %10145 = vmatpush1.bf16.msra.mxu0 %v10116
  %10146 = vmatprep.subr.bf16.mxu0 0
  %10147 = vmatpush1.bf16.msra.mxu0 %v10117
  %10148 = vmatprep.subr.bf16.mxu0 0
  %10149 = vmatpush1.bf16.msra.mxu0 %v10118
  %10150 = vmatprep.subr.bf16.mxu0 0
  %10151 = vmatpush1.bf16.msra.mxu0 %v10119
  %10152 = vmatprep.subr.bf16.mxu0 0
  %10153 = vmatpush1.bf16.msra.mxu0 %v10120
  %10154 = vmatprep.subr.bf16.mxu0 0
  %10155 = vmatpush1.bf16.msra.mxu0 %v10121
  %10156 = vmatprep.subr.bf16.mxu0 0
  %10157 = vmatpush1.bf16.msra.mxu0 %v10122
  %10158 = vmatprep.subr.bf16.mxu0 0
  %10159 = vmatpush1.bf16.msra.mxu0 %v10123
  %10160 = vmatprep.subr.bf16.mxu0 0
  %10161 = vmatpush1.bf16.msra.mxu0 %v10124
  %10162 = vmatprep.subr.bf16.mxu0 0
  %10163 = vmatpush1.bf16.msra.mxu0 %v10125
  %10164 = vmatprep.subr.bf16.mxu0 0
  %10165 = vmatpush1.bf16.msra.mxu0 %v10126
  %10166 = vmatprep.subr.bf16.mxu0 0
  %10167 = vmatpush1.bf16.msra.mxu0 0
  %10168 = vmatprep.subr.bf16.mxu0 0
  %10169 = vmatpush1.bf16.msra.mxu0 0
  %10170 = vmatprep.subr.bf16.mxu0 0
  %10171 = vmatpush1.bf16.msra.mxu0 0
  %10172 = vmatprep.subr.bf16.mxu0 0
  %10173 = vmatpush1.bf16.msra.mxu0 0
  %10174 = vmatprep.mubr.bf16.mxu0 %v10140
  %10175 = vmatmul.mubr.bf16.gmra.mrb[0].mxu0 %v10064
  %v10176 = vpop.f32.mrb[0].mxu0
  %v10177 = vadd.f32 0.0, %v10176
  %v10178 = vpop.f32.mrb[0].mxu0
  %v10179 = vpop.f32.mrb[0].mxu0
  %v10180 = vpop.f32.mrb[0].mxu0
  %10181 = vdwg.mxu0
  %v10182 = vadd.f32 %v10034, %v10177
  %v10183 = vld [vmem:[%s6] sm:$0x1]
  %v10185 = vlaneseq
  %v10186 = vshrl.u32 %v10185, 7
  %v10187 = vsub.s32 0, %v10186
  %v10188 = vrot.slane %v10183, %v10187
  %v10190 = vadd.f32 %v10182, %v10188
  %vm10191 = vcmask 80896
  %10192 = vst.msk [vmem:[%s7] sm:$0xff] %vm10191, %v10190
  // Predicated region
  $region30: #{fused_forward.1} parent=0 // pred_check
    _
  $region31: #{fused_forward.1} parent=0 // pred_check_branch
    %10194 = sbr.rel (0) target = $region33
  $region32: #{fused_forward.1} parent=0 // pred_region
    _
  $region33: #{fused_forward.1} parent=0 // pred_fallthru
    _
  // Predicated region
  $region34: #{fused_forward.1} parent=0 // pred_check
    _
  $region35: #{fused_forward.1} parent=0 // pred_check_branch
    %10196 = sbr.rel (0) target = $region37
  $region36: #{fused_forward.1} parent=0 // pred_region
    _
  $region37: #{fused_forward.1} parent=0 // pred_fallthru
    _

</llo_original>
